<compile_context>
chip_gen: v5e
topology: v5e:2x2
jax: 0.10.0
libtpu: 0.0.40
codegen_flags: <defaults>
</compile_context>

<pallas_src>
import math

import jax
import jax.numpy as jnp
from jax.experimental import pallas as pl
from jax.experimental.pallas import tpu as pltpu

# ----------------------------- configuration -------------------------------
IMG_SIZE = 32               # input image spatial size
PATCH = 4                   # patch-embed kernel/stride
GRID = IMG_SIZE // PATCH    # 8x8 image-embedding grid
HW = GRID * GRID            # 64 spatial positions
EMBED_DIM = 32              # C
NUM_HEADS = 2
DEPTH = 2                   # two-way transformer depth
MLP_DIM = 64
NUM_MASK_TOKENS = 4         # num_multimask_outputs (3) + 1
IOU_HIDDEN = 32
UP1_C = EMBED_DIM // 4      # 8
UP2_C = EMBED_DIM // 8      # 4
NUM_GROUPS = 16             # (2x2) x (2x2) sub-pixel offsets of the 2 convT's
SLAB_W = 128                # lane width of the packed weight/bias slabs


# -------------------------- in-kernel math helpers --------------------------
def _mm(a, b):
    """MXU matmul: bf16 inputs, f32 accumulate (astype is a no-op if already bf16)."""
    return jnp.dot(a.astype(jnp.bfloat16), b.astype(jnp.bfloat16),
                   preferred_element_type=jnp.float32)


def _mm_nt(a, b):
    """a @ b.T without an explicit transpose (contract last dims)."""
    return jax.lax.dot_general(
        a.astype(jnp.bfloat16), b.astype(jnp.bfloat16),
        dimension_numbers=(((1,), (1,)), ((), ())),
        preferred_element_type=jnp.float32)


def _ln(x, g, b, eps):
    mu = jnp.mean(x, axis=-1, keepdims=True)
    xc = x - mu
    var = jnp.mean(xc * xc, axis=-1, keepdims=True)
    return xc * jax.lax.rsqrt(var + eps) * g + b


def _softmax(s):
    s = s - jnp.max(s, axis=-1, keepdims=True)
    p = jnp.exp(s)
    return p * pl.reciprocal(jnp.sum(p, axis=-1, keepdims=True), approx=True)


def _gelu(x):
    # tanh-approximation GELU (exact erf not guaranteed to lower in Mosaic).
    c = math.sqrt(2.0 / math.pi)
    return 0.5 * x * (1.0 + jnp.tanh(c * (x + 0.044715 * x * x * x)))


def _slab_getter(ref, offsets):
    """Static-offset slices into a packed (rows, 128) slab ref."""
    def get(name):
        off, r, c = offsets[name]
        return ref[off:off + r, 0:c]
    return get


def _attend(xq, xk, xv, W, Bv, prefix):
    """SAM Attention. Q weights/bias are pre-scaled by 1/sqrt(dh) at prep time."""
    wqkv = W(prefix + '.wqkv')          # (C, 3*internal) bf16
    bqkv = Bv(prefix + '.bqkv')         # (1, 3*internal) f32
    wo = W(prefix + '.wo')              # (internal, C)
    bo = Bv(prefix + '.bo')             # (1, C)
    internal = wo.shape[0]
    dh = internal // NUM_HEADS

    if xq is xk and xk is xv:
        qkv = _mm(xq, wqkv) + bqkv                       # one MXU push
        q = qkv[:, 0 * internal:1 * internal]
        k = qkv[:, 1 * internal:2 * internal]
        v = qkv[:, 2 * internal:3 * internal]
    elif xq is xk:
        qk = _mm(xq, wqkv[:, :2 * internal]) + bqkv[:, :2 * internal]
        q = qk[:, :internal]
        k = qk[:, internal:]
        v = _mm(xv, wqkv[:, 2 * internal:]) + bqkv[:, 2 * internal:]
    else:
        q = _mm(xq, wqkv[:, 0 * internal:1 * internal]) + bqkv[:, 0 * internal:1 * internal]
        k = _mm(xk, wqkv[:, 1 * internal:2 * internal]) + bqkv[:, 1 * internal:2 * internal]
        v = _mm(xv, wqkv[:, 2 * internal:3 * internal]) + bqkv[:, 2 * internal:3 * internal]

    heads = []
    for h in range(NUM_HEADS):
        sl = slice(h * dh, (h + 1) * dh)
        s = _mm_nt(q[:, sl], k[:, sl])                   # (Lq, Lk)
        p = _softmax(s)
        heads.append(_mm(p, v[:, sl]))                   # (Lq, dh)
    o = heads[0] if NUM_HEADS == 1 else jnp.concatenate(heads, axis=-1)
    return _mm(o, wo) + bo                               # single out-proj matmul


def _two_way_block(W, Bv, p, queries, keys, query_pe, key_pe, skip_pe):
    if skip_pe:
        queries = _attend(queries, queries, queries, W, Bv, p + '.self')
    else:
        q = queries + query_pe
        queries = queries + _attend(q, q, queries, W, Bv, p + '.self')
    queries = _ln(queries, Bv(p + '.n1.g'), Bv(p + '.n1.b'), 1e-5)

    q = queries + query_pe
    k = keys + key_pe
    queries = queries + _attend(q, k, keys, W, Bv, p + '.t2i')
    queries = _ln(queries, Bv(p + '.n2.g'), Bv(p + '.n2.b'), 1e-5)

    h = jnp.maximum(_mm(queries, W(p + '.mlp1')) + Bv(p + '.mlpb1'), 0.0)
    h = _mm(h, W(p + '.mlp2')) + Bv(p + '.mlpb2')
    queries = _ln(queries + h, Bv(p + '.n3.g'), Bv(p + '.n3.b'), 1e-5)

    q = queries + query_pe
    k = keys + key_pe
    keys = keys + _attend(k, q, queries, W, Bv, p + '.i2t')
    keys = _ln(keys, Bv(p + '.n4.g'), Bv(p + '.n4.b'), 1e-5)
    return queries, keys


# ------------------------------ kernel bodies --------------------------------
def _encoder_body(patches, W, Bv):
    """Patch-embed (4x4 stride-4 conv as matmul) -> ViT block -> neck."""
    x = _mm(patches, W('enc.pw')) + Bv('enc.pb')                    # (HW, C)
    x = x + Bv('enc.pos')

    h = _ln(x, Bv('enc.ln1.g'), Bv('enc.ln1.b'), 1e-5)
    x = x + _attend(h, h, h, W, Bv, 'enc.attn')
    h = _ln(x, Bv('enc.ln2.g'), Bv('enc.ln2.b'), 1e-5)
    h = _gelu(_mm(h, W('enc.m1')) + Bv('enc.m1b'))
    h = _mm(h, W('enc.m2')) + Bv('enc.m2b')
    x = x + h

    x = _mm(x, W('enc.neck')) + Bv('enc.neckb')
    x = _ln(x, Bv('enc.nln.g'), Bv('enc.nln.b'), 1e-6)              # LayerNorm2d
    return x


def _decoder_body(img, tokens, W, Bv):
    keys = img + Bv('dec.no_mask')                                  # + dense prompt
    key_pe = Bv('dec.key_pe')
    queries = tokens                                                # (7, C)
    query_pe = tokens

    # two-way transformer
    for li in range(DEPTH):
        queries, keys = _two_way_block(W, Bv, 'dec.l%d' % li, queries, keys,
                                       query_pe, key_pe, skip_pe=(li == 0))
    q = queries + query_pe
    k = keys + key_pe
    queries = queries + _attend(q, k, keys, W, Bv, 'dec.final')
    queries = _ln(queries, Bv('dec.nf.g'), Bv('dec.nf.b'), 1e-5)

    iou_tok = queries[0:1, :]                                       # (1, C)
    mask_toks = queries[1:1 + NUM_MASK_TOKENS, :]                   # (4, C)

    # hypernetwork MLPs: all 4 token MLPs as 3 matmuls (block-diag packing)
    h0 = jnp.maximum(_mm(mask_toks, W('dec.hyp.w0')) + Bv('dec.hyp.b0'), 0.0)   # (4,128)
    h1 = jnp.maximum(_mm(h0, W('dec.hyp.w1bd')) + Bv('dec.hyp.b1'), 0.0)        # (4,128)
    hyper_in = (_mm(h1 * Bv('dec.hyp.blockmask'), W('dec.hyp.w2cat'))
                + Bv('dec.hyp.b2rows'))                                         # (4, 4)

    # IoU prediction head (3-layer MLP, ReLU)
    hi = jnp.maximum(_mm(iou_tok, W('dec.iou.w0')) + Bv('dec.iou.b0'), 0.0)
    hi = jnp.maximum(_mm(hi, W('dec.iou.w1')) + Bv('dec.iou.b1'), 0.0)
    iou = _mm(hi, W('dec.iou.w2')) + Bv('dec.iou.b2')                           # (1, 4)

    # output upscaling: two stride-2 ConvTranspose2d as grouped matmuls.
    # y1 columns are (off0, c1); group-wise LayerNorm2d via a precomputed
    # group-averaging matrix (no in-kernel reshape); second stage is ONE
    # matmul against a block-diagonal (32, 64) weight -> y2 columns (g, c2).
    y1 = _mm(keys, W('dec.w1g')) + Bv('dec.b1t')                    # (HW, 32)
    gm = Bv('dec.gmat')                                             # (32, 32) f32
    mu = jnp.dot(y1, gm, preferred_element_type=jnp.float32)
    ms = jnp.dot(y1 * y1, gm, preferred_element_type=jnp.float32)
    var = ms - mu * mu
    y1n = (y1 - mu) * jax.lax.rsqrt(var + 1e-6) * Bv('dec.upg') + Bv('dec.upb')
    a = _gelu(y1n)
    y2 = _gelu(_mm(a, W('dec.w2bd')) + Bv('dec.b2cat'))             # (HW, 64)

    # masks: ONE matmul against a block-diagonal "hyper" matrix.
    #   hbd[g*4+c, g*4+t] = hyper_in[t, c]   (zero off the diagonal blocks)
    hT_rows = _mm_nt(W('dec.q1'), hyper_in)                         # (64, 4): row (g,c) -> hyper_in[:, c]
    hbd = _mm(hT_rows, W('dec.q2')) * Bv('dec.m64')                 # (64, 64)
    masks = _mm(y2, hbd)                                            # (HW, 64): cols = (g, t)
    return masks, iou


def _make_kernel(woffs, boffs, with_encoder):
    def kernel(x_ref, tok_ref, w_ref, b_ref, *out_refs):
        W = _slab_getter(w_ref, woffs)
        Bv = _slab_getter(b_ref, boffs)
        if with_encoder:
            img_ref, masks_ref, iou_ref = out_refs
            img = _encoder_body(x_ref[0], W, Bv)
            img_ref[0] = img
        else:
            masks_ref, iou_ref = out_refs
            img = x_ref[0]
        masks, iou = _decoder_body(img, tok_ref[0], W, Bv)
        masks_ref[0] = masks
        iou_ref[0] = iou
    return kernel


# --------------------------- pallas_call wrappers ----------------------------
def _rep_spec(arr):
    nd = arr.ndim
    return pl.BlockSpec(arr.shape, lambda b, _nd=nd: (0,) * _nd)


def run_medsam_fused(wslab, bslab, layout, patches, tokens):
    B = patches.shape[0]
    kernel = _make_kernel(layout['woffs'], layout['boffs'], with_encoder=True)
    return pl.pallas_call(
        kernel,
        grid=(B,),
        in_specs=[
            pl.BlockSpec((1, HW, 3 * PATCH * PATCH), lambda b: (b, 0, 0)),
            pl.BlockSpec((1, 3 + NUM_MASK_TOKENS, EMBED_DIM), lambda b: (b, 0, 0)),
            _rep_spec(wslab),
            _rep_spec(bslab),
        ],
        out_specs=(
            pl.BlockSpec((1, HW, EMBED_DIM), lambda b: (b, 0, 0)),
            pl.BlockSpec((1, HW, NUM_GROUPS * NUM_MASK_TOKENS), lambda b: (b, 0, 0)),
            pl.BlockSpec((1, 1, NUM_MASK_TOKENS), lambda b: (b, 0, 0)),
        ),
        out_shape=(
            jax.ShapeDtypeStruct((B, HW, EMBED_DIM), jnp.float32),
            jax.ShapeDtypeStruct((B, HW, NUM_GROUPS * NUM_MASK_TOKENS), jnp.float32),
            jax.ShapeDtypeStruct((B, 1, NUM_MASK_TOKENS), jnp.float32),
        ),
        compiler_params=pltpu.CompilerParams(dimension_semantics=("parallel",)),
    )(patches, tokens, wslab, bslab)


def run_mask_decoder_only(wslab, bslab, layout, img_flat, tokens):
    B = img_flat.shape[0]
    kernel = _make_kernel(layout['woffs'], layout['boffs'], with_encoder=False)
    return pl.pallas_call(
        kernel,
        grid=(B,),
        in_specs=[
            pl.BlockSpec((1, HW, EMBED_DIM), lambda b: (b, 0, 0)),
            pl.BlockSpec((1, 3 + NUM_MASK_TOKENS, EMBED_DIM), lambda b: (b, 0, 0)),
            _rep_spec(wslab),
            _rep_spec(bslab),
        ],
        out_specs=(
            pl.BlockSpec((1, HW, NUM_GROUPS * NUM_MASK_TOKENS), lambda b: (b, 0, 0)),
            pl.BlockSpec((1, 1, NUM_MASK_TOKENS), lambda b: (b, 0, 0)),
        ),
        out_shape=(
            jax.ShapeDtypeStruct((B, HW, NUM_GROUPS * NUM_MASK_TOKENS), jnp.float32),
            jax.ShapeDtypeStruct((B, 1, NUM_MASK_TOKENS), jnp.float32),
        ),
        compiler_params=pltpu.CompilerParams(dimension_semantics=("parallel",)),
    )(img_flat, tokens, wslab, bslab)


# ----------------------------- parameter init -------------------------------
class KeyGen:
    def __init__(self, key):
        self.key = key

    def __call__(self):
        self.key, sub = jax.random.split(self.key)
        return sub


def init_linear(kg, fan_in, fan_out):
    return {'w': 0.02 * jax.random.normal(kg(), (fan_in, fan_out), jnp.float32),
            'b': jnp.zeros((fan_out,), jnp.float32)}


def init_ln(dim):
    return {'g': jnp.ones((dim,), jnp.float32),
            'b': jnp.zeros((dim,), jnp.float32)}


def init_attention(kg, embed_dim, downsample_rate):
    internal = embed_dim // downsample_rate
    return {'q': init_linear(kg, embed_dim, internal),
            'k': init_linear(kg, embed_dim, internal),
            'v': init_linear(kg, embed_dim, internal),
            'out': init_linear(kg, internal, embed_dim)}


def init_mlp3(kg, din, dh, dout):
    return [init_linear(kg, din, dh), init_linear(kg, dh, dh),
            init_linear(kg, dh, dout)]


def init_image_encoder(kg):
    return {
        'patch_w': 0.02 * jax.random.normal(kg(), (EMBED_DIM, 3, PATCH, PATCH), jnp.float32),
        'patch_b': jnp.zeros((EMBED_DIM,), jnp.float32),
        'pos': 0.02 * jax.random.normal(kg(), (1, GRID, GRID, EMBED_DIM), jnp.float32),
        'ln1': init_ln(EMBED_DIM),
        'attn': init_attention(kg, EMBED_DIM, 1),
        'ln2': init_ln(EMBED_DIM),
        'mlp1': init_linear(kg, EMBED_DIM, MLP_DIM),
        'mlp2': init_linear(kg, MLP_DIM, EMBED_DIM),
        'neck': init_linear(kg, EMBED_DIM, EMBED_DIM),
        'neck_ln': init_ln(EMBED_DIM),
    }


def init_prompt_encoder(kg):
    return {
        'pe_gauss': jax.random.normal(kg(), (2, EMBED_DIM // 2), jnp.float32),
        'point_embed': 0.02 * jax.random.normal(kg(), (4, EMBED_DIM), jnp.float32),
        'no_mask_embed': 0.02 * jax.random.normal(kg(), (1, EMBED_DIM), jnp.float32),
    }


def init_two_way_block(kg):
    return {
        'self_attn': init_attention(kg, EMBED_DIM, 1),
        'norm1': init_ln(EMBED_DIM),
        'cross_t2i': init_attention(kg, EMBED_DIM, 2),
        'norm2': init_ln(EMBED_DIM),
        'mlp1': init_linear(kg, EMBED_DIM, MLP_DIM),
        'mlp2': init_linear(kg, MLP_DIM, EMBED_DIM),
        'norm3': init_ln(EMBED_DIM),
        'norm4': init_ln(EMBED_DIM),
        'cross_i2t': init_attention(kg, EMBED_DIM, 2),
    }


def init_mask_decoder(kg):
    return {
        'transformer': {
            'layers': [init_two_way_block(kg) for _ in range(DEPTH)],
            'final_attn': init_attention(kg, EMBED_DIM, 2),
            'norm_final': init_ln(EMBED_DIM),
        },
        'iou_token': 0.02 * jax.random.normal(kg(), (1, EMBED_DIM), jnp.float32),
        'mask_tokens': 0.02 * jax.random.normal(kg(), (NUM_MASK_TOKENS, EMBED_DIM), jnp.float32),
        'up1_w': 0.02 * jax.random.normal(kg(), (EMBED_DIM, UP1_C, 2, 2), jnp.float32),
        'up1_b': jnp.zeros((UP1_C,), jnp.float32),
        'up_ln': init_ln(UP1_C),
        'up2_w': 0.02 * jax.random.normal(kg(), (UP1_C, UP2_C, 2, 2), jnp.float32),
        'up2_b': jnp.zeros((UP2_C,), jnp.float32),
        'hyper_mlps': [init_mlp3(kg, EMBED_DIM, EMBED_DIM, UP2_C)
                       for _ in range(NUM_MASK_TOKENS)],
        'iou_head': init_mlp3(kg, EMBED_DIM, IOU_HIDDEN, NUM_MASK_TOKENS),
    }


# --------------------- kernel-layout parameter preparation -------------------
def _round8(n):
    return ((n + 7) // 8) * 8


class _SlabPacker:
    """Packs 2-D weight/bias pieces into a (rows, 128) slab; static offsets."""

    def __init__(self, dtype):
        self.dtype = dtype
        self.parts = []
        self.offsets = {}
        self.rows = 0

    def add(self, name, arr):
        arr = jnp.asarray(arr, jnp.float32)
        if arr.ndim == 1:
            arr = arr.reshape(1, -1)
        r, c = arr.shape
        assert c <= SLAB_W, (name, arr.shape)
        rp = _round8(r)
        buf = jnp.zeros((rp, SLAB_W), jnp.float32).at[:r, :c].set(arr)
        self.parts.append(buf)
        self.offsets[name] = (self.rows, r, c)
        self.rows += rp

    def finalize(self):
        return jnp.concatenate(self.parts, axis=0).astype(self.dtype), dict(self.offsets)


def _block_diag(blocks):
    rows = sum(b.shape[0] for b in blocks)
    cols = sum(b.shape[1] for b in blocks)
    out = jnp.zeros((rows, cols), jnp.float32)
    r = c = 0
    for b in blocks:
        out = out.at[r:r + b.shape[0], c:c + b.shape[1]].set(b)
        r += b.shape[0]
        c += b.shape[1]
    return out


def _convT_weight(w):
    """torch (Cin, Cout, 2, 2) -> (Cin, 4*Cout) with columns [(dy*2+dx)*Cout + co]."""
    cin, cout = w.shape[0], w.shape[1]
    return jnp.transpose(w, (0, 2, 3, 1)).reshape(cin, 4 * cout)


def _pack_attention(wp, bp, prefix, p):
    internal = p['out']['w'].shape[0]
    dh = internal // NUM_HEADS
    scale = 1.0 / math.sqrt(dh)                    # folded into Q weights/bias
    wqkv = jnp.concatenate([p['q']['w'] * scale, p['k']['w'], p['v']['w']], axis=1)
    bqkv = jnp.concatenate([p['q']['b'] * scale, p['k']['b'], p['v']['b']], axis=0)
    wp.add(prefix + '.wqkv', wqkv)
    bp.add(prefix + '.bqkv', bqkv)
    wp.add(prefix + '.wo', p['out']['w'])
    bp.add(prefix + '.bo', p['out']['b'])


def _pack_encoder(wp, bp, p):
    wp.add('enc.pw', p['patch_w'].reshape(EMBED_DIM, -1).T)
    bp.add('enc.pb', p['patch_b'])
    bp.add('enc.pos', p['pos'].reshape(HW, EMBED_DIM))
    bp.add('enc.ln1.g', p['ln1']['g'])
    bp.add('enc.ln1.b', p['ln1']['b'])
    _pack_attention(wp, bp, 'enc.attn', p['attn'])
    bp.add('enc.ln2.g', p['ln2']['g'])
    bp.add('enc.ln2.b', p['ln2']['b'])
    wp.add('enc.m1', p['mlp1']['w'])
    bp.add('enc.m1b', p['mlp1']['b'])
    wp.add('enc.m2', p['mlp2']['w'])
    bp.add('enc.m2b', p['mlp2']['b'])
    wp.add('enc.neck', p['neck']['w'])
    bp.add('enc.neckb', p['neck']['b'])
    bp.add('enc.nln.g', p['neck_ln']['g'])
    bp.add('enc.nln.b', p['neck_ln']['b'])


def _pe_encoding(coords, gauss):
    """SAM PositionEmbeddingRandom: coords in [0,1], shape (..., 2)."""
    coords = 2.0 * coords - 1.0
    coords = coords @ gauss
    coords = 2.0 * jnp.pi * coords
    return jnp.concatenate([jnp.sin(coords), jnp.cos(coords)], axis=-1)


def dense_pe_flat(pe):
    h = w = GRID
    y = (jnp.arange(h, dtype=jnp.float32) + 0.5) / h
    x = (jnp.arange(w, dtype=jnp.float32) + 0.5) / w
    yy = jnp.broadcast_to(y[:, None], (h, w))
    xx = jnp.broadcast_to(x[None, :], (h, w))
    p = _pe_encoding(jnp.stack([xx, yy], axis=-1), pe['pe_gauss'])     # (h, w, C)
    return p.reshape(HW, EMBED_DIM).astype(jnp.float32)


def _pack_decoder(wp, bp, md, pe):
    t = md['transformer']
    bp.add('dec.key_pe', dense_pe_flat(pe))
    bp.add('dec.no_mask', pe['no_mask_embed'].reshape(1, EMBED_DIM))

    for li, lp in enumerate(t['layers']):
        p = 'dec.l%d' % li
        _pack_attention(wp, bp, p + '.self', lp['self_attn'])
        bp.add(p + '.n1.g', lp['norm1']['g'])
        bp.add(p + '.n1.b', lp['norm1']['b'])
        _pack_attention(wp, bp, p + '.t2i', lp['cross_t2i'])
        bp.add(p + '.n2.g', lp['norm2']['g'])
        bp.add(p + '.n2.b', lp['norm2']['b'])
        wp.add(p + '.mlp1', lp['mlp1']['w'])
        bp.add(p + '.mlpb1', lp['mlp1']['b'])
        wp.add(p + '.mlp2', lp['mlp2']['w'])
        bp.add(p + '.mlpb2', lp['mlp2']['b'])
        bp.add(p + '.n3.g', lp['norm3']['g'])
        bp.add(p + '.n3.b', lp['norm3']['b'])
        _pack_attention(wp, bp, p + '.i2t', lp['cross_i2t'])
        bp.add(p + '.n4.g', lp['norm4']['g'])
        bp.add(p + '.n4.b', lp['norm4']['b'])
    _pack_attention(wp, bp, 'dec.final', t['final_attn'])
    bp.add('dec.nf.g', t['norm_final']['g'])
    bp.add('dec.nf.b', t['norm_final']['b'])

    # output upscaling: grouped ConvTranspose2d weights; stage-2 block-diagonal.
    wp.add('dec.w1g', _convT_weight(md['up1_w']))                       # (32, 32)
    bp.add('dec.b1t', jnp.tile(md['up1_b'], 4))
    bp.add('dec.upg', jnp.tile(md['up_ln']['g'], 4))
    bp.add('dec.upb', jnp.tile(md['up_ln']['b'], 4))
    gidx = jnp.arange(4 * UP1_C) // UP1_C
    bp.add('dec.gmat', (gidx[:, None] == gidx[None, :]).astype(jnp.float32) / UP1_C)
    w2g = _convT_weight(md['up2_w'])                                    # (8, 16)
    wp.add('dec.w2bd', _block_diag([w2g] * 4))                          # (32, 64)
    bp.add('dec.b2cat', jnp.tile(md['up2_b'], NUM_GROUPS))              # (64,)

    # hypernetwork MLPs packed so all 4 token MLPs run as 3 matmuls.
    hm = md['hyper_mlps']
    wp.add('dec.hyp.w0', jnp.concatenate([m[0]['w'] for m in hm], axis=1))    # (32, 128)
    bp.add('dec.hyp.b0', jnp.concatenate([m[0]['b'] for m in hm], axis=0))
    wp.add('dec.hyp.w1bd', _block_diag([m[1]['w'] for m in hm]))              # (128, 128)
    bp.add('dec.hyp.b1', jnp.concatenate([m[1]['b'] for m in hm], axis=0))
    wp.add('dec.hyp.w2cat', jnp.concatenate([m[2]['w'] for m in hm], axis=0))  # (128, 4)
    bp.add('dec.hyp.b2rows', jnp.stack([m[2]['b'] for m in hm], axis=0))       # (4, 4)
    tok = jnp.arange(NUM_MASK_TOKENS)
    col = jnp.arange(NUM_MASK_TOKENS * EMBED_DIM) // EMBED_DIM
    bp.add('dec.hyp.blockmask', (tok[:, None] == col[None, :]).astype(jnp.float32))

    # selector/mask constants for the single fused mask matmul.
    r = jnp.arange(NUM_GROUPS * UP2_C)                                  # 64
    wp.add('dec.q1', (r[:, None] % UP2_C == jnp.arange(UP2_C)[None, :]).astype(jnp.float32))
    wp.add('dec.q2', (jnp.arange(NUM_MASK_TOKENS)[:, None]
                      == r[None, :] % NUM_MASK_TOKENS).astype(jnp.float32))
    bp.add('dec.m64', (r[:, None] // UP2_C == r[None, :] // NUM_MASK_TOKENS)
           .astype(jnp.float32))

    # IoU head.
    wp.add('dec.iou.w0', md['iou_head'][0]['w'])
    bp.add('dec.iou.b0', md['iou_head'][0]['b'])
    wp.add('dec.iou.w1', md['iou_head'][1]['w'])
    bp.add('dec.iou.b1', md['iou_head'][1]['b'])
    wp.add('dec.iou.w2', md['iou_head'][2]['w'])
    bp.add('dec.iou.b2', md['iou_head'][2]['b'])


def prepare_params(params):
    wp = _SlabPacker(jnp.bfloat16)
    bp = _SlabPacker(jnp.float32)
    _pack_encoder(wp, bp, params['image_encoder'])
    _pack_decoder(wp, bp, params['mask_decoder'], params['prompt_encoder'])
    wslab, woffs = wp.finalize()
    bslab, boffs = bp.finalize()
    prepared = {
        'wslab': wslab,
        'bslab': bslab,
        'pe_gauss': params['prompt_encoder']['pe_gauss'],
        'point_embed': params['prompt_encoder']['point_embed'],
        'output_tokens': jnp.concatenate(
            [params['mask_decoder']['iou_token'],
             params['mask_decoder']['mask_tokens']], axis=0),
    }
    layout = {'woffs': woffs, 'boffs': boffs}          # static Python metadata
    return prepared, layout


# ------------------------------- glue (boundary) -----------------------------
def patchify(image):
    """(B, 3, H, W) NCHW -> (B, HW, 3*PATCH*PATCH) flat patches (boundary op)."""
    B, Cin, H, W = image.shape
    gh, gw = H // PATCH, W // PATCH
    p = image.reshape(B, Cin, gh, PATCH, gw, PATCH)
    p = p.transpose(0, 2, 4, 1, 3, 5).reshape(B, gh * gw, Cin * PATCH * PATCH)
    return p


def prompt_corners(prepared, boxes):
    """boxes (B, 4) [x0,y0,x1,y1] -> sparse corner embeddings (B, 2, C)."""
    B = boxes.shape[0]
    coords = (boxes.astype(jnp.float32) + 0.5).reshape(B, 2, 2)
    coords = coords / jnp.array([IMG_SIZE, IMG_SIZE], jnp.float32)
    corner = _pe_encoding(coords, prepared['pe_gauss'])
    corner = corner.at[:, 0, :].add(prepared['point_embed'][2])
    corner = corner.at[:, 1, :].add(prepared['point_embed'][3])
    return corner


# ------------------------------ MedSAM_Lite ---------------------------------
def medsam_lite_forward(prepared, layout, image=None, boxes=None, image_embedding=None):
    sparse = prompt_corners(prepared, boxes)                             # (B, 2, C)
    B = sparse.shape[0]
    out_tok = jnp.broadcast_to(
        prepared['output_tokens'][None], (B, 1 + NUM_MASK_TOKENS, EMBED_DIM))
    tokens = jnp.concatenate([out_tok, sparse], axis=1)                  # (B, 7, C)

    if image_embedding is None:
        assert image is not None, 'Either image or image_embedding must be provided.'
        img_flat, masks_raw, iou_raw = run_medsam_fused(
            prepared['wslab'], prepared['bslab'], layout, patchify(image), tokens)
    else:
        img_flat = image_embedding.transpose(0, 2, 3, 1).reshape(B, HW, EMBED_DIM)
        masks_raw, iou_raw = run_mask_decoder_only(
            prepared['wslab'], prepared['bslab'], layout, img_flat, tokens)

    # un-group the sub-pixel offsets into the 32x32 mask grid.
    # masks_raw: (B, HW, 64) with rows (y, x) and cols (dy0, dx0, dy1, dx1, t).
    mg = masks_raw.reshape(B, GRID, GRID, 2, 2, 2, 2, NUM_MASK_TOKENS)
    masks = mg.transpose(0, 7, 1, 3, 5, 2, 4, 6).reshape(
        B, NUM_MASK_TOKENS, 4 * GRID, 4 * GRID)
    iou_pred = iou_raw[:, 0, :]                                          # (B, 4)

    # multimask_output=False -> first mask / first IoU only.
    low_res_masks = masks[:, 0:1]
    iou_predictions = iou_pred[:, 0:1]

    image_embedding_out = img_flat.reshape(
        B, GRID, GRID, EMBED_DIM).transpose(0, 3, 1, 2)                  # NCHW
    return low_res_masks, iou_predictions, image_embedding_out


# ---------------------------------- main ------------------------------------
if __name__ == "__main__":
    kg = KeyGen(jax.random.PRNGKey(0))
    params = {
        'image_encoder': init_image_encoder(kg),
        'prompt_encoder': init_prompt_encoder(kg),
        'mask_decoder': init_mask_decoder(kg),
    }
    prepared, layout = prepare_params(params)

    data_key = jax.random.PRNGKey(0)
    k_img, _ = jax.random.split(data_key)
    B = 2
    image = jax.random.normal(k_img, (B, 3, IMG_SIZE, IMG_SIZE), jnp.float32)
    boxes = jnp.array([[4.0, 4.0, 20.0, 24.0],
                       [2.0, 6.0, 28.0, 30.0]], jnp.float32)

    fwd = jax.jit(lambda prep, img, bxs: medsam_lite_forward(
        prep, layout, image=img, boxes=bxs))
    low_res_masks, iou_predictions, image_embedding = fwd(prepared, image, boxes)
    jax.block_until_ready((low_res_masks, iou_predictions, image_embedding))

    assert low_res_masks.shape == (B, 1, 4 * GRID, 4 * GRID)
    assert iou_predictions.shape == (B, 1)
    assert image_embedding.shape == (B, EMBED_DIM, GRID, GRID)
    assert low_res_masks.dtype == jnp.float32
    print("KERNEL_OK")
</pallas_src>

<mosaic_0001>
module attributes {stable_mosaic.version = 11 : i64} {
  func.func @kernel(%arg0: i32, %arg1: memref<1x64x48xf32, #tpu.memory_space<vmem>>, %arg2: memref<1x7x32xf32, #tpu.memory_space<vmem>>, %arg3: memref<1320x128xbf16, #tpu.memory_space<vmem>>, %arg4: memref<704x128xf32, #tpu.memory_space<vmem>>, %arg5: memref<1x64x32xf32, #tpu.memory_space<vmem>>, %arg6: memref<1x64x64xf32, #tpu.memory_space<vmem>>, %arg7: memref<1x1x4xf32, #tpu.memory_space<vmem>>) attributes {dimension_semantics = [#tpu.dimension_semantics<parallel>], iteration_bounds = array<i64: 2>, scalar_prefetch = 0 : i64, scratch_operands = 0 : i64, tpu.core_type = #tpu.core_type<tc>, window_params = [{transform_indices = @transform_0, window_bounds = array<i64: 1, 64, 48>}, {transform_indices = @transform_1, window_bounds = array<i64: 1, 7, 32>}, {pipeline_mode = #tpu.pipeline_mode<synchronous>, transform_indices = @transform_2, window_bounds = array<i64: 1320, 128>}, {pipeline_mode = #tpu.pipeline_mode<synchronous>, transform_indices = @transform_3, window_bounds = array<i64: 704, 128>}, {transform_indices = @transform_4, window_bounds = array<i64: 1, 64, 32>}, {transform_indices = @transform_5, window_bounds = array<i64: 1, 64, 64>}, {transform_indices = @transform_6, window_bounds = array<i64: 1, 1, 4>}]} {
    %c0 = arith.constant 0 : index
    %c0_0 = arith.constant 0 : index
    %c0_1 = arith.constant 0 : index
    %0 = vector.load %arg1[%c0, %c0_0, %c0_1] : memref<1x64x48xf32, #tpu.memory_space<vmem>>, vector<1x64x48xf32>
    %1 = vector.shape_cast %0 : vector<1x64x48xf32> to vector<64x48xf32>
    %c0_2 = arith.constant 0 : index
    %c0_3 = arith.constant 0 : index
    %2 = vector.load %arg3[%c0_2, %c0_3] : memref<1320x128xbf16, #tpu.memory_space<vmem>>, vector<48x32xbf16>
    %3 = arith.truncf %1 : vector<64x48xf32> to vector<64x48xbf16>
    %cst = arith.constant dense<0.000000e+00> : vector<64x32xf32>
    %4 = tpu.matmul %3, %2, %cst {dimension_numbers = #tpu.dot_dimension_numbers<[1], [0], [0], [1], [0, 0, 1, 1], [], []>} : vector<64x48xbf16>, vector<48x32xbf16>, vector<64x32xf32> -> vector<64x32xf32>
    %c0_4 = arith.constant 0 : index
    %c0_5 = arith.constant 0 : index
    %5 = vector.load %arg4[%c0_4, %c0_5] : memref<704x128xf32, #tpu.memory_space<vmem>>, vector<1x32xf32>
    %6 = vector.broadcast %5 : vector<1x32xf32> to vector<64x32xf32>
    %7 = arith.addf %4, %6 : vector<64x32xf32>
    %c8 = arith.constant 8 : index
    %c0_6 = arith.constant 0 : index
    %8 = vector.load %arg4[%c8, %c0_6] : memref<704x128xf32, #tpu.memory_space<vmem>>, vector<64x32xf32>
    %9 = arith.addf %7, %8 : vector<64x32xf32>
    %c72 = arith.constant 72 : index
    %c0_7 = arith.constant 0 : index
    %10 = vector.load %arg4[%c72, %c0_7] : memref<704x128xf32, #tpu.memory_space<vmem>>, vector<1x32xf32>
    %c80 = arith.constant 80 : index
    %c0_8 = arith.constant 0 : index
    %11 = vector.load %arg4[%c80, %c0_8] : memref<704x128xf32, #tpu.memory_space<vmem>>, vector<1x32xf32>
    %cst_9 = arith.constant dense<0.000000e+00> : vector<64xf32>
    %12 = vector.multi_reduction <add>, %9, %cst_9 [1] : vector<64x32xf32> to vector<64xf32>
    %13 = vector.shape_cast %12 : vector<64xf32> to vector<64x1xf32>
    %cst_10 = arith.constant 3.200000e+01 : f32
    %14 = vector.broadcast %cst_10 : f32 to vector<64x1xf32>
    %15 = arith.divf %13, %14 : vector<64x1xf32>
    %16 = vector.broadcast %15 : vector<64x1xf32> to vector<64x32xf32>
    %17 = arith.subf %9, %16 : vector<64x32xf32>
    %18 = arith.mulf %17, %17 : vector<64x32xf32>
    %cst_11 = arith.constant dense<0.000000e+00> : vector<64xf32>
    %19 = vector.multi_reduction <add>, %18, %cst_11 [1] : vector<64x32xf32> to vector<64xf32>
    %20 = vector.shape_cast %19 : vector<64xf32> to vector<64x1xf32>
    %cst_12 = arith.constant 3.200000e+01 : f32
    %21 = vector.broadcast %cst_12 : f32 to vector<64x1xf32>
    %22 = arith.divf %20, %21 : vector<64x1xf32>
    %cst_13 = arith.constant 9.99999974E-6 : f32
    %23 = vector.broadcast %cst_13 : f32 to vector<64x1xf32>
    %24 = arith.addf %22, %23 : vector<64x1xf32>
    %25 = math.rsqrt %24 : vector<64x1xf32>
    %26 = vector.broadcast %25 : vector<64x1xf32> to vector<64x32xf32>
    %27 = arith.mulf %17, %26 : vector<64x32xf32>
    %28 = vector.broadcast %10 : vector<1x32xf32> to vector<64x32xf32>
    %29 = arith.mulf %27, %28 : vector<64x32xf32>
    %30 = vector.broadcast %11 : vector<1x32xf32> to vector<64x32xf32>
    %31 = arith.addf %29, %30 : vector<64x32xf32>
    %c48 = arith.constant 48 : index
    %c0_14 = arith.constant 0 : index
    %32 = vector.load %arg3[%c48, %c0_14] : memref<1320x128xbf16, #tpu.memory_space<vmem>>, vector<32x96xbf16>
    %c88 = arith.constant 88 : index
    %c0_15 = arith.constant 0 : index
    %33 = vector.load %arg4[%c88, %c0_15] : memref<704x128xf32, #tpu.memory_space<vmem>>, vector<1x96xf32>
    %c80_16 = arith.constant 80 : index
    %c0_17 = arith.constant 0 : index
    %34 = vector.load %arg3[%c80_16, %c0_17] : memref<1320x128xbf16, #tpu.memory_space<vmem>>, vector<32x32xbf16>
    %c96 = arith.constant 96 : index
    %c0_18 = arith.constant 0 : index
    %35 = vector.load %arg4[%c96, %c0_18] : memref<704x128xf32, #tpu.memory_space<vmem>>, vector<1x32xf32>
    %36 = arith.truncf %31 : vector<64x32xf32> to vector<64x32xbf16>
    %cst_19 = arith.constant dense<0.000000e+00> : vector<64x96xf32>
    %37 = tpu.matmul %36, %32, %cst_19 {dimension_numbers = #tpu.dot_dimension_numbers<[1], [0], [0], [1], [0, 0, 1, 1], [], []>} : vector<64x32xbf16>, vector<32x96xbf16>, vector<64x96xf32> -> vector<64x96xf32>
    %38 = vector.broadcast %33 : vector<1x96xf32> to vector<64x96xf32>
    %39 = arith.addf %37, %38 : vector<64x96xf32>
    %40 = vector.extract_strided_slice %39 {offsets = [0, 0], sizes = [64, 32], strides = [1, 1]} : vector<64x96xf32> to vector<64x32xf32>
    %41 = vector.extract_strided_slice %39 {offsets = [0, 32], sizes = [64, 32], strides = [1, 1]} : vector<64x96xf32> to vector<64x32xf32>
    %42 = vector.extract_strided_slice %39 {offsets = [0, 64], sizes = [64, 32], strides = [1, 1]} : vector<64x96xf32> to vector<64x32xf32>
    %43 = vector.extract_strided_slice %40 {offsets = [0, 0], sizes = [64, 16], strides = [1, 1]} : vector<64x32xf32> to vector<64x16xf32>
    %44 = vector.extract_strided_slice %41 {offsets = [0, 0], sizes = [64, 16], strides = [1, 1]} : vector<64x32xf32> to vector<64x16xf32>
    %45 = arith.truncf %43 : vector<64x16xf32> to vector<64x16xbf16>
    %46 = arith.truncf %44 : vector<64x16xf32> to vector<64x16xbf16>
    %cst_20 = arith.constant dense<0.000000e+00> : vector<64x64xf32>
    %47 = tpu.matmul %45, %46, %cst_20 {dimension_numbers = #tpu.dot_dimension_numbers<[1], [1], [0], [0], [0, 0, 1, 0], [], []>} : vector<64x16xbf16>, vector<64x16xbf16>, vector<64x64xf32> -> vector<64x64xf32>
    %cst_21 = arith.constant dense<0xFF800000> : vector<64xf32>
    %48 = vector.multi_reduction <maximumf>, %47, %cst_21 [1] : vector<64x64xf32> to vector<64xf32>
    %49 = vector.shape_cast %48 : vector<64xf32> to vector<64x1xf32>
    %50 = vector.broadcast %49 : vector<64x1xf32> to vector<64x64xf32>
    %51 = arith.subf %47, %50 : vector<64x64xf32>
    %52 = math.exp %51 : vector<64x64xf32>
    %cst_22 = arith.constant dense<0.000000e+00> : vector<64xf32>
    %53 = vector.multi_reduction <add>, %52, %cst_22 [1] : vector<64x64xf32> to vector<64xf32>
    %54 = vector.shape_cast %53 : vector<64xf32> to vector<64x1xf32>
    %55 = tpu.reciprocal %54 {approx = true} : vector<64x1xf32> -> vector<64x1xf32>
    %56 = vector.broadcast %55 : vector<64x1xf32> to vector<64x64xf32>
    %57 = arith.mulf %52, %56 : vector<64x64xf32>
    %58 = vector.extract_strided_slice %42 {offsets = [0, 0], sizes = [64, 16], strides = [1, 1]} : vector<64x32xf32> to vector<64x16xf32>
    %59 = arith.truncf %57 : vector<64x64xf32> to vector<64x64xbf16>
    %60 = arith.truncf %58 : vector<64x16xf32> to vector<64x16xbf16>
    %cst_23 = arith.constant dense<0.000000e+00> : vector<64x16xf32>
    %61 = tpu.matmul %59, %60, %cst_23 {dimension_numbers = #tpu.dot_dimension_numbers<[1], [0], [0], [1], [0, 0, 1, 1], [], []>} : vector<64x64xbf16>, vector<64x16xbf16>, vector<64x16xf32> -> vector<64x16xf32>
    %62 = vector.extract_strided_slice %40 {offsets = [0, 16], sizes = [64, 16], strides = [1, 1]} : vector<64x32xf32> to vector<64x16xf32>
    %63 = vector.extract_strided_slice %41 {offsets = [0, 16], sizes = [64, 16], strides = [1, 1]} : vector<64x32xf32> to vector<64x16xf32>
    %64 = arith.truncf %62 : vector<64x16xf32> to vector<64x16xbf16>
    %65 = arith.truncf %63 : vector<64x16xf32> to vector<64x16xbf16>
    %cst_24 = arith.constant dense<0.000000e+00> : vector<64x64xf32>
    %66 = tpu.matmul %64, %65, %cst_24 {dimension_numbers = #tpu.dot_dimension_numbers<[1], [1], [0], [0], [0, 0, 1, 0], [], []>} : vector<64x16xbf16>, vector<64x16xbf16>, vector<64x64xf32> -> vector<64x64xf32>
    %cst_25 = arith.constant dense<0xFF800000> : vector<64xf32>
    %67 = vector.multi_reduction <maximumf>, %66, %cst_25 [1] : vector<64x64xf32> to vector<64xf32>
    %68 = vector.shape_cast %67 : vector<64xf32> to vector<64x1xf32>
    %69 = vector.broadcast %68 : vector<64x1xf32> to vector<64x64xf32>
    %70 = arith.subf %66, %69 : vector<64x64xf32>
    %71 = math.exp %70 : vector<64x64xf32>
    %cst_26 = arith.constant dense<0.000000e+00> : vector<64xf32>
    %72 = vector.multi_reduction <add>, %71, %cst_26 [1] : vector<64x64xf32> to vector<64xf32>
    %73 = vector.shape_cast %72 : vector<64xf32> to vector<64x1xf32>
    %74 = tpu.reciprocal %73 {approx = true} : vector<64x1xf32> -> vector<64x1xf32>
    %75 = vector.broadcast %74 : vector<64x1xf32> to vector<64x64xf32>
    %76 = arith.mulf %71, %75 : vector<64x64xf32>
    %77 = vector.extract_strided_slice %42 {offsets = [0, 16], sizes = [64, 16], strides = [1, 1]} : vector<64x32xf32> to vector<64x16xf32>
    %78 = arith.truncf %76 : vector<64x64xf32> to vector<64x64xbf16>
    %79 = arith.truncf %77 : vector<64x16xf32> to vector<64x16xbf16>
    %cst_27 = arith.constant dense<0.000000e+00> : vector<64x16xf32>
    %80 = tpu.matmul %78, %79, %cst_27 {dimension_numbers = #tpu.dot_dimension_numbers<[1], [0], [0], [1], [0, 0, 1, 1], [], []>} : vector<64x64xbf16>, vector<64x16xbf16>, vector<64x16xf32> -> vector<64x16xf32>
    %81 = tpu.concatenate %61, %80 in 1 : vector<64x16xf32>, vector<64x16xf32> -> vector<64x32xf32>
    %82 = arith.truncf %81 : vector<64x32xf32> to vector<64x32xbf16>
    %cst_28 = arith.constant dense<0.000000e+00> : vector<64x32xf32>
    %83 = tpu.matmul %82, %34, %cst_28 {dimension_numbers = #tpu.dot_dimension_numbers<[1], [0], [0], [1], [0, 0, 1, 1], [], []>} : vector<64x32xbf16>, vector<32x32xbf16>, vector<64x32xf32> -> vector<64x32xf32>
    %84 = vector.broadcast %35 : vector<1x32xf32> to vector<64x32xf32>
    %85 = arith.addf %83, %84 : vector<64x32xf32>
    %86 = arith.addf %9, %85 : vector<64x32xf32>
    %c104 = arith.constant 104 : index
    %c0_29 = arith.constant 0 : index
    %87 = vector.load %arg4[%c104, %c0_29] : memref<704x128xf32, #tpu.memory_space<vmem>>, vector<1x32xf32>
    %c112 = arith.constant 112 : index
    %c0_30 = arith.constant 0 : index
    %88 = vector.load %arg4[%c112, %c0_30] : memref<704x128xf32, #tpu.memory_space<vmem>>, vector<1x32xf32>
    %cst_31 = arith.constant dense<0.000000e+00> : vector<64xf32>
    %89 = vector.multi_reduction <add>, %86, %cst_31 [1] : vector<64x32xf32> to vector<64xf32>
    %90 = vector.shape_cast %89 : vector<64xf32> to vector<64x1xf32>
    %cst_32 = arith.constant 3.200000e+01 : f32
    %91 = vector.broadcast %cst_32 : f32 to vector<64x1xf32>
    %92 = arith.divf %90, %91 : vector<64x1xf32>
    %93 = vector.broadcast %92 : vector<64x1xf32> to vector<64x32xf32>
    %94 = arith.subf %86, %93 : vector<64x32xf32>
    %95 = arith.mulf %94, %94 : vector<64x32xf32>
    %cst_33 = arith.constant dense<0.000000e+00> : vector<64xf32>
    %96 = vector.multi_reduction <add>, %95, %cst_33 [1] : vector<64x32xf32> to vector<64xf32>
    %97 = vector.shape_cast %96 : vector<64xf32> to vector<64x1xf32>
    %cst_34 = arith.constant 3.200000e+01 : f32
    %98 = vector.broadcast %cst_34 : f32 to vector<64x1xf32>
    %99 = arith.divf %97, %98 : vector<64x1xf32>
    %cst_35 = arith.constant 9.99999974E-6 : f32
    %100 = vector.broadcast %cst_35 : f32 to vector<64x1xf32>
    %101 = arith.addf %99, %100 : vector<64x1xf32>
    %102 = math.rsqrt %101 : vector<64x1xf32>
    %103 = vector.broadcast %102 : vector<64x1xf32> to vector<64x32xf32>
    %104 = arith.mulf %94, %103 : vector<64x32xf32>
    %105 = vector.broadcast %87 : vector<1x32xf32> to vector<64x32xf32>
    %106 = arith.mulf %104, %105 : vector<64x32xf32>
    %107 = vector.broadcast %88 : vector<1x32xf32> to vector<64x32xf32>
    %108 = arith.addf %106, %107 : vector<64x32xf32>
    %c112_36 = arith.constant 112 : index
    %c0_37 = arith.constant 0 : index
    %109 = vector.load %arg3[%c112_36, %c0_37] : memref<1320x128xbf16, #tpu.memory_space<vmem>>, vector<32x64xbf16>
    %110 = arith.truncf %108 : vector<64x32xf32> to vector<64x32xbf16>
    %cst_38 = arith.constant dense<0.000000e+00> : vector<64x64xf32>
    %111 = tpu.matmul %110, %109, %cst_38 {dimension_numbers = #tpu.dot_dimension_numbers<[1], [0], [0], [1], [0, 0, 1, 1], [], []>} : vector<64x32xbf16>, vector<32x64xbf16>, vector<64x64xf32> -> vector<64x64xf32>
    %c120 = arith.constant 120 : index
    %c0_39 = arith.constant 0 : index
    %112 = vector.load %arg4[%c120, %c0_39] : memref<704x128xf32, #tpu.memory_space<vmem>>, vector<1x64xf32>
    %113 = vector.broadcast %112 : vector<1x64xf32> to vector<64x64xf32>
    %114 = arith.addf %111, %113 : vector<64x64xf32>
    %cst_40 = arith.constant 5.000000e-01 : f32
    %115 = vector.broadcast %cst_40 : f32 to vector<64x64xf32>
    %116 = arith.mulf %115, %114 : vector<64x64xf32>
    %cst_41 = arith.constant 4.471500e-02 : f32
    %117 = vector.broadcast %cst_41 : f32 to vector<64x64xf32>
    %118 = arith.mulf %117, %114 : vector<64x64xf32>
    %119 = arith.mulf %118, %114 : vector<64x64xf32>
    %120 = arith.mulf %119, %114 : vector<64x64xf32>
    %121 = arith.addf %114, %120 : vector<64x64xf32>
    %cst_42 = arith.constant 0.797884583 : f32
    %122 = vector.broadcast %cst_42 : f32 to vector<64x64xf32>
    %123 = arith.mulf %122, %121 : vector<64x64xf32>
    %124 = math.tanh %123 : vector<64x64xf32>
    %cst_43 = arith.constant 1.000000e+00 : f32
    %125 = vector.broadcast %cst_43 : f32 to vector<64x64xf32>
    %126 = arith.addf %125, %124 : vector<64x64xf32>
    %127 = arith.mulf %116, %126 : vector<64x64xf32>
    %c144 = arith.constant 144 : index
    %c0_44 = arith.constant 0 : index
    %128 = vector.load %arg3[%c144, %c0_44] : memref<1320x128xbf16, #tpu.memory_space<vmem>>, vector<64x32xbf16>
    %129 = arith.truncf %127 : vector<64x64xf32> to vector<64x64xbf16>
    %cst_45 = arith.constant dense<0.000000e+00> : vector<64x32xf32>
    %130 = tpu.matmul %129, %128, %cst_45 {dimension_numbers = #tpu.dot_dimension_numbers<[1], [0], [0], [1], [0, 0, 1, 1], [], []>} : vector<64x64xbf16>, vector<64x32xbf16>, vector<64x32xf32> -> vector<64x32xf32>
    %c128 = arith.constant 128 : index
    %c0_46 = arith.constant 0 : index
    %131 = vector.load %arg4[%c128, %c0_46] : memref<704x128xf32, #tpu.memory_space<vmem>>, vector<1x32xf32>
    %132 = vector.broadcast %131 : vector<1x32xf32> to vector<64x32xf32>
    %133 = arith.addf %130, %132 : vector<64x32xf32>
    %134 = arith.addf %86, %133 : vector<64x32xf32>
    %c208 = arith.constant 208 : index
    %c0_47 = arith.constant 0 : index
    %135 = vector.load %arg3[%c208, %c0_47] : memref<1320x128xbf16, #tpu.memory_space<vmem>>, vector<32x32xbf16>
    %136 = arith.truncf %134 : vector<64x32xf32> to vector<64x32xbf16>
    %cst_48 = arith.constant dense<0.000000e+00> : vector<64x32xf32>
    %137 = tpu.matmul %136, %135, %cst_48 {dimension_numbers = #tpu.dot_dimension_numbers<[1], [0], [0], [1], [0, 0, 1, 1], [], []>} : vector<64x32xbf16>, vector<32x32xbf16>, vector<64x32xf32> -> vector<64x32xf32>
    %c136 = arith.constant 136 : index
    %c0_49 = arith.constant 0 : index
    %138 = vector.load %arg4[%c136, %c0_49] : memref<704x128xf32, #tpu.memory_space<vmem>>, vector<1x32xf32>
    %139 = vector.broadcast %138 : vector<1x32xf32> to vector<64x32xf32>
    %140 = arith.addf %137, %139 : vector<64x32xf32>
    %c144_50 = arith.constant 144 : index
    %c0_51 = arith.constant 0 : index
    %141 = vector.load %arg4[%c144_50, %c0_51] : memref<704x128xf32, #tpu.memory_space<vmem>>, vector<1x32xf32>
    %c152 = arith.constant 152 : index
    %c0_52 = arith.constant 0 : index
    %142 = vector.load %arg4[%c152, %c0_52] : memref<704x128xf32, #tpu.memory_space<vmem>>, vector<1x32xf32>
    %cst_53 = arith.constant dense<0.000000e+00> : vector<64xf32>
    %143 = vector.multi_reduction <add>, %140, %cst_53 [1] : vector<64x32xf32> to vector<64xf32>
    %144 = vector.shape_cast %143 : vector<64xf32> to vector<64x1xf32>
    %cst_54 = arith.constant 3.200000e+01 : f32
    %145 = vector.broadcast %cst_54 : f32 to vector<64x1xf32>
    %146 = arith.divf %144, %145 : vector<64x1xf32>
    %147 = vector.broadcast %146 : vector<64x1xf32> to vector<64x32xf32>
    %148 = arith.subf %140, %147 : vector<64x32xf32>
    %149 = arith.mulf %148, %148 : vector<64x32xf32>
    %cst_55 = arith.constant dense<0.000000e+00> : vector<64xf32>
    %150 = vector.multi_reduction <add>, %149, %cst_55 [1] : vector<64x32xf32> to vector<64xf32>
    %151 = vector.shape_cast %150 : vector<64xf32> to vector<64x1xf32>
    %cst_56 = arith.constant 3.200000e+01 : f32
    %152 = vector.broadcast %cst_56 : f32 to vector<64x1xf32>
    %153 = arith.divf %151, %152 : vector<64x1xf32>
    %cst_57 = arith.constant 9.99999997E-7 : f32
    %154 = vector.broadcast %cst_57 : f32 to vector<64x1xf32>
    %155 = arith.addf %153, %154 : vector<64x1xf32>
    %156 = math.rsqrt %155 : vector<64x1xf32>
    %157 = vector.broadcast %156 : vector<64x1xf32> to vector<64x32xf32>
    %158 = arith.mulf %148, %157 : vector<64x32xf32>
    %159 = vector.broadcast %141 : vector<1x32xf32> to vector<64x32xf32>
    %160 = arith.mulf %158, %159 : vector<64x32xf32>
    %161 = vector.broadcast %142 : vector<1x32xf32> to vector<64x32xf32>
    %162 = arith.addf %160, %161 : vector<64x32xf32>
    %c0_58 = arith.constant 0 : index
    %c0_59 = arith.constant 0 : index
    %c0_60 = arith.constant 0 : index
    %163 = vector.load %arg5[%c0_58, %c0_59, %c0_60] : memref<1x64x32xf32, #tpu.memory_space<vmem>>, vector<1x64x32xf32>
    %164 = vector.shape_cast %163 : vector<1x64x32xf32> to vector<64x32xf32>
    %165 = vector.shape_cast %162 : vector<64x32xf32> to vector<1x64x32xf32>
    tpu.vector_store %arg5[%c0_58, %c0_59, %c0_60], %165 {strides = array<i32>} : memref<1x64x32xf32, #tpu.memory_space<vmem>>, vector<1x64x32xf32>,
    %c0_61 = arith.constant 0 : index
    %c0_62 = arith.constant 0 : index
    %c0_63 = arith.constant 0 : index
    %166 = vector.load %arg2[%c0_61, %c0_62, %c0_63] : memref<1x7x32xf32, #tpu.memory_space<vmem>>, vector<1x7x32xf32>
    %167 = vector.shape_cast %166 : vector<1x7x32xf32> to vector<7x32xf32>
    %c224 = arith.constant 224 : index
    %c0_64 = arith.constant 0 : index
    %168 = vector.load %arg4[%c224, %c0_64] : memref<704x128xf32, #tpu.memory_space<vmem>>, vector<1x32xf32>
    %169 = vector.broadcast %168 : vector<1x32xf32> to vector<64x32xf32>
    %170 = arith.addf %162, %169 : vector<64x32xf32>
    %c160 = arith.constant 160 : index
    %c0_65 = arith.constant 0 : index
    %171 = vector.load %arg4[%c160, %c0_65] : memref<704x128xf32, #tpu.memory_space<vmem>>, vector<64x32xf32>
    %c240 = arith.constant 240 : index
    %c0_66 = arith.constant 0 : index
    %172 = vector.load %arg3[%c240, %c0_66] : memref<1320x128xbf16, #tpu.memory_space<vmem>>, vector<32x96xbf16>
    %c232 = arith.constant 232 : index
    %c0_67 = arith.constant 0 : index
    %173 = vector.load %arg4[%c232, %c0_67] : memref<704x128xf32, #tpu.memory_space<vmem>>, vector<1x96xf32>
    %c272 = arith.constant 272 : index
    %c0_68 = arith.constant 0 : index
    %174 = vector.load %arg3[%c272, %c0_68] : memref<1320x128xbf16, #tpu.memory_space<vmem>>, vector<32x32xbf16>
    %c240_69 = arith.constant 240 : index
    %c0_70 = arith.constant 0 : index
    %175 = vector.load %arg4[%c240_69, %c0_70] : memref<704x128xf32, #tpu.memory_space<vmem>>, vector<1x32xf32>
    %176 = arith.truncf %167 : vector<7x32xf32> to vector<7x32xbf16>
    %cst_71 = arith.constant dense<0.000000e+00> : vector<7x96xf32>
    %177 = tpu.matmul %176, %172, %cst_71 {dimension_numbers = #tpu.dot_dimension_numbers<[1], [0], [0], [1], [0, 0, 1, 1], [], []>} : vector<7x32xbf16>, vector<32x96xbf16>, vector<7x96xf32> -> vector<7x96xf32>
    %178 = vector.broadcast %173 : vector<1x96xf32> to vector<7x96xf32>
    %179 = arith.addf %177, %178 : vector<7x96xf32>
    %180 = vector.extract_strided_slice %179 {offsets = [0, 0], sizes = [7, 32], strides = [1, 1]} : vector<7x96xf32> to vector<7x32xf32>
    %181 = vector.extract_strided_slice %179 {offsets = [0, 32], sizes = [7, 32], strides = [1, 1]} : vector<7x96xf32> to vector<7x32xf32>
    %182 = vector.extract_strided_slice %179 {offsets = [0, 64], sizes = [7, 32], strides = [1, 1]} : vector<7x96xf32> to vector<7x32xf32>
    %183 = vector.extract_strided_slice %180 {offsets = [0, 0], sizes = [7, 16], strides = [1, 1]} : vector<7x32xf32> to vector<7x16xf32>
    %184 = vector.extract_strided_slice %181 {offsets = [0, 0], sizes = [7, 16], strides = [1, 1]} : vector<7x32xf32> to vector<7x16xf32>
    %185 = arith.truncf %183 : vector<7x16xf32> to vector<7x16xbf16>
    %186 = arith.truncf %184 : vector<7x16xf32> to vector<7x16xbf16>
    %cst_72 = arith.constant dense<0.000000e+00> : vector<7x7xf32>
    %187 = tpu.matmul %185, %186, %cst_72 {dimension_numbers = #tpu.dot_dimension_numbers<[1], [1], [0], [0], [0, 0, 1, 0], [], []>} : vector<7x16xbf16>, vector<7x16xbf16>, vector<7x7xf32> -> vector<7x7xf32>
    %cst_73 = arith.constant dense<0xFF800000> : vector<7xf32>
    %188 = vector.multi_reduction <maximumf>, %187, %cst_73 [1] : vector<7x7xf32> to vector<7xf32>
    %189 = vector.shape_cast %188 : vector<7xf32> to vector<7x1xf32>
    %190 = vector.broadcast %189 : vector<7x1xf32> to vector<7x7xf32>
    %191 = arith.subf %187, %190 : vector<7x7xf32>
    %192 = math.exp %191 : vector<7x7xf32>
    %cst_74 = arith.constant dense<0.000000e+00> : vector<7xf32>
    %193 = vector.multi_reduction <add>, %192, %cst_74 [1] : vector<7x7xf32> to vector<7xf32>
    %194 = vector.shape_cast %193 : vector<7xf32> to vector<7x1xf32>
    %195 = tpu.reciprocal %194 {approx = true} : vector<7x1xf32> -> vector<7x1xf32>
    %196 = vector.broadcast %195 : vector<7x1xf32> to vector<7x7xf32>
    %197 = arith.mulf %192, %196 : vector<7x7xf32>
    %198 = vector.extract_strided_slice %182 {offsets = [0, 0], sizes = [7, 16], strides = [1, 1]} : vector<7x32xf32> to vector<7x16xf32>
    %199 = arith.truncf %197 : vector<7x7xf32> to vector<7x7xbf16>
    %200 = arith.truncf %198 : vector<7x16xf32> to vector<7x16xbf16>
    %cst_75 = arith.constant dense<0.000000e+00> : vector<7x16xf32>
    %201 = tpu.matmul %199, %200, %cst_75 {dimension_numbers = #tpu.dot_dimension_numbers<[1], [0], [0], [1], [0, 0, 1, 1], [], []>} : vector<7x7xbf16>, vector<7x16xbf16>, vector<7x16xf32> -> vector<7x16xf32>
    %202 = vector.extract_strided_slice %180 {offsets = [0, 16], sizes = [7, 16], strides = [1, 1]} : vector<7x32xf32> to vector<7x16xf32>
    %203 = vector.extract_strided_slice %181 {offsets = [0, 16], sizes = [7, 16], strides = [1, 1]} : vector<7x32xf32> to vector<7x16xf32>
    %204 = arith.truncf %202 : vector<7x16xf32> to vector<7x16xbf16>
    %205 = arith.truncf %203 : vector<7x16xf32> to vector<7x16xbf16>
    %cst_76 = arith.constant dense<0.000000e+00> : vector<7x7xf32>
    %206 = tpu.matmul %204, %205, %cst_76 {dimension_numbers = #tpu.dot_dimension_numbers<[1], [1], [0], [0], [0, 0, 1, 0], [], []>} : vector<7x16xbf16>, vector<7x16xbf16>, vector<7x7xf32> -> vector<7x7xf32>
    %cst_77 = arith.constant dense<0xFF800000> : vector<7xf32>
    %207 = vector.multi_reduction <maximumf>, %206, %cst_77 [1] : vector<7x7xf32> to vector<7xf32>
    %208 = vector.shape_cast %207 : vector<7xf32> to vector<7x1xf32>
    %209 = vector.broadcast %208 : vector<7x1xf32> to vector<7x7xf32>
    %210 = arith.subf %206, %209 : vector<7x7xf32>
    %211 = math.exp %210 : vector<7x7xf32>
    %cst_78 = arith.constant dense<0.000000e+00> : vector<7xf32>
    %212 = vector.multi_reduction <add>, %211, %cst_78 [1] : vector<7x7xf32> to vector<7xf32>
    %213 = vector.shape_cast %212 : vector<7xf32> to vector<7x1xf32>
    %214 = tpu.reciprocal %213 {approx = true} : vector<7x1xf32> -> vector<7x1xf32>
    %215 = vector.broadcast %214 : vector<7x1xf32> to vector<7x7xf32>
    %216 = arith.mulf %211, %215 : vector<7x7xf32>
    %217 = vector.extract_strided_slice %182 {offsets = [0, 16], sizes = [7, 16], strides = [1, 1]} : vector<7x32xf32> to vector<7x16xf32>
    %218 = arith.truncf %216 : vector<7x7xf32> to vector<7x7xbf16>
    %219 = arith.truncf %217 : vector<7x16xf32> to vector<7x16xbf16>
    %cst_79 = arith.constant dense<0.000000e+00> : vector<7x16xf32>
    %220 = tpu.matmul %218, %219, %cst_79 {dimension_numbers = #tpu.dot_dimension_numbers<[1], [0], [0], [1], [0, 0, 1, 1], [], []>} : vector<7x7xbf16>, vector<7x16xbf16>, vector<7x16xf32> -> vector<7x16xf32>
    %221 = tpu.concatenate %201, %220 in 1 : vector<7x16xf32>, vector<7x16xf32> -> vector<7x32xf32>
    %222 = arith.truncf %221 : vector<7x32xf32> to vector<7x32xbf16>
    %cst_80 = arith.constant dense<0.000000e+00> : vector<7x32xf32>
    %223 = tpu.matmul %222, %174, %cst_80 {dimension_numbers = #tpu.dot_dimension_numbers<[1], [0], [0], [1], [0, 0, 1, 1], [], []>} : vector<7x32xbf16>, vector<32x32xbf16>, vector<7x32xf32> -> vector<7x32xf32>
    %224 = vector.broadcast %175 : vector<1x32xf32> to vector<7x32xf32>
    %225 = arith.addf %223, %224 : vector<7x32xf32>
    %c248 = arith.constant 248 : index
    %c0_81 = arith.constant 0 : index
    %226 = vector.load %arg4[%c248, %c0_81] : memref<704x128xf32, #tpu.memory_space<vmem>>, vector<1x32xf32>
    %c256 = arith.constant 256 : index
    %c0_82 = arith.constant 0 : index
    %227 = vector.load %arg4[%c256, %c0_82] : memref<704x128xf32, #tpu.memory_space<vmem>>, vector<1x32xf32>
    %cst_83 = arith.constant dense<0.000000e+00> : vector<7xf32>
    %228 = vector.multi_reduction <add>, %225, %cst_83 [1] : vector<7x32xf32> to vector<7xf32>
    %229 = vector.shape_cast %228 : vector<7xf32> to vector<7x1xf32>
    %cst_84 = arith.constant 3.200000e+01 : f32
    %230 = vector.broadcast %cst_84 : f32 to vector<7x1xf32>
    %231 = arith.divf %229, %230 : vector<7x1xf32>
    %232 = vector.broadcast %231 : vector<7x1xf32> to vector<7x32xf32>
    %233 = arith.subf %225, %232 : vector<7x32xf32>
    %234 = arith.mulf %233, %233 : vector<7x32xf32>
    %cst_85 = arith.constant dense<0.000000e+00> : vector<7xf32>
    %235 = vector.multi_reduction <add>, %234, %cst_85 [1] : vector<7x32xf32> to vector<7xf32>
    %236 = vector.shape_cast %235 : vector<7xf32> to vector<7x1xf32>
    %cst_86 = arith.constant 3.200000e+01 : f32
    %237 = vector.broadcast %cst_86 : f32 to vector<7x1xf32>
    %238 = arith.divf %236, %237 : vector<7x1xf32>
    %cst_87 = arith.constant 9.99999974E-6 : f32
    %239 = vector.broadcast %cst_87 : f32 to vector<7x1xf32>
    %240 = arith.addf %238, %239 : vector<7x1xf32>
    %241 = math.rsqrt %240 : vector<7x1xf32>
    %242 = vector.broadcast %241 : vector<7x1xf32> to vector<7x32xf32>
    %243 = arith.mulf %233, %242 : vector<7x32xf32>
    %244 = vector.broadcast %226 : vector<1x32xf32> to vector<7x32xf32>
    %245 = arith.mulf %243, %244 : vector<7x32xf32>
    %246 = vector.broadcast %227 : vector<1x32xf32> to vector<7x32xf32>
    %247 = arith.addf %245, %246 : vector<7x32xf32>
    %248 = arith.addf %247, %167 : vector<7x32xf32>
    %249 = arith.addf %170, %171 : vector<64x32xf32>
    %c304 = arith.constant 304 : index
    %c0_88 = arith.constant 0 : index
    %250 = vector.load %arg3[%c304, %c0_88] : memref<1320x128xbf16, #tpu.memory_space<vmem>>, vector<32x48xbf16>
    %c264 = arith.constant 264 : index
    %c0_89 = arith.constant 0 : index
    %251 = vector.load %arg4[%c264, %c0_89] : memref<704x128xf32, #tpu.memory_space<vmem>>, vector<1x48xf32>
    %c336 = arith.constant 336 : index
    %c0_90 = arith.constant 0 : index
    %252 = vector.load %arg3[%c336, %c0_90] : memref<1320x128xbf16, #tpu.memory_space<vmem>>, vector<16x32xbf16>
    %c272_91 = arith.constant 272 : index
    %c0_92 = arith.constant 0 : index
    %253 = vector.load %arg4[%c272_91, %c0_92] : memref<704x128xf32, #tpu.memory_space<vmem>>, vector<1x32xf32>
    %254 = vector.extract_strided_slice %250 {offsets = [0, 0], sizes = [32, 16], strides = [1, 1]} : vector<32x48xbf16> to vector<32x16xbf16>
    %255 = arith.truncf %248 : vector<7x32xf32> to vector<7x32xbf16>
    %cst_93 = arith.constant dense<0.000000e+00> : vector<7x16xf32>
    %256 = tpu.matmul %255, %254, %cst_93 {dimension_numbers = #tpu.dot_dimension_numbers<[1], [0], [0], [1], [0, 0, 1, 1], [], []>} : vector<7x32xbf16>, vector<32x16xbf16>, vector<7x16xf32> -> vector<7x16xf32>
    %257 = vector.extract_strided_slice %251 {offsets = [0, 0], sizes = [1, 16], strides = [1, 1]} : vector<1x48xf32> to vector<1x16xf32>
    %258 = vector.broadcast %257 : vector<1x16xf32> to vector<7x16xf32>
    %259 = arith.addf %256, %258 : vector<7x16xf32>
    %260 = vector.extract_strided_slice %250 {offsets = [0, 16], sizes = [32, 16], strides = [1, 1]} : vector<32x48xbf16> to vector<32x16xbf16>
    %261 = arith.truncf %249 : vector<64x32xf32> to vector<64x32xbf16>
    %cst_94 = arith.constant dense<0.000000e+00> : vector<64x16xf32>
    %262 = tpu.matmul %261, %260, %cst_94 {dimension_numbers = #tpu.dot_dimension_numbers<[1], [0], [0], [1], [0, 0, 1, 1], [], []>} : vector<64x32xbf16>, vector<32x16xbf16>, vector<64x16xf32> -> vector<64x16xf32>
    %263 = vector.extract_strided_slice %251 {offsets = [0, 16], sizes = [1, 16], strides = [1, 1]} : vector<1x48xf32> to vector<1x16xf32>
    %264 = vector.broadcast %263 : vector<1x16xf32> to vector<64x16xf32>
    %265 = arith.addf %262, %264 : vector<64x16xf32>
    %266 = vector.extract_strided_slice %250 {offsets = [0, 32], sizes = [32, 16], strides = [1, 1]} : vector<32x48xbf16> to vector<32x16xbf16>
    %267 = arith.truncf %170 : vector<64x32xf32> to vector<64x32xbf16>
    %cst_95 = arith.constant dense<0.000000e+00> : vector<64x16xf32>
    %268 = tpu.matmul %267, %266, %cst_95 {dimension_numbers = #tpu.dot_dimension_numbers<[1], [0], [0], [1], [0, 0, 1, 1], [], []>} : vector<64x32xbf16>, vector<32x16xbf16>, vector<64x16xf32> -> vector<64x16xf32>
    %269 = vector.extract_strided_slice %251 {offsets = [0, 32], sizes = [1, 16], strides = [1, 1]} : vector<1x48xf32> to vector<1x16xf32>
    %270 = vector.broadcast %269 : vector<1x16xf32> to vector<64x16xf32>
    %271 = arith.addf %268, %270 : vector<64x16xf32>
    %272 = vector.extract_strided_slice %259 {offsets = [0, 0], sizes = [7, 8], strides = [1, 1]} : vector<7x16xf32> to vector<7x8xf32>
    %273 = vector.extract_strided_slice %265 {offsets = [0, 0], sizes = [64, 8], strides = [1, 1]} : vector<64x16xf32> to vector<64x8xf32>
    %274 = arith.truncf %272 : vector<7x8xf32> to vector<7x8xbf16>
    %275 = arith.truncf %273 : vector<64x8xf32> to vector<64x8xbf16>
    %cst_96 = arith.constant dense<0.000000e+00> : vector<7x64xf32>
    %276 = tpu.matmul %274, %275, %cst_96 {dimension_numbers = #tpu.dot_dimension_numbers<[1], [1], [0], [0], [0, 0, 1, 0], [], []>} : vector<7x8xbf16>, vector<64x8xbf16>, vector<7x64xf32> -> vector<7x64xf32>
    %cst_97 = arith.constant dense<0xFF800000> : vector<7xf32>
    %277 = vector.multi_reduction <maximumf>, %276, %cst_97 [1] : vector<7x64xf32> to vector<7xf32>
    %278 = vector.shape_cast %277 : vector<7xf32> to vector<7x1xf32>
    %279 = vector.broadcast %278 : vector<7x1xf32> to vector<7x64xf32>
    %280 = arith.subf %276, %279 : vector<7x64xf32>
    %281 = math.exp %280 : vector<7x64xf32>
    %cst_98 = arith.constant dense<0.000000e+00> : vector<7xf32>
    %282 = vector.multi_reduction <add>, %281, %cst_98 [1] : vector<7x64xf32> to vector<7xf32>
    %283 = vector.shape_cast %282 : vector<7xf32> to vector<7x1xf32>
    %284 = tpu.reciprocal %283 {approx = true} : vector<7x1xf32> -> vector<7x1xf32>
    %285 = vector.broadcast %284 : vector<7x1xf32> to vector<7x64xf32>
    %286 = arith.mulf %281, %285 : vector<7x64xf32>
    %287 = vector.extract_strided_slice %271 {offsets = [0, 0], sizes = [64, 8], strides = [1, 1]} : vector<64x16xf32> to vector<64x8xf32>
    %288 = arith.truncf %286 : vector<7x64xf32> to vector<7x64xbf16>
    %289 = arith.truncf %287 : vector<64x8xf32> to vector<64x8xbf16>
    %cst_99 = arith.constant dense<0.000000e+00> : vector<7x8xf32>
    %290 = tpu.matmul %288, %289, %cst_99 {dimension_numbers = #tpu.dot_dimension_numbers<[1], [0], [0], [1], [0, 0, 1, 1], [], []>} : vector<7x64xbf16>, vector<64x8xbf16>, vector<7x8xf32> -> vector<7x8xf32>
    %291 = vector.extract_strided_slice %259 {offsets = [0, 8], sizes = [7, 8], strides = [1, 1]} : vector<7x16xf32> to vector<7x8xf32>
    %292 = vector.extract_strided_slice %265 {offsets = [0, 8], sizes = [64, 8], strides = [1, 1]} : vector<64x16xf32> to vector<64x8xf32>
    %293 = arith.truncf %291 : vector<7x8xf32> to vector<7x8xbf16>
    %294 = arith.truncf %292 : vector<64x8xf32> to vector<64x8xbf16>
    %cst_100 = arith.constant dense<0.000000e+00> : vector<7x64xf32>
    %295 = tpu.matmul %293, %294, %cst_100 {dimension_numbers = #tpu.dot_dimension_numbers<[1], [1], [0], [0], [0, 0, 1, 0], [], []>} : vector<7x8xbf16>, vector<64x8xbf16>, vector<7x64xf32> -> vector<7x64xf32>
    %cst_101 = arith.constant dense<0xFF800000> : vector<7xf32>
    %296 = vector.multi_reduction <maximumf>, %295, %cst_101 [1] : vector<7x64xf32> to vector<7xf32>
    %297 = vector.shape_cast %296 : vector<7xf32> to vector<7x1xf32>
    %298 = vector.broadcast %297 : vector<7x1xf32> to vector<7x64xf32>
    %299 = arith.subf %295, %298 : vector<7x64xf32>
    %300 = math.exp %299 : vector<7x64xf32>
    %cst_102 = arith.constant dense<0.000000e+00> : vector<7xf32>
    %301 = vector.multi_reduction <add>, %300, %cst_102 [1] : vector<7x64xf32> to vector<7xf32>
    %302 = vector.shape_cast %301 : vector<7xf32> to vector<7x1xf32>
    %303 = tpu.reciprocal %302 {approx = true} : vector<7x1xf32> -> vector<7x1xf32>
    %304 = vector.broadcast %303 : vector<7x1xf32> to vector<7x64xf32>
    %305 = arith.mulf %300, %304 : vector<7x64xf32>
    %306 = vector.extract_strided_slice %271 {offsets = [0, 8], sizes = [64, 8], strides = [1, 1]} : vector<64x16xf32> to vector<64x8xf32>
    %307 = arith.truncf %305 : vector<7x64xf32> to vector<7x64xbf16>
    %308 = arith.truncf %306 : vector<64x8xf32> to vector<64x8xbf16>
    %cst_103 = arith.constant dense<0.000000e+00> : vector<7x8xf32>
    %309 = tpu.matmul %307, %308, %cst_103 {dimension_numbers = #tpu.dot_dimension_numbers<[1], [0], [0], [1], [0, 0, 1, 1], [], []>} : vector<7x64xbf16>, vector<64x8xbf16>, vector<7x8xf32> -> vector<7x8xf32>
    %310 = tpu.concatenate %290, %309 in 1 : vector<7x8xf32>, vector<7x8xf32> -> vector<7x16xf32>
    %311 = arith.truncf %310 : vector<7x16xf32> to vector<7x16xbf16>
    %cst_104 = arith.constant dense<0.000000e+00> : vector<7x32xf32>
    %312 = tpu.matmul %311, %252, %cst_104 {dimension_numbers = #tpu.dot_dimension_numbers<[1], [0], [0], [1], [0, 0, 1, 1], [], []>} : vector<7x16xbf16>, vector<16x32xbf16>, vector<7x32xf32> -> vector<7x32xf32>
    %313 = vector.broadcast %253 : vector<1x32xf32> to vector<7x32xf32>
    %314 = arith.addf %312, %313 : vector<7x32xf32>
    %315 = arith.addf %247, %314 : vector<7x32xf32>
    %c280 = arith.constant 280 : index
    %c0_105 = arith.constant 0 : index
    %316 = vector.load %arg4[%c280, %c0_105] : memref<704x128xf32, #tpu.memory_space<vmem>>, vector<1x32xf32>
    %c288 = arith.constant 288 : index
    %c0_106 = arith.constant 0 : index
    %317 = vector.load %arg4[%c288, %c0_106] : memref<704x128xf32, #tpu.memory_space<vmem>>, vector<1x32xf32>
    %cst_107 = arith.constant dense<0.000000e+00> : vector<7xf32>
    %318 = vector.multi_reduction <add>, %315, %cst_107 [1] : vector<7x32xf32> to vector<7xf32>
    %319 = vector.shape_cast %318 : vector<7xf32> to vector<7x1xf32>
    %cst_108 = arith.constant 3.200000e+01 : f32
    %320 = vector.broadcast %cst_108 : f32 to vector<7x1xf32>
    %321 = arith.divf %319, %320 : vector<7x1xf32>
    %322 = vector.broadcast %321 : vector<7x1xf32> to vector<7x32xf32>
    %323 = arith.subf %315, %322 : vector<7x32xf32>
    %324 = arith.mulf %323, %323 : vector<7x32xf32>
    %cst_109 = arith.constant dense<0.000000e+00> : vector<7xf32>
    %325 = vector.multi_reduction <add>, %324, %cst_109 [1] : vector<7x32xf32> to vector<7xf32>
    %326 = vector.shape_cast %325 : vector<7xf32> to vector<7x1xf32>
    %cst_110 = arith.constant 3.200000e+01 : f32
    %327 = vector.broadcast %cst_110 : f32 to vector<7x1xf32>
    %328 = arith.divf %326, %327 : vector<7x1xf32>
    %cst_111 = arith.constant 9.99999974E-6 : f32
    %329 = vector.broadcast %cst_111 : f32 to vector<7x1xf32>
    %330 = arith.addf %328, %329 : vector<7x1xf32>
    %331 = math.rsqrt %330 : vector<7x1xf32>
    %332 = vector.broadcast %331 : vector<7x1xf32> to vector<7x32xf32>
    %333 = arith.mulf %323, %332 : vector<7x32xf32>
    %334 = vector.broadcast %316 : vector<1x32xf32> to vector<7x32xf32>
    %335 = arith.mulf %333, %334 : vector<7x32xf32>
    %336 = vector.broadcast %317 : vector<1x32xf32> to vector<7x32xf32>
    %337 = arith.addf %335, %336 : vector<7x32xf32>
    %c352 = arith.constant 352 : index
    %c0_112 = arith.constant 0 : index
    %338 = vector.load %arg3[%c352, %c0_112] : memref<1320x128xbf16, #tpu.memory_space<vmem>>, vector<32x64xbf16>
    %339 = arith.truncf %337 : vector<7x32xf32> to vector<7x32xbf16>
    %cst_113 = arith.constant dense<0.000000e+00> : vector<7x64xf32>
    %340 = tpu.matmul %339, %338, %cst_113 {dimension_numbers = #tpu.dot_dimension_numbers<[1], [0], [0], [1], [0, 0, 1, 1], [], []>} : vector<7x32xbf16>, vector<32x64xbf16>, vector<7x64xf32> -> vector<7x64xf32>
    %c296 = arith.constant 296 : index
    %c0_114 = arith.constant 0 : index
    %341 = vector.load %arg4[%c296, %c0_114] : memref<704x128xf32, #tpu.memory_space<vmem>>, vector<1x64xf32>
    %342 = vector.broadcast %341 : vector<1x64xf32> to vector<7x64xf32>
    %343 = arith.addf %340, %342 : vector<7x64xf32>
    %cst_115 = arith.constant 0.000000e+00 : f32
    %344 = vector.broadcast %cst_115 : f32 to vector<7x64xf32>
    %345 = arith.maximumf %343, %344 : vector<7x64xf32>
    %c384 = arith.constant 384 : index
    %c0_116 = arith.constant 0 : index
    %346 = vector.load %arg3[%c384, %c0_116] : memref<1320x128xbf16, #tpu.memory_space<vmem>>, vector<64x32xbf16>
    %347 = arith.truncf %345 : vector<7x64xf32> to vector<7x64xbf16>
    %cst_117 = arith.constant dense<0.000000e+00> : vector<7x32xf32>
    %348 = tpu.matmul %347, %346, %cst_117 {dimension_numbers = #tpu.dot_dimension_numbers<[1], [0], [0], [1], [0, 0, 1, 1], [], []>} : vector<7x64xbf16>, vector<64x32xbf16>, vector<7x32xf32> -> vector<7x32xf32>
    %c304_118 = arith.constant 304 : index
    %c0_119 = arith.constant 0 : index
    %349 = vector.load %arg4[%c304_118, %c0_119] : memref<704x128xf32, #tpu.memory_space<vmem>>, vector<1x32xf32>
    %350 = vector.broadcast %349 : vector<1x32xf32> to vector<7x32xf32>
    %351 = arith.addf %348, %350 : vector<7x32xf32>
    %352 = arith.addf %337, %351 : vector<7x32xf32>
    %c312 = arith.constant 312 : index
    %c0_120 = arith.constant 0 : index
    %353 = vector.load %arg4[%c312, %c0_120] : memref<704x128xf32, #tpu.memory_space<vmem>>, vector<1x32xf32>
    %c320 = arith.constant 320 : index
    %c0_121 = arith.constant 0 : index
    %354 = vector.load %arg4[%c320, %c0_121] : memref<704x128xf32, #tpu.memory_space<vmem>>, vector<1x32xf32>
    %cst_122 = arith.constant dense<0.000000e+00> : vector<7xf32>
    %355 = vector.multi_reduction <add>, %352, %cst_122 [1] : vector<7x32xf32> to vector<7xf32>
    %356 = vector.shape_cast %355 : vector<7xf32> to vector<7x1xf32>
    %cst_123 = arith.constant 3.200000e+01 : f32
    %357 = vector.broadcast %cst_123 : f32 to vector<7x1xf32>
    %358 = arith.divf %356, %357 : vector<7x1xf32>
    %359 = vector.broadcast %358 : vector<7x1xf32> to vector<7x32xf32>
    %360 = arith.subf %352, %359 : vector<7x32xf32>
    %361 = arith.mulf %360, %360 : vector<7x32xf32>
    %cst_124 = arith.constant dense<0.000000e+00> : vector<7xf32>
    %362 = vector.multi_reduction <add>, %361, %cst_124 [1] : vector<7x32xf32> to vector<7xf32>
    %363 = vector.shape_cast %362 : vector<7xf32> to vector<7x1xf32>
    %cst_125 = arith.constant 3.200000e+01 : f32
    %364 = vector.broadcast %cst_125 : f32 to vector<7x1xf32>
    %365 = arith.divf %363, %364 : vector<7x1xf32>
    %cst_126 = arith.constant 9.99999974E-6 : f32
    %366 = vector.broadcast %cst_126 : f32 to vector<7x1xf32>
    %367 = arith.addf %365, %366 : vector<7x1xf32>
    %368 = math.rsqrt %367 : vector<7x1xf32>
    %369 = vector.broadcast %368 : vector<7x1xf32> to vector<7x32xf32>
    %370 = arith.mulf %360, %369 : vector<7x32xf32>
    %371 = vector.broadcast %353 : vector<1x32xf32> to vector<7x32xf32>
    %372 = arith.mulf %370, %371 : vector<7x32xf32>
    %373 = vector.broadcast %354 : vector<1x32xf32> to vector<7x32xf32>
    %374 = arith.addf %372, %373 : vector<7x32xf32>
    %375 = arith.addf %374, %167 : vector<7x32xf32>
    %376 = arith.addf %170, %171 : vector<64x32xf32>
    %c448 = arith.constant 448 : index
    %c0_127 = arith.constant 0 : index
    %377 = vector.load %arg3[%c448, %c0_127] : memref<1320x128xbf16, #tpu.memory_space<vmem>>, vector<32x48xbf16>
    %c328 = arith.constant 328 : index
    %c0_128 = arith.constant 0 : index
    %378 = vector.load %arg4[%c328, %c0_128] : memref<704x128xf32, #tpu.memory_space<vmem>>, vector<1x48xf32>
    %c480 = arith.constant 480 : index
    %c0_129 = arith.constant 0 : index
    %379 = vector.load %arg3[%c480, %c0_129] : memref<1320x128xbf16, #tpu.memory_space<vmem>>, vector<16x32xbf16>
    %c336_130 = arith.constant 336 : index
    %c0_131 = arith.constant 0 : index
    %380 = vector.load %arg4[%c336_130, %c0_131] : memref<704x128xf32, #tpu.memory_space<vmem>>, vector<1x32xf32>
    %381 = vector.extract_strided_slice %377 {offsets = [0, 0], sizes = [32, 16], strides = [1, 1]} : vector<32x48xbf16> to vector<32x16xbf16>
    %382 = arith.truncf %376 : vector<64x32xf32> to vector<64x32xbf16>
    %cst_132 = arith.constant dense<0.000000e+00> : vector<64x16xf32>
    %383 = tpu.matmul %382, %381, %cst_132 {dimension_numbers = #tpu.dot_dimension_numbers<[1], [0], [0], [1], [0, 0, 1, 1], [], []>} : vector<64x32xbf16>, vector<32x16xbf16>, vector<64x16xf32> -> vector<64x16xf32>
    %384 = vector.extract_strided_slice %378 {offsets = [0, 0], sizes = [1, 16], strides = [1, 1]} : vector<1x48xf32> to vector<1x16xf32>
    %385 = vector.broadcast %384 : vector<1x16xf32> to vector<64x16xf32>
    %386 = arith.addf %383, %385 : vector<64x16xf32>
    %387 = vector.extract_strided_slice %377 {offsets = [0, 16], sizes = [32, 16], strides = [1, 1]} : vector<32x48xbf16> to vector<32x16xbf16>
    %388 = arith.truncf %375 : vector<7x32xf32> to vector<7x32xbf16>
    %cst_133 = arith.constant dense<0.000000e+00> : vector<7x16xf32>
    %389 = tpu.matmul %388, %387, %cst_133 {dimension_numbers = #tpu.dot_dimension_numbers<[1], [0], [0], [1], [0, 0, 1, 1], [], []>} : vector<7x32xbf16>, vector<32x16xbf16>, vector<7x16xf32> -> vector<7x16xf32>
    %390 = vector.extract_strided_slice %378 {offsets = [0, 16], sizes = [1, 16], strides = [1, 1]} : vector<1x48xf32> to vector<1x16xf32>
    %391 = vector.broadcast %390 : vector<1x16xf32> to vector<7x16xf32>
    %392 = arith.addf %389, %391 : vector<7x16xf32>
    %393 = vector.extract_strided_slice %377 {offsets = [0, 32], sizes = [32, 16], strides = [1, 1]} : vector<32x48xbf16> to vector<32x16xbf16>
    %394 = arith.truncf %374 : vector<7x32xf32> to vector<7x32xbf16>
    %cst_134 = arith.constant dense<0.000000e+00> : vector<7x16xf32>
    %395 = tpu.matmul %394, %393, %cst_134 {dimension_numbers = #tpu.dot_dimension_numbers<[1], [0], [0], [1], [0, 0, 1, 1], [], []>} : vector<7x32xbf16>, vector<32x16xbf16>, vector<7x16xf32> -> vector<7x16xf32>
    %396 = vector.extract_strided_slice %378 {offsets = [0, 32], sizes = [1, 16], strides = [1, 1]} : vector<1x48xf32> to vector<1x16xf32>
    %397 = vector.broadcast %396 : vector<1x16xf32> to vector<7x16xf32>
    %398 = arith.addf %395, %397 : vector<7x16xf32>
    %399 = vector.extract_strided_slice %386 {offsets = [0, 0], sizes = [64, 8], strides = [1, 1]} : vector<64x16xf32> to vector<64x8xf32>
    %400 = vector.extract_strided_slice %392 {offsets = [0, 0], sizes = [7, 8], strides = [1, 1]} : vector<7x16xf32> to vector<7x8xf32>
    %401 = arith.truncf %399 : vector<64x8xf32> to vector<64x8xbf16>
    %402 = arith.truncf %400 : vector<7x8xf32> to vector<7x8xbf16>
    %cst_135 = arith.constant dense<0.000000e+00> : vector<64x7xf32>
    %403 = tpu.matmul %401, %402, %cst_135 {dimension_numbers = #tpu.dot_dimension_numbers<[1], [1], [0], [0], [0, 0, 1, 0], [], []>} : vector<64x8xbf16>, vector<7x8xbf16>, vector<64x7xf32> -> vector<64x7xf32>
    %cst_136 = arith.constant dense<0xFF800000> : vector<64xf32>
    %404 = vector.multi_reduction <maximumf>, %403, %cst_136 [1] : vector<64x7xf32> to vector<64xf32>
    %405 = vector.shape_cast %404 : vector<64xf32> to vector<64x1xf32>
    %406 = vector.broadcast %405 : vector<64x1xf32> to vector<64x7xf32>
    %407 = arith.subf %403, %406 : vector<64x7xf32>
    %408 = math.exp %407 : vector<64x7xf32>
    %cst_137 = arith.constant dense<0.000000e+00> : vector<64xf32>
    %409 = vector.multi_reduction <add>, %408, %cst_137 [1] : vector<64x7xf32> to vector<64xf32>
    %410 = vector.shape_cast %409 : vector<64xf32> to vector<64x1xf32>
    %411 = tpu.reciprocal %410 {approx = true} : vector<64x1xf32> -> vector<64x1xf32>
    %412 = vector.broadcast %411 : vector<64x1xf32> to vector<64x7xf32>
    %413 = arith.mulf %408, %412 : vector<64x7xf32>
    %414 = vector.extract_strided_slice %398 {offsets = [0, 0], sizes = [7, 8], strides = [1, 1]} : vector<7x16xf32> to vector<7x8xf32>
    %415 = arith.truncf %413 : vector<64x7xf32> to vector<64x7xbf16>
    %416 = arith.truncf %414 : vector<7x8xf32> to vector<7x8xbf16>
    %cst_138 = arith.constant dense<0.000000e+00> : vector<64x8xf32>
    %417 = tpu.matmul %415, %416, %cst_138 {dimension_numbers = #tpu.dot_dimension_numbers<[1], [0], [0], [1], [0, 0, 1, 1], [], []>} : vector<64x7xbf16>, vector<7x8xbf16>, vector<64x8xf32> -> vector<64x8xf32>
    %418 = vector.extract_strided_slice %386 {offsets = [0, 8], sizes = [64, 8], strides = [1, 1]} : vector<64x16xf32> to vector<64x8xf32>
    %419 = vector.extract_strided_slice %392 {offsets = [0, 8], sizes = [7, 8], strides = [1, 1]} : vector<7x16xf32> to vector<7x8xf32>
    %420 = arith.truncf %418 : vector<64x8xf32> to vector<64x8xbf16>
    %421 = arith.truncf %419 : vector<7x8xf32> to vector<7x8xbf16>
    %cst_139 = arith.constant dense<0.000000e+00> : vector<64x7xf32>
    %422 = tpu.matmul %420, %421, %cst_139 {dimension_numbers = #tpu.dot_dimension_numbers<[1], [1], [0], [0], [0, 0, 1, 0], [], []>} : vector<64x8xbf16>, vector<7x8xbf16>, vector<64x7xf32> -> vector<64x7xf32>
    %cst_140 = arith.constant dense<0xFF800000> : vector<64xf32>
    %423 = vector.multi_reduction <maximumf>, %422, %cst_140 [1] : vector<64x7xf32> to vector<64xf32>
    %424 = vector.shape_cast %423 : vector<64xf32> to vector<64x1xf32>
    %425 = vector.broadcast %424 : vector<64x1xf32> to vector<64x7xf32>
    %426 = arith.subf %422, %425 : vector<64x7xf32>
    %427 = math.exp %426 : vector<64x7xf32>
    %cst_141 = arith.constant dense<0.000000e+00> : vector<64xf32>
    %428 = vector.multi_reduction <add>, %427, %cst_141 [1] : vector<64x7xf32> to vector<64xf32>
    %429 = vector.shape_cast %428 : vector<64xf32> to vector<64x1xf32>
    %430 = tpu.reciprocal %429 {approx = true} : vector<64x1xf32> -> vector<64x1xf32>
    %431 = vector.broadcast %430 : vector<64x1xf32> to vector<64x7xf32>
    %432 = arith.mulf %427, %431 : vector<64x7xf32>
    %433 = vector.extract_strided_slice %398 {offsets = [0, 8], sizes = [7, 8], strides = [1, 1]} : vector<7x16xf32> to vector<7x8xf32>
    %434 = arith.truncf %432 : vector<64x7xf32> to vector<64x7xbf16>
    %435 = arith.truncf %433 : vector<7x8xf32> to vector<7x8xbf16>
    %cst_142 = arith.constant dense<0.000000e+00> : vector<64x8xf32>
    %436 = tpu.matmul %434, %435, %cst_142 {dimension_numbers = #tpu.dot_dimension_numbers<[1], [0], [0], [1], [0, 0, 1, 1], [], []>} : vector<64x7xbf16>, vector<7x8xbf16>, vector<64x8xf32> -> vector<64x8xf32>
    %437 = tpu.concatenate %417, %436 in 1 : vector<64x8xf32>, vector<64x8xf32> -> vector<64x16xf32>
    %438 = arith.truncf %437 : vector<64x16xf32> to vector<64x16xbf16>
    %cst_143 = arith.constant dense<0.000000e+00> : vector<64x32xf32>
    %439 = tpu.matmul %438, %379, %cst_143 {dimension_numbers = #tpu.dot_dimension_numbers<[1], [0], [0], [1], [0, 0, 1, 1], [], []>} : vector<64x16xbf16>, vector<16x32xbf16>, vector<64x32xf32> -> vector<64x32xf32>
    %440 = vector.broadcast %380 : vector<1x32xf32> to vector<64x32xf32>
    %441 = arith.addf %439, %440 : vector<64x32xf32>
    %442 = arith.addf %170, %441 : vector<64x32xf32>
    %c344 = arith.constant 344 : index
    %c0_144 = arith.constant 0 : index
    %443 = vector.load %arg4[%c344, %c0_144] : memref<704x128xf32, #tpu.memory_space<vmem>>, vector<1x32xf32>
    %c352_145 = arith.constant 352 : index
    %c0_146 = arith.constant 0 : index
    %444 = vector.load %arg4[%c352_145, %c0_146] : memref<704x128xf32, #tpu.memory_space<vmem>>, vector<1x32xf32>
    %cst_147 = arith.constant dense<0.000000e+00> : vector<64xf32>
    %445 = vector.multi_reduction <add>, %442, %cst_147 [1] : vector<64x32xf32> to vector<64xf32>
    %446 = vector.shape_cast %445 : vector<64xf32> to vector<64x1xf32>
    %cst_148 = arith.constant 3.200000e+01 : f32
    %447 = vector.broadcast %cst_148 : f32 to vector<64x1xf32>
    %448 = arith.divf %446, %447 : vector<64x1xf32>
    %449 = vector.broadcast %448 : vector<64x1xf32> to vector<64x32xf32>
    %450 = arith.subf %442, %449 : vector<64x32xf32>
    %451 = arith.mulf %450, %450 : vector<64x32xf32>
    %cst_149 = arith.constant dense<0.000000e+00> : vector<64xf32>
    %452 = vector.multi_reduction <add>, %451, %cst_149 [1] : vector<64x32xf32> to vector<64xf32>
    %453 = vector.shape_cast %452 : vector<64xf32> to vector<64x1xf32>
    %cst_150 = arith.constant 3.200000e+01 : f32
    %454 = vector.broadcast %cst_150 : f32 to vector<64x1xf32>
    %455 = arith.divf %453, %454 : vector<64x1xf32>
    %cst_151 = arith.constant 9.99999974E-6 : f32
    %456 = vector.broadcast %cst_151 : f32 to vector<64x1xf32>
    %457 = arith.addf %455, %456 : vector<64x1xf32>
    %458 = math.rsqrt %457 : vector<64x1xf32>
    %459 = vector.broadcast %458 : vector<64x1xf32> to vector<64x32xf32>
    %460 = arith.mulf %450, %459 : vector<64x32xf32>
    %461 = vector.broadcast %443 : vector<1x32xf32> to vector<64x32xf32>
    %462 = arith.mulf %460, %461 : vector<64x32xf32>
    %463 = vector.broadcast %444 : vector<1x32xf32> to vector<64x32xf32>
    %464 = arith.addf %462, %463 : vector<64x32xf32>
    %465 = arith.addf %374, %167 : vector<7x32xf32>
    %c496 = arith.constant 496 : index
    %c0_152 = arith.constant 0 : index
    %466 = vector.load %arg3[%c496, %c0_152] : memref<1320x128xbf16, #tpu.memory_space<vmem>>, vector<32x96xbf16>
    %c360 = arith.constant 360 : index
    %c0_153 = arith.constant 0 : index
    %467 = vector.load %arg4[%c360, %c0_153] : memref<704x128xf32, #tpu.memory_space<vmem>>, vector<1x96xf32>
    %c528 = arith.constant 528 : index
    %c0_154 = arith.constant 0 : index
    %468 = vector.load %arg3[%c528, %c0_154] : memref<1320x128xbf16, #tpu.memory_space<vmem>>, vector<32x32xbf16>
    %c368 = arith.constant 368 : index
    %c0_155 = arith.constant 0 : index
    %469 = vector.load %arg4[%c368, %c0_155] : memref<704x128xf32, #tpu.memory_space<vmem>>, vector<1x32xf32>
    %470 = vector.extract_strided_slice %466 {offsets = [0, 0], sizes = [32, 64], strides = [1, 1]} : vector<32x96xbf16> to vector<32x64xbf16>
    %471 = arith.truncf %465 : vector<7x32xf32> to vector<7x32xbf16>
    %cst_156 = arith.constant dense<0.000000e+00> : vector<7x64xf32>
    %472 = tpu.matmul %471, %470, %cst_156 {dimension_numbers = #tpu.dot_dimension_numbers<[1], [0], [0], [1], [0, 0, 1, 1], [], []>} : vector<7x32xbf16>, vector<32x64xbf16>, vector<7x64xf32> -> vector<7x64xf32>
    %473 = vector.extract_strided_slice %467 {offsets = [0, 0], sizes = [1, 64], strides = [1, 1]} : vector<1x96xf32> to vector<1x64xf32>
    %474 = vector.broadcast %473 : vector<1x64xf32> to vector<7x64xf32>
    %475 = arith.addf %472, %474 : vector<7x64xf32>
    %476 = vector.extract_strided_slice %475 {offsets = [0, 0], sizes = [7, 32], strides = [1, 1]} : vector<7x64xf32> to vector<7x32xf32>
    %477 = vector.extract_strided_slice %475 {offsets = [0, 32], sizes = [7, 32], strides = [1, 1]} : vector<7x64xf32> to vector<7x32xf32>
    %478 = vector.extract_strided_slice %466 {offsets = [0, 64], sizes = [32, 32], strides = [1, 1]} : vector<32x96xbf16> to vector<32x32xbf16>
    %479 = arith.truncf %374 : vector<7x32xf32> to vector<7x32xbf16>
    %cst_157 = arith.constant dense<0.000000e+00> : vector<7x32xf32>
    %480 = tpu.matmul %479, %478, %cst_157 {dimension_numbers = #tpu.dot_dimension_numbers<[1], [0], [0], [1], [0, 0, 1, 1], [], []>} : vector<7x32xbf16>, vector<32x32xbf16>, vector<7x32xf32> -> vector<7x32xf32>
    %481 = vector.extract_strided_slice %467 {offsets = [0, 64], sizes = [1, 32], strides = [1, 1]} : vector<1x96xf32> to vector<1x32xf32>
    %482 = vector.broadcast %481 : vector<1x32xf32> to vector<7x32xf32>
    %483 = arith.addf %480, %482 : vector<7x32xf32>
    %484 = vector.extract_strided_slice %476 {offsets = [0, 0], sizes = [7, 16], strides = [1, 1]} : vector<7x32xf32> to vector<7x16xf32>
    %485 = vector.extract_strided_slice %477 {offsets = [0, 0], sizes = [7, 16], strides = [1, 1]} : vector<7x32xf32> to vector<7x16xf32>
    %486 = arith.truncf %484 : vector<7x16xf32> to vector<7x16xbf16>
    %487 = arith.truncf %485 : vector<7x16xf32> to vector<7x16xbf16>
    %cst_158 = arith.constant dense<0.000000e+00> : vector<7x7xf32>
    %488 = tpu.matmul %486, %487, %cst_158 {dimension_numbers = #tpu.dot_dimension_numbers<[1], [1], [0], [0], [0, 0, 1, 0], [], []>} : vector<7x16xbf16>, vector<7x16xbf16>, vector<7x7xf32> -> vector<7x7xf32>
    %cst_159 = arith.constant dense<0xFF800000> : vector<7xf32>
    %489 = vector.multi_reduction <maximumf>, %488, %cst_159 [1] : vector<7x7xf32> to vector<7xf32>
    %490 = vector.shape_cast %489 : vector<7xf32> to vector<7x1xf32>
    %491 = vector.broadcast %490 : vector<7x1xf32> to vector<7x7xf32>
    %492 = arith.subf %488, %491 : vector<7x7xf32>
    %493 = math.exp %492 : vector<7x7xf32>
    %cst_160 = arith.constant dense<0.000000e+00> : vector<7xf32>
    %494 = vector.multi_reduction <add>, %493, %cst_160 [1] : vector<7x7xf32> to vector<7xf32>
    %495 = vector.shape_cast %494 : vector<7xf32> to vector<7x1xf32>
    %496 = tpu.reciprocal %495 {approx = true} : vector<7x1xf32> -> vector<7x1xf32>
    %497 = vector.broadcast %496 : vector<7x1xf32> to vector<7x7xf32>
    %498 = arith.mulf %493, %497 : vector<7x7xf32>
    %499 = vector.extract_strided_slice %483 {offsets = [0, 0], sizes = [7, 16], strides = [1, 1]} : vector<7x32xf32> to vector<7x16xf32>
    %500 = arith.truncf %498 : vector<7x7xf32> to vector<7x7xbf16>
    %501 = arith.truncf %499 : vector<7x16xf32> to vector<7x16xbf16>
    %cst_161 = arith.constant dense<0.000000e+00> : vector<7x16xf32>
    %502 = tpu.matmul %500, %501, %cst_161 {dimension_numbers = #tpu.dot_dimension_numbers<[1], [0], [0], [1], [0, 0, 1, 1], [], []>} : vector<7x7xbf16>, vector<7x16xbf16>, vector<7x16xf32> -> vector<7x16xf32>
    %503 = vector.extract_strided_slice %476 {offsets = [0, 16], sizes = [7, 16], strides = [1, 1]} : vector<7x32xf32> to vector<7x16xf32>
    %504 = vector.extract_strided_slice %477 {offsets = [0, 16], sizes = [7, 16], strides = [1, 1]} : vector<7x32xf32> to vector<7x16xf32>
    %505 = arith.truncf %503 : vector<7x16xf32> to vector<7x16xbf16>
    %506 = arith.truncf %504 : vector<7x16xf32> to vector<7x16xbf16>
    %cst_162 = arith.constant dense<0.000000e+00> : vector<7x7xf32>
    %507 = tpu.matmul %505, %506, %cst_162 {dimension_numbers = #tpu.dot_dimension_numbers<[1], [1], [0], [0], [0, 0, 1, 0], [], []>} : vector<7x16xbf16>, vector<7x16xbf16>, vector<7x7xf32> -> vector<7x7xf32>
    %cst_163 = arith.constant dense<0xFF800000> : vector<7xf32>
    %508 = vector.multi_reduction <maximumf>, %507, %cst_163 [1] : vector<7x7xf32> to vector<7xf32>
    %509 = vector.shape_cast %508 : vector<7xf32> to vector<7x1xf32>
    %510 = vector.broadcast %509 : vector<7x1xf32> to vector<7x7xf32>
    %511 = arith.subf %507, %510 : vector<7x7xf32>
    %512 = math.exp %511 : vector<7x7xf32>
    %cst_164 = arith.constant dense<0.000000e+00> : vector<7xf32>
    %513 = vector.multi_reduction <add>, %512, %cst_164 [1] : vector<7x7xf32> to vector<7xf32>
    %514 = vector.shape_cast %513 : vector<7xf32> to vector<7x1xf32>
    %515 = tpu.reciprocal %514 {approx = true} : vector<7x1xf32> -> vector<7x1xf32>
    %516 = vector.broadcast %515 : vector<7x1xf32> to vector<7x7xf32>
    %517 = arith.mulf %512, %516 : vector<7x7xf32>
    %518 = vector.extract_strided_slice %483 {offsets = [0, 16], sizes = [7, 16], strides = [1, 1]} : vector<7x32xf32> to vector<7x16xf32>
    %519 = arith.truncf %517 : vector<7x7xf32> to vector<7x7xbf16>
    %520 = arith.truncf %518 : vector<7x16xf32> to vector<7x16xbf16>
    %cst_165 = arith.constant dense<0.000000e+00> : vector<7x16xf32>
    %521 = tpu.matmul %519, %520, %cst_165 {dimension_numbers = #tpu.dot_dimension_numbers<[1], [0], [0], [1], [0, 0, 1, 1], [], []>} : vector<7x7xbf16>, vector<7x16xbf16>, vector<7x16xf32> -> vector<7x16xf32>
    %522 = tpu.concatenate %502, %521 in 1 : vector<7x16xf32>, vector<7x16xf32> -> vector<7x32xf32>
    %523 = arith.truncf %522 : vector<7x32xf32> to vector<7x32xbf16>
    %cst_166 = arith.constant dense<0.000000e+00> : vector<7x32xf32>
    %524 = tpu.matmul %523, %468, %cst_166 {dimension_numbers = #tpu.dot_dimension_numbers<[1], [0], [0], [1], [0, 0, 1, 1], [], []>} : vector<7x32xbf16>, vector<32x32xbf16>, vector<7x32xf32> -> vector<7x32xf32>
    %525 = vector.broadcast %469 : vector<1x32xf32> to vector<7x32xf32>
    %526 = arith.addf %524, %525 : vector<7x32xf32>
    %527 = arith.addf %374, %526 : vector<7x32xf32>
    %c376 = arith.constant 376 : index
    %c0_167 = arith.constant 0 : index
    %528 = vector.load %arg4[%c376, %c0_167] : memref<704x128xf32, #tpu.memory_space<vmem>>, vector<1x32xf32>
    %c384_168 = arith.constant 384 : index
    %c0_169 = arith.constant 0 : index
    %529 = vector.load %arg4[%c384_168, %c0_169] : memref<704x128xf32, #tpu.memory_space<vmem>>, vector<1x32xf32>
    %cst_170 = arith.constant dense<0.000000e+00> : vector<7xf32>
    %530 = vector.multi_reduction <add>, %527, %cst_170 [1] : vector<7x32xf32> to vector<7xf32>
    %531 = vector.shape_cast %530 : vector<7xf32> to vector<7x1xf32>
    %cst_171 = arith.constant 3.200000e+01 : f32
    %532 = vector.broadcast %cst_171 : f32 to vector<7x1xf32>
    %533 = arith.divf %531, %532 : vector<7x1xf32>
    %534 = vector.broadcast %533 : vector<7x1xf32> to vector<7x32xf32>
    %535 = arith.subf %527, %534 : vector<7x32xf32>
    %536 = arith.mulf %535, %535 : vector<7x32xf32>
    %cst_172 = arith.constant dense<0.000000e+00> : vector<7xf32>
    %537 = vector.multi_reduction <add>, %536, %cst_172 [1] : vector<7x32xf32> to vector<7xf32>
    %538 = vector.shape_cast %537 : vector<7xf32> to vector<7x1xf32>
    %cst_173 = arith.constant 3.200000e+01 : f32
    %539 = vector.broadcast %cst_173 : f32 to vector<7x1xf32>
    %540 = arith.divf %538, %539 : vector<7x1xf32>
    %cst_174 = arith.constant 9.99999974E-6 : f32
    %541 = vector.broadcast %cst_174 : f32 to vector<7x1xf32>
    %542 = arith.addf %540, %541 : vector<7x1xf32>
    %543 = math.rsqrt %542 : vector<7x1xf32>
    %544 = vector.broadcast %543 : vector<7x1xf32> to vector<7x32xf32>
    %545 = arith.mulf %535, %544 : vector<7x32xf32>
    %546 = vector.broadcast %528 : vector<1x32xf32> to vector<7x32xf32>
    %547 = arith.mulf %545, %546 : vector<7x32xf32>
    %548 = vector.broadcast %529 : vector<1x32xf32> to vector<7x32xf32>
    %549 = arith.addf %547, %548 : vector<7x32xf32>
    %550 = arith.addf %549, %167 : vector<7x32xf32>
    %551 = arith.addf %464, %171 : vector<64x32xf32>
    %c560 = arith.constant 560 : index
    %c0_175 = arith.constant 0 : index
    %552 = vector.load %arg3[%c560, %c0_175] : memref<1320x128xbf16, #tpu.memory_space<vmem>>, vector<32x48xbf16>
    %c392 = arith.constant 392 : index
    %c0_176 = arith.constant 0 : index
    %553 = vector.load %arg4[%c392, %c0_176] : memref<704x128xf32, #tpu.memory_space<vmem>>, vector<1x48xf32>
    %c592 = arith.constant 592 : index
    %c0_177 = arith.constant 0 : index
    %554 = vector.load %arg3[%c592, %c0_177] : memref<1320x128xbf16, #tpu.memory_space<vmem>>, vector<16x32xbf16>
    %c400 = arith.constant 400 : index
    %c0_178 = arith.constant 0 : index
    %555 = vector.load %arg4[%c400, %c0_178] : memref<704x128xf32, #tpu.memory_space<vmem>>, vector<1x32xf32>
    %556 = vector.extract_strided_slice %552 {offsets = [0, 0], sizes = [32, 16], strides = [1, 1]} : vector<32x48xbf16> to vector<32x16xbf16>
    %557 = arith.truncf %550 : vector<7x32xf32> to vector<7x32xbf16>
    %cst_179 = arith.constant dense<0.000000e+00> : vector<7x16xf32>
    %558 = tpu.matmul %557, %556, %cst_179 {dimension_numbers = #tpu.dot_dimension_numbers<[1], [0], [0], [1], [0, 0, 1, 1], [], []>} : vector<7x32xbf16>, vector<32x16xbf16>, vector<7x16xf32> -> vector<7x16xf32>
    %559 = vector.extract_strided_slice %553 {offsets = [0, 0], sizes = [1, 16], strides = [1, 1]} : vector<1x48xf32> to vector<1x16xf32>
    %560 = vector.broadcast %559 : vector<1x16xf32> to vector<7x16xf32>
    %561 = arith.addf %558, %560 : vector<7x16xf32>
    %562 = vector.extract_strided_slice %552 {offsets = [0, 16], sizes = [32, 16], strides = [1, 1]} : vector<32x48xbf16> to vector<32x16xbf16>
    %563 = arith.truncf %551 : vector<64x32xf32> to vector<64x32xbf16>
    %cst_180 = arith.constant dense<0.000000e+00> : vector<64x16xf32>
    %564 = tpu.matmul %563, %562, %cst_180 {dimension_numbers = #tpu.dot_dimension_numbers<[1], [0], [0], [1], [0, 0, 1, 1], [], []>} : vector<64x32xbf16>, vector<32x16xbf16>, vector<64x16xf32> -> vector<64x16xf32>
    %565 = vector.extract_strided_slice %553 {offsets = [0, 16], sizes = [1, 16], strides = [1, 1]} : vector<1x48xf32> to vector<1x16xf32>
    %566 = vector.broadcast %565 : vector<1x16xf32> to vector<64x16xf32>
    %567 = arith.addf %564, %566 : vector<64x16xf32>
    %568 = vector.extract_strided_slice %552 {offsets = [0, 32], sizes = [32, 16], strides = [1, 1]} : vector<32x48xbf16> to vector<32x16xbf16>
    %569 = arith.truncf %464 : vector<64x32xf32> to vector<64x32xbf16>
    %cst_181 = arith.constant dense<0.000000e+00> : vector<64x16xf32>
    %570 = tpu.matmul %569, %568, %cst_181 {dimension_numbers = #tpu.dot_dimension_numbers<[1], [0], [0], [1], [0, 0, 1, 1], [], []>} : vector<64x32xbf16>, vector<32x16xbf16>, vector<64x16xf32> -> vector<64x16xf32>
    %571 = vector.extract_strided_slice %553 {offsets = [0, 32], sizes = [1, 16], strides = [1, 1]} : vector<1x48xf32> to vector<1x16xf32>
    %572 = vector.broadcast %571 : vector<1x16xf32> to vector<64x16xf32>
    %573 = arith.addf %570, %572 : vector<64x16xf32>
    %574 = vector.extract_strided_slice %561 {offsets = [0, 0], sizes = [7, 8], strides = [1, 1]} : vector<7x16xf32> to vector<7x8xf32>
    %575 = vector.extract_strided_slice %567 {offsets = [0, 0], sizes = [64, 8], strides = [1, 1]} : vector<64x16xf32> to vector<64x8xf32>
    %576 = arith.truncf %574 : vector<7x8xf32> to vector<7x8xbf16>
    %577 = arith.truncf %575 : vector<64x8xf32> to vector<64x8xbf16>
    %cst_182 = arith.constant dense<0.000000e+00> : vector<7x64xf32>
    %578 = tpu.matmul %576, %577, %cst_182 {dimension_numbers = #tpu.dot_dimension_numbers<[1], [1], [0], [0], [0, 0, 1, 0], [], []>} : vector<7x8xbf16>, vector<64x8xbf16>, vector<7x64xf32> -> vector<7x64xf32>
    %cst_183 = arith.constant dense<0xFF800000> : vector<7xf32>
    %579 = vector.multi_reduction <maximumf>, %578, %cst_183 [1] : vector<7x64xf32> to vector<7xf32>
    %580 = vector.shape_cast %579 : vector<7xf32> to vector<7x1xf32>
    %581 = vector.broadcast %580 : vector<7x1xf32> to vector<7x64xf32>
    %582 = arith.subf %578, %581 : vector<7x64xf32>
    %583 = math.exp %582 : vector<7x64xf32>
    %cst_184 = arith.constant dense<0.000000e+00> : vector<7xf32>
    %584 = vector.multi_reduction <add>, %583, %cst_184 [1] : vector<7x64xf32> to vector<7xf32>
    %585 = vector.shape_cast %584 : vector<7xf32> to vector<7x1xf32>
    %586 = tpu.reciprocal %585 {approx = true} : vector<7x1xf32> -> vector<7x1xf32>
    %587 = vector.broadcast %586 : vector<7x1xf32> to vector<7x64xf32>
    %588 = arith.mulf %583, %587 : vector<7x64xf32>
    %589 = vector.extract_strided_slice %573 {offsets = [0, 0], sizes = [64, 8], strides = [1, 1]} : vector<64x16xf32> to vector<64x8xf32>
    %590 = arith.truncf %588 : vector<7x64xf32> to vector<7x64xbf16>
    %591 = arith.truncf %589 : vector<64x8xf32> to vector<64x8xbf16>
    %cst_185 = arith.constant dense<0.000000e+00> : vector<7x8xf32>
    %592 = tpu.matmul %590, %591, %cst_185 {dimension_numbers = #tpu.dot_dimension_numbers<[1], [0], [0], [1], [0, 0, 1, 1], [], []>} : vector<7x64xbf16>, vector<64x8xbf16>, vector<7x8xf32> -> vector<7x8xf32>
    %593 = vector.extract_strided_slice %561 {offsets = [0, 8], sizes = [7, 8], strides = [1, 1]} : vector<7x16xf32> to vector<7x8xf32>
    %594 = vector.extract_strided_slice %567 {offsets = [0, 8], sizes = [64, 8], strides = [1, 1]} : vector<64x16xf32> to vector<64x8xf32>
    %595 = arith.truncf %593 : vector<7x8xf32> to vector<7x8xbf16>
    %596 = arith.truncf %594 : vector<64x8xf32> to vector<64x8xbf16>
    %cst_186 = arith.constant dense<0.000000e+00> : vector<7x64xf32>
    %597 = tpu.matmul %595, %596, %cst_186 {dimension_numbers = #tpu.dot_dimension_numbers<[1], [1], [0], [0], [0, 0, 1, 0], [], []>} : vector<7x8xbf16>, vector<64x8xbf16>, vector<7x64xf32> -> vector<7x64xf32>
    %cst_187 = arith.constant dense<0xFF800000> : vector<7xf32>
    %598 = vector.multi_reduction <maximumf>, %597, %cst_187 [1] : vector<7x64xf32> to vector<7xf32>
    %599 = vector.shape_cast %598 : vector<7xf32> to vector<7x1xf32>
    %600 = vector.broadcast %599 : vector<7x1xf32> to vector<7x64xf32>
    %601 = arith.subf %597, %600 : vector<7x64xf32>
    %602 = math.exp %601 : vector<7x64xf32>
    %cst_188 = arith.constant dense<0.000000e+00> : vector<7xf32>
    %603 = vector.multi_reduction <add>, %602, %cst_188 [1] : vector<7x64xf32> to vector<7xf32>
    %604 = vector.shape_cast %603 : vector<7xf32> to vector<7x1xf32>
    %605 = tpu.reciprocal %604 {approx = true} : vector<7x1xf32> -> vector<7x1xf32>
    %606 = vector.broadcast %605 : vector<7x1xf32> to vector<7x64xf32>
    %607 = arith.mulf %602, %606 : vector<7x64xf32>
    %608 = vector.extract_strided_slice %573 {offsets = [0, 8], sizes = [64, 8], strides = [1, 1]} : vector<64x16xf32> to vector<64x8xf32>
    %609 = arith.truncf %607 : vector<7x64xf32> to vector<7x64xbf16>
    %610 = arith.truncf %608 : vector<64x8xf32> to vector<64x8xbf16>
    %cst_189 = arith.constant dense<0.000000e+00> : vector<7x8xf32>
    %611 = tpu.matmul %609, %610, %cst_189 {dimension_numbers = #tpu.dot_dimension_numbers<[1], [0], [0], [1], [0, 0, 1, 1], [], []>} : vector<7x64xbf16>, vector<64x8xbf16>, vector<7x8xf32> -> vector<7x8xf32>
    %612 = tpu.concatenate %592, %611 in 1 : vector<7x8xf32>, vector<7x8xf32> -> vector<7x16xf32>
    %613 = arith.truncf %612 : vector<7x16xf32> to vector<7x16xbf16>
    %cst_190 = arith.constant dense<0.000000e+00> : vector<7x32xf32>
    %614 = tpu.matmul %613, %554, %cst_190 {dimension_numbers = #tpu.dot_dimension_numbers<[1], [0], [0], [1], [0, 0, 1, 1], [], []>} : vector<7x16xbf16>, vector<16x32xbf16>, vector<7x32xf32> -> vector<7x32xf32>
    %615 = vector.broadcast %555 : vector<1x32xf32> to vector<7x32xf32>
    %616 = arith.addf %614, %615 : vector<7x32xf32>
    %617 = arith.addf %549, %616 : vector<7x32xf32>
    %c408 = arith.constant 408 : index
    %c0_191 = arith.constant 0 : index
    %618 = vector.load %arg4[%c408, %c0_191] : memref<704x128xf32, #tpu.memory_space<vmem>>, vector<1x32xf32>
    %c416 = arith.constant 416 : index
    %c0_192 = arith.constant 0 : index
    %619 = vector.load %arg4[%c416, %c0_192] : memref<704x128xf32, #tpu.memory_space<vmem>>, vector<1x32xf32>
    %cst_193 = arith.constant dense<0.000000e+00> : vector<7xf32>
    %620 = vector.multi_reduction <add>, %617, %cst_193 [1] : vector<7x32xf32> to vector<7xf32>
    %621 = vector.shape_cast %620 : vector<7xf32> to vector<7x1xf32>
    %cst_194 = arith.constant 3.200000e+01 : f32
    %622 = vector.broadcast %cst_194 : f32 to vector<7x1xf32>
    %623 = arith.divf %621, %622 : vector<7x1xf32>
    %624 = vector.broadcast %623 : vector<7x1xf32> to vector<7x32xf32>
    %625 = arith.subf %617, %624 : vector<7x32xf32>
    %626 = arith.mulf %625, %625 : vector<7x32xf32>
    %cst_195 = arith.constant dense<0.000000e+00> : vector<7xf32>
    %627 = vector.multi_reduction <add>, %626, %cst_195 [1] : vector<7x32xf32> to vector<7xf32>
    %628 = vector.shape_cast %627 : vector<7xf32> to vector<7x1xf32>
    %cst_196 = arith.constant 3.200000e+01 : f32
    %629 = vector.broadcast %cst_196 : f32 to vector<7x1xf32>
    %630 = arith.divf %628, %629 : vector<7x1xf32>
    %cst_197 = arith.constant 9.99999974E-6 : f32
    %631 = vector.broadcast %cst_197 : f32 to vector<7x1xf32>
    %632 = arith.addf %630, %631 : vector<7x1xf32>
    %633 = math.rsqrt %632 : vector<7x1xf32>
    %634 = vector.broadcast %633 : vector<7x1xf32> to vector<7x32xf32>
    %635 = arith.mulf %625, %634 : vector<7x32xf32>
    %636 = vector.broadcast %618 : vector<1x32xf32> to vector<7x32xf32>
    %637 = arith.mulf %635, %636 : vector<7x32xf32>
    %638 = vector.broadcast %619 : vector<1x32xf32> to vector<7x32xf32>
    %639 = arith.addf %637, %638 : vector<7x32xf32>
    %c608 = arith.constant 608 : index
    %c0_198 = arith.constant 0 : index
    %640 = vector.load %arg3[%c608, %c0_198] : memref<1320x128xbf16, #tpu.memory_space<vmem>>, vector<32x64xbf16>
    %641 = arith.truncf %639 : vector<7x32xf32> to vector<7x32xbf16>
    %cst_199 = arith.constant dense<0.000000e+00> : vector<7x64xf32>
    %642 = tpu.matmul %641, %640, %cst_199 {dimension_numbers = #tpu.dot_dimension_numbers<[1], [0], [0], [1], [0, 0, 1, 1], [], []>} : vector<7x32xbf16>, vector<32x64xbf16>, vector<7x64xf32> -> vector<7x64xf32>
    %c424 = arith.constant 424 : index
    %c0_200 = arith.constant 0 : index
    %643 = vector.load %arg4[%c424, %c0_200] : memref<704x128xf32, #tpu.memory_space<vmem>>, vector<1x64xf32>
    %644 = vector.broadcast %643 : vector<1x64xf32> to vector<7x64xf32>
    %645 = arith.addf %642, %644 : vector<7x64xf32>
    %cst_201 = arith.constant 0.000000e+00 : f32
    %646 = vector.broadcast %cst_201 : f32 to vector<7x64xf32>
    %647 = arith.maximumf %645, %646 : vector<7x64xf32>
    %c640 = arith.constant 640 : index
    %c0_202 = arith.constant 0 : index
    %648 = vector.load %arg3[%c640, %c0_202] : memref<1320x128xbf16, #tpu.memory_space<vmem>>, vector<64x32xbf16>
    %649 = arith.truncf %647 : vector<7x64xf32> to vector<7x64xbf16>
    %cst_203 = arith.constant dense<0.000000e+00> : vector<7x32xf32>
    %650 = tpu.matmul %649, %648, %cst_203 {dimension_numbers = #tpu.dot_dimension_numbers<[1], [0], [0], [1], [0, 0, 1, 1], [], []>} : vector<7x64xbf16>, vector<64x32xbf16>, vector<7x32xf32> -> vector<7x32xf32>
    %c432 = arith.constant 432 : index
    %c0_204 = arith.constant 0 : index
    %651 = vector.load %arg4[%c432, %c0_204] : memref<704x128xf32, #tpu.memory_space<vmem>>, vector<1x32xf32>
    %652 = vector.broadcast %651 : vector<1x32xf32> to vector<7x32xf32>
    %653 = arith.addf %650, %652 : vector<7x32xf32>
    %654 = arith.addf %639, %653 : vector<7x32xf32>
    %c440 = arith.constant 440 : index
    %c0_205 = arith.constant 0 : index
    %655 = vector.load %arg4[%c440, %c0_205] : memref<704x128xf32, #tpu.memory_space<vmem>>, vector<1x32xf32>
    %c448_206 = arith.constant 448 : index
    %c0_207 = arith.constant 0 : index
    %656 = vector.load %arg4[%c448_206, %c0_207] : memref<704x128xf32, #tpu.memory_space<vmem>>, vector<1x32xf32>
    %cst_208 = arith.constant dense<0.000000e+00> : vector<7xf32>
    %657 = vector.multi_reduction <add>, %654, %cst_208 [1] : vector<7x32xf32> to vector<7xf32>
    %658 = vector.shape_cast %657 : vector<7xf32> to vector<7x1xf32>
    %cst_209 = arith.constant 3.200000e+01 : f32
    %659 = vector.broadcast %cst_209 : f32 to vector<7x1xf32>
    %660 = arith.divf %658, %659 : vector<7x1xf32>
    %661 = vector.broadcast %660 : vector<7x1xf32> to vector<7x32xf32>
    %662 = arith.subf %654, %661 : vector<7x32xf32>
    %663 = arith.mulf %662, %662 : vector<7x32xf32>
    %cst_210 = arith.constant dense<0.000000e+00> : vector<7xf32>
    %664 = vector.multi_reduction <add>, %663, %cst_210 [1] : vector<7x32xf32> to vector<7xf32>
    %665 = vector.shape_cast %664 : vector<7xf32> to vector<7x1xf32>
    %cst_211 = arith.constant 3.200000e+01 : f32
    %666 = vector.broadcast %cst_211 : f32 to vector<7x1xf32>
    %667 = arith.divf %665, %666 : vector<7x1xf32>
    %cst_212 = arith.constant 9.99999974E-6 : f32
    %668 = vector.broadcast %cst_212 : f32 to vector<7x1xf32>
    %669 = arith.addf %667, %668 : vector<7x1xf32>
    %670 = math.rsqrt %669 : vector<7x1xf32>
    %671 = vector.broadcast %670 : vector<7x1xf32> to vector<7x32xf32>
    %672 = arith.mulf %662, %671 : vector<7x32xf32>
    %673 = vector.broadcast %655 : vector<1x32xf32> to vector<7x32xf32>
    %674 = arith.mulf %672, %673 : vector<7x32xf32>
    %675 = vector.broadcast %656 : vector<1x32xf32> to vector<7x32xf32>
    %676 = arith.addf %674, %675 : vector<7x32xf32>
    %677 = arith.addf %676, %167 : vector<7x32xf32>
    %678 = arith.addf %464, %171 : vector<64x32xf32>
    %c704 = arith.constant 704 : index
    %c0_213 = arith.constant 0 : index
    %679 = vector.load %arg3[%c704, %c0_213] : memref<1320x128xbf16, #tpu.memory_space<vmem>>, vector<32x48xbf16>
    %c456 = arith.constant 456 : index
    %c0_214 = arith.constant 0 : index
    %680 = vector.load %arg4[%c456, %c0_214] : memref<704x128xf32, #tpu.memory_space<vmem>>, vector<1x48xf32>
    %c736 = arith.constant 736 : index
    %c0_215 = arith.constant 0 : index
    %681 = vector.load %arg3[%c736, %c0_215] : memref<1320x128xbf16, #tpu.memory_space<vmem>>, vector<16x32xbf16>
    %c464 = arith.constant 464 : index
    %c0_216 = arith.constant 0 : index
    %682 = vector.load %arg4[%c464, %c0_216] : memref<704x128xf32, #tpu.memory_space<vmem>>, vector<1x32xf32>
    %683 = vector.extract_strided_slice %679 {offsets = [0, 0], sizes = [32, 16], strides = [1, 1]} : vector<32x48xbf16> to vector<32x16xbf16>
    %684 = arith.truncf %678 : vector<64x32xf32> to vector<64x32xbf16>
    %cst_217 = arith.constant dense<0.000000e+00> : vector<64x16xf32>
    %685 = tpu.matmul %684, %683, %cst_217 {dimension_numbers = #tpu.dot_dimension_numbers<[1], [0], [0], [1], [0, 0, 1, 1], [], []>} : vector<64x32xbf16>, vector<32x16xbf16>, vector<64x16xf32> -> vector<64x16xf32>
    %686 = vector.extract_strided_slice %680 {offsets = [0, 0], sizes = [1, 16], strides = [1, 1]} : vector<1x48xf32> to vector<1x16xf32>
    %687 = vector.broadcast %686 : vector<1x16xf32> to vector<64x16xf32>
    %688 = arith.addf %685, %687 : vector<64x16xf32>
    %689 = vector.extract_strided_slice %679 {offsets = [0, 16], sizes = [32, 16], strides = [1, 1]} : vector<32x48xbf16> to vector<32x16xbf16>
    %690 = arith.truncf %677 : vector<7x32xf32> to vector<7x32xbf16>
    %cst_218 = arith.constant dense<0.000000e+00> : vector<7x16xf32>
    %691 = tpu.matmul %690, %689, %cst_218 {dimension_numbers = #tpu.dot_dimension_numbers<[1], [0], [0], [1], [0, 0, 1, 1], [], []>} : vector<7x32xbf16>, vector<32x16xbf16>, vector<7x16xf32> -> vector<7x16xf32>
    %692 = vector.extract_strided_slice %680 {offsets = [0, 16], sizes = [1, 16], strides = [1, 1]} : vector<1x48xf32> to vector<1x16xf32>
    %693 = vector.broadcast %692 : vector<1x16xf32> to vector<7x16xf32>
    %694 = arith.addf %691, %693 : vector<7x16xf32>
    %695 = vector.extract_strided_slice %679 {offsets = [0, 32], sizes = [32, 16], strides = [1, 1]} : vector<32x48xbf16> to vector<32x16xbf16>
    %696 = arith.truncf %676 : vector<7x32xf32> to vector<7x32xbf16>
    %cst_219 = arith.constant dense<0.000000e+00> : vector<7x16xf32>
    %697 = tpu.matmul %696, %695, %cst_219 {dimension_numbers = #tpu.dot_dimension_numbers<[1], [0], [0], [1], [0, 0, 1, 1], [], []>} : vector<7x32xbf16>, vector<32x16xbf16>, vector<7x16xf32> -> vector<7x16xf32>
    %698 = vector.extract_strided_slice %680 {offsets = [0, 32], sizes = [1, 16], strides = [1, 1]} : vector<1x48xf32> to vector<1x16xf32>
    %699 = vector.broadcast %698 : vector<1x16xf32> to vector<7x16xf32>
    %700 = arith.addf %697, %699 : vector<7x16xf32>
    %701 = vector.extract_strided_slice %688 {offsets = [0, 0], sizes = [64, 8], strides = [1, 1]} : vector<64x16xf32> to vector<64x8xf32>
    %702 = vector.extract_strided_slice %694 {offsets = [0, 0], sizes = [7, 8], strides = [1, 1]} : vector<7x16xf32> to vector<7x8xf32>
    %703 = arith.truncf %701 : vector<64x8xf32> to vector<64x8xbf16>
    %704 = arith.truncf %702 : vector<7x8xf32> to vector<7x8xbf16>
    %cst_220 = arith.constant dense<0.000000e+00> : vector<64x7xf32>
    %705 = tpu.matmul %703, %704, %cst_220 {dimension_numbers = #tpu.dot_dimension_numbers<[1], [1], [0], [0], [0, 0, 1, 0], [], []>} : vector<64x8xbf16>, vector<7x8xbf16>, vector<64x7xf32> -> vector<64x7xf32>
    %cst_221 = arith.constant dense<0xFF800000> : vector<64xf32>
    %706 = vector.multi_reduction <maximumf>, %705, %cst_221 [1] : vector<64x7xf32> to vector<64xf32>
    %707 = vector.shape_cast %706 : vector<64xf32> to vector<64x1xf32>
    %708 = vector.broadcast %707 : vector<64x1xf32> to vector<64x7xf32>
    %709 = arith.subf %705, %708 : vector<64x7xf32>
    %710 = math.exp %709 : vector<64x7xf32>
    %cst_222 = arith.constant dense<0.000000e+00> : vector<64xf32>
    %711 = vector.multi_reduction <add>, %710, %cst_222 [1] : vector<64x7xf32> to vector<64xf32>
    %712 = vector.shape_cast %711 : vector<64xf32> to vector<64x1xf32>
    %713 = tpu.reciprocal %712 {approx = true} : vector<64x1xf32> -> vector<64x1xf32>
    %714 = vector.broadcast %713 : vector<64x1xf32> to vector<64x7xf32>
    %715 = arith.mulf %710, %714 : vector<64x7xf32>
    %716 = vector.extract_strided_slice %700 {offsets = [0, 0], sizes = [7, 8], strides = [1, 1]} : vector<7x16xf32> to vector<7x8xf32>
    %717 = arith.truncf %715 : vector<64x7xf32> to vector<64x7xbf16>
    %718 = arith.truncf %716 : vector<7x8xf32> to vector<7x8xbf16>
    %cst_223 = arith.constant dense<0.000000e+00> : vector<64x8xf32>
    %719 = tpu.matmul %717, %718, %cst_223 {dimension_numbers = #tpu.dot_dimension_numbers<[1], [0], [0], [1], [0, 0, 1, 1], [], []>} : vector<64x7xbf16>, vector<7x8xbf16>, vector<64x8xf32> -> vector<64x8xf32>
    %720 = vector.extract_strided_slice %688 {offsets = [0, 8], sizes = [64, 8], strides = [1, 1]} : vector<64x16xf32> to vector<64x8xf32>
    %721 = vector.extract_strided_slice %694 {offsets = [0, 8], sizes = [7, 8], strides = [1, 1]} : vector<7x16xf32> to vector<7x8xf32>
    %722 = arith.truncf %720 : vector<64x8xf32> to vector<64x8xbf16>
    %723 = arith.truncf %721 : vector<7x8xf32> to vector<7x8xbf16>
    %cst_224 = arith.constant dense<0.000000e+00> : vector<64x7xf32>
    %724 = tpu.matmul %722, %723, %cst_224 {dimension_numbers = #tpu.dot_dimension_numbers<[1], [1], [0], [0], [0, 0, 1, 0], [], []>} : vector<64x8xbf16>, vector<7x8xbf16>, vector<64x7xf32> -> vector<64x7xf32>
    %cst_225 = arith.constant dense<0xFF800000> : vector<64xf32>
    %725 = vector.multi_reduction <maximumf>, %724, %cst_225 [1] : vector<64x7xf32> to vector<64xf32>
    %726 = vector.shape_cast %725 : vector<64xf32> to vector<64x1xf32>
    %727 = vector.broadcast %726 : vector<64x1xf32> to vector<64x7xf32>
    %728 = arith.subf %724, %727 : vector<64x7xf32>
    %729 = math.exp %728 : vector<64x7xf32>
    %cst_226 = arith.constant dense<0.000000e+00> : vector<64xf32>
    %730 = vector.multi_reduction <add>, %729, %cst_226 [1] : vector<64x7xf32> to vector<64xf32>
    %731 = vector.shape_cast %730 : vector<64xf32> to vector<64x1xf32>
    %732 = tpu.reciprocal %731 {approx = true} : vector<64x1xf32> -> vector<64x1xf32>
    %733 = vector.broadcast %732 : vector<64x1xf32> to vector<64x7xf32>
    %734 = arith.mulf %729, %733 : vector<64x7xf32>
    %735 = vector.extract_strided_slice %700 {offsets = [0, 8], sizes = [7, 8], strides = [1, 1]} : vector<7x16xf32> to vector<7x8xf32>
    %736 = arith.truncf %734 : vector<64x7xf32> to vector<64x7xbf16>
    %737 = arith.truncf %735 : vector<7x8xf32> to vector<7x8xbf16>
    %cst_227 = arith.constant dense<0.000000e+00> : vector<64x8xf32>
    %738 = tpu.matmul %736, %737, %cst_227 {dimension_numbers = #tpu.dot_dimension_numbers<[1], [0], [0], [1], [0, 0, 1, 1], [], []>} : vector<64x7xbf16>, vector<7x8xbf16>, vector<64x8xf32> -> vector<64x8xf32>
    %739 = tpu.concatenate %719, %738 in 1 : vector<64x8xf32>, vector<64x8xf32> -> vector<64x16xf32>
    %740 = arith.truncf %739 : vector<64x16xf32> to vector<64x16xbf16>
    %cst_228 = arith.constant dense<0.000000e+00> : vector<64x32xf32>
    %741 = tpu.matmul %740, %681, %cst_228 {dimension_numbers = #tpu.dot_dimension_numbers<[1], [0], [0], [1], [0, 0, 1, 1], [], []>} : vector<64x16xbf16>, vector<16x32xbf16>, vector<64x32xf32> -> vector<64x32xf32>
    %742 = vector.broadcast %682 : vector<1x32xf32> to vector<64x32xf32>
    %743 = arith.addf %741, %742 : vector<64x32xf32>
    %744 = arith.addf %464, %743 : vector<64x32xf32>
    %c472 = arith.constant 472 : index
    %c0_229 = arith.constant 0 : index
    %745 = vector.load %arg4[%c472, %c0_229] : memref<704x128xf32, #tpu.memory_space<vmem>>, vector<1x32xf32>
    %c480_230 = arith.constant 480 : index
    %c0_231 = arith.constant 0 : index
    %746 = vector.load %arg4[%c480_230, %c0_231] : memref<704x128xf32, #tpu.memory_space<vmem>>, vector<1x32xf32>
    %cst_232 = arith.constant dense<0.000000e+00> : vector<64xf32>
    %747 = vector.multi_reduction <add>, %744, %cst_232 [1] : vector<64x32xf32> to vector<64xf32>
    %748 = vector.shape_cast %747 : vector<64xf32> to vector<64x1xf32>
    %cst_233 = arith.constant 3.200000e+01 : f32
    %749 = vector.broadcast %cst_233 : f32 to vector<64x1xf32>
    %750 = arith.divf %748, %749 : vector<64x1xf32>
    %751 = vector.broadcast %750 : vector<64x1xf32> to vector<64x32xf32>
    %752 = arith.subf %744, %751 : vector<64x32xf32>
    %753 = arith.mulf %752, %752 : vector<64x32xf32>
    %cst_234 = arith.constant dense<0.000000e+00> : vector<64xf32>
    %754 = vector.multi_reduction <add>, %753, %cst_234 [1] : vector<64x32xf32> to vector<64xf32>
    %755 = vector.shape_cast %754 : vector<64xf32> to vector<64x1xf32>
    %cst_235 = arith.constant 3.200000e+01 : f32
    %756 = vector.broadcast %cst_235 : f32 to vector<64x1xf32>
    %757 = arith.divf %755, %756 : vector<64x1xf32>
    %cst_236 = arith.constant 9.99999974E-6 : f32
    %758 = vector.broadcast %cst_236 : f32 to vector<64x1xf32>
    %759 = arith.addf %757, %758 : vector<64x1xf32>
    %760 = math.rsqrt %759 : vector<64x1xf32>
    %761 = vector.broadcast %760 : vector<64x1xf32> to vector<64x32xf32>
    %762 = arith.mulf %752, %761 : vector<64x32xf32>
    %763 = vector.broadcast %745 : vector<1x32xf32> to vector<64x32xf32>
    %764 = arith.mulf %762, %763 : vector<64x32xf32>
    %765 = vector.broadcast %746 : vector<1x32xf32> to vector<64x32xf32>
    %766 = arith.addf %764, %765 : vector<64x32xf32>
    %767 = arith.addf %676, %167 : vector<7x32xf32>
    %768 = arith.addf %766, %171 : vector<64x32xf32>
    %c752 = arith.constant 752 : index
    %c0_237 = arith.constant 0 : index
    %769 = vector.load %arg3[%c752, %c0_237] : memref<1320x128xbf16, #tpu.memory_space<vmem>>, vector<32x48xbf16>
    %c488 = arith.constant 488 : index
    %c0_238 = arith.constant 0 : index
    %770 = vector.load %arg4[%c488, %c0_238] : memref<704x128xf32, #tpu.memory_space<vmem>>, vector<1x48xf32>
    %c784 = arith.constant 784 : index
    %c0_239 = arith.constant 0 : index
    %771 = vector.load %arg3[%c784, %c0_239] : memref<1320x128xbf16, #tpu.memory_space<vmem>>, vector<16x32xbf16>
    %c496_240 = arith.constant 496 : index
    %c0_241 = arith.constant 0 : index
    %772 = vector.load %arg4[%c496_240, %c0_241] : memref<704x128xf32, #tpu.memory_space<vmem>>, vector<1x32xf32>
    %773 = vector.extract_strided_slice %769 {offsets = [0, 0], sizes = [32, 16], strides = [1, 1]} : vector<32x48xbf16> to vector<32x16xbf16>
    %774 = arith.truncf %767 : vector<7x32xf32> to vector<7x32xbf16>
    %cst_242 = arith.constant dense<0.000000e+00> : vector<7x16xf32>
    %775 = tpu.matmul %774, %773, %cst_242 {dimension_numbers = #tpu.dot_dimension_numbers<[1], [0], [0], [1], [0, 0, 1, 1], [], []>} : vector<7x32xbf16>, vector<32x16xbf16>, vector<7x16xf32> -> vector<7x16xf32>
    %776 = vector.extract_strided_slice %770 {offsets = [0, 0], sizes = [1, 16], strides = [1, 1]} : vector<1x48xf32> to vector<1x16xf32>
    %777 = vector.broadcast %776 : vector<1x16xf32> to vector<7x16xf32>
    %778 = arith.addf %775, %777 : vector<7x16xf32>
    %779 = vector.extract_strided_slice %769 {offsets = [0, 16], sizes = [32, 16], strides = [1, 1]} : vector<32x48xbf16> to vector<32x16xbf16>
    %780 = arith.truncf %768 : vector<64x32xf32> to vector<64x32xbf16>
    %cst_243 = arith.constant dense<0.000000e+00> : vector<64x16xf32>
    %781 = tpu.matmul %780, %779, %cst_243 {dimension_numbers = #tpu.dot_dimension_numbers<[1], [0], [0], [1], [0, 0, 1, 1], [], []>} : vector<64x32xbf16>, vector<32x16xbf16>, vector<64x16xf32> -> vector<64x16xf32>
    %782 = vector.extract_strided_slice %770 {offsets = [0, 16], sizes = [1, 16], strides = [1, 1]} : vector<1x48xf32> to vector<1x16xf32>
    %783 = vector.broadcast %782 : vector<1x16xf32> to vector<64x16xf32>
    %784 = arith.addf %781, %783 : vector<64x16xf32>
    %785 = vector.extract_strided_slice %769 {offsets = [0, 32], sizes = [32, 16], strides = [1, 1]} : vector<32x48xbf16> to vector<32x16xbf16>
    %786 = arith.truncf %766 : vector<64x32xf32> to vector<64x32xbf16>
    %cst_244 = arith.constant dense<0.000000e+00> : vector<64x16xf32>
    %787 = tpu.matmul %786, %785, %cst_244 {dimension_numbers = #tpu.dot_dimension_numbers<[1], [0], [0], [1], [0, 0, 1, 1], [], []>} : vector<64x32xbf16>, vector<32x16xbf16>, vector<64x16xf32> -> vector<64x16xf32>
    %788 = vector.extract_strided_slice %770 {offsets = [0, 32], sizes = [1, 16], strides = [1, 1]} : vector<1x48xf32> to vector<1x16xf32>
    %789 = vector.broadcast %788 : vector<1x16xf32> to vector<64x16xf32>
    %790 = arith.addf %787, %789 : vector<64x16xf32>
    %791 = vector.extract_strided_slice %778 {offsets = [0, 0], sizes = [7, 8], strides = [1, 1]} : vector<7x16xf32> to vector<7x8xf32>
    %792 = vector.extract_strided_slice %784 {offsets = [0, 0], sizes = [64, 8], strides = [1, 1]} : vector<64x16xf32> to vector<64x8xf32>
    %793 = arith.truncf %791 : vector<7x8xf32> to vector<7x8xbf16>
    %794 = arith.truncf %792 : vector<64x8xf32> to vector<64x8xbf16>
    %cst_245 = arith.constant dense<0.000000e+00> : vector<7x64xf32>
    %795 = tpu.matmul %793, %794, %cst_245 {dimension_numbers = #tpu.dot_dimension_numbers<[1], [1], [0], [0], [0, 0, 1, 0], [], []>} : vector<7x8xbf16>, vector<64x8xbf16>, vector<7x64xf32> -> vector<7x64xf32>
    %cst_246 = arith.constant dense<0xFF800000> : vector<7xf32>
    %796 = vector.multi_reduction <maximumf>, %795, %cst_246 [1] : vector<7x64xf32> to vector<7xf32>
    %797 = vector.shape_cast %796 : vector<7xf32> to vector<7x1xf32>
    %798 = vector.broadcast %797 : vector<7x1xf32> to vector<7x64xf32>
    %799 = arith.subf %795, %798 : vector<7x64xf32>
    %800 = math.exp %799 : vector<7x64xf32>
    %cst_247 = arith.constant dense<0.000000e+00> : vector<7xf32>
    %801 = vector.multi_reduction <add>, %800, %cst_247 [1] : vector<7x64xf32> to vector<7xf32>
    %802 = vector.shape_cast %801 : vector<7xf32> to vector<7x1xf32>
    %803 = tpu.reciprocal %802 {approx = true} : vector<7x1xf32> -> vector<7x1xf32>
    %804 = vector.broadcast %803 : vector<7x1xf32> to vector<7x64xf32>
    %805 = arith.mulf %800, %804 : vector<7x64xf32>
    %806 = vector.extract_strided_slice %790 {offsets = [0, 0], sizes = [64, 8], strides = [1, 1]} : vector<64x16xf32> to vector<64x8xf32>
    %807 = arith.truncf %805 : vector<7x64xf32> to vector<7x64xbf16>
    %808 = arith.truncf %806 : vector<64x8xf32> to vector<64x8xbf16>
    %cst_248 = arith.constant dense<0.000000e+00> : vector<7x8xf32>
    %809 = tpu.matmul %807, %808, %cst_248 {dimension_numbers = #tpu.dot_dimension_numbers<[1], [0], [0], [1], [0, 0, 1, 1], [], []>} : vector<7x64xbf16>, vector<64x8xbf16>, vector<7x8xf32> -> vector<7x8xf32>
    %810 = vector.extract_strided_slice %778 {offsets = [0, 8], sizes = [7, 8], strides = [1, 1]} : vector<7x16xf32> to vector<7x8xf32>
    %811 = vector.extract_strided_slice %784 {offsets = [0, 8], sizes = [64, 8], strides = [1, 1]} : vector<64x16xf32> to vector<64x8xf32>
    %812 = arith.truncf %810 : vector<7x8xf32> to vector<7x8xbf16>
    %813 = arith.truncf %811 : vector<64x8xf32> to vector<64x8xbf16>
    %cst_249 = arith.constant dense<0.000000e+00> : vector<7x64xf32>
    %814 = tpu.matmul %812, %813, %cst_249 {dimension_numbers = #tpu.dot_dimension_numbers<[1], [1], [0], [0], [0, 0, 1, 0], [], []>} : vector<7x8xbf16>, vector<64x8xbf16>, vector<7x64xf32> -> vector<7x64xf32>
    %cst_250 = arith.constant dense<0xFF800000> : vector<7xf32>
    %815 = vector.multi_reduction <maximumf>, %814, %cst_250 [1] : vector<7x64xf32> to vector<7xf32>
    %816 = vector.shape_cast %815 : vector<7xf32> to vector<7x1xf32>
    %817 = vector.broadcast %816 : vector<7x1xf32> to vector<7x64xf32>
    %818 = arith.subf %814, %817 : vector<7x64xf32>
    %819 = math.exp %818 : vector<7x64xf32>
    %cst_251 = arith.constant dense<0.000000e+00> : vector<7xf32>
    %820 = vector.multi_reduction <add>, %819, %cst_251 [1] : vector<7x64xf32> to vector<7xf32>
    %821 = vector.shape_cast %820 : vector<7xf32> to vector<7x1xf32>
    %822 = tpu.reciprocal %821 {approx = true} : vector<7x1xf32> -> vector<7x1xf32>
    %823 = vector.broadcast %822 : vector<7x1xf32> to vector<7x64xf32>
    %824 = arith.mulf %819, %823 : vector<7x64xf32>
    %825 = vector.extract_strided_slice %790 {offsets = [0, 8], sizes = [64, 8], strides = [1, 1]} : vector<64x16xf32> to vector<64x8xf32>
    %826 = arith.truncf %824 : vector<7x64xf32> to vector<7x64xbf16>
    %827 = arith.truncf %825 : vector<64x8xf32> to vector<64x8xbf16>
    %cst_252 = arith.constant dense<0.000000e+00> : vector<7x8xf32>
    %828 = tpu.matmul %826, %827, %cst_252 {dimension_numbers = #tpu.dot_dimension_numbers<[1], [0], [0], [1], [0, 0, 1, 1], [], []>} : vector<7x64xbf16>, vector<64x8xbf16>, vector<7x8xf32> -> vector<7x8xf32>
    %829 = tpu.concatenate %809, %828 in 1 : vector<7x8xf32>, vector<7x8xf32> -> vector<7x16xf32>
    %830 = arith.truncf %829 : vector<7x16xf32> to vector<7x16xbf16>
    %cst_253 = arith.constant dense<0.000000e+00> : vector<7x32xf32>
    %831 = tpu.matmul %830, %771, %cst_253 {dimension_numbers = #tpu.dot_dimension_numbers<[1], [0], [0], [1], [0, 0, 1, 1], [], []>} : vector<7x16xbf16>, vector<16x32xbf16>, vector<7x32xf32> -> vector<7x32xf32>
    %832 = vector.broadcast %772 : vector<1x32xf32> to vector<7x32xf32>
    %833 = arith.addf %831, %832 : vector<7x32xf32>
    %834 = arith.addf %676, %833 : vector<7x32xf32>
    %c504 = arith.constant 504 : index
    %c0_254 = arith.constant 0 : index
    %835 = vector.load %arg4[%c504, %c0_254] : memref<704x128xf32, #tpu.memory_space<vmem>>, vector<1x32xf32>
    %c512 = arith.constant 512 : index
    %c0_255 = arith.constant 0 : index
    %836 = vector.load %arg4[%c512, %c0_255] : memref<704x128xf32, #tpu.memory_space<vmem>>, vector<1x32xf32>
    %cst_256 = arith.constant dense<0.000000e+00> : vector<7xf32>
    %837 = vector.multi_reduction <add>, %834, %cst_256 [1] : vector<7x32xf32> to vector<7xf32>
    %838 = vector.shape_cast %837 : vector<7xf32> to vector<7x1xf32>
    %cst_257 = arith.constant 3.200000e+01 : f32
    %839 = vector.broadcast %cst_257 : f32 to vector<7x1xf32>
    %840 = arith.divf %838, %839 : vector<7x1xf32>
    %841 = vector.broadcast %840 : vector<7x1xf32> to vector<7x32xf32>
    %842 = arith.subf %834, %841 : vector<7x32xf32>
    %843 = arith.mulf %842, %842 : vector<7x32xf32>
    %cst_258 = arith.constant dense<0.000000e+00> : vector<7xf32>
    %844 = vector.multi_reduction <add>, %843, %cst_258 [1] : vector<7x32xf32> to vector<7xf32>
    %845 = vector.shape_cast %844 : vector<7xf32> to vector<7x1xf32>
    %cst_259 = arith.constant 3.200000e+01 : f32
    %846 = vector.broadcast %cst_259 : f32 to vector<7x1xf32>
    %847 = arith.divf %845, %846 : vector<7x1xf32>
    %cst_260 = arith.constant 9.99999974E-6 : f32
    %848 = vector.broadcast %cst_260 : f32 to vector<7x1xf32>
    %849 = arith.addf %847, %848 : vector<7x1xf32>
    %850 = math.rsqrt %849 : vector<7x1xf32>
    %851 = vector.broadcast %850 : vector<7x1xf32> to vector<7x32xf32>
    %852 = arith.mulf %842, %851 : vector<7x32xf32>
    %853 = vector.broadcast %835 : vector<1x32xf32> to vector<7x32xf32>
    %854 = arith.mulf %852, %853 : vector<7x32xf32>
    %855 = vector.broadcast %836 : vector<1x32xf32> to vector<7x32xf32>
    %856 = arith.addf %854, %855 : vector<7x32xf32>
    %857 = vector.extract_strided_slice %856 {offsets = [0, 0], sizes = [1, 32], strides = [1, 1]} : vector<7x32xf32> to vector<1x32xf32>
    %858 = vector.extract_strided_slice %856 {offsets = [1, 0], sizes = [4, 32], strides = [1, 1]} : vector<7x32xf32> to vector<4x32xf32>
    %c864 = arith.constant 864 : index
    %c0_261 = arith.constant 0 : index
    %859 = vector.load %arg3[%c864, %c0_261] : memref<1320x128xbf16, #tpu.memory_space<vmem>>, vector<32x128xbf16>
    %860 = arith.truncf %858 : vector<4x32xf32> to vector<4x32xbf16>
    %cst_262 = arith.constant dense<0.000000e+00> : vector<4x128xf32>
    %861 = tpu.matmul %860, %859, %cst_262 {dimension_numbers = #tpu.dot_dimension_numbers<[1], [0], [0], [1], [0, 0, 1, 1], [], []>} : vector<4x32xbf16>, vector<32x128xbf16>, vector<4x128xf32> -> vector<4x128xf32>
    %c584 = arith.constant 584 : index
    %c0_263 = arith.constant 0 : index
    %862 = vector.load %arg4[%c584, %c0_263] : memref<704x128xf32, #tpu.memory_space<vmem>>, vector<1x128xf32>
    %863 = vector.broadcast %862 : vector<1x128xf32> to vector<4x128xf32>
    %864 = arith.addf %861, %863 : vector<4x128xf32>
    %cst_264 = arith.constant 0.000000e+00 : f32
    %865 = vector.broadcast %cst_264 : f32 to vector<4x128xf32>
    %866 = arith.maximumf %864, %865 : vector<4x128xf32>
    %c896 = arith.constant 896 : index
    %c0_265 = arith.constant 0 : index
    %867 = vector.load %arg3[%c896, %c0_265] : memref<1320x128xbf16, #tpu.memory_space<vmem>>, vector<128x128xbf16>
    %868 = arith.truncf %866 : vector<4x128xf32> to vector<4x128xbf16>
    %cst_266 = arith.constant dense<0.000000e+00> : vector<4x128xf32>
    %869 = tpu.matmul %868, %867, %cst_266 {dimension_numbers = #tpu.dot_dimension_numbers<[1], [0], [0], [1], [0, 0, 1, 1], [], []>} : vector<4x128xbf16>, vector<128x128xbf16>, vector<4x128xf32> -> vector<4x128xf32>
    %c592_267 = arith.constant 592 : index
    %c0_268 = arith.constant 0 : index
    %870 = vector.load %arg4[%c592_267, %c0_268] : memref<704x128xf32, #tpu.memory_space<vmem>>, vector<1x128xf32>
    %871 = vector.broadcast %870 : vector<1x128xf32> to vector<4x128xf32>
    %872 = arith.addf %869, %871 : vector<4x128xf32>
    %cst_269 = arith.constant 0.000000e+00 : f32
    %873 = vector.broadcast %cst_269 : f32 to vector<4x128xf32>
    %874 = arith.maximumf %872, %873 : vector<4x128xf32>
    %c608_270 = arith.constant 608 : index
    %c0_271 = arith.constant 0 : index
    %875 = vector.load %arg4[%c608_270, %c0_271] : memref<704x128xf32, #tpu.memory_space<vmem>>, vector<4x128xf32>
    %876 = arith.mulf %874, %875 : vector<4x128xf32>
    %c1024 = arith.constant 1024 : index
    %c0_272 = arith.constant 0 : index
    %877 = vector.load %arg3[%c1024, %c0_272] : memref<1320x128xbf16, #tpu.memory_space<vmem>>, vector<128x4xbf16>
    %878 = arith.truncf %876 : vector<4x128xf32> to vector<4x128xbf16>
    %cst_273 = arith.constant dense<0.000000e+00> : vector<4x4xf32>
    %879 = tpu.matmul %878, %877, %cst_273 {dimension_numbers = #tpu.dot_dimension_numbers<[1], [0], [0], [1], [0, 0, 1, 1], [], []>} : vector<4x128xbf16>, vector<128x4xbf16>, vector<4x4xf32> -> vector<4x4xf32>
    %c600 = arith.constant 600 : index
    %c0_274 = arith.constant 0 : index
    %880 = vector.load %arg4[%c600, %c0_274] : memref<704x128xf32, #tpu.memory_space<vmem>>, vector<4x4xf32>
    %881 = arith.addf %879, %880 : vector<4x4xf32>
    %c1224 = arith.constant 1224 : index
    %c0_275 = arith.constant 0 : index
    %882 = vector.load %arg3[%c1224, %c0_275] : memref<1320x128xbf16, #tpu.memory_space<vmem>>, vector<32x32xbf16>
    %883 = arith.truncf %857 : vector<1x32xf32> to vector<1x32xbf16>
    %cst_276 = arith.constant dense<0.000000e+00> : vector<1x32xf32>
    %884 = tpu.matmul %883, %882, %cst_276 {dimension_numbers = #tpu.dot_dimension_numbers<[1], [0], [0], [1], [0, 0, 1, 1], [], []>} : vector<1x32xbf16>, vector<32x32xbf16>, vector<1x32xf32> -> vector<1x32xf32>
    %c680 = arith.constant 680 : index
    %c0_277 = arith.constant 0 : index
    %885 = vector.load %arg4[%c680, %c0_277] : memref<704x128xf32, #tpu.memory_space<vmem>>, vector<1x32xf32>
    %886 = arith.addf %884, %885 : vector<1x32xf32>
    %cst_278 = arith.constant 0.000000e+00 : f32
    %887 = vector.broadcast %cst_278 : f32 to vector<1x32xf32>
    %888 = arith.maximumf %886, %887 : vector<1x32xf32>
    %c1256 = arith.constant 1256 : index
    %c0_279 = arith.constant 0 : index
    %889 = vector.load %arg3[%c1256, %c0_279] : memref<1320x128xbf16, #tpu.memory_space<vmem>>, vector<32x32xbf16>
    %890 = arith.truncf %888 : vector<1x32xf32> to vector<1x32xbf16>
    %cst_280 = arith.constant dense<0.000000e+00> : vector<1x32xf32>
    %891 = tpu.matmul %890, %889, %cst_280 {dimension_numbers = #tpu.dot_dimension_numbers<[1], [0], [0], [1], [0, 0, 1, 1], [], []>} : vector<1x32xbf16>, vector<32x32xbf16>, vector<1x32xf32> -> vector<1x32xf32>
    %c688 = arith.constant 688 : index
    %c0_281 = arith.constant 0 : index
    %892 = vector.load %arg4[%c688, %c0_281] : memref<704x128xf32, #tpu.memory_space<vmem>>, vector<1x32xf32>
    %893 = arith.addf %891, %892 : vector<1x32xf32>
    %cst_282 = arith.constant 0.000000e+00 : f32
    %894 = vector.broadcast %cst_282 : f32 to vector<1x32xf32>
    %895 = arith.maximumf %893, %894 : vector<1x32xf32>
    %c1288 = arith.constant 1288 : index
    %c0_283 = arith.constant 0 : index
    %896 = vector.load %arg3[%c1288, %c0_283] : memref<1320x128xbf16, #tpu.memory_space<vmem>>, vector<32x4xbf16>
    %897 = arith.truncf %895 : vector<1x32xf32> to vector<1x32xbf16>
    %cst_284 = arith.constant dense<0.000000e+00> : vector<1x4xf32>
    %898 = tpu.matmul %897, %896, %cst_284 {dimension_numbers = #tpu.dot_dimension_numbers<[1], [0], [0], [1], [0, 0, 1, 1], [], []>} : vector<1x32xbf16>, vector<32x4xbf16>, vector<1x4xf32> -> vector<1x4xf32>
    %c696 = arith.constant 696 : index
    %c0_285 = arith.constant 0 : index
    %899 = vector.load %arg4[%c696, %c0_285] : memref<704x128xf32, #tpu.memory_space<vmem>>, vector<1x4xf32>
    %900 = arith.addf %898, %899 : vector<1x4xf32>
    %c800 = arith.constant 800 : index
    %c0_286 = arith.constant 0 : index
    %901 = vector.load %arg3[%c800, %c0_286] : memref<1320x128xbf16, #tpu.memory_space<vmem>>, vector<32x32xbf16>
    %902 = arith.truncf %766 : vector<64x32xf32> to vector<64x32xbf16>
    %cst_287 = arith.constant dense<0.000000e+00> : vector<64x32xf32>
    %903 = tpu.matmul %902, %901, %cst_287 {dimension_numbers = #tpu.dot_dimension_numbers<[1], [0], [0], [1], [0, 0, 1, 1], [], []>} : vector<64x32xbf16>, vector<32x32xbf16>, vector<64x32xf32> -> vector<64x32xf32>
    %c520 = arith.constant 520 : index
    %c0_288 = arith.constant 0 : index
    %904 = vector.load %arg4[%c520, %c0_288] : memref<704x128xf32, #tpu.memory_space<vmem>>, vector<1x32xf32>
    %905 = vector.broadcast %904 : vector<1x32xf32> to vector<64x32xf32>
    %906 = arith.addf %903, %905 : vector<64x32xf32>
    %c544 = arith.constant 544 : index
    %c0_289 = arith.constant 0 : index
    %907 = vector.load %arg4[%c544, %c0_289] : memref<704x128xf32, #tpu.memory_space<vmem>>, vector<32x32xf32>
    %cst_290 = arith.constant dense<0.000000e+00> : vector<64x32xf32>
    %908 = tpu.matmul %906, %907, %cst_290 {dimension_numbers = #tpu.dot_dimension_numbers<[1], [0], [0], [1], [0, 0, 1, 1], [], []>} : vector<64x32xf32>, vector<32x32xf32>, vector<64x32xf32> -> vector<64x32xf32>
    %909 = arith.mulf %906, %906 : vector<64x32xf32>
    %cst_291 = arith.constant dense<0.000000e+00> : vector<64x32xf32>
    %910 = tpu.matmul %909, %907, %cst_291 {dimension_numbers = #tpu.dot_dimension_numbers<[1], [0], [0], [1], [0, 0, 1, 1], [], []>} : vector<64x32xf32>, vector<32x32xf32>, vector<64x32xf32> -> vector<64x32xf32>
    %911 = arith.mulf %908, %908 : vector<64x32xf32>
    %912 = arith.subf %910, %911 : vector<64x32xf32>
    %913 = arith.subf %906, %908 : vector<64x32xf32>
    %cst_292 = arith.constant 9.99999997E-7 : f32
    %914 = vector.broadcast %cst_292 : f32 to vector<64x32xf32>
    %915 = arith.addf %912, %914 : vector<64x32xf32>
    %916 = math.rsqrt %915 : vector<64x32xf32>
    %917 = arith.mulf %913, %916 : vector<64x32xf32>
    %c528_293 = arith.constant 528 : index
    %c0_294 = arith.constant 0 : index
    %918 = vector.load %arg4[%c528_293, %c0_294] : memref<704x128xf32, #tpu.memory_space<vmem>>, vector<1x32xf32>
    %919 = vector.broadcast %918 : vector<1x32xf32> to vector<64x32xf32>
    %920 = arith.mulf %917, %919 : vector<64x32xf32>
    %c536 = arith.constant 536 : index
    %c0_295 = arith.constant 0 : index
    %921 = vector.load %arg4[%c536, %c0_295] : memref<704x128xf32, #tpu.memory_space<vmem>>, vector<1x32xf32>
    %922 = vector.broadcast %921 : vector<1x32xf32> to vector<64x32xf32>
    %923 = arith.addf %920, %922 : vector<64x32xf32>
    %cst_296 = arith.constant 5.000000e-01 : f32
    %924 = vector.broadcast %cst_296 : f32 to vector<64x32xf32>
    %925 = arith.mulf %924, %923 : vector<64x32xf32>
    %cst_297 = arith.constant 4.471500e-02 : f32
    %926 = vector.broadcast %cst_297 : f32 to vector<64x32xf32>
    %927 = arith.mulf %926, %923 : vector<64x32xf32>
    %928 = arith.mulf %927, %923 : vector<64x32xf32>
    %929 = arith.mulf %928, %923 : vector<64x32xf32>
    %930 = arith.addf %923, %929 : vector<64x32xf32>
    %cst_298 = arith.constant 0.797884583 : f32
    %931 = vector.broadcast %cst_298 : f32 to vector<64x32xf32>
    %932 = arith.mulf %931, %930 : vector<64x32xf32>
    %933 = math.tanh %932 : vector<64x32xf32>
    %cst_299 = arith.constant 1.000000e+00 : f32
    %934 = vector.broadcast %cst_299 : f32 to vector<64x32xf32>
    %935 = arith.addf %934, %933 : vector<64x32xf32>
    %936 = arith.mulf %925, %935 : vector<64x32xf32>
    %c832 = arith.constant 832 : index
    %c0_300 = arith.constant 0 : index
    %937 = vector.load %arg3[%c832, %c0_300] : memref<1320x128xbf16, #tpu.memory_space<vmem>>, vector<32x64xbf16>
    %938 = arith.truncf %936 : vector<64x32xf32> to vector<64x32xbf16>
    %cst_301 = arith.constant dense<0.000000e+00> : vector<64x64xf32>
    %939 = tpu.matmul %938, %937, %cst_301 {dimension_numbers = #tpu.dot_dimension_numbers<[1], [0], [0], [1], [0, 0, 1, 1], [], []>} : vector<64x32xbf16>, vector<32x64xbf16>, vector<64x64xf32> -> vector<64x64xf32>
    %c576 = arith.constant 576 : index
    %c0_302 = arith.constant 0 : index
    %940 = vector.load %arg4[%c576, %c0_302] : memref<704x128xf32, #tpu.memory_space<vmem>>, vector<1x64xf32>
    %941 = vector.broadcast %940 : vector<1x64xf32> to vector<64x64xf32>
    %942 = arith.addf %939, %941 : vector<64x64xf32>
    %cst_303 = arith.constant 5.000000e-01 : f32
    %943 = vector.broadcast %cst_303 : f32 to vector<64x64xf32>
    %944 = arith.mulf %943, %942 : vector<64x64xf32>
    %cst_304 = arith.constant 4.471500e-02 : f32
    %945 = vector.broadcast %cst_304 : f32 to vector<64x64xf32>
    %946 = arith.mulf %945, %942 : vector<64x64xf32>
    %947 = arith.mulf %946, %942 : vector<64x64xf32>
    %948 = arith.mulf %947, %942 : vector<64x64xf32>
    %949 = arith.addf %942, %948 : vector<64x64xf32>
    %cst_305 = arith.constant 0.797884583 : f32
    %950 = vector.broadcast %cst_305 : f32 to vector<64x64xf32>
    %951 = arith.mulf %950, %949 : vector<64x64xf32>
    %952 = math.tanh %951 : vector<64x64xf32>
    %cst_306 = arith.constant 1.000000e+00 : f32
    %953 = vector.broadcast %cst_306 : f32 to vector<64x64xf32>
    %954 = arith.addf %953, %952 : vector<64x64xf32>
    %955 = arith.mulf %944, %954 : vector<64x64xf32>
    %c1152 = arith.constant 1152 : index
    %c0_307 = arith.constant 0 : index
    %956 = vector.load %arg3[%c1152, %c0_307] : memref<1320x128xbf16, #tpu.memory_space<vmem>>, vector<64x4xbf16>
    %957 = arith.truncf %881 : vector<4x4xf32> to vector<4x4xbf16>
    %cst_308 = arith.constant dense<0.000000e+00> : vector<64x4xf32>
    %958 = tpu.matmul %956, %957, %cst_308 {dimension_numbers = #tpu.dot_dimension_numbers<[1], [1], [0], [0], [0, 0, 1, 0], [], []>} : vector<64x4xbf16>, vector<4x4xbf16>, vector<64x4xf32> -> vector<64x4xf32>
    %c1216 = arith.constant 1216 : index
    %c0_309 = arith.constant 0 : index
    %959 = vector.load %arg3[%c1216, %c0_309] : memref<1320x128xbf16, #tpu.memory_space<vmem>>, vector<4x64xbf16>
    %960 = arith.truncf %958 : vector<64x4xf32> to vector<64x4xbf16>
    %cst_310 = arith.constant dense<0.000000e+00> : vector<64x64xf32>
    %961 = tpu.matmul %960, %959, %cst_310 {dimension_numbers = #tpu.dot_dimension_numbers<[1], [0], [0], [1], [0, 0, 1, 1], [], []>} : vector<64x4xbf16>, vector<4x64xbf16>, vector<64x64xf32> -> vector<64x64xf32>
    %c616 = arith.constant 616 : index
    %c0_311 = arith.constant 0 : index
    %962 = vector.load %arg4[%c616, %c0_311] : memref<704x128xf32, #tpu.memory_space<vmem>>, vector<64x64xf32>
    %963 = arith.mulf %961, %962 : vector<64x64xf32>
    %964 = arith.truncf %955 : vector<64x64xf32> to vector<64x64xbf16>
    %965 = arith.truncf %963 : vector<64x64xf32> to vector<64x64xbf16>
    %cst_312 = arith.constant dense<0.000000e+00> : vector<64x64xf32>
    %966 = tpu.matmul %964, %965, %cst_312 {dimension_numbers = #tpu.dot_dimension_numbers<[1], [0], [0], [1], [0, 0, 1, 1], [], []>} : vector<64x64xbf16>, vector<64x64xbf16>, vector<64x64xf32> -> vector<64x64xf32>
    %c0_313 = arith.constant 0 : index
    %c0_314 = arith.constant 0 : index
    %c0_315 = arith.constant 0 : index
    %967 = vector.load %arg6[%c0_313, %c0_314, %c0_315] : memref<1x64x64xf32, #tpu.memory_space<vmem>>, vector<1x64x64xf32>
    %968 = vector.shape_cast %967 : vector<1x64x64xf32> to vector<64x64xf32>
    %969 = vector.shape_cast %966 : vector<64x64xf32> to vector<1x64x64xf32>
    tpu.vector_store %arg6[%c0_313, %c0_314, %c0_315], %969 {strides = array<i32>} : memref<1x64x64xf32, #tpu.memory_space<vmem>>, vector<1x64x64xf32>,
    %c0_316 = arith.constant 0 : index
    %c0_317 = arith.constant 0 : index
    %c0_318 = arith.constant 0 : index
    %970 = vector.load %arg7[%c0_316, %c0_317, %c0_318] : memref<1x1x4xf32, #tpu.memory_space<vmem>>, vector<1x1x4xf32>
    %971 = vector.shape_cast %970 : vector<1x1x4xf32> to vector<1x4xf32>
    %972 = vector.shape_cast %900 : vector<1x4xf32> to vector<1x1x4xf32>
    tpu.vector_store %arg7[%c0_316, %c0_317, %c0_318], %972 {strides = array<i32>} : memref<1x1x4xf32, #tpu.memory_space<vmem>>, vector<1x1x4xf32>,
    return
  }
  func.func @transform_0(%arg0: i32) -> (i32, i32, i32) {
    %c0_i32 = arith.constant 0 : i32
    %c0_i32_0 = arith.constant 0 : i32
    %c0_i32_1 = arith.constant 0 : i32
    return %arg0, %c0_i32, %c0_i32_0 : i32, i32, i32
  }
  func.func @transform_1(%arg0: i32) -> (i32, i32, i32) {
    %c0_i32 = arith.constant 0 : i32
    %c0_i32_0 = arith.constant 0 : i32
    %c0_i32_1 = arith.constant 0 : i32
    return %arg0, %c0_i32, %c0_i32_0 : i32, i32, i32
  }
  func.func @transform_2(%arg0: i32) -> (i32, i32) {
    %c0_i32 = arith.constant 0 : i32
    %c0_i32_0 = arith.constant 0 : i32
    %c0_i32_1 = arith.constant 0 : i32
    return %c0_i32, %c0_i32_0 : i32, i32
  }
  func.func @transform_3(%arg0: i32) -> (i32, i32) {
    %c0_i32 = arith.constant 0 : i32
    %c0_i32_0 = arith.constant 0 : i32
    %c0_i32_1 = arith.constant 0 : i32
    return %c0_i32, %c0_i32_0 : i32, i32
  }
  func.func @transform_4(%arg0: i32) -> (i32, i32, i32) {
    %c0_i32 = arith.constant 0 : i32
    %c0_i32_0 = arith.constant 0 : i32
    %c0_i32_1 = arith.constant 0 : i32
    return %arg0, %c0_i32, %c0_i32_0 : i32, i32, i32
  }
  func.func @transform_5(%arg0: i32) -> (i32, i32, i32) {
    %c0_i32 = arith.constant 0 : i32
    %c0_i32_0 = arith.constant 0 : i32
    %c0_i32_1 = arith.constant 0 : i32
    return %arg0, %c0_i32, %c0_i32_0 : i32, i32, i32
  }
  func.func @transform_6(%arg0: i32) -> (i32, i32, i32) {
    %c0_i32 = arith.constant 0 : i32
    %c0_i32_0 = arith.constant 0 : i32
    %c0_i32_1 = arith.constant 0 : i32
    return %arg0, %c0_i32, %c0_i32_0 : i32, i32, i32
  }
}

</mosaic_0001>

<llo_original>
// kernel: _lambda_.1
$region0: #{_lambda_.1}
  #allocation0 [shape = 'u32[]', space=smem, size = 0x4, offset = 0x4, fixed_abs, tag = 'smem constant byte address 0x4 - core index']
  #allocation1 [shape = 'u32[72,128]{1,0:T(1,128)}', space=vmem, size = 0x9000, scoped, tag = 'internal scratch']
  %s0 = inlined_call_operand.vmem [shape: f32[2,64,48], index: 0, kind: input, shape index: {}]
  %s1 = inlined_call_operand.vmem [shape: f32[2,7,32], index: 1, kind: input, shape index: {}]
  %s2 = inlined_call_operand.vmem [shape: bf16[1320,128], index: 2, kind: input, shape index: {}]
  %s3 = inlined_call_operand.vmem [shape: f32[704,128], index: 3, kind: input, shape index: {}]
  %s4 = inlined_call_operand.hbm [shape: f32[2,64,32], index: 4, kind: output, shape index: {0}]
  %s5 = inlined_call_operand.vmem [shape: f32[2,64,64], index: 5, kind: output, shape index: {1}]
  %s6 = inlined_call_operand.vmem [shape: f32[2,1,4], index: 6, kind: output, shape index: {2}]
  %7 = xla_tuple %s4, %s5, %s6
  %s8 = sld [smem:[#allocation0]]
  $region65: #{_lambda_.1} parent=0
    _
  %s10 = ssub.s32 1, %s8
  %s11 = scalar_select 0, %s10, %s8
  $region1: #{_lambda_.1} parent=0
    #allocation2 [shape = 'u8[65536]{0}', space=vmem, size = 0x10000, scoped, tag = 'output window, operand 0']
    #allocation3 [shape = 's32[2]{0}', space=sflag, size = 0x8, scoped, tag = 'scoped memory for _lambda_.1']
    %12 = vsyncpa [#allocation3], 0
    %s13 = scalar_lea.sflag [#allocation3], 1
    %14 = vsyncpa %s13, 0
    loop: start=0, step=1, limit=4
    $region2: #{_lambda_.1} parent=1 // loop_pre_header
      _
    $region3: #{_lambda_.1} parent=1 // loop_header
      %s16 = sphi 0, %s20
      %p17 = scmp.ge.s32.totalorder %s16, 4
      %s26 = sphi 0, %s28
      %s29 = sphi 0, %s26
      %s30 = sphi 0, %s29
      %s46 = sphi 0, %s30
      %s52 = sphi 0, %s54
      %s55 = sphi 0, %s52
      %s56 = sphi 0, %s55
      %s72 = sphi 0, %s56
      %s76 = sphi 0, %s76
      %s78 = sphi 0, %s76
      %s79 = sphi 0, %s78
      %s93 = sphi 0, %s79
      %s97 = sphi 0, %s97
      %s99 = sphi 0, %s97
      %s100 = sphi 0, %s99
      %s114 = sphi 0, %s100
      %s120 = sphi 0, %s122
      %s123 = sphi 0, %s120
      %s124 = sphi 0, %s123
      %s140 = sphi 0, %s124
      %s146 = sphi 0, %s148
      %s149 = sphi 0, %s146
      %s150 = sphi 0, %s149
      %s166 = sphi 0, %s150
      %s172 = sphi 0, %s174
      %s175 = sphi 0, %s172
      %s176 = sphi 0, %s175
      %s192 = sphi 0, %s176
    $region4: #{_lambda_.1} parent=1 // loop_header_branch
      %19 = sbr.rel (%p17) target = $region8
    $region5: #{_lambda_.1} parent=1 // loop_body
      %s21 = ssub.s32 %s16, 1
      %s22 = ssub.s32 %s16, 2
      %s23 = sadd.s32 %s16, 1
      %s24 = ssub.s32 %s16, %s23
      %p25 = scmp.eq.s32.totalorder %s24, 0
      %s27 = sadd.s32 %s26, 1
      %s28 = scalar_select %p25, %s26, %s27
      %p31 = pneg %p25
      %p32 = scmp.eq.s32.totalorder %s16, 1
      %p33 = por %p31, %p32
      %p34 = scmp.ne.s32.totalorder %s26, %s29
      %p35 = scmp.eq.s32.totalorder %s16, 0
      %p36 = por %p34, %p35
      %p37 = scmp.ne.s32.totalorder %s26, %s29
      %p38 = scmp.eq.s32.totalorder %s21, 1
      %p39 = por %p37, %p38
      %p40 = scmp.ne.s32.totalorder %s29, %s30
      %p41 = scmp.eq.s32.totalorder %s21, 0
      %p42 = por %p40, %p41
      %p43 = scmp.ne.s32.totalorder %s29, %s30
      %p44 = scmp.eq.s32.totalorder %s22, 1
      %p45 = por %p43, %p44
      %p47 = scmp.ne.s32.totalorder %s30, %s46
      %p48 = scmp.eq.s32.totalorder %s22, 0
      %p49 = por %p47, %p48
      %s50 = ssub.s32 %s16, %s23
      %p51 = scmp.eq.s32.totalorder %s50, 0
      %s53 = sadd.s32 %s52, 1
      %s54 = scalar_select %p51, %s52, %s53
      %p57 = pneg %p51
      %p58 = scmp.eq.s32.totalorder %s16, 1
      %p59 = por %p57, %p58
      %p60 = scmp.ne.s32.totalorder %s52, %s55
      %p61 = scmp.eq.s32.totalorder %s16, 0
      %p62 = por %p60, %p61
      %p63 = scmp.ne.s32.totalorder %s52, %s55
      %p64 = scmp.eq.s32.totalorder %s21, 1
      %p65 = por %p63, %p64
      %p66 = scmp.ne.s32.totalorder %s55, %s56
      %p67 = scmp.eq.s32.totalorder %s21, 0
      %p68 = por %p66, %p67
      %p69 = scmp.ne.s32.totalorder %s55, %s56
      %p70 = scmp.eq.s32.totalorder %s22, 1
      %p71 = por %p69, %p70
      %p73 = scmp.ne.s32.totalorder %s56, %s72
      %p74 = scmp.eq.s32.totalorder %s22, 0
      %p75 = por %p73, %p74
      %s77 = sadd.s32 %s76, 1
      %p80 = scmp.eq.s32.totalorder %s16, 1
      %p81 = scmp.ne.s32.totalorder %s76, %s78
      %p82 = scmp.eq.s32.totalorder %s16, 0
      %p83 = por %p81, %p82
      %p84 = scmp.ne.s32.totalorder %s76, %s78
      %p85 = scmp.eq.s32.totalorder %s21, 1
      %p86 = por %p84, %p85
      %p87 = scmp.ne.s32.totalorder %s78, %s79
      %p88 = scmp.eq.s32.totalorder %s21, 0
      %p89 = por %p87, %p88
      %p90 = scmp.ne.s32.totalorder %s78, %s79
      %p91 = scmp.eq.s32.totalorder %s22, 1
      %p92 = por %p90, %p91
      %p94 = scmp.ne.s32.totalorder %s79, %s93
      %p95 = scmp.eq.s32.totalorder %s22, 0
      %p96 = por %p94, %p95
      %s98 = sadd.s32 %s97, 1
      %p101 = scmp.eq.s32.totalorder %s16, 1
      %p102 = scmp.ne.s32.totalorder %s97, %s99
      %p103 = scmp.eq.s32.totalorder %s16, 0
      %p104 = por %p102, %p103
      %p105 = scmp.ne.s32.totalorder %s97, %s99
      %p106 = scmp.eq.s32.totalorder %s21, 1
      %p107 = por %p105, %p106
      %p108 = scmp.ne.s32.totalorder %s99, %s100
      %p109 = scmp.eq.s32.totalorder %s21, 0
      %p110 = por %p108, %p109
      %p111 = scmp.ne.s32.totalorder %s99, %s100
      %p112 = scmp.eq.s32.totalorder %s22, 1
      %p113 = por %p111, %p112
      %p115 = scmp.ne.s32.totalorder %s100, %s114
      %p116 = scmp.eq.s32.totalorder %s22, 0
      %p117 = por %p115, %p116
      %s118 = ssub.s32 %s16, %s23
      %p119 = scmp.eq.s32.totalorder %s118, 0
      %s121 = sadd.s32 %s120, 1
      %s122 = scalar_select %p119, %s120, %s121
      %p125 = pneg %p119
      %p126 = scmp.eq.s32.totalorder %s16, 1
      %p127 = por %p125, %p126
      %p128 = scmp.ne.s32.totalorder %s120, %s123
      %p129 = scmp.eq.s32.totalorder %s16, 0
      %p130 = por %p128, %p129
      %p131 = scmp.ne.s32.totalorder %s120, %s123
      %p132 = scmp.eq.s32.totalorder %s21, 1
      %p133 = por %p131, %p132
      %p134 = scmp.ne.s32.totalorder %s123, %s124
      %p135 = scmp.eq.s32.totalorder %s21, 0
      %p136 = por %p134, %p135
      %p137 = scmp.ne.s32.totalorder %s123, %s124
      %p138 = scmp.eq.s32.totalorder %s22, 1
      %p139 = por %p137, %p138
      %p141 = scmp.ne.s32.totalorder %s124, %s140
      %p142 = scmp.eq.s32.totalorder %s22, 0
      %p143 = por %p141, %p142
      %s144 = ssub.s32 %s16, %s23
      %p145 = scmp.eq.s32.totalorder %s144, 0
      %s147 = sadd.s32 %s146, 1
      %s148 = scalar_select %p145, %s146, %s147
      %p151 = pneg %p145
      %p152 = scmp.eq.s32.totalorder %s16, 1
      %p153 = por %p151, %p152
      %p154 = scmp.ne.s32.totalorder %s146, %s149
      %p155 = scmp.eq.s32.totalorder %s16, 0
      %p156 = por %p154, %p155
      %p157 = scmp.ne.s32.totalorder %s146, %s149
      %p158 = scmp.eq.s32.totalorder %s21, 1
      %p159 = por %p157, %p158
      %p160 = scmp.ne.s32.totalorder %s149, %s150
      %p161 = scmp.eq.s32.totalorder %s21, 0
      %p162 = por %p160, %p161
      %p163 = scmp.ne.s32.totalorder %s149, %s150
      %p164 = scmp.eq.s32.totalorder %s22, 1
      %p165 = por %p163, %p164
      %p167 = scmp.ne.s32.totalorder %s150, %s166
      %p168 = scmp.eq.s32.totalorder %s22, 0
      %p169 = por %p167, %p168
      %s170 = ssub.s32 %s16, %s23
      %p171 = scmp.eq.s32.totalorder %s170, 0
      %s173 = sadd.s32 %s172, 1
      %s174 = scalar_select %p171, %s172, %s173
      %p177 = pneg %p171
      %p178 = scmp.eq.s32.totalorder %s16, 1
      %p179 = por %p177, %p178
      %p180 = scmp.ne.s32.totalorder %s172, %s175
      %p181 = scmp.eq.s32.totalorder %s16, 0
      %p182 = por %p180, %p181
      %p183 = scmp.ne.s32.totalorder %s172, %s175
      %p184 = scmp.eq.s32.totalorder %s21, 1
      %p185 = por %p183, %p184
      %p186 = scmp.ne.s32.totalorder %s175, %s176
      %p187 = scmp.eq.s32.totalorder %s21, 0
      %p188 = por %p186, %p187
      %p189 = scmp.ne.s32.totalorder %s175, %s176
      %p190 = scmp.eq.s32.totalorder %s22, 1
      %p191 = por %p189, %p190
      %p193 = scmp.ne.s32.totalorder %s176, %s192
      %p194 = scmp.eq.s32.totalorder %s22, 0
      %p195 = por %p193, %p194
      %p196 = scmp.le.s32.totalorder 1, %s16
      %p197 = scmp.lt.s32.totalorder %s16, 3
      %p198 = pnand %p196, %p197
      %p199 = pneg %p198
      // Predicated region
      $region9: #{_lambda_.1} parent=5 // pred_check
        _
      $region10: #{_lambda_.1} parent=5 // pred_check_branch
        %201 = sbr.rel (%p198) target = $region12
      $region11: #{_lambda_.1} parent=5 // pred_region
        %s202 = ssub.s32 %s16, 1
        // Predicated region
        $region13: #{_lambda_.1} parent=11 // pred_check
          %p203 = pneg %p89
        $region14: #{_lambda_.1} parent=11 // pred_check_branch
          %205 = sbr.rel (%p203) target = $region16
        $region15: #{_lambda_.1} parent=11 // pred_region
          _
        $region16: #{_lambda_.1} parent=11 // pred_fallthru
          _
        // Predicated region
        $region17: #{_lambda_.1} parent=11 // pred_check
          %p206 = pneg %p110
        $region18: #{_lambda_.1} parent=11 // pred_check_branch
          %208 = sbr.rel (%p206) target = $region20
        $region19: #{_lambda_.1} parent=11 // pred_region
          _
        $region20: #{_lambda_.1} parent=11 // pred_fallthru
          _
      $region12: #{_lambda_.1} parent=5 // pred_fallthru
        _
      %p209 = scmp.lt.s32.totalorder %s16, 2
      // Predicated region
      $region21: #{_lambda_.1} parent=5 // pred_check
        %p210 = pneg %p209
      $region22: #{_lambda_.1} parent=5 // pred_check_branch
        %212 = sbr.rel (%p210) target = $region24
      $region23: #{_lambda_.1} parent=5 // pred_region
        // Predicated region
        $region25: #{_lambda_.1} parent=23 // pred_check
          %p213 = pneg %p36
        $region26: #{_lambda_.1} parent=23 // pred_check_branch
          %215 = sbr.rel (%p213) target = $region28
        $region27: #{_lambda_.1} parent=23 // pred_region
          %p216 = scmp.lt.s32.totalorder %s16, 1
          %s217 = scalar_select %p216, %s16, 1
          %s218 = smul.addr %s217, 8
          %s219 = smul.addr %s218, 8
          %s220 = scalar_lea.vmem %s0, %s219
        $region28: #{_lambda_.1} parent=23 // pred_fallthru
          _
        // Predicated region
        $region29: #{_lambda_.1} parent=23 // pred_check
          %p221 = pneg %p62
        $region30: #{_lambda_.1} parent=23 // pred_check_branch
          %223 = sbr.rel (%p221) target = $region32
        $region31: #{_lambda_.1} parent=23 // pred_region
          %p224 = scmp.lt.s32.totalorder %s16, 1
          %s225 = scalar_select %p224, %s16, 1
          %s226 = smul.addr %s225, 8
          %s227 = scalar_lea.vmem %s1, %s226
        $region32: #{_lambda_.1} parent=23 // pred_fallthru
          _
      $region24: #{_lambda_.1} parent=5 // pred_fallthru
        _
      %p228 = scmp.le.s32.totalorder 1, %s16
      %p229 = scmp.lt.s32.totalorder %s16, 3
      %p230 = pnand %p228, %p229
      %p231 = pneg %p230
      // Predicated region
      $region33: #{_lambda_.1} parent=5 // pred_check
        _
      $region34: #{_lambda_.1} parent=5 // pred_check_branch
        %233 = sbr.rel (%p230) target = $region36
      $region35: #{_lambda_.1} parent=5 // pred_region
        %s234 = ssub.s32 %s16, 1
        %p235 = scmp.lt.s32.totalorder %s21, 1
        %s236 = scalar_select %p235, %s21, 1
        %s237 = smul.addr %s236, 8
        %s238 = smul.addr %s237, 8
        %s239 = scalar_lea.vmem %s0, %s238
        %p240 = pneg %p42
        %p241 = pneg %p39
        %p242 = scmp.lt.s32.totalorder %s21, 1
        %s243 = scalar_select %p242, %s21, 1
        %s244 = smul.addr %s243, 8
        %s245 = scalar_lea.vmem %s1, %s244
        %p246 = pneg %p68
        %p247 = pneg %p65
        %p248 = pneg %p89
        %p249 = pneg %p86
        %p250 = pneg %p110
        %p251 = pneg %p107
        %p252 = pneg %p136
        %p253 = pneg %p133
        %s254 = sand.u32 %s123, 1
        %s255 = scalar_lea.sflag [#allocation3], %s254
        %s256 = sand.u32 %s123, 1
        %s257 = smul.addr %s256, 64
        %s258 = scalar_lea.vmem [#allocation2], %s257
        %p259 = pneg %p162
        %p260 = pneg %p159
        %p261 = scmp.lt.s32.totalorder %s21, 1
        %s262 = scalar_select %p261, %s21, 1
        %s263 = smul.addr %s262, 8
        %s264 = smul.addr %s263, 8
        %s265 = scalar_lea.vmem %s5, %s264
        %p266 = pneg %p188
        %p267 = pneg %p185
        %p268 = scmp.lt.s32.totalorder %s21, 1
        %s269 = scalar_select %p268, %s21, 1
        %s270 = scalar_lea.vmem %s6, %s269
        %p271 = scmp.lt.s32.totalorder %s21, 1
        %s272 = scalar_select %p271, %s21, 1
        %s273 = smul.addr %s272, 8
        %s274 = smul.addr %s273, 8
        %s275 = scalar_lea.vmem %s0, %s274
        %p276 = scmp.lt.s32.totalorder %s21, 1
        %s277 = scalar_select %p276, %s21, 1
        %s278 = smul.addr %s277, 8
        %s279 = scalar_lea.vmem %s1, %s278
        %p280 = scmp.lt.s32.totalorder %s21, 1
        %s281 = scalar_select %p280, %s21, 1
        %s282 = smul.addr %s281, 8
        %s283 = smul.addr %s282, 8
        %s284 = scalar_lea.vmem %s5, %s283
        %p285 = scmp.lt.s32.totalorder %s21, 1
        %s286 = scalar_select %p285, %s21, 1
        %s287 = scalar_lea.vmem %s6, %s286
        %v289 = vld [vmem:[%s275] sm:$0xff]
        %v290 = vld [vmem:[%s275 + $0x8] sm:$0xff]
        %v291 = vld [vmem:[%s275 + $0x10] sm:$0xff]
        %v292 = vld [vmem:[%s275 + $0x18] sm:$0xff]
        %v293 = vld [vmem:[%s275 + $0x20] sm:$0xff]
        %v294 = vld [vmem:[%s275 + $0x28] sm:$0xff]
        %v295 = vld [vmem:[%s275 + $0x30] sm:$0xff]
        %v296 = vld [vmem:[%s275 + $0x38] sm:$0xff]
        %v297 = vld [vmem:[%s2] sm:$0xf]
        %v298 = vld [vmem:[%s2 + $0x4] sm:$0xf]
        %v299 = vld [vmem:[%s2 + $0x8] sm:$0xf]
        %v300 = vld [vmem:[%s2 + $0xc] sm:$0xf]
        %v301 = vld [vmem:[%s2 + $0x10] sm:$0xf]
        %v302 = vld [vmem:[%s2 + $0x14] sm:$0xf]
        %v303 = vpack.c.bf16 %v290, %v289
        %v304 = vpack.c.bf16 %v292, %v291
        %v305 = vpack.c.bf16 %v294, %v293
        %v306 = vpack.c.bf16 %v296, %v295
        %v307 = vld [vmem:[%s3] sm:$0x1]
        %v308 = vperm.slane %v307, 0
        %v315 = vunpack.c.l.b16 %v297
        %v316 = vunpack.c.l.b16 %v298
        %v317 = vunpack.c.l.b16 %v299
        %v318 = vunpack.c.l.b16 %v300
        %v319 = vunpack.c.l.b16 %v301
        %v320 = vunpack.c.l.b16 %v302
        %v321 = vpack.c.b16 %v316, %v315
        %v322 = vpack.c.b16 %v318, %v317
        %v323 = vpack.c.b16 %v320, %v319
        %vm327 = vcmask 392192
        %v329 = vsel %vm327, %v303, 0
        %v332 = vsel %vm327, %v304, 0
        %v335 = vsel %vm327, %v305, 0
        %v338 = vsel %vm327, %v306, 0
        %340 = vmatpush.bf16.msra.mxu0 0
        %341 = vmatpush.bf16.msra.mxu0 0
        %342 = vmatpush.bf16.msra.mxu0 0
        %343 = vmatpush.bf16.msra.mxu0 0
        %344 = vmatpush.bf16.msra.mxu0 0
        %345 = vmatpush.bf16.msra.mxu0 %v323
        %346 = vmatpush.bf16.msra.mxu0 %v322
        %347 = vmatpush.bf16.msra.mxu0 %v321
        %348 = vmatmul.bf16.gmra.mxu0 %v329
        %v349 = vpop.f32.mrf.mxu0
        %v350 = vadd.f32 %v308, %v349
        %v351 = vpop.f32.mrf.mxu0
        %v352 = vadd.f32 %v308, %v351
        %353 = vmatmul.bf16.gmra.mxu0 %v332
        %v354 = vpop.f32.mrf.mxu0
        %v355 = vadd.f32 %v308, %v354
        %v356 = vpop.f32.mrf.mxu0
        %v357 = vadd.f32 %v308, %v356
        %358 = vmatmul.bf16.gmra.mxu0 %v335
        %v359 = vpop.f32.mrf.mxu0
        %v360 = vadd.f32 %v308, %v359
        %v361 = vpop.f32.mrf.mxu0
        %v362 = vadd.f32 %v308, %v361
        %363 = vmatmul.bf16.gmra.mxu0 %v338
        %v364 = vpop.f32.mrf.mxu0
        %v365 = vadd.f32 %v308, %v364
        %v366 = vpop.f32.mrf.mxu0
        %v367 = vadd.f32 %v308, %v366
        %368 = vdwg.mxu0
        %v369 = vld [vmem:[%s3 + $0x8] sm:$0xff]
        %v370 = vld [vmem:[%s3 + $0x10] sm:$0xff]
        %v371 = vld [vmem:[%s3 + $0x18] sm:$0xff]
        %v372 = vld [vmem:[%s3 + $0x20] sm:$0xff]
        %v373 = vld [vmem:[%s3 + $0x28] sm:$0xff]
        %v374 = vld [vmem:[%s3 + $0x30] sm:$0xff]
        %v375 = vld [vmem:[%s3 + $0x38] sm:$0xff]
        %v376 = vld [vmem:[%s3 + $0x40] sm:$0xff]
        %v377 = vadd.f32 %v350, %v369
        %v378 = vadd.f32 %v352, %v370
        %v379 = vadd.f32 %v355, %v371
        %v380 = vadd.f32 %v357, %v372
        %v381 = vadd.f32 %v360, %v373
        %v382 = vadd.f32 %v362, %v374
        %v383 = vadd.f32 %v365, %v375
        %v384 = vadd.f32 %v367, %v376
        %v385 = vld [vmem:[%s3 + $0x48] sm:$0x1]
        %v386 = vld [vmem:[%s3 + $0x50] sm:$0x1]
        %vm387 = vcmask 261120
        %v388 = vsel %vm387, %v377, 0.0
        %389 = vadd.xlane.f32.xlu0 %v388
        %v390 = vpop.xlane.xlu0 %389
        %v391 = vsel %vm387, %v378, 0.0
        %392 = vadd.xlane.f32.xlu0 %v391
        %v393 = vpop.xlane.xlu0 %392
        %v394 = vsel %vm387, %v379, 0.0
        %395 = vadd.xlane.f32.xlu0 %v394
        %v396 = vpop.xlane.xlu0 %395
        %v397 = vsel %vm387, %v380, 0.0
        %398 = vadd.xlane.f32.xlu0 %v397
        %v399 = vpop.xlane.xlu0 %398
        %v400 = vsel %vm387, %v381, 0.0
        %401 = vadd.xlane.f32.xlu0 %v400
        %v402 = vpop.xlane.xlu0 %401
        %v403 = vsel %vm387, %v382, 0.0
        %404 = vadd.xlane.f32.xlu0 %v403
        %v405 = vpop.xlane.xlu0 %404
        %v406 = vsel %vm387, %v383, 0.0
        %407 = vadd.xlane.f32.xlu0 %v406
        %v408 = vpop.xlane.xlu0 %407
        %v409 = vsel %vm387, %v384, 0.0
        %410 = vadd.xlane.f32.xlu0 %v409
        %v411 = vpop.xlane.xlu0 %410
        %v412 = vrcp.pop 32.0
        %v413 = vmul.f32 32.0, %v412
        %v414 = vsub.f32 1.0, %v413
        %v415 = vmul.f32 %v412, %v414
        %v416 = vadd.f32 %v412, %v415
        %vm417 = vweird.f32 %v412
        %v418 = vsel %vm417, %v412, %v416
        %v419 = vmul.f32 %v390, %v418
        %v420 = vmul.f32 %v393, %v418
        %v421 = vmul.f32 %v396, %v418
        %v422 = vmul.f32 %v399, %v418
        %v423 = vmul.f32 %v402, %v418
        %v424 = vmul.f32 %v405, %v418
        %v425 = vmul.f32 %v408, %v418
        %v426 = vmul.f32 %v411, %v418
        %v427 = vsub.f32 %v377, %v419
        %v428 = vsub.f32 %v378, %v420
        %v429 = vsub.f32 %v379, %v421
        %v430 = vsub.f32 %v380, %v422
        %v431 = vsub.f32 %v381, %v423
        %v432 = vsub.f32 %v382, %v424
        %v433 = vsub.f32 %v383, %v425
        %v434 = vsub.f32 %v384, %v426
        %v435 = vmul.f32 %v427, %v427
        %v436 = vmul.f32 %v428, %v428
        %v437 = vmul.f32 %v429, %v429
        %v438 = vmul.f32 %v430, %v430
        %v439 = vmul.f32 %v431, %v431
        %v440 = vmul.f32 %v432, %v432
        %v441 = vmul.f32 %v433, %v433
        %v442 = vmul.f32 %v434, %v434
        %v443 = vsel %vm387, %v435, 0.0
        %444 = vadd.xlane.f32.xlu0 %v443
        %v445 = vpop.xlane.xlu0 %444
        %v446 = vsel %vm387, %v436, 0.0
        %447 = vadd.xlane.f32.xlu0 %v446
        %v448 = vpop.xlane.xlu0 %447
        %v449 = vsel %vm387, %v437, 0.0
        %450 = vadd.xlane.f32.xlu0 %v449
        %v451 = vpop.xlane.xlu0 %450
        %v452 = vsel %vm387, %v438, 0.0
        %453 = vadd.xlane.f32.xlu0 %v452
        %v454 = vpop.xlane.xlu0 %453
        %v455 = vsel %vm387, %v439, 0.0
        %456 = vadd.xlane.f32.xlu0 %v455
        %v457 = vpop.xlane.xlu0 %456
        %v458 = vsel %vm387, %v440, 0.0
        %459 = vadd.xlane.f32.xlu0 %v458
        %v460 = vpop.xlane.xlu0 %459
        %v461 = vsel %vm387, %v441, 0.0
        %462 = vadd.xlane.f32.xlu0 %v461
        %v463 = vpop.xlane.xlu0 %462
        %v464 = vsel %vm387, %v442, 0.0
        %465 = vadd.xlane.f32.xlu0 %v464
        %v466 = vpop.xlane.xlu0 %465
        %v467 = vmul.f32 %v445, %v418
        %v468 = vmul.f32 %v448, %v418
        %v469 = vmul.f32 %v451, %v418
        %v470 = vmul.f32 %v454, %v418
        %v471 = vmul.f32 %v457, %v418
        %v472 = vmul.f32 %v460, %v418
        %v473 = vmul.f32 %v463, %v418
        %v474 = vmul.f32 %v466, %v418
        %v475 = vadd.f32 %v467, 1e-05
        %v476 = vadd.f32 %v468, 1e-05
        %v477 = vadd.f32 %v469, 1e-05
        %v478 = vadd.f32 %v470, 1e-05
        %v479 = vadd.f32 %v471, 1e-05
        %v480 = vadd.f32 %v472, 1e-05
        %v481 = vadd.f32 %v473, 1e-05
        %v482 = vadd.f32 %v474, 1e-05
        %v483 = vrsqrt.pop %v475
        %v484 = vmul.f32 %v483, %v475
        %v485 = vmul.f32 %v484, %v483
        %v486 = vmul.f32 0.5, %v485
        %v487 = vsub.f32 1.5, %v486
        %v488 = vmul.f32 %v483, %v487
        %vm489 = vweird.f32 %v475
        %vm490 = vweird.f32 %v483
        %vm491 = vmor %vm489, %vm490
        %v492 = vsel %vm491, %v483, %v488
        %v493 = vrsqrt.pop %v476
        %v494 = vmul.f32 %v493, %v476
        %v495 = vmul.f32 %v494, %v493
        %v496 = vmul.f32 0.5, %v495
        %v497 = vsub.f32 1.5, %v496
        %v498 = vmul.f32 %v493, %v497
        %vm499 = vweird.f32 %v476
        %vm500 = vweird.f32 %v493
        %vm501 = vmor %vm499, %vm500
        %v502 = vsel %vm501, %v493, %v498
        %v503 = vrsqrt.pop %v477
        %v504 = vmul.f32 %v503, %v477
        %v505 = vmul.f32 %v504, %v503
        %v506 = vmul.f32 0.5, %v505
        %v507 = vsub.f32 1.5, %v506
        %v508 = vmul.f32 %v503, %v507
        %vm509 = vweird.f32 %v477
        %vm510 = vweird.f32 %v503
        %vm511 = vmor %vm509, %vm510
        %v512 = vsel %vm511, %v503, %v508
        %v513 = vrsqrt.pop %v478
        %v514 = vmul.f32 %v513, %v478
        %v515 = vmul.f32 %v514, %v513
        %v516 = vmul.f32 0.5, %v515
        %v517 = vsub.f32 1.5, %v516
        %v518 = vmul.f32 %v513, %v517
        %vm519 = vweird.f32 %v478
        %vm520 = vweird.f32 %v513
        %vm521 = vmor %vm519, %vm520
        %v522 = vsel %vm521, %v513, %v518
        %v523 = vrsqrt.pop %v479
        %v524 = vmul.f32 %v523, %v479
        %v525 = vmul.f32 %v524, %v523
        %v526 = vmul.f32 0.5, %v525
        %v527 = vsub.f32 1.5, %v526
        %v528 = vmul.f32 %v523, %v527
        %vm529 = vweird.f32 %v479
        %vm530 = vweird.f32 %v523
        %vm531 = vmor %vm529, %vm530
        %v532 = vsel %vm531, %v523, %v528
        %v533 = vrsqrt.pop %v480
        %v534 = vmul.f32 %v533, %v480
        %v535 = vmul.f32 %v534, %v533
        %v536 = vmul.f32 0.5, %v535
        %v537 = vsub.f32 1.5, %v536
        %v538 = vmul.f32 %v533, %v537
        %vm539 = vweird.f32 %v480
        %vm540 = vweird.f32 %v533
        %vm541 = vmor %vm539, %vm540
        %v542 = vsel %vm541, %v533, %v538
        %v543 = vrsqrt.pop %v481
        %v544 = vmul.f32 %v543, %v481
        %v545 = vmul.f32 %v544, %v543
        %v546 = vmul.f32 0.5, %v545
        %v547 = vsub.f32 1.5, %v546
        %v548 = vmul.f32 %v543, %v547
        %vm549 = vweird.f32 %v481
        %vm550 = vweird.f32 %v543
        %vm551 = vmor %vm549, %vm550
        %v552 = vsel %vm551, %v543, %v548
        %v553 = vrsqrt.pop %v482
        %v554 = vmul.f32 %v553, %v482
        %v555 = vmul.f32 %v554, %v553
        %v556 = vmul.f32 0.5, %v555
        %v557 = vsub.f32 1.5, %v556
        %v558 = vmul.f32 %v553, %v557
        %vm559 = vweird.f32 %v482
        %vm560 = vweird.f32 %v553
        %vm561 = vmor %vm559, %vm560
        %v562 = vsel %vm561, %v553, %v558
        %v563 = vmul.f32 %v427, %v492
        %v564 = vmul.f32 %v428, %v502
        %v565 = vmul.f32 %v429, %v512
        %v566 = vmul.f32 %v430, %v522
        %v567 = vmul.f32 %v431, %v532
        %v568 = vmul.f32 %v432, %v542
        %v569 = vmul.f32 %v433, %v552
        %v570 = vmul.f32 %v434, %v562
        %v571 = vperm.slane %v385, 0
        %v572 = vmul.f32 %v563, %v571
        %v573 = vmul.f32 %v564, %v571
        %v574 = vmul.f32 %v565, %v571
        %v575 = vmul.f32 %v566, %v571
        %v576 = vmul.f32 %v567, %v571
        %v577 = vmul.f32 %v568, %v571
        %v578 = vmul.f32 %v569, %v571
        %v579 = vmul.f32 %v570, %v571
        %v580 = vperm.slane %v386, 0
        %v581 = vadd.f32 %v572, %v580
        %v582 = vadd.f32 %v573, %v580
        %v583 = vadd.f32 %v574, %v580
        %v584 = vadd.f32 %v575, %v580
        %v585 = vadd.f32 %v576, %v580
        %v586 = vadd.f32 %v577, %v580
        %v587 = vadd.f32 %v578, %v580
        %v588 = vadd.f32 %v579, %v580
        %v589 = vld [vmem:[%s2 + $0x18] sm:$0xf]
        %v590 = vld [vmem:[%s2 + $0x1c] sm:$0xf]
        %v591 = vld [vmem:[%s2 + $0x20] sm:$0xf]
        %v592 = vld [vmem:[%s2 + $0x24] sm:$0xf]
        %v593 = vld [vmem:[%s3 + $0x58] sm:$0x1]
        %v594 = vld [vmem:[%s2 + $0x28] sm:$0xf]
        %v595 = vld [vmem:[%s2 + $0x2c] sm:$0xf]
        %v596 = vld [vmem:[%s2 + $0x30] sm:$0xf]
        %v597 = vld [vmem:[%s2 + $0x34] sm:$0xf]
        %v598 = vld [vmem:[%s3 + $0x60] sm:$0x1]
        %v599 = vpack.c.bf16 %v582, %v581
        %v600 = vpack.c.bf16 %v584, %v583
        %v601 = vpack.c.bf16 %v586, %v585
        %v602 = vpack.c.bf16 %v588, %v587
        %v603 = vperm.slane %v593, 0
        %v608 = vunpack.c.l.b16 %v589
        %v609 = vunpack.c.l.b16 %v590
        %v610 = vunpack.c.l.b16 %v591
        %v611 = vunpack.c.l.b16 %v592
        %v612 = vpack.c.b16 %v609, %v608
        %v613 = vpack.c.b16 %v611, %v610
        %v617 = vsel %vm387, %v599, 0
        %v620 = vsel %vm387, %v600, 0
        %v623 = vsel %vm387, %v601, 0
        %v626 = vsel %vm387, %v602, 0
        %628 = vmatpush.bf16.msra.mxu0 0
        %629 = vmatpush.bf16.msra.mxu0 0
        %630 = vmatpush.bf16.msra.mxu0 0
        %631 = vmatpush.bf16.msra.mxu0 0
        %632 = vmatpush.bf16.msra.mxu0 0
        %633 = vmatpush.bf16.msra.mxu0 0
        %634 = vmatpush.bf16.msra.mxu0 %v613
        %635 = vmatpush.bf16.msra.mxu0 %v612
        %636 = vmatmul.bf16.gmra.mxu0 %v617
        %v637 = vpop.f32.mrf.mxu0
        %v638 = vadd.f32 %v603, %v637
        %v639 = vpop.f32.mrf.mxu0
        %v640 = vadd.f32 %v603, %v639
        %641 = vmatmul.bf16.gmra.mxu0 %v620
        %v642 = vpop.f32.mrf.mxu0
        %v643 = vadd.f32 %v603, %v642
        %v644 = vpop.f32.mrf.mxu0
        %v645 = vadd.f32 %v603, %v644
        %646 = vmatmul.bf16.gmra.mxu0 %v623
        %v647 = vpop.f32.mrf.mxu0
        %v648 = vadd.f32 %v603, %v647
        %v649 = vpop.f32.mrf.mxu0
        %v650 = vadd.f32 %v603, %v649
        %651 = vmatmul.bf16.gmra.mxu0 %v626
        %v652 = vpop.f32.mrf.mxu0
        %v653 = vadd.f32 %v603, %v652
        %v654 = vpop.f32.mrf.mxu0
        %v655 = vadd.f32 %v603, %v654
        %656 = vdwg.mxu0
        %v657 = vpack.c.bf16 %v640, %v638
        %v658 = vpack.c.bf16 %v645, %v643
        %v659 = vpack.c.bf16 %v650, %v648
        %v660 = vpack.c.bf16 %v655, %v653
        %665 = vrot.lane.b32.xlu0 %v657, 96
        %v666 = vpop.permute.xlu0 %665
        %667 = vrot.lane.b32.xlu0 %v658, 96
        %v668 = vpop.permute.xlu0 %667
        %669 = vrot.lane.b32.xlu0 %v659, 96
        %v670 = vpop.permute.xlu0 %669
        %671 = vrot.lane.b32.xlu0 %v660, 96
        %v672 = vpop.permute.xlu0 %671
        %vm673 = vcmask 130048
        %v675 = vsel %vm673, %v657, 0
        %v678 = vsel %vm673, %v658, 0
        %v681 = vsel %vm673, %v659, 0
        %v684 = vsel %vm673, %v660, 0
        %v687 = vsel %vm673, %v666, 0
        %v690 = vsel %vm673, %v668, 0
        %v693 = vsel %vm673, %v670, 0
        %v696 = vsel %vm673, %v672, 0
        %698 = vmatpush.bf16.xpose.msra.mxu0 0
        %699 = vmatpush.bf16.xpose.msra.mxu0 0
        %700 = vmatpush.bf16.xpose.msra.mxu0 0
        %701 = vmatpush.bf16.xpose.msra.mxu0 0
        %702 = vmatpush.bf16.xpose.msra.mxu0 %v696
        %703 = vmatpush.bf16.xpose.msra.mxu0 %v693
        %704 = vmatpush.bf16.xpose.msra.mxu0 %v690
        %705 = vmatpush.bf16.xpose.msra.mxu0 %v687
        %706 = vmatmul.bf16.gmra.mxu0 %v675
        %v707 = vpop.f32.mrf.mxu0
        %v708 = vadd.f32 0.0, %v707
        %v709 = vpop.f32.mrf.mxu0
        %v710 = vadd.f32 0.0, %v709
        %711 = vmatmul.bf16.gmra.mxu0 %v678
        %v712 = vpop.f32.mrf.mxu0
        %v713 = vadd.f32 0.0, %v712
        %v714 = vpop.f32.mrf.mxu0
        %v715 = vadd.f32 0.0, %v714
        %716 = vmatmul.bf16.gmra.mxu0 %v681
        %v717 = vpop.f32.mrf.mxu0
        %v718 = vadd.f32 0.0, %v717
        %v719 = vpop.f32.mrf.mxu0
        %v720 = vadd.f32 0.0, %v719
        %721 = vmatmul.bf16.gmra.mxu0 %v684
        %v722 = vpop.f32.mrf.mxu0
        %v723 = vadd.f32 0.0, %v722
        %v724 = vpop.f32.mrf.mxu0
        %v725 = vadd.f32 0.0, %v724
        %726 = vdwg.mxu0
        %vm727 = vcmask 523264
        %v728 = vsel %vm727, %v708, -inf
        %729 = vmax.xlane.f32.xlu0 %v728
        %v730 = vpop.xlane.xlu0 %729
        %v731 = vsel %vm727, %v710, -inf
        %732 = vmax.xlane.f32.xlu0 %v731
        %v733 = vpop.xlane.xlu0 %732
        %v734 = vsel %vm727, %v713, -inf
        %735 = vmax.xlane.f32.xlu0 %v734
        %v736 = vpop.xlane.xlu0 %735
        %v737 = vsel %vm727, %v715, -inf
        %738 = vmax.xlane.f32.xlu0 %v737
        %v739 = vpop.xlane.xlu0 %738
        %v740 = vsel %vm727, %v718, -inf
        %741 = vmax.xlane.f32.xlu0 %v740
        %v742 = vpop.xlane.xlu0 %741
        %v743 = vsel %vm727, %v720, -inf
        %744 = vmax.xlane.f32.xlu0 %v743
        %v745 = vpop.xlane.xlu0 %744
        %v746 = vsel %vm727, %v723, -inf
        %747 = vmax.xlane.f32.xlu0 %v746
        %v748 = vpop.xlane.xlu0 %747
        %v749 = vsel %vm727, %v725, -inf
        %750 = vmax.xlane.f32.xlu0 %v749
        %v751 = vpop.xlane.xlu0 %750
        %v752 = vsub.f32 %v708, %v730
        %v753 = vsub.f32 %v710, %v733
        %v754 = vsub.f32 %v713, %v736
        %v755 = vsub.f32 %v715, %v739
        %v756 = vsub.f32 %v718, %v742
        %v757 = vsub.f32 %v720, %v745
        %v758 = vsub.f32 %v723, %v748
        %v759 = vsub.f32 %v725, %v751
        %v760 = vmul.f32 %v752, 1.442695
        %v761 = vpow.pop %v760
        %v762 = vmul.f32 %v753, 1.442695
        %v763 = vpow.pop %v762
        %v764 = vmul.f32 %v754, 1.442695
        %v765 = vpow.pop %v764
        %v766 = vmul.f32 %v755, 1.442695
        %v767 = vpow.pop %v766
        %v768 = vmul.f32 %v756, 1.442695
        %v769 = vpow.pop %v768
        %v770 = vmul.f32 %v757, 1.442695
        %v771 = vpow.pop %v770
        %v772 = vmul.f32 %v758, 1.442695
        %v773 = vpow.pop %v772
        %v774 = vmul.f32 %v759, 1.442695
        %v775 = vpow.pop %v774
        %v776 = vsel %vm727, %v761, 0.0
        %777 = vadd.xlane.f32.xlu0 %v776
        %v778 = vpop.xlane.xlu0 %777
        %v779 = vsel %vm727, %v763, 0.0
        %780 = vadd.xlane.f32.xlu0 %v779
        %v781 = vpop.xlane.xlu0 %780
        %v782 = vsel %vm727, %v765, 0.0
        %783 = vadd.xlane.f32.xlu0 %v782
        %v784 = vpop.xlane.xlu0 %783
        %v785 = vsel %vm727, %v767, 0.0
        %786 = vadd.xlane.f32.xlu0 %v785
        %v787 = vpop.xlane.xlu0 %786
        %v788 = vsel %vm727, %v769, 0.0
        %789 = vadd.xlane.f32.xlu0 %v788
        %v790 = vpop.xlane.xlu0 %789
        %v791 = vsel %vm727, %v771, 0.0
        %792 = vadd.xlane.f32.xlu0 %v791
        %v793 = vpop.xlane.xlu0 %792
        %v794 = vsel %vm727, %v773, 0.0
        %795 = vadd.xlane.f32.xlu0 %v794
        %v796 = vpop.xlane.xlu0 %795
        %v797 = vsel %vm727, %v775, 0.0
        %798 = vadd.xlane.f32.xlu0 %v797
        %v799 = vpop.xlane.xlu0 %798
        %v800 = vrcp.pop %v778
        %v801 = vrcp.pop %v781
        %v802 = vrcp.pop %v784
        %v803 = vrcp.pop %v787
        %v804 = vrcp.pop %v790
        %v805 = vrcp.pop %v793
        %v806 = vrcp.pop %v796
        %v807 = vrcp.pop %v799
        %v808 = vmul.f32 %v761, %v800
        %v809 = vmul.f32 %v763, %v801
        %v810 = vmul.f32 %v765, %v802
        %v811 = vmul.f32 %v767, %v803
        %v812 = vmul.f32 %v769, %v804
        %v813 = vmul.f32 %v771, %v805
        %v814 = vmul.f32 %v773, %v806
        %v815 = vmul.f32 %v775, %v807
        %v816 = vpack.c.bf16 %v809, %v808
        %v817 = vpack.c.bf16 %v811, %v810
        %v818 = vpack.c.bf16 %v813, %v812
        %v819 = vpack.c.bf16 %v815, %v814
        %820 = vrot.lane.b32.xlu0 %v657, 64
        %v821 = vpop.permute.xlu0 %820
        %822 = vrot.lane.b32.xlu0 %v658, 64
        %v823 = vpop.permute.xlu0 %822
        %824 = vrot.lane.b32.xlu0 %v659, 64
        %v825 = vpop.permute.xlu0 %824
        %826 = vrot.lane.b32.xlu0 %v660, 64
        %v827 = vpop.permute.xlu0 %826
        %v833 = vsel %vm727, %v816, 0
        %v836 = vsel %vm727, %v817, 0
        %v839 = vsel %vm727, %v818, 0
        %v842 = vsel %vm727, %v819, 0
        %844 = vmatpush.bf16.msra.mxu0 0
        %845 = vmatpush.bf16.msra.mxu0 0
        %846 = vmatpush.bf16.msra.mxu0 0
        %847 = vmatpush.bf16.msra.mxu0 0
        %848 = vmatpush.bf16.msra.mxu0 %v827
        %849 = vmatpush.bf16.msra.mxu0 %v825
        %850 = vmatpush.bf16.msra.mxu0 %v823
        %851 = vmatpush.bf16.msra.mxu0 %v821
        %852 = vmatmul.bf16.gmra.mxu0 %v833
        %v853 = vpop.f32.mrf.mxu0
        %v854 = vadd.f32 0.0, %v853
        %v855 = vpop.f32.mrf.mxu0
        %v856 = vadd.f32 0.0, %v855
        %857 = vmatmul.bf16.gmra.mxu0 %v836
        %v858 = vpop.f32.mrf.mxu0
        %v859 = vadd.f32 0.0, %v858
        %v860 = vpop.f32.mrf.mxu0
        %v861 = vadd.f32 0.0, %v860
        %862 = vmatmul.bf16.gmra.mxu0 %v839
        %v863 = vpop.f32.mrf.mxu0
        %v864 = vadd.f32 0.0, %v863
        %v865 = vpop.f32.mrf.mxu0
        %v866 = vadd.f32 0.0, %v865
        %867 = vmatmul.bf16.gmra.mxu0 %v842
        %v868 = vpop.f32.mrf.mxu0
        %v869 = vadd.f32 0.0, %v868
        %v870 = vpop.f32.mrf.mxu0
        %v871 = vadd.f32 0.0, %v870
        %872 = vdwg.mxu0
        %873 = vrot.lane.b32.xlu0 %v657, 112
        %v874 = vpop.permute.xlu0 %873
        %875 = vrot.lane.b32.xlu0 %v658, 112
        %v876 = vpop.permute.xlu0 %875
        %877 = vrot.lane.b32.xlu0 %v659, 112
        %v878 = vpop.permute.xlu0 %877
        %879 = vrot.lane.b32.xlu0 %v660, 112
        %v880 = vpop.permute.xlu0 %879
        %881 = vrot.lane.b32.xlu0 %v657, 80
        %v882 = vpop.permute.xlu0 %881
        %883 = vrot.lane.b32.xlu0 %v658, 80
        %v884 = vpop.permute.xlu0 %883
        %885 = vrot.lane.b32.xlu0 %v659, 80
        %v886 = vpop.permute.xlu0 %885
        %887 = vrot.lane.b32.xlu0 %v660, 80
        %v888 = vpop.permute.xlu0 %887
        %v890 = vsel %vm673, %v874, 0
        %v893 = vsel %vm673, %v876, 0
        %v896 = vsel %vm673, %v878, 0
        %v899 = vsel %vm673, %v880, 0
        %v902 = vsel %vm673, %v882, 0
        %v905 = vsel %vm673, %v884, 0
        %v908 = vsel %vm673, %v886, 0
        %v911 = vsel %vm673, %v888, 0
        %913 = vmatpush.bf16.xpose.msra.mxu0 0
        %914 = vmatpush.bf16.xpose.msra.mxu0 0
        %915 = vmatpush.bf16.xpose.msra.mxu0 0
        %916 = vmatpush.bf16.xpose.msra.mxu0 0
        %917 = vmatpush.bf16.xpose.msra.mxu0 %v911
        %918 = vmatpush.bf16.xpose.msra.mxu0 %v908
        %919 = vmatpush.bf16.xpose.msra.mxu0 %v905
        %920 = vmatpush.bf16.xpose.msra.mxu0 %v902
        %921 = vmatmul.bf16.gmra.mxu0 %v890
        %v922 = vpop.f32.mrf.mxu0
        %v923 = vadd.f32 0.0, %v922
        %v924 = vpop.f32.mrf.mxu0
        %v925 = vadd.f32 0.0, %v924
        %926 = vmatmul.bf16.gmra.mxu0 %v893
        %v927 = vpop.f32.mrf.mxu0
        %v928 = vadd.f32 0.0, %v927
        %v929 = vpop.f32.mrf.mxu0
        %v930 = vadd.f32 0.0, %v929
        %931 = vmatmul.bf16.gmra.mxu0 %v896
        %v932 = vpop.f32.mrf.mxu0
        %v933 = vadd.f32 0.0, %v932
        %v934 = vpop.f32.mrf.mxu0
        %v935 = vadd.f32 0.0, %v934
        %936 = vmatmul.bf16.gmra.mxu0 %v899
        %v937 = vpop.f32.mrf.mxu0
        %v938 = vadd.f32 0.0, %v937
        %v939 = vpop.f32.mrf.mxu0
        %v940 = vadd.f32 0.0, %v939
        %941 = vdwg.mxu0
        %v942 = vsel %vm727, %v923, -inf
        %943 = vmax.xlane.f32.xlu0 %v942
        %v944 = vpop.xlane.xlu0 %943
        %v945 = vsel %vm727, %v925, -inf
        %946 = vmax.xlane.f32.xlu0 %v945
        %v947 = vpop.xlane.xlu0 %946
        %v948 = vsel %vm727, %v928, -inf
        %949 = vmax.xlane.f32.xlu0 %v948
        %v950 = vpop.xlane.xlu0 %949
        %v951 = vsel %vm727, %v930, -inf
        %952 = vmax.xlane.f32.xlu0 %v951
        %v953 = vpop.xlane.xlu0 %952
        %v954 = vsel %vm727, %v933, -inf
        %955 = vmax.xlane.f32.xlu0 %v954
        %v956 = vpop.xlane.xlu0 %955
        %v957 = vsel %vm727, %v935, -inf
        %958 = vmax.xlane.f32.xlu0 %v957
        %v959 = vpop.xlane.xlu0 %958
        %v960 = vsel %vm727, %v938, -inf
        %961 = vmax.xlane.f32.xlu0 %v960
        %v962 = vpop.xlane.xlu0 %961
        %v963 = vsel %vm727, %v940, -inf
        %964 = vmax.xlane.f32.xlu0 %v963
        %v965 = vpop.xlane.xlu0 %964
        %v966 = vsub.f32 %v923, %v944
        %v967 = vsub.f32 %v925, %v947
        %v968 = vsub.f32 %v928, %v950
        %v969 = vsub.f32 %v930, %v953
        %v970 = vsub.f32 %v933, %v956
        %v971 = vsub.f32 %v935, %v959
        %v972 = vsub.f32 %v938, %v962
        %v973 = vsub.f32 %v940, %v965
        %v974 = vmul.f32 %v966, 1.442695
        %v975 = vpow.pop %v974
        %v976 = vmul.f32 %v967, 1.442695
        %v977 = vpow.pop %v976
        %v978 = vmul.f32 %v968, 1.442695
        %v979 = vpow.pop %v978
        %v980 = vmul.f32 %v969, 1.442695
        %v981 = vpow.pop %v980
        %v982 = vmul.f32 %v970, 1.442695
        %v983 = vpow.pop %v982
        %v984 = vmul.f32 %v971, 1.442695
        %v985 = vpow.pop %v984
        %v986 = vmul.f32 %v972, 1.442695
        %v987 = vpow.pop %v986
        %v988 = vmul.f32 %v973, 1.442695
        %v989 = vpow.pop %v988
        %v990 = vsel %vm727, %v975, 0.0
        %991 = vadd.xlane.f32.xlu0 %v990
        %v992 = vpop.xlane.xlu0 %991
        %v993 = vsel %vm727, %v977, 0.0
        %994 = vadd.xlane.f32.xlu0 %v993
        %v995 = vpop.xlane.xlu0 %994
        %v996 = vsel %vm727, %v979, 0.0
        %997 = vadd.xlane.f32.xlu0 %v996
        %v998 = vpop.xlane.xlu0 %997
        %v999 = vsel %vm727, %v981, 0.0
        %1000 = vadd.xlane.f32.xlu0 %v999
        %v1001 = vpop.xlane.xlu0 %1000
        %v1002 = vsel %vm727, %v983, 0.0
        %1003 = vadd.xlane.f32.xlu0 %v1002
        %v1004 = vpop.xlane.xlu0 %1003
        %v1005 = vsel %vm727, %v985, 0.0
        %1006 = vadd.xlane.f32.xlu0 %v1005
        %v1007 = vpop.xlane.xlu0 %1006
        %v1008 = vsel %vm727, %v987, 0.0
        %1009 = vadd.xlane.f32.xlu0 %v1008
        %v1010 = vpop.xlane.xlu0 %1009
        %v1011 = vsel %vm727, %v989, 0.0
        %1012 = vadd.xlane.f32.xlu0 %v1011
        %v1013 = vpop.xlane.xlu0 %1012
        %v1014 = vrcp.pop %v992
        %v1015 = vrcp.pop %v995
        %v1016 = vrcp.pop %v998
        %v1017 = vrcp.pop %v1001
        %v1018 = vrcp.pop %v1004
        %v1019 = vrcp.pop %v1007
        %v1020 = vrcp.pop %v1010
        %v1021 = vrcp.pop %v1013
        %v1022 = vmul.f32 %v975, %v1014
        %v1023 = vmul.f32 %v977, %v1015
        %v1024 = vmul.f32 %v979, %v1016
        %v1025 = vmul.f32 %v981, %v1017
        %v1026 = vmul.f32 %v983, %v1018
        %v1027 = vmul.f32 %v985, %v1019
        %v1028 = vmul.f32 %v987, %v1020
        %v1029 = vmul.f32 %v989, %v1021
        %v1030 = vpack.c.bf16 %v1023, %v1022
        %v1031 = vpack.c.bf16 %v1025, %v1024
        %v1032 = vpack.c.bf16 %v1027, %v1026
        %v1033 = vpack.c.bf16 %v1029, %v1028
        %1034 = vrot.lane.b32.xlu0 %v657, 48
        %v1035 = vpop.permute.xlu0 %1034
        %1036 = vrot.lane.b32.xlu0 %v658, 48
        %v1037 = vpop.permute.xlu0 %1036
        %1038 = vrot.lane.b32.xlu0 %v659, 48
        %v1039 = vpop.permute.xlu0 %1038
        %1040 = vrot.lane.b32.xlu0 %v660, 48
        %v1041 = vpop.permute.xlu0 %1040
        %v1047 = vsel %vm727, %v1030, 0
        %v1050 = vsel %vm727, %v1031, 0
        %v1053 = vsel %vm727, %v1032, 0
        %v1056 = vsel %vm727, %v1033, 0
        %1058 = vmatpush.bf16.msra.mxu0 0
        %1059 = vmatpush.bf16.msra.mxu0 0
        %1060 = vmatpush.bf16.msra.mxu0 0
        %1061 = vmatpush.bf16.msra.mxu0 0
        %1062 = vmatpush.bf16.msra.mxu0 %v1041
        %1063 = vmatpush.bf16.msra.mxu0 %v1039
        %1064 = vmatpush.bf16.msra.mxu0 %v1037
        %1065 = vmatpush.bf16.msra.mxu0 %v1035
        %1066 = vmatmul.bf16.gmra.mxu0 %v1047
        %v1067 = vpop.f32.mrf.mxu0
        %v1068 = vadd.f32 0.0, %v1067
        %v1069 = vpop.f32.mrf.mxu0
        %v1070 = vadd.f32 0.0, %v1069
        %1071 = vmatmul.bf16.gmra.mxu0 %v1050
        %v1072 = vpop.f32.mrf.mxu0
        %v1073 = vadd.f32 0.0, %v1072
        %v1074 = vpop.f32.mrf.mxu0
        %v1075 = vadd.f32 0.0, %v1074
        %1076 = vmatmul.bf16.gmra.mxu0 %v1053
        %v1077 = vpop.f32.mrf.mxu0
        %v1078 = vadd.f32 0.0, %v1077
        %v1079 = vpop.f32.mrf.mxu0
        %v1080 = vadd.f32 0.0, %v1079
        %1081 = vmatmul.bf16.gmra.mxu0 %v1056
        %v1082 = vpop.f32.mrf.mxu0
        %v1083 = vadd.f32 0.0, %v1082
        %v1084 = vpop.f32.mrf.mxu0
        %v1085 = vadd.f32 0.0, %v1084
        %1086 = vdwg.mxu0
        %1095 = vrot.lane.b32.xlu0 %v1068, 16
        %v1096 = vpop.permute.xlu0 %1095
        %1097 = vrot.lane.b32.xlu0 %v1070, 16
        %v1098 = vpop.permute.xlu0 %1097
        %1099 = vrot.lane.b32.xlu0 %v1073, 16
        %v1100 = vpop.permute.xlu0 %1099
        %1101 = vrot.lane.b32.xlu0 %v1075, 16
        %v1102 = vpop.permute.xlu0 %1101
        %1103 = vrot.lane.b32.xlu0 %v1078, 16
        %v1104 = vpop.permute.xlu0 %1103
        %1105 = vrot.lane.b32.xlu0 %v1080, 16
        %v1106 = vpop.permute.xlu0 %1105
        %1107 = vrot.lane.b32.xlu0 %v1083, 16
        %v1108 = vpop.permute.xlu0 %1107
        %1109 = vrot.lane.b32.xlu0 %v1085, 16
        %v1110 = vpop.permute.xlu0 %1109
        %v1119 = vsel %vm673, %v854, %v1096
        %v1120 = vsel %vm673, %v856, %v1098
        %v1121 = vsel %vm673, %v859, %v1100
        %v1122 = vsel %vm673, %v861, %v1102
        %v1123 = vsel %vm673, %v864, %v1104
        %v1124 = vsel %vm673, %v866, %v1106
        %v1125 = vsel %vm673, %v869, %v1108
        %v1126 = vsel %vm673, %v871, %v1110
        %v1127 = vpack.c.bf16 %v1120, %v1119
        %v1128 = vpack.c.bf16 %v1122, %v1121
        %v1129 = vpack.c.bf16 %v1124, %v1123
        %v1130 = vpack.c.bf16 %v1126, %v1125
        %v1131 = vperm.slane %v598, 0
        %v1136 = vunpack.c.l.b16 %v594
        %v1137 = vunpack.c.l.b16 %v595
        %v1138 = vunpack.c.l.b16 %v596
        %v1139 = vunpack.c.l.b16 %v597
        %v1140 = vpack.c.b16 %v1137, %v1136
        %v1141 = vpack.c.b16 %v1139, %v1138
        %v1145 = vsel %vm387, %v1127, 0
        %v1148 = vsel %vm387, %v1128, 0
        %v1151 = vsel %vm387, %v1129, 0
        %v1154 = vsel %vm387, %v1130, 0
        %1156 = vmatpush.bf16.msra.mxu0 0
        %1157 = vmatpush.bf16.msra.mxu0 0
        %1158 = vmatpush.bf16.msra.mxu0 0
        %1159 = vmatpush.bf16.msra.mxu0 0
        %1160 = vmatpush.bf16.msra.mxu0 0
        %1161 = vmatpush.bf16.msra.mxu0 0
        %1162 = vmatpush.bf16.msra.mxu0 %v1141
        %1163 = vmatpush.bf16.msra.mxu0 %v1140
        %1164 = vmatmul.bf16.gmra.mxu0 %v1145
        %v1165 = vpop.f32.mrf.mxu0
        %v1166 = vadd.f32 %v1131, %v1165
        %v1167 = vpop.f32.mrf.mxu0
        %v1168 = vadd.f32 %v1131, %v1167
        %1169 = vmatmul.bf16.gmra.mxu0 %v1148
        %v1170 = vpop.f32.mrf.mxu0
        %v1171 = vadd.f32 %v1131, %v1170
        %v1172 = vpop.f32.mrf.mxu0
        %v1173 = vadd.f32 %v1131, %v1172
        %1174 = vmatmul.bf16.gmra.mxu0 %v1151
        %v1175 = vpop.f32.mrf.mxu0
        %v1176 = vadd.f32 %v1131, %v1175
        %v1177 = vpop.f32.mrf.mxu0
        %v1178 = vadd.f32 %v1131, %v1177
        %1179 = vmatmul.bf16.gmra.mxu0 %v1154
        %v1180 = vpop.f32.mrf.mxu0
        %v1181 = vadd.f32 %v1131, %v1180
        %v1182 = vpop.f32.mrf.mxu0
        %v1183 = vadd.f32 %v1131, %v1182
        %1184 = vdwg.mxu0
        %v1185 = vadd.f32 %v377, %v1166
        %v1186 = vadd.f32 %v378, %v1168
        %v1187 = vadd.f32 %v379, %v1171
        %v1188 = vadd.f32 %v380, %v1173
        %v1189 = vadd.f32 %v381, %v1176
        %v1190 = vadd.f32 %v382, %v1178
        %v1191 = vadd.f32 %v383, %v1181
        %v1192 = vadd.f32 %v384, %v1183
        %v1193 = vld [vmem:[%s3 + $0x68] sm:$0x1]
        %v1194 = vld [vmem:[%s3 + $0x70] sm:$0x1]
        %v1195 = vsel %vm387, %v1185, 0.0
        %1196 = vadd.xlane.f32.xlu0 %v1195
        %v1197 = vpop.xlane.xlu0 %1196
        %v1198 = vsel %vm387, %v1186, 0.0
        %1199 = vadd.xlane.f32.xlu0 %v1198
        %v1200 = vpop.xlane.xlu0 %1199
        %v1201 = vsel %vm387, %v1187, 0.0
        %1202 = vadd.xlane.f32.xlu0 %v1201
        %v1203 = vpop.xlane.xlu0 %1202
        %v1204 = vsel %vm387, %v1188, 0.0
        %1205 = vadd.xlane.f32.xlu0 %v1204
        %v1206 = vpop.xlane.xlu0 %1205
        %v1207 = vsel %vm387, %v1189, 0.0
        %1208 = vadd.xlane.f32.xlu0 %v1207
        %v1209 = vpop.xlane.xlu0 %1208
        %v1210 = vsel %vm387, %v1190, 0.0
        %1211 = vadd.xlane.f32.xlu0 %v1210
        %v1212 = vpop.xlane.xlu0 %1211
        %v1213 = vsel %vm387, %v1191, 0.0
        %1214 = vadd.xlane.f32.xlu0 %v1213
        %v1215 = vpop.xlane.xlu0 %1214
        %v1216 = vsel %vm387, %v1192, 0.0
        %1217 = vadd.xlane.f32.xlu0 %v1216
        %v1218 = vpop.xlane.xlu0 %1217
        %v1219 = vmul.f32 %v1197, %v418
        %v1220 = vmul.f32 %v1200, %v418
        %v1221 = vmul.f32 %v1203, %v418
        %v1222 = vmul.f32 %v1206, %v418
        %v1223 = vmul.f32 %v1209, %v418
        %v1224 = vmul.f32 %v1212, %v418
        %v1225 = vmul.f32 %v1215, %v418
        %v1226 = vmul.f32 %v1218, %v418
        %v1227 = vsub.f32 %v1185, %v1219
        %v1228 = vsub.f32 %v1186, %v1220
        %v1229 = vsub.f32 %v1187, %v1221
        %v1230 = vsub.f32 %v1188, %v1222
        %v1231 = vsub.f32 %v1189, %v1223
        %v1232 = vsub.f32 %v1190, %v1224
        %v1233 = vsub.f32 %v1191, %v1225
        %v1234 = vsub.f32 %v1192, %v1226
        %v1235 = vmul.f32 %v1227, %v1227
        %v1236 = vmul.f32 %v1228, %v1228
        %v1237 = vmul.f32 %v1229, %v1229
        %v1238 = vmul.f32 %v1230, %v1230
        %v1239 = vmul.f32 %v1231, %v1231
        %v1240 = vmul.f32 %v1232, %v1232
        %v1241 = vmul.f32 %v1233, %v1233
        %v1242 = vmul.f32 %v1234, %v1234
        %v1243 = vsel %vm387, %v1235, 0.0
        %1244 = vadd.xlane.f32.xlu0 %v1243
        %v1245 = vpop.xlane.xlu0 %1244
        %v1246 = vsel %vm387, %v1236, 0.0
        %1247 = vadd.xlane.f32.xlu0 %v1246
        %v1248 = vpop.xlane.xlu0 %1247
        %v1249 = vsel %vm387, %v1237, 0.0
        %1250 = vadd.xlane.f32.xlu0 %v1249
        %v1251 = vpop.xlane.xlu0 %1250
        %v1252 = vsel %vm387, %v1238, 0.0
        %1253 = vadd.xlane.f32.xlu0 %v1252
        %v1254 = vpop.xlane.xlu0 %1253
        %v1255 = vsel %vm387, %v1239, 0.0
        %1256 = vadd.xlane.f32.xlu0 %v1255
        %v1257 = vpop.xlane.xlu0 %1256
        %v1258 = vsel %vm387, %v1240, 0.0
        %1259 = vadd.xlane.f32.xlu0 %v1258
        %v1260 = vpop.xlane.xlu0 %1259
        %v1261 = vsel %vm387, %v1241, 0.0
        %1262 = vadd.xlane.f32.xlu0 %v1261
        %v1263 = vpop.xlane.xlu0 %1262
        %v1264 = vsel %vm387, %v1242, 0.0
        %1265 = vadd.xlane.f32.xlu0 %v1264
        %v1266 = vpop.xlane.xlu0 %1265
        %v1267 = vmul.f32 %v1245, %v418
        %v1268 = vmul.f32 %v1248, %v418
        %v1269 = vmul.f32 %v1251, %v418
        %v1270 = vmul.f32 %v1254, %v418
        %v1271 = vmul.f32 %v1257, %v418
        %v1272 = vmul.f32 %v1260, %v418
        %v1273 = vmul.f32 %v1263, %v418
        %v1274 = vmul.f32 %v1266, %v418
        %v1275 = vadd.f32 %v1267, 1e-05
        %v1276 = vadd.f32 %v1268, 1e-05
        %v1277 = vadd.f32 %v1269, 1e-05
        %v1278 = vadd.f32 %v1270, 1e-05
        %v1279 = vadd.f32 %v1271, 1e-05
        %v1280 = vadd.f32 %v1272, 1e-05
        %v1281 = vadd.f32 %v1273, 1e-05
        %v1282 = vadd.f32 %v1274, 1e-05
        %v1283 = vrsqrt.pop %v1275
        %v1284 = vmul.f32 %v1283, %v1275
        %v1285 = vmul.f32 %v1284, %v1283
        %v1286 = vmul.f32 0.5, %v1285
        %v1287 = vsub.f32 1.5, %v1286
        %v1288 = vmul.f32 %v1283, %v1287
        %vm1289 = vweird.f32 %v1275
        %vm1290 = vweird.f32 %v1283
        %vm1291 = vmor %vm1289, %vm1290
        %v1292 = vsel %vm1291, %v1283, %v1288
        %v1293 = vrsqrt.pop %v1276
        %v1294 = vmul.f32 %v1293, %v1276
        %v1295 = vmul.f32 %v1294, %v1293
        %v1296 = vmul.f32 0.5, %v1295
        %v1297 = vsub.f32 1.5, %v1296
        %v1298 = vmul.f32 %v1293, %v1297
        %vm1299 = vweird.f32 %v1276
        %vm1300 = vweird.f32 %v1293
        %vm1301 = vmor %vm1299, %vm1300
        %v1302 = vsel %vm1301, %v1293, %v1298
        %v1303 = vrsqrt.pop %v1277
        %v1304 = vmul.f32 %v1303, %v1277
        %v1305 = vmul.f32 %v1304, %v1303
        %v1306 = vmul.f32 0.5, %v1305
        %v1307 = vsub.f32 1.5, %v1306
        %v1308 = vmul.f32 %v1303, %v1307
        %vm1309 = vweird.f32 %v1277
        %vm1310 = vweird.f32 %v1303
        %vm1311 = vmor %vm1309, %vm1310
        %v1312 = vsel %vm1311, %v1303, %v1308
        %v1313 = vrsqrt.pop %v1278
        %v1314 = vmul.f32 %v1313, %v1278
        %v1315 = vmul.f32 %v1314, %v1313
        %v1316 = vmul.f32 0.5, %v1315
        %v1317 = vsub.f32 1.5, %v1316
        %v1318 = vmul.f32 %v1313, %v1317
        %vm1319 = vweird.f32 %v1278
        %vm1320 = vweird.f32 %v1313
        %vm1321 = vmor %vm1319, %vm1320
        %v1322 = vsel %vm1321, %v1313, %v1318
        %v1323 = vrsqrt.pop %v1279
        %v1324 = vmul.f32 %v1323, %v1279
        %v1325 = vmul.f32 %v1324, %v1323
        %v1326 = vmul.f32 0.5, %v1325
        %v1327 = vsub.f32 1.5, %v1326
        %v1328 = vmul.f32 %v1323, %v1327
        %vm1329 = vweird.f32 %v1279
        %vm1330 = vweird.f32 %v1323
        %vm1331 = vmor %vm1329, %vm1330
        %v1332 = vsel %vm1331, %v1323, %v1328
        %v1333 = vrsqrt.pop %v1280
        %v1334 = vmul.f32 %v1333, %v1280
        %v1335 = vmul.f32 %v1334, %v1333
        %v1336 = vmul.f32 0.5, %v1335
        %v1337 = vsub.f32 1.5, %v1336
        %v1338 = vmul.f32 %v1333, %v1337
        %vm1339 = vweird.f32 %v1280
        %vm1340 = vweird.f32 %v1333
        %vm1341 = vmor %vm1339, %vm1340
        %v1342 = vsel %vm1341, %v1333, %v1338
        %v1343 = vrsqrt.pop %v1281
        %v1344 = vmul.f32 %v1343, %v1281
        %v1345 = vmul.f32 %v1344, %v1343
        %v1346 = vmul.f32 0.5, %v1345
        %v1347 = vsub.f32 1.5, %v1346
        %v1348 = vmul.f32 %v1343, %v1347
        %vm1349 = vweird.f32 %v1281
        %vm1350 = vweird.f32 %v1343
        %vm1351 = vmor %vm1349, %vm1350
        %v1352 = vsel %vm1351, %v1343, %v1348
        %v1353 = vrsqrt.pop %v1282
        %v1354 = vmul.f32 %v1353, %v1282
        %v1355 = vmul.f32 %v1354, %v1353
        %v1356 = vmul.f32 0.5, %v1355
        %v1357 = vsub.f32 1.5, %v1356
        %v1358 = vmul.f32 %v1353, %v1357
        %vm1359 = vweird.f32 %v1282
        %vm1360 = vweird.f32 %v1353
        %vm1361 = vmor %vm1359, %vm1360
        %v1362 = vsel %vm1361, %v1353, %v1358
        %v1363 = vmul.f32 %v1227, %v1292
        %v1364 = vmul.f32 %v1228, %v1302
        %v1365 = vmul.f32 %v1229, %v1312
        %v1366 = vmul.f32 %v1230, %v1322
        %v1367 = vmul.f32 %v1231, %v1332
        %v1368 = vmul.f32 %v1232, %v1342
        %v1369 = vmul.f32 %v1233, %v1352
        %v1370 = vmul.f32 %v1234, %v1362
        %v1371 = vperm.slane %v1193, 0
        %v1372 = vmul.f32 %v1363, %v1371
        %v1373 = vmul.f32 %v1364, %v1371
        %v1374 = vmul.f32 %v1365, %v1371
        %v1375 = vmul.f32 %v1366, %v1371
        %v1376 = vmul.f32 %v1367, %v1371
        %v1377 = vmul.f32 %v1368, %v1371
        %v1378 = vmul.f32 %v1369, %v1371
        %v1379 = vmul.f32 %v1370, %v1371
        %v1380 = vperm.slane %v1194, 0
        %v1381 = vadd.f32 %v1372, %v1380
        %v1382 = vadd.f32 %v1373, %v1380
        %v1383 = vadd.f32 %v1374, %v1380
        %v1384 = vadd.f32 %v1375, %v1380
        %v1385 = vadd.f32 %v1376, %v1380
        %v1386 = vadd.f32 %v1377, %v1380
        %v1387 = vadd.f32 %v1378, %v1380
        %v1388 = vadd.f32 %v1379, %v1380
        %v1389 = vld [vmem:[%s2 + $0x38] sm:$0xf]
        %v1390 = vld [vmem:[%s2 + $0x3c] sm:$0xf]
        %v1391 = vld [vmem:[%s2 + $0x40] sm:$0xf]
        %v1392 = vld [vmem:[%s2 + $0x44] sm:$0xf]
        %v1393 = vpack.c.bf16 %v1382, %v1381
        %v1394 = vpack.c.bf16 %v1384, %v1383
        %v1395 = vpack.c.bf16 %v1386, %v1385
        %v1396 = vpack.c.bf16 %v1388, %v1387
        %v1397 = vld [vmem:[%s3 + $0x78] sm:$0x1]
        %v1398 = vperm.slane %v1397, 0
        %v1403 = vunpack.c.l.b16 %v1389
        %v1404 = vunpack.c.l.b16 %v1390
        %v1405 = vunpack.c.l.b16 %v1391
        %v1406 = vunpack.c.l.b16 %v1392
        %v1407 = vpack.c.b16 %v1404, %v1403
        %v1408 = vpack.c.b16 %v1406, %v1405
        %v1412 = vsel %vm387, %v1393, 0
        %v1415 = vsel %vm387, %v1394, 0
        %v1418 = vsel %vm387, %v1395, 0
        %v1421 = vsel %vm387, %v1396, 0
        %1423 = vmatpush.bf16.msra.mxu0 0
        %1424 = vmatpush.bf16.msra.mxu0 0
        %1425 = vmatpush.bf16.msra.mxu0 0
        %1426 = vmatpush.bf16.msra.mxu0 0
        %1427 = vmatpush.bf16.msra.mxu0 0
        %1428 = vmatpush.bf16.msra.mxu0 0
        %1429 = vmatpush.bf16.msra.mxu0 %v1408
        %1430 = vmatpush.bf16.msra.mxu0 %v1407
        %1431 = vmatmul.bf16.gmra.mxu0 %v1412
        %v1432 = vpop.f32.mrf.mxu0
        %v1433 = vadd.f32 %v1398, %v1432
        %v1434 = vpop.f32.mrf.mxu0
        %v1435 = vadd.f32 %v1398, %v1434
        %1436 = vmatmul.bf16.gmra.mxu0 %v1415
        %v1437 = vpop.f32.mrf.mxu0
        %v1438 = vadd.f32 %v1398, %v1437
        %v1439 = vpop.f32.mrf.mxu0
        %v1440 = vadd.f32 %v1398, %v1439
        %1441 = vmatmul.bf16.gmra.mxu0 %v1418
        %v1442 = vpop.f32.mrf.mxu0
        %v1443 = vadd.f32 %v1398, %v1442
        %v1444 = vpop.f32.mrf.mxu0
        %v1445 = vadd.f32 %v1398, %v1444
        %1446 = vmatmul.bf16.gmra.mxu0 %v1421
        %v1447 = vpop.f32.mrf.mxu0
        %v1448 = vadd.f32 %v1398, %v1447
        %v1449 = vpop.f32.mrf.mxu0
        %v1450 = vadd.f32 %v1398, %v1449
        %1451 = vdwg.mxu0
        %v1452 = vmul.f32 %v1433, 0.5
        %v1453 = vmul.f32 %v1435, 0.5
        %v1454 = vmul.f32 %v1438, 0.5
        %v1455 = vmul.f32 %v1440, 0.5
        %v1456 = vmul.f32 %v1443, 0.5
        %v1457 = vmul.f32 %v1445, 0.5
        %v1458 = vmul.f32 %v1448, 0.5
        %v1459 = vmul.f32 %v1450, 0.5
        %v1460 = vmul.f32 %v1433, 0.044715
        %v1461 = vmul.f32 %v1435, 0.044715
        %v1462 = vmul.f32 %v1438, 0.044715
        %v1463 = vmul.f32 %v1440, 0.044715
        %v1464 = vmul.f32 %v1443, 0.044715
        %v1465 = vmul.f32 %v1445, 0.044715
        %v1466 = vmul.f32 %v1448, 0.044715
        %v1467 = vmul.f32 %v1450, 0.044715
        %v1468 = vmul.f32 %v1460, %v1433
        %v1469 = vmul.f32 %v1461, %v1435
        %v1470 = vmul.f32 %v1462, %v1438
        %v1471 = vmul.f32 %v1463, %v1440
        %v1472 = vmul.f32 %v1464, %v1443
        %v1473 = vmul.f32 %v1465, %v1445
        %v1474 = vmul.f32 %v1466, %v1448
        %v1475 = vmul.f32 %v1467, %v1450
        %v1476 = vmul.f32 %v1468, %v1433
        %v1477 = vmul.f32 %v1469, %v1435
        %v1478 = vmul.f32 %v1470, %v1438
        %v1479 = vmul.f32 %v1471, %v1440
        %v1480 = vmul.f32 %v1472, %v1443
        %v1481 = vmul.f32 %v1473, %v1445
        %v1482 = vmul.f32 %v1474, %v1448
        %v1483 = vmul.f32 %v1475, %v1450
        %v1484 = vadd.f32 %v1433, %v1476
        %v1485 = vadd.f32 %v1435, %v1477
        %v1486 = vadd.f32 %v1438, %v1478
        %v1487 = vadd.f32 %v1440, %v1479
        %v1488 = vadd.f32 %v1443, %v1480
        %v1489 = vadd.f32 %v1445, %v1481
        %v1490 = vadd.f32 %v1448, %v1482
        %v1491 = vadd.f32 %v1450, %v1483
        %v1492 = vmul.f32 %v1484, 0.7978846
        %v1493 = vmul.f32 %v1485, 0.7978846
        %v1494 = vmul.f32 %v1486, 0.7978846
        %v1495 = vmul.f32 %v1487, 0.7978846
        %v1496 = vmul.f32 %v1488, 0.7978846
        %v1497 = vmul.f32 %v1489, 0.7978846
        %v1498 = vmul.f32 %v1490, 0.7978846
        %v1499 = vmul.f32 %v1491, 0.7978846
        %v1500 = vtanh.pop %v1492
        %v1501 = vtanh.pop %v1493
        %v1502 = vtanh.pop %v1494
        %v1503 = vtanh.pop %v1495
        %v1504 = vtanh.pop %v1496
        %v1505 = vtanh.pop %v1497
        %v1506 = vtanh.pop %v1498
        %v1507 = vtanh.pop %v1499
        %v1508 = vadd.f32 %v1500, 1.0
        %v1509 = vadd.f32 %v1501, 1.0
        %v1510 = vadd.f32 %v1502, 1.0
        %v1511 = vadd.f32 %v1503, 1.0
        %v1512 = vadd.f32 %v1504, 1.0
        %v1513 = vadd.f32 %v1505, 1.0
        %v1514 = vadd.f32 %v1506, 1.0
        %v1515 = vadd.f32 %v1507, 1.0
        %v1516 = vmul.f32 %v1452, %v1508
        %v1517 = vmul.f32 %v1453, %v1509
        %v1518 = vmul.f32 %v1454, %v1510
        %v1519 = vmul.f32 %v1455, %v1511
        %v1520 = vmul.f32 %v1456, %v1512
        %v1521 = vmul.f32 %v1457, %v1513
        %v1522 = vmul.f32 %v1458, %v1514
        %v1523 = vmul.f32 %v1459, %v1515
        %v1524 = vld [vmem:[%s2 + $0x48] sm:$0xf]
        %v1525 = vld [vmem:[%s2 + $0x4c] sm:$0xf]
        %v1526 = vld [vmem:[%s2 + $0x50] sm:$0xf]
        %v1527 = vld [vmem:[%s2 + $0x54] sm:$0xf]
        %v1528 = vld [vmem:[%s2 + $0x58] sm:$0xf]
        %v1529 = vld [vmem:[%s2 + $0x5c] sm:$0xf]
        %v1530 = vld [vmem:[%s2 + $0x60] sm:$0xf]
        %v1531 = vld [vmem:[%s2 + $0x64] sm:$0xf]
        %v1532 = vpack.c.bf16 %v1517, %v1516
        %v1533 = vpack.c.bf16 %v1519, %v1518
        %v1534 = vpack.c.bf16 %v1521, %v1520
        %v1535 = vpack.c.bf16 %v1523, %v1522
        %v1536 = vld [vmem:[%s3 + $0x80] sm:$0x1]
        %v1537 = vperm.slane %v1536, 0
        %v1546 = vunpack.c.l.b16 %v1524
        %v1547 = vunpack.c.l.b16 %v1525
        %v1548 = vunpack.c.l.b16 %v1526
        %v1549 = vunpack.c.l.b16 %v1527
        %v1550 = vunpack.c.l.b16 %v1528
        %v1551 = vunpack.c.l.b16 %v1529
        %v1552 = vunpack.c.l.b16 %v1530
        %v1553 = vunpack.c.l.b16 %v1531
        %v1554 = vpack.c.b16 %v1547, %v1546
        %v1555 = vpack.c.b16 %v1549, %v1548
        %v1556 = vpack.c.b16 %v1551, %v1550
        %v1557 = vpack.c.b16 %v1553, %v1552
        %v1563 = vsel %vm727, %v1532, 0
        %v1566 = vsel %vm727, %v1533, 0
        %v1569 = vsel %vm727, %v1534, 0
        %v1572 = vsel %vm727, %v1535, 0
        %1574 = vmatpush.bf16.msra.mxu0 0
        %1575 = vmatpush.bf16.msra.mxu0 0
        %1576 = vmatpush.bf16.msra.mxu0 0
        %1577 = vmatpush.bf16.msra.mxu0 0
        %1578 = vmatpush.bf16.msra.mxu0 %v1557
        %1579 = vmatpush.bf16.msra.mxu0 %v1556
        %1580 = vmatpush.bf16.msra.mxu0 %v1555
        %1581 = vmatpush.bf16.msra.mxu0 %v1554
        %1582 = vmatmul.bf16.gmra.mxu0 %v1563
        %v1583 = vpop.f32.mrf.mxu0
        %v1584 = vadd.f32 %v1537, %v1583
        %v1585 = vpop.f32.mrf.mxu0
        %v1586 = vadd.f32 %v1537, %v1585
        %1587 = vmatmul.bf16.gmra.mxu0 %v1566
        %v1588 = vpop.f32.mrf.mxu0
        %v1589 = vadd.f32 %v1537, %v1588
        %v1590 = vpop.f32.mrf.mxu0
        %v1591 = vadd.f32 %v1537, %v1590
        %1592 = vmatmul.bf16.gmra.mxu0 %v1569
        %v1593 = vpop.f32.mrf.mxu0
        %v1594 = vadd.f32 %v1537, %v1593
        %v1595 = vpop.f32.mrf.mxu0
        %v1596 = vadd.f32 %v1537, %v1595
        %1597 = vmatmul.bf16.gmra.mxu0 %v1572
        %v1598 = vpop.f32.mrf.mxu0
        %v1599 = vadd.f32 %v1537, %v1598
        %v1600 = vpop.f32.mrf.mxu0
        %v1601 = vadd.f32 %v1537, %v1600
        %1602 = vdwg.mxu0
        %v1603 = vadd.f32 %v1185, %v1584
        %v1604 = vadd.f32 %v1186, %v1586
        %v1605 = vadd.f32 %v1187, %v1589
        %v1606 = vadd.f32 %v1188, %v1591
        %v1607 = vadd.f32 %v1189, %v1594
        %v1608 = vadd.f32 %v1190, %v1596
        %v1609 = vadd.f32 %v1191, %v1599
        %v1610 = vadd.f32 %v1192, %v1601
        %v1611 = vld [vmem:[%s2 + $0x68] sm:$0xf]
        %v1612 = vld [vmem:[%s2 + $0x6c] sm:$0xf]
        %v1613 = vld [vmem:[%s2 + $0x70] sm:$0xf]
        %v1614 = vld [vmem:[%s2 + $0x74] sm:$0xf]
        %v1615 = vpack.c.bf16 %v1604, %v1603
        %v1616 = vpack.c.bf16 %v1606, %v1605
        %v1617 = vpack.c.bf16 %v1608, %v1607
        %v1618 = vpack.c.bf16 %v1610, %v1609
        %v1619 = vld [vmem:[%s3 + $0x88] sm:$0x1]
        %v1620 = vperm.slane %v1619, 0
        %v1625 = vunpack.c.l.b16 %v1611
        %v1626 = vunpack.c.l.b16 %v1612
        %v1627 = vunpack.c.l.b16 %v1613
        %v1628 = vunpack.c.l.b16 %v1614
        %v1629 = vpack.c.b16 %v1626, %v1625
        %v1630 = vpack.c.b16 %v1628, %v1627
        %v1634 = vsel %vm387, %v1615, 0
        %v1637 = vsel %vm387, %v1616, 0
        %v1640 = vsel %vm387, %v1617, 0
        %v1643 = vsel %vm387, %v1618, 0
        %1645 = vmatpush.bf16.msra.mxu0 0
        %1646 = vmatpush.bf16.msra.mxu0 0
        %1647 = vmatpush.bf16.msra.mxu0 0
        %1648 = vmatpush.bf16.msra.mxu0 0
        %1649 = vmatpush.bf16.msra.mxu0 0
        %1650 = vmatpush.bf16.msra.mxu0 0
        %1651 = vmatpush.bf16.msra.mxu0 %v1630
        %1652 = vmatpush.bf16.msra.mxu0 %v1629
        %1653 = vmatmul.bf16.gmra.mxu0 %v1634
        %v1654 = vpop.f32.mrf.mxu0
        %v1655 = vadd.f32 %v1620, %v1654
        %v1656 = vpop.f32.mrf.mxu0
        %v1657 = vadd.f32 %v1620, %v1656
        %1658 = vmatmul.bf16.gmra.mxu0 %v1637
        %v1659 = vpop.f32.mrf.mxu0
        %v1660 = vadd.f32 %v1620, %v1659
        %v1661 = vpop.f32.mrf.mxu0
        %v1662 = vadd.f32 %v1620, %v1661
        %1663 = vmatmul.bf16.gmra.mxu0 %v1640
        %v1664 = vpop.f32.mrf.mxu0
        %v1665 = vadd.f32 %v1620, %v1664
        %v1666 = vpop.f32.mrf.mxu0
        %v1667 = vadd.f32 %v1620, %v1666
        %1668 = vmatmul.bf16.gmra.mxu0 %v1643
        %v1669 = vpop.f32.mrf.mxu0
        %v1670 = vadd.f32 %v1620, %v1669
        %v1671 = vpop.f32.mrf.mxu0
        %v1672 = vadd.f32 %v1620, %v1671
        %1673 = vdwg.mxu0
        %v1674 = vld [vmem:[%s3 + $0x90] sm:$0x1]
        %v1675 = vld [vmem:[%s3 + $0x98] sm:$0x1]
        %v1676 = vsel %vm387, %v1655, 0.0
        %1677 = vadd.xlane.f32.xlu0 %v1676
        %v1678 = vpop.xlane.xlu0 %1677
        %v1679 = vsel %vm387, %v1657, 0.0
        %1680 = vadd.xlane.f32.xlu0 %v1679
        %v1681 = vpop.xlane.xlu0 %1680
        %v1682 = vsel %vm387, %v1660, 0.0
        %1683 = vadd.xlane.f32.xlu0 %v1682
        %v1684 = vpop.xlane.xlu0 %1683
        %v1685 = vsel %vm387, %v1662, 0.0
        %1686 = vadd.xlane.f32.xlu0 %v1685
        %v1687 = vpop.xlane.xlu0 %1686
        %v1688 = vsel %vm387, %v1665, 0.0
        %1689 = vadd.xlane.f32.xlu0 %v1688
        %v1690 = vpop.xlane.xlu0 %1689
        %v1691 = vsel %vm387, %v1667, 0.0
        %1692 = vadd.xlane.f32.xlu0 %v1691
        %v1693 = vpop.xlane.xlu0 %1692
        %v1694 = vsel %vm387, %v1670, 0.0
        %1695 = vadd.xlane.f32.xlu0 %v1694
        %v1696 = vpop.xlane.xlu0 %1695
        %v1697 = vsel %vm387, %v1672, 0.0
        %1698 = vadd.xlane.f32.xlu0 %v1697
        %v1699 = vpop.xlane.xlu0 %1698
        %v1700 = vmul.f32 %v1678, %v418
        %v1701 = vmul.f32 %v1681, %v418
        %v1702 = vmul.f32 %v1684, %v418
        %v1703 = vmul.f32 %v1687, %v418
        %v1704 = vmul.f32 %v1690, %v418
        %v1705 = vmul.f32 %v1693, %v418
        %v1706 = vmul.f32 %v1696, %v418
        %v1707 = vmul.f32 %v1699, %v418
        %v1708 = vsub.f32 %v1655, %v1700
        %v1709 = vsub.f32 %v1657, %v1701
        %v1710 = vsub.f32 %v1660, %v1702
        %v1711 = vsub.f32 %v1662, %v1703
        %v1712 = vsub.f32 %v1665, %v1704
        %v1713 = vsub.f32 %v1667, %v1705
        %v1714 = vsub.f32 %v1670, %v1706
        %v1715 = vsub.f32 %v1672, %v1707
        %v1716 = vmul.f32 %v1708, %v1708
        %v1717 = vmul.f32 %v1709, %v1709
        %v1718 = vmul.f32 %v1710, %v1710
        %v1719 = vmul.f32 %v1711, %v1711
        %v1720 = vmul.f32 %v1712, %v1712
        %v1721 = vmul.f32 %v1713, %v1713
        %v1722 = vmul.f32 %v1714, %v1714
        %v1723 = vmul.f32 %v1715, %v1715
        %v1724 = vsel %vm387, %v1716, 0.0
        %1725 = vadd.xlane.f32.xlu0 %v1724
        %v1726 = vpop.xlane.xlu0 %1725
        %v1727 = vsel %vm387, %v1717, 0.0
        %1728 = vadd.xlane.f32.xlu0 %v1727
        %v1729 = vpop.xlane.xlu0 %1728
        %v1730 = vsel %vm387, %v1718, 0.0
        %1731 = vadd.xlane.f32.xlu0 %v1730
        %v1732 = vpop.xlane.xlu0 %1731
        %v1733 = vsel %vm387, %v1719, 0.0
        %1734 = vadd.xlane.f32.xlu0 %v1733
        %v1735 = vpop.xlane.xlu0 %1734
        %v1736 = vsel %vm387, %v1720, 0.0
        %1737 = vadd.xlane.f32.xlu0 %v1736
        %v1738 = vpop.xlane.xlu0 %1737
        %v1739 = vsel %vm387, %v1721, 0.0
        %1740 = vadd.xlane.f32.xlu0 %v1739
        %v1741 = vpop.xlane.xlu0 %1740
        %v1742 = vsel %vm387, %v1722, 0.0
        %1743 = vadd.xlane.f32.xlu0 %v1742
        %v1744 = vpop.xlane.xlu0 %1743
        %v1745 = vsel %vm387, %v1723, 0.0
        %1746 = vadd.xlane.f32.xlu0 %v1745
        %v1747 = vpop.xlane.xlu0 %1746
        %v1748 = vmul.f32 %v1726, %v418
        %v1749 = vmul.f32 %v1729, %v418
        %v1750 = vmul.f32 %v1732, %v418
        %v1751 = vmul.f32 %v1735, %v418
        %v1752 = vmul.f32 %v1738, %v418
        %v1753 = vmul.f32 %v1741, %v418
        %v1754 = vmul.f32 %v1744, %v418
        %v1755 = vmul.f32 %v1747, %v418
        %v1756 = vadd.f32 %v1748, 1e-06
        %v1757 = vadd.f32 %v1749, 1e-06
        %v1758 = vadd.f32 %v1750, 1e-06
        %v1759 = vadd.f32 %v1751, 1e-06
        %v1760 = vadd.f32 %v1752, 1e-06
        %v1761 = vadd.f32 %v1753, 1e-06
        %v1762 = vadd.f32 %v1754, 1e-06
        %v1763 = vadd.f32 %v1755, 1e-06
        %v1764 = vrsqrt.pop %v1756
        %v1765 = vmul.f32 %v1764, %v1756
        %v1766 = vmul.f32 %v1765, %v1764
        %v1767 = vmul.f32 0.5, %v1766
        %v1768 = vsub.f32 1.5, %v1767
        %v1769 = vmul.f32 %v1764, %v1768
        %vm1770 = vweird.f32 %v1756
        %vm1771 = vweird.f32 %v1764
        %vm1772 = vmor %vm1770, %vm1771
        %v1773 = vsel %vm1772, %v1764, %v1769
        %v1774 = vrsqrt.pop %v1757
        %v1775 = vmul.f32 %v1774, %v1757
        %v1776 = vmul.f32 %v1775, %v1774
        %v1777 = vmul.f32 0.5, %v1776
        %v1778 = vsub.f32 1.5, %v1777
        %v1779 = vmul.f32 %v1774, %v1778
        %vm1780 = vweird.f32 %v1757
        %vm1781 = vweird.f32 %v1774
        %vm1782 = vmor %vm1780, %vm1781
        %v1783 = vsel %vm1782, %v1774, %v1779
        %v1784 = vrsqrt.pop %v1758
        %v1785 = vmul.f32 %v1784, %v1758
        %v1786 = vmul.f32 %v1785, %v1784
        %v1787 = vmul.f32 0.5, %v1786
        %v1788 = vsub.f32 1.5, %v1787
        %v1789 = vmul.f32 %v1784, %v1788
        %vm1790 = vweird.f32 %v1758
        %vm1791 = vweird.f32 %v1784
        %vm1792 = vmor %vm1790, %vm1791
        %v1793 = vsel %vm1792, %v1784, %v1789
        %v1794 = vrsqrt.pop %v1759
        %v1795 = vmul.f32 %v1794, %v1759
        %v1796 = vmul.f32 %v1795, %v1794
        %v1797 = vmul.f32 0.5, %v1796
        %v1798 = vsub.f32 1.5, %v1797
        %v1799 = vmul.f32 %v1794, %v1798
        %vm1800 = vweird.f32 %v1759
        %vm1801 = vweird.f32 %v1794
        %vm1802 = vmor %vm1800, %vm1801
        %v1803 = vsel %vm1802, %v1794, %v1799
        %v1804 = vrsqrt.pop %v1760
        %v1805 = vmul.f32 %v1804, %v1760
        %v1806 = vmul.f32 %v1805, %v1804
        %v1807 = vmul.f32 0.5, %v1806
        %v1808 = vsub.f32 1.5, %v1807
        %v1809 = vmul.f32 %v1804, %v1808
        %vm1810 = vweird.f32 %v1760
        %vm1811 = vweird.f32 %v1804
        %vm1812 = vmor %vm1810, %vm1811
        %v1813 = vsel %vm1812, %v1804, %v1809
        %v1814 = vrsqrt.pop %v1761
        %v1815 = vmul.f32 %v1814, %v1761
        %v1816 = vmul.f32 %v1815, %v1814
        %v1817 = vmul.f32 0.5, %v1816
        %v1818 = vsub.f32 1.5, %v1817
        %v1819 = vmul.f32 %v1814, %v1818
        %vm1820 = vweird.f32 %v1761
        %vm1821 = vweird.f32 %v1814
        %vm1822 = vmor %vm1820, %vm1821
        %v1823 = vsel %vm1822, %v1814, %v1819
        %v1824 = vrsqrt.pop %v1762
        %v1825 = vmul.f32 %v1824, %v1762
        %v1826 = vmul.f32 %v1825, %v1824
        %v1827 = vmul.f32 0.5, %v1826
        %v1828 = vsub.f32 1.5, %v1827
        %v1829 = vmul.f32 %v1824, %v1828
        %vm1830 = vweird.f32 %v1762
        %vm1831 = vweird.f32 %v1824
        %vm1832 = vmor %vm1830, %vm1831
        %v1833 = vsel %vm1832, %v1824, %v1829
        %v1834 = vrsqrt.pop %v1763
        %v1835 = vmul.f32 %v1834, %v1763
        %v1836 = vmul.f32 %v1835, %v1834
        %v1837 = vmul.f32 0.5, %v1836
        %v1838 = vsub.f32 1.5, %v1837
        %v1839 = vmul.f32 %v1834, %v1838
        %vm1840 = vweird.f32 %v1763
        %vm1841 = vweird.f32 %v1834
        %vm1842 = vmor %vm1840, %vm1841
        %v1843 = vsel %vm1842, %v1834, %v1839
        %v1844 = vmul.f32 %v1708, %v1773
        %v1845 = vmul.f32 %v1709, %v1783
        %v1846 = vmul.f32 %v1710, %v1793
        %v1847 = vmul.f32 %v1711, %v1803
        %v1848 = vmul.f32 %v1712, %v1813
        %v1849 = vmul.f32 %v1713, %v1823
        %v1850 = vmul.f32 %v1714, %v1833
        %v1851 = vmul.f32 %v1715, %v1843
        %v1852 = vperm.slane %v1674, 0
        %v1853 = vmul.f32 %v1844, %v1852
        %v1854 = vmul.f32 %v1845, %v1852
        %v1855 = vmul.f32 %v1846, %v1852
        %v1856 = vmul.f32 %v1847, %v1852
        %v1857 = vmul.f32 %v1848, %v1852
        %v1858 = vmul.f32 %v1849, %v1852
        %v1859 = vmul.f32 %v1850, %v1852
        %v1860 = vmul.f32 %v1851, %v1852
        %v1861 = vperm.slane %v1675, 0
        %v1862 = vadd.f32 %v1853, %v1861
        %v1863 = vadd.f32 %v1854, %v1861
        %v1864 = vadd.f32 %v1855, %v1861
        %v1865 = vadd.f32 %v1856, %v1861
        %v1866 = vadd.f32 %v1857, %v1861
        %v1867 = vadd.f32 %v1858, %v1861
        %v1868 = vadd.f32 %v1859, %v1861
        %v1869 = vadd.f32 %v1860, %v1861
        %1870 = vst.msk [vmem:[%s258] sm:$0xff] %vm387, %v1862
        %1871 = vst.msk [vmem:[%s258 + $0x8] sm:$0xff] %vm387, %v1863
        %1872 = vst.msk [vmem:[%s258 + $0x10] sm:$0xff] %vm387, %v1864
        %1873 = vst.msk [vmem:[%s258 + $0x18] sm:$0xff] %vm387, %v1865
        %1874 = vst.msk [vmem:[%s258 + $0x20] sm:$0xff] %vm387, %v1866
        %1875 = vst.msk [vmem:[%s258 + $0x28] sm:$0xff] %vm387, %v1867
        %1876 = vst.msk [vmem:[%s258 + $0x30] sm:$0xff] %vm387, %v1868
        %1877 = vst.msk [vmem:[%s258 + $0x38] sm:$0xff] %vm387, %v1869
        %v1878 = vld [vmem:[%s279] sm:$0x7f]
        %v1879 = vld [vmem:[%s3 + $0xe0] sm:$0x1]
        %v1880 = vperm.slane %v1879, 0
        %v1881 = vadd.f32 %v1862, %v1880
        %v1882 = vadd.f32 %v1863, %v1880
        %v1883 = vadd.f32 %v1864, %v1880
        %v1884 = vadd.f32 %v1865, %v1880
        %v1885 = vadd.f32 %v1866, %v1880
        %v1886 = vadd.f32 %v1867, %v1880
        %v1887 = vadd.f32 %v1868, %v1880
        %v1888 = vadd.f32 %v1869, %v1880
        %v1889 = vld [vmem:[%s3 + $0xa0] sm:$0xff]
        %v1890 = vld [vmem:[%s3 + $0xa8] sm:$0xff]
        %v1891 = vld [vmem:[%s3 + $0xb0] sm:$0xff]
        %v1892 = vld [vmem:[%s3 + $0xb8] sm:$0xff]
        %v1893 = vld [vmem:[%s3 + $0xc0] sm:$0xff]
        %v1894 = vld [vmem:[%s3 + $0xc8] sm:$0xff]
        %v1895 = vld [vmem:[%s3 + $0xd0] sm:$0xff]
        %v1896 = vld [vmem:[%s3 + $0xd8] sm:$0xff]
        %v1897 = vld [vmem:[%s2 + $0x78] sm:$0xf]
        %v1898 = vld [vmem:[%s2 + $0x7c] sm:$0xf]
        %v1899 = vld [vmem:[%s2 + $0x80] sm:$0xf]
        %v1900 = vld [vmem:[%s2 + $0x84] sm:$0xf]
        %v1901 = vld [vmem:[%s3 + $0xe8] sm:$0x1]
        %v1902 = vld [vmem:[%s2 + $0x88] sm:$0xf]
        %v1903 = vld [vmem:[%s2 + $0x8c] sm:$0xf]
        %v1904 = vld [vmem:[%s2 + $0x90] sm:$0xf]
        %v1905 = vld [vmem:[%s2 + $0x94] sm:$0xf]
        %v1906 = vld [vmem:[%s3 + $0xf0] sm:$0x1]
        %v1907 = vpack.c.bf16 %v1878, %v1878
        %v1908 = vperm.slane %v1901, 0
        %v1913 = vunpack.c.l.b16 %v1897
        %v1914 = vunpack.c.l.b16 %v1898
        %v1915 = vunpack.c.l.b16 %v1899
        %v1916 = vunpack.c.l.b16 %v1900
        %v1917 = vpack.c.b16 %v1914, %v1913
        %v1918 = vpack.c.b16 %v1916, %v1915
        %v1922 = vsel %vm387, %v1907, 0
        %1924 = vmatpush.bf16.msra.mxu0 0
        %1925 = vmatpush.bf16.msra.mxu0 0
        %1926 = vmatpush.bf16.msra.mxu0 0
        %1927 = vmatpush.bf16.msra.mxu0 0
        %1928 = vmatpush.bf16.msra.mxu0 0
        %1929 = vmatpush.bf16.msra.mxu0 0
        %1930 = vmatpush.bf16.msra.mxu0 %v1918
        %1931 = vmatpush.bf16.msra.mxu0 %v1917
        %1932 = vmatmul.bf16.gmra.mxu0 %v1922
        %v1933 = vpop.f32.mrf.mxu0
        %v1934 = vadd.f32 %v1908, %v1933
        %v1935 = vpop.f32.mrf.mxu0
        %1936 = vdwg.mxu0
        %v1937 = vpack.c.bf16 %v1934, %v1934
        %1939 = vrot.lane.b32.xlu0 %v1937, 96
        %v1940 = vpop.permute.xlu0 %1939
        %v1942 = vsel %vm673, %v1937, 0
        %v1945 = vsel %vm673, %v1940, 0
        %1947 = vmatpush.bf16.xpose.msra.mxu0 0
        %1948 = vmatpush.bf16.xpose.msra.mxu0 0
        %1949 = vmatpush.bf16.xpose.msra.mxu0 0
        %1950 = vmatpush.bf16.xpose.msra.mxu0 0
        %1951 = vmatpush.bf16.xpose.msra.mxu0 0
        %1952 = vmatpush.bf16.xpose.msra.mxu0 0
        %1953 = vmatpush.bf16.xpose.msra.mxu0 0
        %1954 = vmatpush.bf16.xpose.msra.mxu0 %v1945
        %1955 = vmatmul.bf16.gmra.mxu0 %v1942
        %v1956 = vpop.f32.mrf.mxu0
        %v1957 = vadd.f32 0.0, %v1956
        %v1958 = vpop.f32.mrf.mxu0
        %1959 = vdwg.mxu0
        %vm1960 = vcmask 55296
        %v1961 = vsel %vm1960, %v1957, -inf
        %1962 = vmax.xlane.f32.xlu0 %v1961
        %v1963 = vpop.xlane.xlu0 %1962
        %v1964 = vsub.f32 %v1957, %v1963
        %v1965 = vmul.f32 %v1964, 1.442695
        %v1966 = vpow.pop %v1965
        %v1967 = vsel %vm1960, %v1966, 0.0
        %1968 = vadd.xlane.f32.xlu0 %v1967
        %v1969 = vpop.xlane.xlu0 %1968
        %v1970 = vrcp.pop %v1969
        %v1971 = vmul.f32 %v1966, %v1970
        %v1972 = vpack.c.bf16 %v1971, %v1971
        %1973 = vrot.lane.b32.xlu0 %v1937, 64
        %v1974 = vpop.permute.xlu0 %1973
        %vm1975 = vcmask 56320
        %v1977 = vsel %vm1975, %v1972, 0
        %vm1979 = vcmask 1042432
        %vm1980 = vcmask 1043456
        %v1981 = vsel %vm1979, 4294967295, 65535
        %v1982 = vsel %vm1980, %v1981, 0
        %v1984 = vand.u32 %v1974, %v1982
        %1986 = vmatpush.bf16.msra.mxu0 0
        %1987 = vmatpush.bf16.msra.mxu0 0
        %1988 = vmatpush.bf16.msra.mxu0 0
        %1989 = vmatpush.bf16.msra.mxu0 0
        %1990 = vmatpush.bf16.msra.mxu0 0
        %1991 = vmatpush.bf16.msra.mxu0 0
        %1992 = vmatpush.bf16.msra.mxu0 0
        %1993 = vmatpush.bf16.msra.mxu0 %v1984
        %1994 = vmatmul.bf16.gmra.mxu0 %v1977
        %v1995 = vpop.f32.mrf.mxu0
        %v1996 = vadd.f32 0.0, %v1995
        %v1997 = vpop.f32.mrf.mxu0
        %1998 = vdwg.mxu0
        %1999 = vrot.lane.b32.xlu0 %v1937, 112
        %v2000 = vpop.permute.xlu0 %1999
        %2001 = vrot.lane.b32.xlu0 %v1937, 80
        %v2002 = vpop.permute.xlu0 %2001
        %v2004 = vsel %vm673, %v2000, 0
        %v2007 = vsel %vm673, %v2002, 0
        %2009 = vmatpush.bf16.xpose.msra.mxu0 0
        %2010 = vmatpush.bf16.xpose.msra.mxu0 0
        %2011 = vmatpush.bf16.xpose.msra.mxu0 0
        %2012 = vmatpush.bf16.xpose.msra.mxu0 0
        %2013 = vmatpush.bf16.xpose.msra.mxu0 0
        %2014 = vmatpush.bf16.xpose.msra.mxu0 0
        %2015 = vmatpush.bf16.xpose.msra.mxu0 0
        %2016 = vmatpush.bf16.xpose.msra.mxu0 %v2007
        %2017 = vmatmul.bf16.gmra.mxu0 %v2004
        %v2018 = vpop.f32.mrf.mxu0
        %v2019 = vadd.f32 0.0, %v2018
        %v2020 = vpop.f32.mrf.mxu0
        %2021 = vdwg.mxu0
        %v2022 = vsel %vm1960, %v2019, -inf
        %2023 = vmax.xlane.f32.xlu0 %v2022
        %v2024 = vpop.xlane.xlu0 %2023
        %v2025 = vsub.f32 %v2019, %v2024
        %v2026 = vmul.f32 %v2025, 1.442695
        %v2027 = vpow.pop %v2026
        %v2028 = vsel %vm1960, %v2027, 0.0
        %2029 = vadd.xlane.f32.xlu0 %v2028
        %v2030 = vpop.xlane.xlu0 %2029
        %v2031 = vrcp.pop %v2030
        %v2032 = vmul.f32 %v2027, %v2031
        %v2033 = vpack.c.bf16 %v2032, %v2032
        %2034 = vrot.lane.b32.xlu0 %v1937, 48
        %v2035 = vpop.permute.xlu0 %2034
        %v2037 = vsel %vm1975, %v2033, 0
        %v2040 = vand.u32 %v2035, %v1982
        %2042 = vmatpush.bf16.msra.mxu0 0
        %2043 = vmatpush.bf16.msra.mxu0 0
        %2044 = vmatpush.bf16.msra.mxu0 0
        %2045 = vmatpush.bf16.msra.mxu0 0
        %2046 = vmatpush.bf16.msra.mxu0 0
        %2047 = vmatpush.bf16.msra.mxu0 0
        %2048 = vmatpush.bf16.msra.mxu0 0
        %2049 = vmatpush.bf16.msra.mxu0 %v2040
        %2050 = vmatmul.bf16.gmra.mxu0 %v2037
        %v2051 = vpop.f32.mrf.mxu0
        %v2052 = vadd.f32 0.0, %v2051
        %v2053 = vpop.f32.mrf.mxu0
        %2054 = vdwg.mxu0
        %2056 = vrot.lane.b32.xlu0 %v2052, 16
        %v2057 = vpop.permute.xlu0 %2056
        %v2059 = vsel %vm673, %v1996, %v2057
        %v2060 = vpack.c.bf16 %v2059, %v2059
        %v2061 = vperm.slane %v1906, 0
        %v2066 = vunpack.c.l.b16 %v1902
        %v2067 = vunpack.c.l.b16 %v1903
        %v2068 = vunpack.c.l.b16 %v1904
        %v2069 = vunpack.c.l.b16 %v1905
        %v2070 = vpack.c.b16 %v2067, %v2066
        %v2071 = vpack.c.b16 %v2069, %v2068
        %v2075 = vsel %vm387, %v2060, 0
        %2077 = vmatpush.bf16.msra.mxu0 0
        %2078 = vmatpush.bf16.msra.mxu0 0
        %2079 = vmatpush.bf16.msra.mxu0 0
        %2080 = vmatpush.bf16.msra.mxu0 0
        %2081 = vmatpush.bf16.msra.mxu0 0
        %2082 = vmatpush.bf16.msra.mxu0 0
        %2083 = vmatpush.bf16.msra.mxu0 %v2071
        %2084 = vmatpush.bf16.msra.mxu0 %v2070
        %2085 = vmatmul.bf16.gmra.mxu0 %v2075
        %v2086 = vpop.f32.mrf.mxu0
        %v2087 = vadd.f32 %v2061, %v2086
        %v2088 = vpop.f32.mrf.mxu0
        %2089 = vdwg.mxu0
        %v2090 = vld [vmem:[%s3 + $0xf8] sm:$0x1]
        %v2091 = vld [vmem:[%s3 + $0x100] sm:$0x1]
        %vm2092 = vcmask 260096
        %v2093 = vsel %vm2092, %v2087, 0.0
        %2094 = vadd.xlane.f32.xlu0 %v2093
        %v2095 = vpop.xlane.xlu0 %2094
        %v2096 = vmul.f32 %v2095, %v418
        %v2097 = vsub.f32 %v2087, %v2096
        %v2098 = vmul.f32 %v2097, %v2097
        %v2099 = vsel %vm2092, %v2098, 0.0
        %2100 = vadd.xlane.f32.xlu0 %v2099
        %v2101 = vpop.xlane.xlu0 %2100
        %v2102 = vmul.f32 %v2101, %v418
        %v2103 = vadd.f32 %v2102, 1e-05
        %v2104 = vrsqrt.pop %v2103
        %v2105 = vmul.f32 %v2104, %v2103
        %v2106 = vmul.f32 %v2105, %v2104
        %v2107 = vmul.f32 0.5, %v2106
        %v2108 = vsub.f32 1.5, %v2107
        %v2109 = vmul.f32 %v2104, %v2108
        %vm2110 = vweird.f32 %v2103
        %vm2111 = vweird.f32 %v2104
        %vm2112 = vmor %vm2110, %vm2111
        %v2113 = vsel %vm2112, %v2104, %v2109
        %v2114 = vmul.f32 %v2097, %v2113
        %v2115 = vperm.slane %v2090, 0
        %v2116 = vmul.f32 %v2114, %v2115
        %v2117 = vperm.slane %v2091, 0
        %v2118 = vadd.f32 %v2116, %v2117
        %v2119 = vadd.f32 %v2118, %v1878
        %v2120 = vadd.f32 %v1881, %v1889
        %v2121 = vadd.f32 %v1882, %v1890
        %v2122 = vadd.f32 %v1883, %v1891
        %v2123 = vadd.f32 %v1884, %v1892
        %v2124 = vadd.f32 %v1885, %v1893
        %v2125 = vadd.f32 %v1886, %v1894
        %v2126 = vadd.f32 %v1887, %v1895
        %v2127 = vadd.f32 %v1888, %v1896
        %v2128 = vld [vmem:[%s2 + $0x98] sm:$0xf]
        %v2129 = vld [vmem:[%s2 + $0x9c] sm:$0xf]
        %v2130 = vld [vmem:[%s2 + $0xa0] sm:$0xf]
        %v2131 = vld [vmem:[%s2 + $0xa4] sm:$0xf]
        %v2132 = vld [vmem:[%s3 + $0x108] sm:$0x1]
        %v2133 = vld [vmem:[%s2 + $0xa8] sm:$0xf]
        %v2134 = vld [vmem:[%s2 + $0xac] sm:$0xf]
        %v2135 = vld [vmem:[%s3 + $0x110] sm:$0x1]
        %v2136 = vpack.c.bf16 %v2119, %v2119
        %v2137 = vperm.slane %v2132, 0
        %v2142 = vunpack.c.l.b16 %v2128
        %v2143 = vunpack.c.l.b16 %v2129
        %v2144 = vunpack.c.l.b16 %v2130
        %v2145 = vunpack.c.l.b16 %v2131
        %v2146 = vpack.c.b16 %v2143, %v2142
        %v2147 = vpack.c.b16 %v2145, %v2144
        %v2151 = vsel %vm387, %v2136, 0
        %2153 = vmatpush.bf16.msra.mxu0 0
        %2154 = vmatpush.bf16.msra.mxu0 0
        %2155 = vmatpush.bf16.msra.mxu0 0
        %2156 = vmatpush.bf16.msra.mxu0 0
        %2157 = vmatpush.bf16.msra.mxu0 0
        %2158 = vmatpush.bf16.msra.mxu0 0
        %2159 = vmatpush.bf16.msra.mxu0 %v2147
        %2160 = vmatpush.bf16.msra.mxu0 %v2146
        %2161 = vmatmul.bf16.gmra.mxu0 %v2151
        %v2162 = vpop.f32.mrf.mxu0
        %v2163 = vadd.f32 %v2137, %v2162
        %v2164 = vpop.f32.mrf.mxu0
        %2165 = vdwg.mxu0
        %v2166 = vpack.c.bf16 %v2121, %v2120
        %v2167 = vpack.c.bf16 %v2123, %v2122
        %v2168 = vpack.c.bf16 %v2125, %v2124
        %v2169 = vpack.c.bf16 %v2127, %v2126
        %2170 = vrot.lane.b32.xlu0 %v2146, 112
        %v2171 = vpop.permute.xlu0 %2170
        %2172 = vrot.lane.b32.xlu0 %v2147, 112
        %v2173 = vpop.permute.xlu0 %2172
        %2177 = vrot.lane.b32.xlu0 %v2137, 112
        %v2178 = vpop.permute.xlu0 %2177
        %v2181 = vsel %vm387, %v2166, 0
        %v2184 = vsel %vm387, %v2167, 0
        %v2187 = vsel %vm387, %v2168, 0
        %v2190 = vsel %vm387, %v2169, 0
        %2192 = vmatpush.bf16.msra.mxu0 0
        %2193 = vmatpush.bf16.msra.mxu0 0
        %2194 = vmatpush.bf16.msra.mxu0 0
        %2195 = vmatpush.bf16.msra.mxu0 0
        %2196 = vmatpush.bf16.msra.mxu0 0
        %2197 = vmatpush.bf16.msra.mxu0 0
        %2198 = vmatpush.bf16.msra.mxu0 %v2173
        %2199 = vmatpush.bf16.msra.mxu0 %v2171
        %2200 = vmatmul.bf16.gmra.mxu0 %v2181
        %v2201 = vpop.f32.mrf.mxu0
        %v2202 = vadd.f32 %v2178, %v2201
        %v2203 = vpop.f32.mrf.mxu0
        %v2204 = vadd.f32 %v2178, %v2203
        %2205 = vmatmul.bf16.gmra.mxu0 %v2184
        %v2206 = vpop.f32.mrf.mxu0
        %v2207 = vadd.f32 %v2178, %v2206
        %v2208 = vpop.f32.mrf.mxu0
        %v2209 = vadd.f32 %v2178, %v2208
        %2210 = vmatmul.bf16.gmra.mxu0 %v2187
        %v2211 = vpop.f32.mrf.mxu0
        %v2212 = vadd.f32 %v2178, %v2211
        %v2213 = vpop.f32.mrf.mxu0
        %v2214 = vadd.f32 %v2178, %v2213
        %2215 = vmatmul.bf16.gmra.mxu0 %v2190
        %v2216 = vpop.f32.mrf.mxu0
        %v2217 = vadd.f32 %v2178, %v2216
        %v2218 = vpop.f32.mrf.mxu0
        %v2219 = vadd.f32 %v2178, %v2218
        %2220 = vdwg.mxu0
        %v2221 = vpack.c.bf16 %v1882, %v1881
        %v2222 = vpack.c.bf16 %v1884, %v1883
        %v2223 = vpack.c.bf16 %v1886, %v1885
        %v2224 = vpack.c.bf16 %v1888, %v1887
        %2225 = vrot.lane.b32.xlu0 %v2146, 96
        %v2226 = vpop.permute.xlu0 %2225
        %2227 = vrot.lane.b32.xlu0 %v2147, 96
        %v2228 = vpop.permute.xlu0 %2227
        %2231 = vrot.lane.b32.xlu0 %v2137, 96
        %v2232 = vpop.permute.xlu0 %2231
        %v2235 = vsel %vm387, %v2221, 0
        %v2238 = vsel %vm387, %v2222, 0
        %v2241 = vsel %vm387, %v2223, 0
        %v2244 = vsel %vm387, %v2224, 0
        %2246 = vmatpush.bf16.msra.mxu0 0
        %2247 = vmatpush.bf16.msra.mxu0 0
        %2248 = vmatpush.bf16.msra.mxu0 0
        %2249 = vmatpush.bf16.msra.mxu0 0
        %2250 = vmatpush.bf16.msra.mxu0 0
        %2251 = vmatpush.bf16.msra.mxu0 0
        %2252 = vmatpush.bf16.msra.mxu0 %v2228
        %2253 = vmatpush.bf16.msra.mxu0 %v2226
        %2254 = vmatmul.bf16.gmra.mxu0 %v2235
        %v2255 = vpop.f32.mrf.mxu0
        %v2256 = vadd.f32 %v2232, %v2255
        %v2257 = vpop.f32.mrf.mxu0
        %v2258 = vadd.f32 %v2232, %v2257
        %2259 = vmatmul.bf16.gmra.mxu0 %v2238
        %v2260 = vpop.f32.mrf.mxu0
        %v2261 = vadd.f32 %v2232, %v2260
        %v2262 = vpop.f32.mrf.mxu0
        %v2263 = vadd.f32 %v2232, %v2262
        %2264 = vmatmul.bf16.gmra.mxu0 %v2241
        %v2265 = vpop.f32.mrf.mxu0
        %v2266 = vadd.f32 %v2232, %v2265
        %v2267 = vpop.f32.mrf.mxu0
        %v2268 = vadd.f32 %v2232, %v2267
        %2269 = vmatmul.bf16.gmra.mxu0 %v2244
        %v2270 = vpop.f32.mrf.mxu0
        %v2271 = vadd.f32 %v2232, %v2270
        %v2272 = vpop.f32.mrf.mxu0
        %v2273 = vadd.f32 %v2232, %v2272
        %2274 = vdwg.mxu0
        %v2275 = vpack.c.bf16 %v2163, %v2163
        %v2276 = vpack.c.bf16 %v2204, %v2202
        %v2277 = vpack.c.bf16 %v2209, %v2207
        %v2278 = vpack.c.bf16 %v2214, %v2212
        %v2279 = vpack.c.bf16 %v2219, %v2217
        %vm2280 = vcmask 64512
        %v2282 = vsel %vm2280, %v2275, 0
        %v2285 = vsel %vm2280, %v2276, 0
        %v2288 = vsel %vm2280, %v2277, 0
        %v2291 = vsel %vm2280, %v2278, 0
        %v2294 = vsel %vm2280, %v2279, 0
        %2296 = vmatpush.bf16.xpose.msra.mxu0 0
        %2297 = vmatpush.bf16.xpose.msra.mxu0 0
        %2298 = vmatpush.bf16.xpose.msra.mxu0 0
        %2299 = vmatpush.bf16.xpose.msra.mxu0 0
        %2300 = vmatpush.bf16.xpose.msra.mxu0 %v2294
        %2301 = vmatpush.bf16.xpose.msra.mxu0 %v2291
        %2302 = vmatpush.bf16.xpose.msra.mxu0 %v2288
        %2303 = vmatpush.bf16.xpose.msra.mxu0 %v2285
        %2304 = vmatmul.bf16.gmra.mxu0 %v2282
        %v2305 = vpop.f32.mrf.mxu0
        %v2306 = vadd.f32 0.0, %v2305
        %v2307 = vpop.f32.mrf.mxu0
        %2308 = vdwg.mxu0
        %vm2309 = vcmask 522240
        %v2310 = vsel %vm2309, %v2306, -inf
        %2311 = vmax.xlane.f32.xlu0 %v2310
        %v2312 = vpop.xlane.xlu0 %2311
        %v2313 = vsub.f32 %v2306, %v2312
        %v2314 = vmul.f32 %v2313, 1.442695
        %v2315 = vpow.pop %v2314
        %v2316 = vsel %vm2309, %v2315, 0.0
        %2317 = vadd.xlane.f32.xlu0 %v2316
        %v2318 = vpop.xlane.xlu0 %2317
        %v2319 = vrcp.pop %v2318
        %v2320 = vmul.f32 %v2315, %v2319
        %v2321 = vpack.c.bf16 %v2320, %v2320
        %v2322 = vpack.c.bf16 %v2258, %v2256
        %v2323 = vpack.c.bf16 %v2263, %v2261
        %v2324 = vpack.c.bf16 %v2268, %v2266
        %v2325 = vpack.c.bf16 %v2273, %v2271
        %v2327 = vsel %vm727, %v2321, 0
        %2329 = vmatpush.bf16.msra.mxu0 0
        %2330 = vmatpush.bf16.msra.mxu0 0
        %2331 = vmatpush.bf16.msra.mxu0 0
        %2332 = vmatpush.bf16.msra.mxu0 0
        %2333 = vmatpush.bf16.msra.mxu0 %v2325
        %2334 = vmatpush.bf16.msra.mxu0 %v2324
        %2335 = vmatpush.bf16.msra.mxu0 %v2323
        %2336 = vmatpush.bf16.msra.mxu0 %v2322
        %2337 = vmatmul.bf16.gmra.mxu0 %v2327
        %v2338 = vpop.f32.mrf.mxu0
        %v2339 = vadd.f32 0.0, %v2338
        %v2340 = vpop.f32.mrf.mxu0
        %2341 = vdwg.mxu0
        %2343 = vrot.lane.b32.xlu0 %v2275, 120
        %v2344 = vpop.permute.xlu0 %2343
        %2349 = vrot.lane.b32.xlu0 %v2276, 120
        %v2350 = vpop.permute.xlu0 %2349
        %2351 = vrot.lane.b32.xlu0 %v2277, 120
        %v2352 = vpop.permute.xlu0 %2351
        %2353 = vrot.lane.b32.xlu0 %v2278, 120
        %v2354 = vpop.permute.xlu0 %2353
        %2355 = vrot.lane.b32.xlu0 %v2279, 120
        %v2356 = vpop.permute.xlu0 %2355
        %v2358 = vsel %vm2280, %v2344, 0
        %v2361 = vsel %vm2280, %v2350, 0
        %v2364 = vsel %vm2280, %v2352, 0
        %v2367 = vsel %vm2280, %v2354, 0
        %v2370 = vsel %vm2280, %v2356, 0
        %2372 = vmatpush.bf16.xpose.msra.mxu0 0
        %2373 = vmatpush.bf16.xpose.msra.mxu0 0
        %2374 = vmatpush.bf16.xpose.msra.mxu0 0
        %2375 = vmatpush.bf16.xpose.msra.mxu0 0
        %2376 = vmatpush.bf16.xpose.msra.mxu0 %v2370
        %2377 = vmatpush.bf16.xpose.msra.mxu0 %v2367
        %2378 = vmatpush.bf16.xpose.msra.mxu0 %v2364
        %2379 = vmatpush.bf16.xpose.msra.mxu0 %v2361
        %2380 = vmatmul.bf16.gmra.mxu0 %v2358
        %v2381 = vpop.f32.mrf.mxu0
        %v2382 = vadd.f32 0.0, %v2381
        %v2383 = vpop.f32.mrf.mxu0
        %2384 = vdwg.mxu0
        %v2385 = vsel %vm2309, %v2382, -inf
        %2386 = vmax.xlane.f32.xlu0 %v2385
        %v2387 = vpop.xlane.xlu0 %2386
        %v2388 = vsub.f32 %v2382, %v2387
        %v2389 = vmul.f32 %v2388, 1.442695
        %v2390 = vpow.pop %v2389
        %v2391 = vsel %vm2309, %v2390, 0.0
        %2392 = vadd.xlane.f32.xlu0 %v2391
        %v2393 = vpop.xlane.xlu0 %2392
        %v2394 = vrcp.pop %v2393
        %v2395 = vmul.f32 %v2390, %v2394
        %v2396 = vpack.c.bf16 %v2395, %v2395
        %2401 = vrot.lane.b32.xlu0 %v2322, 120
        %v2402 = vpop.permute.xlu0 %2401
        %2403 = vrot.lane.b32.xlu0 %v2323, 120
        %v2404 = vpop.permute.xlu0 %2403
        %2405 = vrot.lane.b32.xlu0 %v2324, 120
        %v2406 = vpop.permute.xlu0 %2405
        %2407 = vrot.lane.b32.xlu0 %v2325, 120
        %v2408 = vpop.permute.xlu0 %2407
        %v2414 = vsel %vm727, %v2396, 0
        %2416 = vmatpush.bf16.msra.mxu0 0
        %2417 = vmatpush.bf16.msra.mxu0 0
        %2418 = vmatpush.bf16.msra.mxu0 0
        %2419 = vmatpush.bf16.msra.mxu0 0
        %2420 = vmatpush.bf16.msra.mxu0 %v2408
        %2421 = vmatpush.bf16.msra.mxu0 %v2406
        %2422 = vmatpush.bf16.msra.mxu0 %v2404
        %2423 = vmatpush.bf16.msra.mxu0 %v2402
        %2424 = vmatmul.bf16.gmra.mxu0 %v2414
        %v2425 = vpop.f32.mrf.mxu0
        %v2426 = vadd.f32 0.0, %v2425
        %v2427 = vpop.f32.mrf.mxu0
        %2428 = vdwg.mxu0
        %2430 = vrot.lane.b32.xlu0 %v2426, 8
        %v2431 = vpop.permute.xlu0 %2430
        %v2433 = vsel %vm2280, %v2339, %v2431
        %v2434 = vpack.c.bf16 %v2433, %v2433
        %v2435 = vperm.slane %v2135, 0
        %v2438 = vunpack.c.l.b16 %v2133
        %v2439 = vunpack.c.l.b16 %v2134
        %v2440 = vpack.c.b16 %v2439, %v2438
        %v2443 = vsel %vm673, %v2434, 0
        %2445 = vmatpush.bf16.msra.mxu0 0
        %2446 = vmatpush.bf16.msra.mxu0 0
        %2447 = vmatpush.bf16.msra.mxu0 0
        %2448 = vmatpush.bf16.msra.mxu0 0
        %2449 = vmatpush.bf16.msra.mxu0 0
        %2450 = vmatpush.bf16.msra.mxu0 0
        %2451 = vmatpush.bf16.msra.mxu0 0
        %2452 = vmatpush.bf16.msra.mxu0 %v2440
        %2453 = vmatmul.bf16.gmra.mxu0 %v2443
        %v2454 = vpop.f32.mrf.mxu0
        %v2455 = vadd.f32 %v2435, %v2454
        %v2456 = vpop.f32.mrf.mxu0
        %2457 = vdwg.mxu0
        %v2458 = vadd.f32 %v2118, %v2455
        %v2459 = vld [vmem:[%s3 + $0x118] sm:$0x1]
        %v2460 = vld [vmem:[%s3 + $0x120] sm:$0x1]
        %v2461 = vsel %vm2092, %v2458, 0.0
        %2462 = vadd.xlane.f32.xlu0 %v2461
        %v2463 = vpop.xlane.xlu0 %2462
        %v2464 = vmul.f32 %v2463, %v418
        %v2465 = vsub.f32 %v2458, %v2464
        %v2466 = vmul.f32 %v2465, %v2465
        %v2467 = vsel %vm2092, %v2466, 0.0
        %2468 = vadd.xlane.f32.xlu0 %v2467
        %v2469 = vpop.xlane.xlu0 %2468
        %v2470 = vmul.f32 %v2469, %v418
        %v2471 = vadd.f32 %v2470, 1e-05
        %v2472 = vrsqrt.pop %v2471
        %v2473 = vmul.f32 %v2472, %v2471
        %v2474 = vmul.f32 %v2473, %v2472
        %v2475 = vmul.f32 0.5, %v2474
        %v2476 = vsub.f32 1.5, %v2475
        %v2477 = vmul.f32 %v2472, %v2476
        %vm2478 = vweird.f32 %v2471
        %vm2479 = vweird.f32 %v2472
        %vm2480 = vmor %vm2478, %vm2479
        %v2481 = vsel %vm2480, %v2472, %v2477
        %v2482 = vmul.f32 %v2465, %v2481
        %v2483 = vperm.slane %v2459, 0
        %v2484 = vmul.f32 %v2482, %v2483
        %v2485 = vperm.slane %v2460, 0
        %v2486 = vadd.f32 %v2484, %v2485
        %v2487 = vld [vmem:[%s2 + $0xb0] sm:$0xf]
        %v2488 = vld [vmem:[%s2 + $0xb4] sm:$0xf]
        %v2489 = vld [vmem:[%s2 + $0xb8] sm:$0xf]
        %v2490 = vld [vmem:[%s2 + $0xbc] sm:$0xf]
        %v2491 = vpack.c.bf16 %v2486, %v2486
        %v2492 = vld [vmem:[%s3 + $0x128] sm:$0x1]
        %v2493 = vperm.slane %v2492, 0
        %v2498 = vunpack.c.l.b16 %v2487
        %v2499 = vunpack.c.l.b16 %v2488
        %v2500 = vunpack.c.l.b16 %v2489
        %v2501 = vunpack.c.l.b16 %v2490
        %v2502 = vpack.c.b16 %v2499, %v2498
        %v2503 = vpack.c.b16 %v2501, %v2500
        %v2507 = vsel %vm387, %v2491, 0
        %2509 = vmatpush.bf16.msra.mxu0 0
        %2510 = vmatpush.bf16.msra.mxu0 0
        %2511 = vmatpush.bf16.msra.mxu0 0
        %2512 = vmatpush.bf16.msra.mxu0 0
        %2513 = vmatpush.bf16.msra.mxu0 0
        %2514 = vmatpush.bf16.msra.mxu0 0
        %2515 = vmatpush.bf16.msra.mxu0 %v2503
        %2516 = vmatpush.bf16.msra.mxu0 %v2502
        %2517 = vmatmul.bf16.gmra.mxu0 %v2507
        %v2518 = vpop.f32.mrf.mxu0
        %v2519 = vadd.f32 %v2493, %v2518
        %v2520 = vpop.f32.mrf.mxu0
        %2521 = vdwg.mxu0
        %v2522 = vmax.f32 %v2519, 0.0
        %v2523 = vld [vmem:[%s2 + $0xc0] sm:$0xf]
        %v2524 = vld [vmem:[%s2 + $0xc4] sm:$0xf]
        %v2525 = vld [vmem:[%s2 + $0xc8] sm:$0xf]
        %v2526 = vld [vmem:[%s2 + $0xcc] sm:$0xf]
        %v2527 = vld [vmem:[%s2 + $0xd0] sm:$0xf]
        %v2528 = vld [vmem:[%s2 + $0xd4] sm:$0xf]
        %v2529 = vld [vmem:[%s2 + $0xd8] sm:$0xf]
        %v2530 = vld [vmem:[%s2 + $0xdc] sm:$0xf]
        %v2531 = vpack.c.bf16 %v2522, %v2522
        %v2532 = vld [vmem:[%s3 + $0x130] sm:$0x1]
        %v2533 = vperm.slane %v2532, 0
        %v2542 = vunpack.c.l.b16 %v2523
        %v2543 = vunpack.c.l.b16 %v2524
        %v2544 = vunpack.c.l.b16 %v2525
        %v2545 = vunpack.c.l.b16 %v2526
        %v2546 = vunpack.c.l.b16 %v2527
        %v2547 = vunpack.c.l.b16 %v2528
        %v2548 = vunpack.c.l.b16 %v2529
        %v2549 = vunpack.c.l.b16 %v2530
        %v2550 = vpack.c.b16 %v2543, %v2542
        %v2551 = vpack.c.b16 %v2545, %v2544
        %v2552 = vpack.c.b16 %v2547, %v2546
        %v2553 = vpack.c.b16 %v2549, %v2548
        %v2559 = vsel %vm727, %v2531, 0
        %2561 = vmatpush.bf16.msra.mxu0 0
        %2562 = vmatpush.bf16.msra.mxu0 0
        %2563 = vmatpush.bf16.msra.mxu0 0
        %2564 = vmatpush.bf16.msra.mxu0 0
        %2565 = vmatpush.bf16.msra.mxu0 %v2553
        %2566 = vmatpush.bf16.msra.mxu0 %v2552
        %2567 = vmatpush.bf16.msra.mxu0 %v2551
        %2568 = vmatpush.bf16.msra.mxu0 %v2550
        %2569 = vmatmul.bf16.gmra.mxu0 %v2559
        %v2570 = vpop.f32.mrf.mxu0
        %v2571 = vadd.f32 %v2533, %v2570
        %v2572 = vpop.f32.mrf.mxu0
        %2573 = vdwg.mxu0
        %v2574 = vadd.f32 %v2486, %v2571
        %v2575 = vld [vmem:[%s3 + $0x138] sm:$0x1]
        %v2576 = vld [vmem:[%s3 + $0x140] sm:$0x1]
        %v2577 = vsel %vm2092, %v2574, 0.0
        %2578 = vadd.xlane.f32.xlu0 %v2577
        %v2579 = vpop.xlane.xlu0 %2578
        %v2580 = vmul.f32 %v2579, %v418
        %v2581 = vsub.f32 %v2574, %v2580
        %v2582 = vmul.f32 %v2581, %v2581
        %v2583 = vsel %vm2092, %v2582, 0.0
        %2584 = vadd.xlane.f32.xlu0 %v2583
        %v2585 = vpop.xlane.xlu0 %2584
        %v2586 = vmul.f32 %v2585, %v418
        %v2587 = vadd.f32 %v2586, 1e-05
        %v2588 = vrsqrt.pop %v2587
        %v2589 = vmul.f32 %v2588, %v2587
        %v2590 = vmul.f32 %v2589, %v2588
        %v2591 = vmul.f32 0.5, %v2590
        %v2592 = vsub.f32 1.5, %v2591
        %v2593 = vmul.f32 %v2588, %v2592
        %vm2594 = vweird.f32 %v2587
        %vm2595 = vweird.f32 %v2588
        %vm2596 = vmor %vm2594, %vm2595
        %v2597 = vsel %vm2596, %v2588, %v2593
        %v2598 = vmul.f32 %v2581, %v2597
        %v2599 = vperm.slane %v2575, 0
        %v2600 = vmul.f32 %v2598, %v2599
        %v2601 = vperm.slane %v2576, 0
        %v2602 = vadd.f32 %v2600, %v2601
        %v2603 = vadd.f32 %v2602, %v1878
        %v2604 = vld [vmem:[%s2 + $0xe0] sm:$0xf]
        %v2605 = vld [vmem:[%s2 + $0xe4] sm:$0xf]
        %v2606 = vld [vmem:[%s2 + $0xe8] sm:$0xf]
        %v2607 = vld [vmem:[%s2 + $0xec] sm:$0xf]
        %v2608 = vld [vmem:[%s3 + $0x148] sm:$0x1]
        %v2609 = vld [vmem:[%s2 + $0xf0] sm:$0xf]
        %v2610 = vld [vmem:[%s2 + $0xf4] sm:$0xf]
        %v2611 = vld [vmem:[%s3 + $0x150] sm:$0x1]
        %v2612 = vperm.slane %v2608, 0
        %v2617 = vunpack.c.l.b16 %v2604
        %v2618 = vunpack.c.l.b16 %v2605
        %v2619 = vunpack.c.l.b16 %v2606
        %v2620 = vunpack.c.l.b16 %v2607
        %v2621 = vpack.c.b16 %v2618, %v2617
        %v2622 = vpack.c.b16 %v2620, %v2619
        %2625 = vmatpush.bf16.msra.mxu0 0
        %2626 = vmatpush.bf16.msra.mxu0 0
        %2627 = vmatpush.bf16.msra.mxu0 0
        %2628 = vmatpush.bf16.msra.mxu0 0
        %2629 = vmatpush.bf16.msra.mxu0 0
        %2630 = vmatpush.bf16.msra.mxu0 0
        %2631 = vmatpush.bf16.msra.mxu0 %v2622
        %2632 = vmatpush.bf16.msra.mxu0 %v2621
        %2633 = vmatmul.bf16.gmra.mxu0 %v2181
        %v2634 = vpop.f32.mrf.mxu0
        %v2635 = vadd.f32 %v2612, %v2634
        %v2636 = vpop.f32.mrf.mxu0
        %v2637 = vadd.f32 %v2612, %v2636
        %2638 = vmatmul.bf16.gmra.mxu0 %v2184
        %v2639 = vpop.f32.mrf.mxu0
        %v2640 = vadd.f32 %v2612, %v2639
        %v2641 = vpop.f32.mrf.mxu0
        %v2642 = vadd.f32 %v2612, %v2641
        %2643 = vmatmul.bf16.gmra.mxu0 %v2187
        %v2644 = vpop.f32.mrf.mxu0
        %v2645 = vadd.f32 %v2612, %v2644
        %v2646 = vpop.f32.mrf.mxu0
        %v2647 = vadd.f32 %v2612, %v2646
        %2648 = vmatmul.bf16.gmra.mxu0 %v2190
        %v2649 = vpop.f32.mrf.mxu0
        %v2650 = vadd.f32 %v2612, %v2649
        %v2651 = vpop.f32.mrf.mxu0
        %v2652 = vadd.f32 %v2612, %v2651
        %2653 = vdwg.mxu0
        %v2654 = vpack.c.bf16 %v2603, %v2603
        %2655 = vrot.lane.b32.xlu0 %v2621, 112
        %v2656 = vpop.permute.xlu0 %2655
        %2657 = vrot.lane.b32.xlu0 %v2622, 112
        %v2658 = vpop.permute.xlu0 %2657
        %2662 = vrot.lane.b32.xlu0 %v2612, 112
        %v2663 = vpop.permute.xlu0 %2662
        %v2666 = vsel %vm387, %v2654, 0
        %2668 = vmatpush.bf16.msra.mxu0 0
        %2669 = vmatpush.bf16.msra.mxu0 0
        %2670 = vmatpush.bf16.msra.mxu0 0
        %2671 = vmatpush.bf16.msra.mxu0 0
        %2672 = vmatpush.bf16.msra.mxu0 0
        %2673 = vmatpush.bf16.msra.mxu0 0
        %2674 = vmatpush.bf16.msra.mxu0 %v2658
        %2675 = vmatpush.bf16.msra.mxu0 %v2656
        %2676 = vmatmul.bf16.gmra.mxu0 %v2666
        %v2677 = vpop.f32.mrf.mxu0
        %v2678 = vadd.f32 %v2663, %v2677
        %v2679 = vpop.f32.mrf.mxu0
        %2680 = vdwg.mxu0
        %v2681 = vpack.c.bf16 %v2602, %v2602
        %2682 = vrot.lane.b32.xlu0 %v2621, 96
        %v2683 = vpop.permute.xlu0 %2682
        %2684 = vrot.lane.b32.xlu0 %v2622, 96
        %v2685 = vpop.permute.xlu0 %2684
        %2688 = vrot.lane.b32.xlu0 %v2612, 96
        %v2689 = vpop.permute.xlu0 %2688
        %v2692 = vsel %vm387, %v2681, 0
        %2694 = vmatpush.bf16.msra.mxu0 0
        %2695 = vmatpush.bf16.msra.mxu0 0
        %2696 = vmatpush.bf16.msra.mxu0 0
        %2697 = vmatpush.bf16.msra.mxu0 0
        %2698 = vmatpush.bf16.msra.mxu0 0
        %2699 = vmatpush.bf16.msra.mxu0 0
        %2700 = vmatpush.bf16.msra.mxu0 %v2685
        %2701 = vmatpush.bf16.msra.mxu0 %v2683
        %2702 = vmatmul.bf16.gmra.mxu0 %v2692
        %v2703 = vpop.f32.mrf.mxu0
        %v2704 = vadd.f32 %v2689, %v2703
        %v2705 = vpop.f32.mrf.mxu0
        %2706 = vdwg.mxu0
        %v2707 = vpack.c.bf16 %v2637, %v2635
        %v2708 = vpack.c.bf16 %v2642, %v2640
        %v2709 = vpack.c.bf16 %v2647, %v2645
        %v2710 = vpack.c.bf16 %v2652, %v2650
        %v2711 = vpack.c.bf16 %v2678, %v2678
        %v2713 = vsel %vm2280, %v2707, 0
        %v2716 = vsel %vm2280, %v2708, 0
        %v2719 = vsel %vm2280, %v2709, 0
        %v2722 = vsel %vm2280, %v2710, 0
        %v2725 = vsel %vm2280, %v2711, 0
        %2727 = vmatpush.bf16.xpose.msra.mxu0 0
        %2728 = vmatpush.bf16.xpose.msra.mxu0 0
        %2729 = vmatpush.bf16.xpose.msra.mxu0 0
        %2730 = vmatpush.bf16.xpose.msra.mxu0 0
        %2731 = vmatpush.bf16.xpose.msra.mxu0 0
        %2732 = vmatpush.bf16.xpose.msra.mxu0 0
        %2733 = vmatpush.bf16.xpose.msra.mxu0 0
        %2734 = vmatpush.bf16.xpose.msra.mxu0 %v2725
        %2735 = vmatmul.bf16.gmra.mxu0 %v2713
        %v2736 = vpop.f32.mrf.mxu0
        %v2737 = vadd.f32 0.0, %v2736
        %v2738 = vpop.f32.mrf.mxu0
        %v2739 = vadd.f32 0.0, %v2738
        %2740 = vmatmul.bf16.gmra.mxu0 %v2716
        %v2741 = vpop.f32.mrf.mxu0
        %v2742 = vadd.f32 0.0, %v2741
        %v2743 = vpop.f32.mrf.mxu0
        %v2744 = vadd.f32 0.0, %v2743
        %2745 = vmatmul.bf16.gmra.mxu0 %v2719
        %v2746 = vpop.f32.mrf.mxu0
        %v2747 = vadd.f32 0.0, %v2746
        %v2748 = vpop.f32.mrf.mxu0
        %v2749 = vadd.f32 0.0, %v2748
        %2750 = vmatmul.bf16.gmra.mxu0 %v2722
        %v2751 = vpop.f32.mrf.mxu0
        %v2752 = vadd.f32 0.0, %v2751
        %v2753 = vpop.f32.mrf.mxu0
        %v2754 = vadd.f32 0.0, %v2753
        %2755 = vdwg.mxu0
        %v2756 = vsel %vm1975, %v2737, -inf
        %2757 = vmax.xlane.f32.xlu0 %v2756
        %v2758 = vpop.xlane.xlu0 %2757
        %v2759 = vsel %vm1975, %v2739, -inf
        %2760 = vmax.xlane.f32.xlu0 %v2759
        %v2761 = vpop.xlane.xlu0 %2760
        %v2762 = vsel %vm1975, %v2742, -inf
        %2763 = vmax.xlane.f32.xlu0 %v2762
        %v2764 = vpop.xlane.xlu0 %2763
        %v2765 = vsel %vm1975, %v2744, -inf
        %2766 = vmax.xlane.f32.xlu0 %v2765
        %v2767 = vpop.xlane.xlu0 %2766
        %v2768 = vsel %vm1975, %v2747, -inf
        %2769 = vmax.xlane.f32.xlu0 %v2768
        %v2770 = vpop.xlane.xlu0 %2769
        %v2771 = vsel %vm1975, %v2749, -inf
        %2772 = vmax.xlane.f32.xlu0 %v2771
        %v2773 = vpop.xlane.xlu0 %2772
        %v2774 = vsel %vm1975, %v2752, -inf
        %2775 = vmax.xlane.f32.xlu0 %v2774
        %v2776 = vpop.xlane.xlu0 %2775
        %v2777 = vsel %vm1975, %v2754, -inf
        %2778 = vmax.xlane.f32.xlu0 %v2777
        %v2779 = vpop.xlane.xlu0 %2778
        %v2780 = vsub.f32 %v2737, %v2758
        %v2781 = vsub.f32 %v2739, %v2761
        %v2782 = vsub.f32 %v2742, %v2764
        %v2783 = vsub.f32 %v2744, %v2767
        %v2784 = vsub.f32 %v2747, %v2770
        %v2785 = vsub.f32 %v2749, %v2773
        %v2786 = vsub.f32 %v2752, %v2776
        %v2787 = vsub.f32 %v2754, %v2779
        %v2788 = vmul.f32 %v2780, 1.442695
        %v2789 = vpow.pop %v2788
        %v2790 = vmul.f32 %v2781, 1.442695
        %v2791 = vpow.pop %v2790
        %v2792 = vmul.f32 %v2782, 1.442695
        %v2793 = vpow.pop %v2792
        %v2794 = vmul.f32 %v2783, 1.442695
        %v2795 = vpow.pop %v2794
        %v2796 = vmul.f32 %v2784, 1.442695
        %v2797 = vpow.pop %v2796
        %v2798 = vmul.f32 %v2785, 1.442695
        %v2799 = vpow.pop %v2798
        %v2800 = vmul.f32 %v2786, 1.442695
        %v2801 = vpow.pop %v2800
        %v2802 = vmul.f32 %v2787, 1.442695
        %v2803 = vpow.pop %v2802
        %v2804 = vsel %vm1975, %v2789, 0.0
        %2805 = vadd.xlane.f32.xlu0 %v2804
        %v2806 = vpop.xlane.xlu0 %2805
        %v2807 = vsel %vm1975, %v2791, 0.0
        %2808 = vadd.xlane.f32.xlu0 %v2807
        %v2809 = vpop.xlane.xlu0 %2808
        %v2810 = vsel %vm1975, %v2793, 0.0
        %2811 = vadd.xlane.f32.xlu0 %v2810
        %v2812 = vpop.xlane.xlu0 %2811
        %v2813 = vsel %vm1975, %v2795, 0.0
        %2814 = vadd.xlane.f32.xlu0 %v2813
        %v2815 = vpop.xlane.xlu0 %2814
        %v2816 = vsel %vm1975, %v2797, 0.0
        %2817 = vadd.xlane.f32.xlu0 %v2816
        %v2818 = vpop.xlane.xlu0 %2817
        %v2819 = vsel %vm1975, %v2799, 0.0
        %2820 = vadd.xlane.f32.xlu0 %v2819
        %v2821 = vpop.xlane.xlu0 %2820
        %v2822 = vsel %vm1975, %v2801, 0.0
        %2823 = vadd.xlane.f32.xlu0 %v2822
        %v2824 = vpop.xlane.xlu0 %2823
        %v2825 = vsel %vm1975, %v2803, 0.0
        %2826 = vadd.xlane.f32.xlu0 %v2825
        %v2827 = vpop.xlane.xlu0 %2826
        %v2828 = vrcp.pop %v2806
        %v2829 = vrcp.pop %v2809
        %v2830 = vrcp.pop %v2812
        %v2831 = vrcp.pop %v2815
        %v2832 = vrcp.pop %v2818
        %v2833 = vrcp.pop %v2821
        %v2834 = vrcp.pop %v2824
        %v2835 = vrcp.pop %v2827
        %v2836 = vmul.f32 %v2789, %v2828
        %v2837 = vmul.f32 %v2791, %v2829
        %v2838 = vmul.f32 %v2793, %v2830
        %v2839 = vmul.f32 %v2795, %v2831
        %v2840 = vmul.f32 %v2797, %v2832
        %v2841 = vmul.f32 %v2799, %v2833
        %v2842 = vmul.f32 %v2801, %v2834
        %v2843 = vmul.f32 %v2803, %v2835
        %v2844 = vpack.c.bf16 %v2837, %v2836
        %v2845 = vpack.c.bf16 %v2839, %v2838
        %v2846 = vpack.c.bf16 %v2841, %v2840
        %v2847 = vpack.c.bf16 %v2843, %v2842
        %v2848 = vpack.c.bf16 %v2704, %v2704
        %v2850 = vsel %vm1975, %v2844, 0
        %v2853 = vsel %vm1975, %v2845, 0
        %v2856 = vsel %vm1975, %v2846, 0
        %v2859 = vsel %vm1975, %v2847, 0
        %v2862 = vand.u32 %v2848, %v1982
        %2864 = vmatpush.bf16.msra.mxu0 0
        %2865 = vmatpush.bf16.msra.mxu0 0
        %2866 = vmatpush.bf16.msra.mxu0 0
        %2867 = vmatpush.bf16.msra.mxu0 0
        %2868 = vmatpush.bf16.msra.mxu0 0
        %2869 = vmatpush.bf16.msra.mxu0 0
        %2870 = vmatpush.bf16.msra.mxu0 0
        %2871 = vmatpush.bf16.msra.mxu0 %v2862
        %2872 = vmatmul.bf16.gmra.mxu0 %v2850
        %v2873 = vpop.f32.mrf.mxu0
        %v2874 = vadd.f32 0.0, %v2873
        %v2875 = vpop.f32.mrf.mxu0
        %v2876 = vadd.f32 0.0, %v2875
        %2877 = vmatmul.bf16.gmra.mxu0 %v2853
        %v2878 = vpop.f32.mrf.mxu0
        %v2879 = vadd.f32 0.0, %v2878
        %v2880 = vpop.f32.mrf.mxu0
        %v2881 = vadd.f32 0.0, %v2880
        %2882 = vmatmul.bf16.gmra.mxu0 %v2856
        %v2883 = vpop.f32.mrf.mxu0
        %v2884 = vadd.f32 0.0, %v2883
        %v2885 = vpop.f32.mrf.mxu0
        %v2886 = vadd.f32 0.0, %v2885
        %2887 = vmatmul.bf16.gmra.mxu0 %v2859
        %v2888 = vpop.f32.mrf.mxu0
        %v2889 = vadd.f32 0.0, %v2888
        %v2890 = vpop.f32.mrf.mxu0
        %v2891 = vadd.f32 0.0, %v2890
        %2892 = vdwg.mxu0
        %2897 = vrot.lane.b32.xlu0 %v2707, 120
        %v2898 = vpop.permute.xlu0 %2897
        %2899 = vrot.lane.b32.xlu0 %v2708, 120
        %v2900 = vpop.permute.xlu0 %2899
        %2901 = vrot.lane.b32.xlu0 %v2709, 120
        %v2902 = vpop.permute.xlu0 %2901
        %2903 = vrot.lane.b32.xlu0 %v2710, 120
        %v2904 = vpop.permute.xlu0 %2903
        %2906 = vrot.lane.b32.xlu0 %v2711, 120
        %v2907 = vpop.permute.xlu0 %2906
        %v2909 = vsel %vm2280, %v2898, 0
        %v2912 = vsel %vm2280, %v2900, 0
        %v2915 = vsel %vm2280, %v2902, 0
        %v2918 = vsel %vm2280, %v2904, 0
        %v2921 = vsel %vm2280, %v2907, 0
        %2923 = vmatpush.bf16.xpose.msra.mxu0 0
        %2924 = vmatpush.bf16.xpose.msra.mxu0 0
        %2925 = vmatpush.bf16.xpose.msra.mxu0 0
        %2926 = vmatpush.bf16.xpose.msra.mxu0 0
        %2927 = vmatpush.bf16.xpose.msra.mxu0 0
        %2928 = vmatpush.bf16.xpose.msra.mxu0 0
        %2929 = vmatpush.bf16.xpose.msra.mxu0 0
        %2930 = vmatpush.bf16.xpose.msra.mxu0 %v2921
        %2931 = vmatmul.bf16.gmra.mxu0 %v2909
        %v2932 = vpop.f32.mrf.mxu0
        %v2933 = vadd.f32 0.0, %v2932
        %v2934 = vpop.f32.mrf.mxu0
        %v2935 = vadd.f32 0.0, %v2934
        %2936 = vmatmul.bf16.gmra.mxu0 %v2912
        %v2937 = vpop.f32.mrf.mxu0
        %v2938 = vadd.f32 0.0, %v2937
        %v2939 = vpop.f32.mrf.mxu0
        %v2940 = vadd.f32 0.0, %v2939
        %2941 = vmatmul.bf16.gmra.mxu0 %v2915
        %v2942 = vpop.f32.mrf.mxu0
        %v2943 = vadd.f32 0.0, %v2942
        %v2944 = vpop.f32.mrf.mxu0
        %v2945 = vadd.f32 0.0, %v2944
        %2946 = vmatmul.bf16.gmra.mxu0 %v2918
        %v2947 = vpop.f32.mrf.mxu0
        %v2948 = vadd.f32 0.0, %v2947
        %v2949 = vpop.f32.mrf.mxu0
        %v2950 = vadd.f32 0.0, %v2949
        %2951 = vdwg.mxu0
        %v2952 = vsel %vm1975, %v2933, -inf
        %2953 = vmax.xlane.f32.xlu0 %v2952
        %v2954 = vpop.xlane.xlu0 %2953
        %v2955 = vsel %vm1975, %v2935, -inf
        %2956 = vmax.xlane.f32.xlu0 %v2955
        %v2957 = vpop.xlane.xlu0 %2956
        %v2958 = vsel %vm1975, %v2938, -inf
        %2959 = vmax.xlane.f32.xlu0 %v2958
        %v2960 = vpop.xlane.xlu0 %2959
        %v2961 = vsel %vm1975, %v2940, -inf
        %2962 = vmax.xlane.f32.xlu0 %v2961
        %v2963 = vpop.xlane.xlu0 %2962
        %v2964 = vsel %vm1975, %v2943, -inf
        %2965 = vmax.xlane.f32.xlu0 %v2964
        %v2966 = vpop.xlane.xlu0 %2965
        %v2967 = vsel %vm1975, %v2945, -inf
        %2968 = vmax.xlane.f32.xlu0 %v2967
        %v2969 = vpop.xlane.xlu0 %2968
        %v2970 = vsel %vm1975, %v2948, -inf
        %2971 = vmax.xlane.f32.xlu0 %v2970
        %v2972 = vpop.xlane.xlu0 %2971
        %v2973 = vsel %vm1975, %v2950, -inf
        %2974 = vmax.xlane.f32.xlu0 %v2973
        %v2975 = vpop.xlane.xlu0 %2974
        %v2976 = vsub.f32 %v2933, %v2954
        %v2977 = vsub.f32 %v2935, %v2957
        %v2978 = vsub.f32 %v2938, %v2960
        %v2979 = vsub.f32 %v2940, %v2963
        %v2980 = vsub.f32 %v2943, %v2966
        %v2981 = vsub.f32 %v2945, %v2969
        %v2982 = vsub.f32 %v2948, %v2972
        %v2983 = vsub.f32 %v2950, %v2975
        %v2984 = vmul.f32 %v2976, 1.442695
        %v2985 = vpow.pop %v2984
        %v2986 = vmul.f32 %v2977, 1.442695
        %v2987 = vpow.pop %v2986
        %v2988 = vmul.f32 %v2978, 1.442695
        %v2989 = vpow.pop %v2988
        %v2990 = vmul.f32 %v2979, 1.442695
        %v2991 = vpow.pop %v2990
        %v2992 = vmul.f32 %v2980, 1.442695
        %v2993 = vpow.pop %v2992
        %v2994 = vmul.f32 %v2981, 1.442695
        %v2995 = vpow.pop %v2994
        %v2996 = vmul.f32 %v2982, 1.442695
        %v2997 = vpow.pop %v2996
        %v2998 = vmul.f32 %v2983, 1.442695
        %v2999 = vpow.pop %v2998
        %v3000 = vsel %vm1975, %v2985, 0.0
        %3001 = vadd.xlane.f32.xlu0 %v3000
        %v3002 = vpop.xlane.xlu0 %3001
        %v3003 = vsel %vm1975, %v2987, 0.0
        %3004 = vadd.xlane.f32.xlu0 %v3003
        %v3005 = vpop.xlane.xlu0 %3004
        %v3006 = vsel %vm1975, %v2989, 0.0
        %3007 = vadd.xlane.f32.xlu0 %v3006
        %v3008 = vpop.xlane.xlu0 %3007
        %v3009 = vsel %vm1975, %v2991, 0.0
        %3010 = vadd.xlane.f32.xlu0 %v3009
        %v3011 = vpop.xlane.xlu0 %3010
        %v3012 = vsel %vm1975, %v2993, 0.0
        %3013 = vadd.xlane.f32.xlu0 %v3012
        %v3014 = vpop.xlane.xlu0 %3013
        %v3015 = vsel %vm1975, %v2995, 0.0
        %3016 = vadd.xlane.f32.xlu0 %v3015
        %v3017 = vpop.xlane.xlu0 %3016
        %v3018 = vsel %vm1975, %v2997, 0.0
        %3019 = vadd.xlane.f32.xlu0 %v3018
        %v3020 = vpop.xlane.xlu0 %3019
        %v3021 = vsel %vm1975, %v2999, 0.0
        %3022 = vadd.xlane.f32.xlu0 %v3021
        %v3023 = vpop.xlane.xlu0 %3022
        %v3024 = vrcp.pop %v3002
        %v3025 = vrcp.pop %v3005
        %v3026 = vrcp.pop %v3008
        %v3027 = vrcp.pop %v3011
        %v3028 = vrcp.pop %v3014
        %v3029 = vrcp.pop %v3017
        %v3030 = vrcp.pop %v3020
        %v3031 = vrcp.pop %v3023
        %v3032 = vmul.f32 %v2985, %v3024
        %v3033 = vmul.f32 %v2987, %v3025
        %v3034 = vmul.f32 %v2989, %v3026
        %v3035 = vmul.f32 %v2991, %v3027
        %v3036 = vmul.f32 %v2993, %v3028
        %v3037 = vmul.f32 %v2995, %v3029
        %v3038 = vmul.f32 %v2997, %v3030
        %v3039 = vmul.f32 %v2999, %v3031
        %v3040 = vpack.c.bf16 %v3033, %v3032
        %v3041 = vpack.c.bf16 %v3035, %v3034
        %v3042 = vpack.c.bf16 %v3037, %v3036
        %v3043 = vpack.c.bf16 %v3039, %v3038
        %3045 = vrot.lane.b32.xlu0 %v2848, 120
        %v3046 = vpop.permute.xlu0 %3045
        %v3048 = vsel %vm1975, %v3040, 0
        %v3051 = vsel %vm1975, %v3041, 0
        %v3054 = vsel %vm1975, %v3042, 0
        %v3057 = vsel %vm1975, %v3043, 0
        %v3060 = vand.u32 %v3046, %v1982
        %3062 = vmatpush.bf16.msra.mxu0 0
        %3063 = vmatpush.bf16.msra.mxu0 0
        %3064 = vmatpush.bf16.msra.mxu0 0
        %3065 = vmatpush.bf16.msra.mxu0 0
        %3066 = vmatpush.bf16.msra.mxu0 0
        %3067 = vmatpush.bf16.msra.mxu0 0
        %3068 = vmatpush.bf16.msra.mxu0 0
        %3069 = vmatpush.bf16.msra.mxu0 %v3060
        %3070 = vmatmul.bf16.gmra.mxu0 %v3048
        %v3071 = vpop.f32.mrf.mxu0
        %v3072 = vadd.f32 0.0, %v3071
        %v3073 = vpop.f32.mrf.mxu0
        %v3074 = vadd.f32 0.0, %v3073
        %3075 = vmatmul.bf16.gmra.mxu0 %v3051
        %v3076 = vpop.f32.mrf.mxu0
        %v3077 = vadd.f32 0.0, %v3076
        %v3078 = vpop.f32.mrf.mxu0
        %v3079 = vadd.f32 0.0, %v3078
        %3080 = vmatmul.bf16.gmra.mxu0 %v3054
        %v3081 = vpop.f32.mrf.mxu0
        %v3082 = vadd.f32 0.0, %v3081
        %v3083 = vpop.f32.mrf.mxu0
        %v3084 = vadd.f32 0.0, %v3083
        %3085 = vmatmul.bf16.gmra.mxu0 %v3057
        %v3086 = vpop.f32.mrf.mxu0
        %v3087 = vadd.f32 0.0, %v3086
        %v3088 = vpop.f32.mrf.mxu0
        %v3089 = vadd.f32 0.0, %v3088
        %3090 = vdwg.mxu0
        %3099 = vrot.lane.b32.xlu0 %v3072, 8
        %v3100 = vpop.permute.xlu0 %3099
        %3101 = vrot.lane.b32.xlu0 %v3074, 8
        %v3102 = vpop.permute.xlu0 %3101
        %3103 = vrot.lane.b32.xlu0 %v3077, 8
        %v3104 = vpop.permute.xlu0 %3103
        %3105 = vrot.lane.b32.xlu0 %v3079, 8
        %v3106 = vpop.permute.xlu0 %3105
        %3107 = vrot.lane.b32.xlu0 %v3082, 8
        %v3108 = vpop.permute.xlu0 %3107
        %3109 = vrot.lane.b32.xlu0 %v3084, 8
        %v3110 = vpop.permute.xlu0 %3109
        %3111 = vrot.lane.b32.xlu0 %v3087, 8
        %v3112 = vpop.permute.xlu0 %3111
        %3113 = vrot.lane.b32.xlu0 %v3089, 8
        %v3114 = vpop.permute.xlu0 %3113
        %v3123 = vsel %vm2280, %v2874, %v3100
        %v3124 = vsel %vm2280, %v2876, %v3102
        %v3125 = vsel %vm2280, %v2879, %v3104
        %v3126 = vsel %vm2280, %v2881, %v3106
        %v3127 = vsel %vm2280, %v2884, %v3108
        %v3128 = vsel %vm2280, %v2886, %v3110
        %v3129 = vsel %vm2280, %v2889, %v3112
        %v3130 = vsel %vm2280, %v2891, %v3114
        %v3131 = vpack.c.bf16 %v3124, %v3123
        %v3132 = vpack.c.bf16 %v3126, %v3125
        %v3133 = vpack.c.bf16 %v3128, %v3127
        %v3134 = vpack.c.bf16 %v3130, %v3129
        %v3135 = vperm.slane %v2611, 0
        %v3138 = vunpack.c.l.b16 %v2609
        %v3139 = vunpack.c.l.b16 %v2610
        %v3140 = vpack.c.b16 %v3139, %v3138
        %v3143 = vsel %vm673, %v3131, 0
        %v3146 = vsel %vm673, %v3132, 0
        %v3149 = vsel %vm673, %v3133, 0
        %v3152 = vsel %vm673, %v3134, 0
        %3154 = vmatpush.bf16.msra.mxu0 0
        %3155 = vmatpush.bf16.msra.mxu0 0
        %3156 = vmatpush.bf16.msra.mxu0 0
        %3157 = vmatpush.bf16.msra.mxu0 0
        %3158 = vmatpush.bf16.msra.mxu0 0
        %3159 = vmatpush.bf16.msra.mxu0 0
        %3160 = vmatpush.bf16.msra.mxu0 0
        %3161 = vmatpush.bf16.msra.mxu0 %v3140
        %3162 = vmatmul.bf16.gmra.mxu0 %v3143
        %v3163 = vpop.f32.mrf.mxu0
        %v3164 = vadd.f32 %v3135, %v3163
        %v3165 = vpop.f32.mrf.mxu0
        %v3166 = vadd.f32 %v3135, %v3165
        %3167 = vmatmul.bf16.gmra.mxu0 %v3146
        %v3168 = vpop.f32.mrf.mxu0
        %v3169 = vadd.f32 %v3135, %v3168
        %v3170 = vpop.f32.mrf.mxu0
        %v3171 = vadd.f32 %v3135, %v3170
        %3172 = vmatmul.bf16.gmra.mxu0 %v3149
        %v3173 = vpop.f32.mrf.mxu0
        %v3174 = vadd.f32 %v3135, %v3173
        %v3175 = vpop.f32.mrf.mxu0
        %v3176 = vadd.f32 %v3135, %v3175
        %3177 = vmatmul.bf16.gmra.mxu0 %v3152
        %v3178 = vpop.f32.mrf.mxu0
        %v3179 = vadd.f32 %v3135, %v3178
        %v3180 = vpop.f32.mrf.mxu0
        %v3181 = vadd.f32 %v3135, %v3180
        %3182 = vdwg.mxu0
        %v3183 = vadd.f32 %v1881, %v3164
        %v3184 = vadd.f32 %v1882, %v3166
        %v3185 = vadd.f32 %v1883, %v3169
        %v3186 = vadd.f32 %v1884, %v3171
        %v3187 = vadd.f32 %v1885, %v3174
        %v3188 = vadd.f32 %v1886, %v3176
        %v3189 = vadd.f32 %v1887, %v3179
        %v3190 = vadd.f32 %v1888, %v3181
        %v3191 = vld [vmem:[%s3 + $0x158] sm:$0x1]
        %v3192 = vld [vmem:[%s3 + $0x160] sm:$0x1]
        %v3193 = vsel %vm387, %v3183, 0.0
        %3194 = vadd.xlane.f32.xlu0 %v3193
        %v3195 = vpop.xlane.xlu0 %3194
        %v3196 = vsel %vm387, %v3184, 0.0
        %3197 = vadd.xlane.f32.xlu0 %v3196
        %v3198 = vpop.xlane.xlu0 %3197
        %v3199 = vsel %vm387, %v3185, 0.0
        %3200 = vadd.xlane.f32.xlu0 %v3199
        %v3201 = vpop.xlane.xlu0 %3200
        %v3202 = vsel %vm387, %v3186, 0.0
        %3203 = vadd.xlane.f32.xlu0 %v3202
        %v3204 = vpop.xlane.xlu0 %3203
        %v3205 = vsel %vm387, %v3187, 0.0
        %3206 = vadd.xlane.f32.xlu0 %v3205
        %v3207 = vpop.xlane.xlu0 %3206
        %v3208 = vsel %vm387, %v3188, 0.0
        %3209 = vadd.xlane.f32.xlu0 %v3208
        %v3210 = vpop.xlane.xlu0 %3209
        %v3211 = vsel %vm387, %v3189, 0.0
        %3212 = vadd.xlane.f32.xlu0 %v3211
        %v3213 = vpop.xlane.xlu0 %3212
        %v3214 = vsel %vm387, %v3190, 0.0
        %3215 = vadd.xlane.f32.xlu0 %v3214
        %v3216 = vpop.xlane.xlu0 %3215
        %v3217 = vmul.f32 %v3195, %v418
        %v3218 = vmul.f32 %v3198, %v418
        %v3219 = vmul.f32 %v3201, %v418
        %v3220 = vmul.f32 %v3204, %v418
        %v3221 = vmul.f32 %v3207, %v418
        %v3222 = vmul.f32 %v3210, %v418
        %v3223 = vmul.f32 %v3213, %v418
        %v3224 = vmul.f32 %v3216, %v418
        %v3225 = vsub.f32 %v3183, %v3217
        %v3226 = vsub.f32 %v3184, %v3218
        %v3227 = vsub.f32 %v3185, %v3219
        %v3228 = vsub.f32 %v3186, %v3220
        %v3229 = vsub.f32 %v3187, %v3221
        %v3230 = vsub.f32 %v3188, %v3222
        %v3231 = vsub.f32 %v3189, %v3223
        %v3232 = vsub.f32 %v3190, %v3224
        %v3233 = vmul.f32 %v3225, %v3225
        %v3234 = vmul.f32 %v3226, %v3226
        %v3235 = vmul.f32 %v3227, %v3227
        %v3236 = vmul.f32 %v3228, %v3228
        %v3237 = vmul.f32 %v3229, %v3229
        %v3238 = vmul.f32 %v3230, %v3230
        %v3239 = vmul.f32 %v3231, %v3231
        %v3240 = vmul.f32 %v3232, %v3232
        %v3241 = vsel %vm387, %v3233, 0.0
        %3242 = vadd.xlane.f32.xlu0 %v3241
        %v3243 = vpop.xlane.xlu0 %3242
        %v3244 = vsel %vm387, %v3234, 0.0
        %3245 = vadd.xlane.f32.xlu0 %v3244
        %v3246 = vpop.xlane.xlu0 %3245
        %v3247 = vsel %vm387, %v3235, 0.0
        %3248 = vadd.xlane.f32.xlu0 %v3247
        %v3249 = vpop.xlane.xlu0 %3248
        %v3250 = vsel %vm387, %v3236, 0.0
        %3251 = vadd.xlane.f32.xlu0 %v3250
        %v3252 = vpop.xlane.xlu0 %3251
        %v3253 = vsel %vm387, %v3237, 0.0
        %3254 = vadd.xlane.f32.xlu0 %v3253
        %v3255 = vpop.xlane.xlu0 %3254
        %v3256 = vsel %vm387, %v3238, 0.0
        %3257 = vadd.xlane.f32.xlu0 %v3256
        %v3258 = vpop.xlane.xlu0 %3257
        %v3259 = vsel %vm387, %v3239, 0.0
        %3260 = vadd.xlane.f32.xlu0 %v3259
        %v3261 = vpop.xlane.xlu0 %3260
        %v3262 = vsel %vm387, %v3240, 0.0
        %3263 = vadd.xlane.f32.xlu0 %v3262
        %v3264 = vpop.xlane.xlu0 %3263
        %v3265 = vmul.f32 %v3243, %v418
        %v3266 = vmul.f32 %v3246, %v418
        %v3267 = vmul.f32 %v3249, %v418
        %v3268 = vmul.f32 %v3252, %v418
        %v3269 = vmul.f32 %v3255, %v418
        %v3270 = vmul.f32 %v3258, %v418
        %v3271 = vmul.f32 %v3261, %v418
        %v3272 = vmul.f32 %v3264, %v418
        %v3273 = vadd.f32 %v3265, 1e-05
        %v3274 = vadd.f32 %v3266, 1e-05
        %v3275 = vadd.f32 %v3267, 1e-05
        %v3276 = vadd.f32 %v3268, 1e-05
        %v3277 = vadd.f32 %v3269, 1e-05
        %v3278 = vadd.f32 %v3270, 1e-05
        %v3279 = vadd.f32 %v3271, 1e-05
        %v3280 = vadd.f32 %v3272, 1e-05
        %v3281 = vrsqrt.pop %v3273
        %v3282 = vmul.f32 %v3281, %v3273
        %v3283 = vmul.f32 %v3282, %v3281
        %v3284 = vmul.f32 0.5, %v3283
        %v3285 = vsub.f32 1.5, %v3284
        %v3286 = vmul.f32 %v3281, %v3285
        %vm3287 = vweird.f32 %v3273
        %vm3288 = vweird.f32 %v3281
        %vm3289 = vmor %vm3287, %vm3288
        %v3290 = vsel %vm3289, %v3281, %v3286
        %v3291 = vrsqrt.pop %v3274
        %v3292 = vmul.f32 %v3291, %v3274
        %v3293 = vmul.f32 %v3292, %v3291
        %v3294 = vmul.f32 0.5, %v3293
        %v3295 = vsub.f32 1.5, %v3294
        %v3296 = vmul.f32 %v3291, %v3295
        %vm3297 = vweird.f32 %v3274
        %vm3298 = vweird.f32 %v3291
        %vm3299 = vmor %vm3297, %vm3298
        %v3300 = vsel %vm3299, %v3291, %v3296
        %v3301 = vrsqrt.pop %v3275
        %v3302 = vmul.f32 %v3301, %v3275
        %v3303 = vmul.f32 %v3302, %v3301
        %v3304 = vmul.f32 0.5, %v3303
        %v3305 = vsub.f32 1.5, %v3304
        %v3306 = vmul.f32 %v3301, %v3305
        %vm3307 = vweird.f32 %v3275
        %vm3308 = vweird.f32 %v3301
        %vm3309 = vmor %vm3307, %vm3308
        %v3310 = vsel %vm3309, %v3301, %v3306
        %v3311 = vrsqrt.pop %v3276
        %v3312 = vmul.f32 %v3311, %v3276
        %v3313 = vmul.f32 %v3312, %v3311
        %v3314 = vmul.f32 0.5, %v3313
        %v3315 = vsub.f32 1.5, %v3314
        %v3316 = vmul.f32 %v3311, %v3315
        %vm3317 = vweird.f32 %v3276
        %vm3318 = vweird.f32 %v3311
        %vm3319 = vmor %vm3317, %vm3318
        %v3320 = vsel %vm3319, %v3311, %v3316
        %v3321 = vrsqrt.pop %v3277
        %v3322 = vmul.f32 %v3321, %v3277
        %v3323 = vmul.f32 %v3322, %v3321
        %v3324 = vmul.f32 0.5, %v3323
        %v3325 = vsub.f32 1.5, %v3324
        %v3326 = vmul.f32 %v3321, %v3325
        %vm3327 = vweird.f32 %v3277
        %vm3328 = vweird.f32 %v3321
        %vm3329 = vmor %vm3327, %vm3328
        %v3330 = vsel %vm3329, %v3321, %v3326
        %v3331 = vrsqrt.pop %v3278
        %v3332 = vmul.f32 %v3331, %v3278
        %v3333 = vmul.f32 %v3332, %v3331
        %v3334 = vmul.f32 0.5, %v3333
        %v3335 = vsub.f32 1.5, %v3334
        %v3336 = vmul.f32 %v3331, %v3335
        %vm3337 = vweird.f32 %v3278
        %vm3338 = vweird.f32 %v3331
        %vm3339 = vmor %vm3337, %vm3338
        %v3340 = vsel %vm3339, %v3331, %v3336
        %v3341 = vrsqrt.pop %v3279
        %v3342 = vmul.f32 %v3341, %v3279
        %v3343 = vmul.f32 %v3342, %v3341
        %v3344 = vmul.f32 0.5, %v3343
        %v3345 = vsub.f32 1.5, %v3344
        %v3346 = vmul.f32 %v3341, %v3345
        %vm3347 = vweird.f32 %v3279
        %vm3348 = vweird.f32 %v3341
        %vm3349 = vmor %vm3347, %vm3348
        %v3350 = vsel %vm3349, %v3341, %v3346
        %v3351 = vrsqrt.pop %v3280
        %v3352 = vmul.f32 %v3351, %v3280
        %v3353 = vmul.f32 %v3352, %v3351
        %v3354 = vmul.f32 0.5, %v3353
        %v3355 = vsub.f32 1.5, %v3354
        %v3356 = vmul.f32 %v3351, %v3355
        %vm3357 = vweird.f32 %v3280
        %vm3358 = vweird.f32 %v3351
        %vm3359 = vmor %vm3357, %vm3358
        %v3360 = vsel %vm3359, %v3351, %v3356
        %v3361 = vmul.f32 %v3225, %v3290
        %v3362 = vmul.f32 %v3226, %v3300
        %v3363 = vmul.f32 %v3227, %v3310
        %v3364 = vmul.f32 %v3228, %v3320
        %v3365 = vmul.f32 %v3229, %v3330
        %v3366 = vmul.f32 %v3230, %v3340
        %v3367 = vmul.f32 %v3231, %v3350
        %v3368 = vmul.f32 %v3232, %v3360
        %v3369 = vperm.slane %v3191, 0
        %v3370 = vmul.f32 %v3361, %v3369
        %v3371 = vmul.f32 %v3362, %v3369
        %v3372 = vmul.f32 %v3363, %v3369
        %v3373 = vmul.f32 %v3364, %v3369
        %v3374 = vmul.f32 %v3365, %v3369
        %v3375 = vmul.f32 %v3366, %v3369
        %v3376 = vmul.f32 %v3367, %v3369
        %v3377 = vmul.f32 %v3368, %v3369
        %v3378 = vperm.slane %v3192, 0
        %v3379 = vadd.f32 %v3370, %v3378
        %v3380 = vadd.f32 %v3371, %v3378
        %v3381 = vadd.f32 %v3372, %v3378
        %v3382 = vadd.f32 %v3373, %v3378
        %v3383 = vadd.f32 %v3374, %v3378
        %v3384 = vadd.f32 %v3375, %v3378
        %v3385 = vadd.f32 %v3376, %v3378
        %v3386 = vadd.f32 %v3377, %v3378
        %v3387 = vld [vmem:[%s2 + $0xf8] sm:$0xf]
        %v3388 = vld [vmem:[%s2 + $0xfc] sm:$0xf]
        %v3389 = vld [vmem:[%s2 + $0x100] sm:$0xf]
        %v3390 = vld [vmem:[%s2 + $0x104] sm:$0xf]
        %v3391 = vld [vmem:[%s3 + $0x168] sm:$0x1]
        %v3392 = vld [vmem:[%s2 + $0x108] sm:$0xf]
        %v3393 = vld [vmem:[%s2 + $0x10c] sm:$0xf]
        %v3394 = vld [vmem:[%s2 + $0x110] sm:$0xf]
        %v3395 = vld [vmem:[%s2 + $0x114] sm:$0xf]
        %v3396 = vld [vmem:[%s3 + $0x170] sm:$0x1]
        %v3397 = vperm.slane %v3391, 0
        %v3402 = vunpack.c.l.b16 %v3387
        %v3403 = vunpack.c.l.b16 %v3388
        %v3404 = vunpack.c.l.b16 %v3389
        %v3405 = vunpack.c.l.b16 %v3390
        %v3406 = vpack.c.b16 %v3403, %v3402
        %v3407 = vpack.c.b16 %v3405, %v3404
        %3410 = vmatpush.bf16.msra.mxu0 0
        %3411 = vmatpush.bf16.msra.mxu0 0
        %3412 = vmatpush.bf16.msra.mxu0 0
        %3413 = vmatpush.bf16.msra.mxu0 0
        %3414 = vmatpush.bf16.msra.mxu0 0
        %3415 = vmatpush.bf16.msra.mxu0 0
        %3416 = vmatpush.bf16.msra.mxu0 %v3407
        %3417 = vmatpush.bf16.msra.mxu0 %v3406
        %3418 = vmatmul.bf16.gmra.mxu0 %v2666
        %v3419 = vpop.f32.mrf.mxu0
        %v3420 = vadd.f32 %v3397, %v3419
        %v3421 = vpop.f32.mrf.mxu0
        %3422 = vdwg.mxu0
        %3423 = vrot.lane.b32.xlu0 %v3406, 64
        %v3424 = vpop.permute.xlu0 %3423
        %3425 = vrot.lane.b32.xlu0 %v3407, 64
        %v3426 = vpop.permute.xlu0 %3425
        %3430 = vrot.lane.b32.xlu0 %v3397, 64
        %v3431 = vpop.permute.xlu0 %3430
        %3433 = vmatpush.bf16.msra.mxu0 0
        %3434 = vmatpush.bf16.msra.mxu0 0
        %3435 = vmatpush.bf16.msra.mxu0 0
        %3436 = vmatpush.bf16.msra.mxu0 0
        %3437 = vmatpush.bf16.msra.mxu0 0
        %3438 = vmatpush.bf16.msra.mxu0 0
        %3439 = vmatpush.bf16.msra.mxu0 %v3426
        %3440 = vmatpush.bf16.msra.mxu0 %v3424
        %3441 = vmatmul.bf16.gmra.mxu0 %v2692
        %v3442 = vpop.f32.mrf.mxu0
        %v3443 = vadd.f32 %v3431, %v3442
        %v3444 = vpop.f32.mrf.mxu0
        %3445 = vdwg.mxu0
        %v3446 = vpack.c.bf16 %v3420, %v3420
        %3448 = vrot.lane.b32.xlu0 %v3446, 96
        %v3449 = vpop.permute.xlu0 %3448
        %v3451 = vsel %vm673, %v3446, 0
        %v3454 = vsel %vm673, %v3449, 0
        %3456 = vmatpush.bf16.xpose.msra.mxu0 0
        %3457 = vmatpush.bf16.xpose.msra.mxu0 0
        %3458 = vmatpush.bf16.xpose.msra.mxu0 0
        %3459 = vmatpush.bf16.xpose.msra.mxu0 0
        %3460 = vmatpush.bf16.xpose.msra.mxu0 0
        %3461 = vmatpush.bf16.xpose.msra.mxu0 0
        %3462 = vmatpush.bf16.xpose.msra.mxu0 0
        %3463 = vmatpush.bf16.xpose.msra.mxu0 %v3454
        %3464 = vmatmul.bf16.gmra.mxu0 %v3451
        %v3465 = vpop.f32.mrf.mxu0
        %v3466 = vadd.f32 0.0, %v3465
        %v3467 = vpop.f32.mrf.mxu0
        %3468 = vdwg.mxu0
        %v3469 = vsel %vm1960, %v3466, -inf
        %3470 = vmax.xlane.f32.xlu0 %v3469
        %v3471 = vpop.xlane.xlu0 %3470
        %v3472 = vsub.f32 %v3466, %v3471
        %v3473 = vmul.f32 %v3472, 1.442695
        %v3474 = vpow.pop %v3473
        %v3475 = vsel %vm1960, %v3474, 0.0
        %3476 = vadd.xlane.f32.xlu0 %v3475
        %v3477 = vpop.xlane.xlu0 %3476
        %v3478 = vrcp.pop %v3477
        %v3479 = vmul.f32 %v3474, %v3478
        %v3480 = vpack.c.bf16 %v3479, %v3479
        %v3481 = vpack.c.bf16 %v3443, %v3443
        %v3483 = vsel %vm1975, %v3480, 0
        %v3486 = vand.u32 %v3481, %v1982
        %3488 = vmatpush.bf16.msra.mxu0 0
        %3489 = vmatpush.bf16.msra.mxu0 0
        %3490 = vmatpush.bf16.msra.mxu0 0
        %3491 = vmatpush.bf16.msra.mxu0 0
        %3492 = vmatpush.bf16.msra.mxu0 0
        %3493 = vmatpush.bf16.msra.mxu0 0
        %3494 = vmatpush.bf16.msra.mxu0 0
        %3495 = vmatpush.bf16.msra.mxu0 %v3486
        %3496 = vmatmul.bf16.gmra.mxu0 %v3483
        %v3497 = vpop.f32.mrf.mxu0
        %v3498 = vadd.f32 0.0, %v3497
        %v3499 = vpop.f32.mrf.mxu0
        %3500 = vdwg.mxu0
        %3501 = vrot.lane.b32.xlu0 %v3446, 112
        %v3502 = vpop.permute.xlu0 %3501
        %3503 = vrot.lane.b32.xlu0 %v3446, 80
        %v3504 = vpop.permute.xlu0 %3503
        %v3506 = vsel %vm673, %v3502, 0
        %v3509 = vsel %vm673, %v3504, 0
        %3511 = vmatpush.bf16.xpose.msra.mxu0 0
        %3512 = vmatpush.bf16.xpose.msra.mxu0 0
        %3513 = vmatpush.bf16.xpose.msra.mxu0 0
        %3514 = vmatpush.bf16.xpose.msra.mxu0 0
        %3515 = vmatpush.bf16.xpose.msra.mxu0 0
        %3516 = vmatpush.bf16.xpose.msra.mxu0 0
        %3517 = vmatpush.bf16.xpose.msra.mxu0 0
        %3518 = vmatpush.bf16.xpose.msra.mxu0 %v3509
        %3519 = vmatmul.bf16.gmra.mxu0 %v3506
        %v3520 = vpop.f32.mrf.mxu0
        %v3521 = vadd.f32 0.0, %v3520
        %v3522 = vpop.f32.mrf.mxu0
        %3523 = vdwg.mxu0
        %v3524 = vsel %vm1960, %v3521, -inf
        %3525 = vmax.xlane.f32.xlu0 %v3524
        %v3526 = vpop.xlane.xlu0 %3525
        %v3527 = vsub.f32 %v3521, %v3526
        %v3528 = vmul.f32 %v3527, 1.442695
        %v3529 = vpow.pop %v3528
        %v3530 = vsel %vm1960, %v3529, 0.0
        %3531 = vadd.xlane.f32.xlu0 %v3530
        %v3532 = vpop.xlane.xlu0 %3531
        %v3533 = vrcp.pop %v3532
        %v3534 = vmul.f32 %v3529, %v3533
        %v3535 = vpack.c.bf16 %v3534, %v3534
        %3537 = vrot.lane.b32.xlu0 %v3481, 112
        %v3538 = vpop.permute.xlu0 %3537
        %v3540 = vsel %vm1975, %v3535, 0
        %v3543 = vand.u32 %v3538, %v1982
        %3545 = vmatpush.bf16.msra.mxu0 0
        %3546 = vmatpush.bf16.msra.mxu0 0
        %3547 = vmatpush.bf16.msra.mxu0 0
        %3548 = vmatpush.bf16.msra.mxu0 0
        %3549 = vmatpush.bf16.msra.mxu0 0
        %3550 = vmatpush.bf16.msra.mxu0 0
        %3551 = vmatpush.bf16.msra.mxu0 0
        %3552 = vmatpush.bf16.msra.mxu0 %v3543
        %3553 = vmatmul.bf16.gmra.mxu0 %v3540
        %v3554 = vpop.f32.mrf.mxu0
        %v3555 = vadd.f32 0.0, %v3554
        %v3556 = vpop.f32.mrf.mxu0
        %3557 = vdwg.mxu0
        %3559 = vrot.lane.b32.xlu0 %v3555, 16
        %v3560 = vpop.permute.xlu0 %3559
        %v3562 = vsel %vm673, %v3498, %v3560
        %v3563 = vpack.c.bf16 %v3562, %v3562
        %v3564 = vperm.slane %v3396, 0
        %v3569 = vunpack.c.l.b16 %v3392
        %v3570 = vunpack.c.l.b16 %v3393
        %v3571 = vunpack.c.l.b16 %v3394
        %v3572 = vunpack.c.l.b16 %v3395
        %v3573 = vpack.c.b16 %v3570, %v3569
        %v3574 = vpack.c.b16 %v3572, %v3571
        %v3578 = vsel %vm387, %v3563, 0
        %3580 = vmatpush.bf16.msra.mxu0 0
        %3581 = vmatpush.bf16.msra.mxu0 0
        %3582 = vmatpush.bf16.msra.mxu0 0
        %3583 = vmatpush.bf16.msra.mxu0 0
        %3584 = vmatpush.bf16.msra.mxu0 0
        %3585 = vmatpush.bf16.msra.mxu0 0
        %3586 = vmatpush.bf16.msra.mxu0 %v3574
        %3587 = vmatpush.bf16.msra.mxu0 %v3573
        %3588 = vmatmul.bf16.gmra.mxu0 %v3578
        %v3589 = vpop.f32.mrf.mxu0
        %v3590 = vadd.f32 %v3564, %v3589
        %v3591 = vpop.f32.mrf.mxu0
        %3592 = vdwg.mxu0
        %v3593 = vadd.f32 %v2602, %v3590
        %v3594 = vld [vmem:[%s3 + $0x178] sm:$0x1]
        %v3595 = vld [vmem:[%s3 + $0x180] sm:$0x1]
        %v3596 = vsel %vm2092, %v3593, 0.0
        %3597 = vadd.xlane.f32.xlu0 %v3596
        %v3598 = vpop.xlane.xlu0 %3597
        %v3599 = vmul.f32 %v3598, %v418
        %v3600 = vsub.f32 %v3593, %v3599
        %v3601 = vmul.f32 %v3600, %v3600
        %v3602 = vsel %vm2092, %v3601, 0.0
        %3603 = vadd.xlane.f32.xlu0 %v3602
        %v3604 = vpop.xlane.xlu0 %3603
        %v3605 = vmul.f32 %v3604, %v418
        %v3606 = vadd.f32 %v3605, 1e-05
        %v3607 = vrsqrt.pop %v3606
        %v3608 = vmul.f32 %v3607, %v3606
        %v3609 = vmul.f32 %v3608, %v3607
        %v3610 = vmul.f32 0.5, %v3609
        %v3611 = vsub.f32 1.5, %v3610
        %v3612 = vmul.f32 %v3607, %v3611
        %vm3613 = vweird.f32 %v3606
        %vm3614 = vweird.f32 %v3607
        %vm3615 = vmor %vm3613, %vm3614
        %v3616 = vsel %vm3615, %v3607, %v3612
        %v3617 = vmul.f32 %v3600, %v3616
        %v3618 = vperm.slane %v3594, 0
        %v3619 = vmul.f32 %v3617, %v3618
        %v3620 = vperm.slane %v3595, 0
        %v3621 = vadd.f32 %v3619, %v3620
        %v3622 = vadd.f32 %v3621, %v1878
        %v3623 = vadd.f32 %v3379, %v1889
        %v3624 = vadd.f32 %v3380, %v1890
        %v3625 = vadd.f32 %v3381, %v1891
        %v3626 = vadd.f32 %v3382, %v1892
        %v3627 = vadd.f32 %v3383, %v1893
        %v3628 = vadd.f32 %v3384, %v1894
        %v3629 = vadd.f32 %v3385, %v1895
        %v3630 = vadd.f32 %v3386, %v1896
        %v3631 = vld [vmem:[%s2 + $0x118] sm:$0xf]
        %v3632 = vld [vmem:[%s2 + $0x11c] sm:$0xf]
        %v3633 = vld [vmem:[%s2 + $0x120] sm:$0xf]
        %v3634 = vld [vmem:[%s2 + $0x124] sm:$0xf]
        %v3635 = vld [vmem:[%s3 + $0x188] sm:$0x1]
        %v3636 = vld [vmem:[%s2 + $0x128] sm:$0xf]
        %v3637 = vld [vmem:[%s2 + $0x12c] sm:$0xf]
        %v3638 = vld [vmem:[%s3 + $0x190] sm:$0x1]
        %v3639 = vpack.c.bf16 %v3622, %v3622
        %v3640 = vperm.slane %v3635, 0
        %v3645 = vunpack.c.l.b16 %v3631
        %v3646 = vunpack.c.l.b16 %v3632
        %v3647 = vunpack.c.l.b16 %v3633
        %v3648 = vunpack.c.l.b16 %v3634
        %v3649 = vpack.c.b16 %v3646, %v3645
        %v3650 = vpack.c.b16 %v3648, %v3647
        %v3654 = vsel %vm387, %v3639, 0
        %3656 = vmatpush.bf16.msra.mxu0 0
        %3657 = vmatpush.bf16.msra.mxu0 0
        %3658 = vmatpush.bf16.msra.mxu0 0
        %3659 = vmatpush.bf16.msra.mxu0 0
        %3660 = vmatpush.bf16.msra.mxu0 0
        %3661 = vmatpush.bf16.msra.mxu0 0
        %3662 = vmatpush.bf16.msra.mxu0 %v3650
        %3663 = vmatpush.bf16.msra.mxu0 %v3649
        %3664 = vmatmul.bf16.gmra.mxu0 %v3654
        %v3665 = vpop.f32.mrf.mxu0
        %v3666 = vadd.f32 %v3640, %v3665
        %v3667 = vpop.f32.mrf.mxu0
        %3668 = vdwg.mxu0
        %v3669 = vpack.c.bf16 %v3624, %v3623
        %v3670 = vpack.c.bf16 %v3626, %v3625
        %v3671 = vpack.c.bf16 %v3628, %v3627
        %v3672 = vpack.c.bf16 %v3630, %v3629
        %3673 = vrot.lane.b32.xlu0 %v3649, 112
        %v3674 = vpop.permute.xlu0 %3673
        %3675 = vrot.lane.b32.xlu0 %v3650, 112
        %v3676 = vpop.permute.xlu0 %3675
        %3680 = vrot.lane.b32.xlu0 %v3640, 112
        %v3681 = vpop.permute.xlu0 %3680
        %v3684 = vsel %vm387, %v3669, 0
        %v3687 = vsel %vm387, %v3670, 0
        %v3690 = vsel %vm387, %v3671, 0
        %v3693 = vsel %vm387, %v3672, 0
        %3695 = vmatpush.bf16.msra.mxu0 0
        %3696 = vmatpush.bf16.msra.mxu0 0
        %3697 = vmatpush.bf16.msra.mxu0 0
        %3698 = vmatpush.bf16.msra.mxu0 0
        %3699 = vmatpush.bf16.msra.mxu0 0
        %3700 = vmatpush.bf16.msra.mxu0 0
        %3701 = vmatpush.bf16.msra.mxu0 %v3676
        %3702 = vmatpush.bf16.msra.mxu0 %v3674
        %3703 = vmatmul.bf16.gmra.mxu0 %v3684
        %v3704 = vpop.f32.mrf.mxu0
        %v3705 = vadd.f32 %v3681, %v3704
        %v3706 = vpop.f32.mrf.mxu0
        %v3707 = vadd.f32 %v3681, %v3706
        %3708 = vmatmul.bf16.gmra.mxu0 %v3687
        %v3709 = vpop.f32.mrf.mxu0
        %v3710 = vadd.f32 %v3681, %v3709
        %v3711 = vpop.f32.mrf.mxu0
        %v3712 = vadd.f32 %v3681, %v3711
        %3713 = vmatmul.bf16.gmra.mxu0 %v3690
        %v3714 = vpop.f32.mrf.mxu0
        %v3715 = vadd.f32 %v3681, %v3714
        %v3716 = vpop.f32.mrf.mxu0
        %v3717 = vadd.f32 %v3681, %v3716
        %3718 = vmatmul.bf16.gmra.mxu0 %v3693
        %v3719 = vpop.f32.mrf.mxu0
        %v3720 = vadd.f32 %v3681, %v3719
        %v3721 = vpop.f32.mrf.mxu0
        %v3722 = vadd.f32 %v3681, %v3721
        %3723 = vdwg.mxu0
        %v3724 = vpack.c.bf16 %v3380, %v3379
        %v3725 = vpack.c.bf16 %v3382, %v3381
        %v3726 = vpack.c.bf16 %v3384, %v3383
        %v3727 = vpack.c.bf16 %v3386, %v3385
        %3728 = vrot.lane.b32.xlu0 %v3649, 96
        %v3729 = vpop.permute.xlu0 %3728
        %3730 = vrot.lane.b32.xlu0 %v3650, 96
        %v3731 = vpop.permute.xlu0 %3730
        %3734 = vrot.lane.b32.xlu0 %v3640, 96
        %v3735 = vpop.permute.xlu0 %3734
        %v3738 = vsel %vm387, %v3724, 0
        %v3741 = vsel %vm387, %v3725, 0
        %v3744 = vsel %vm387, %v3726, 0
        %v3747 = vsel %vm387, %v3727, 0
        %3749 = vmatpush.bf16.msra.mxu0 0
        %3750 = vmatpush.bf16.msra.mxu0 0
        %3751 = vmatpush.bf16.msra.mxu0 0
        %3752 = vmatpush.bf16.msra.mxu0 0
        %3753 = vmatpush.bf16.msra.mxu0 0
        %3754 = vmatpush.bf16.msra.mxu0 0
        %3755 = vmatpush.bf16.msra.mxu0 %v3731
        %3756 = vmatpush.bf16.msra.mxu0 %v3729
        %3757 = vmatmul.bf16.gmra.mxu0 %v3738
        %v3758 = vpop.f32.mrf.mxu0
        %v3759 = vadd.f32 %v3735, %v3758
        %v3760 = vpop.f32.mrf.mxu0
        %v3761 = vadd.f32 %v3735, %v3760
        %3762 = vmatmul.bf16.gmra.mxu0 %v3741
        %v3763 = vpop.f32.mrf.mxu0
        %v3764 = vadd.f32 %v3735, %v3763
        %v3765 = vpop.f32.mrf.mxu0
        %v3766 = vadd.f32 %v3735, %v3765
        %3767 = vmatmul.bf16.gmra.mxu0 %v3744
        %v3768 = vpop.f32.mrf.mxu0
        %v3769 = vadd.f32 %v3735, %v3768
        %v3770 = vpop.f32.mrf.mxu0
        %v3771 = vadd.f32 %v3735, %v3770
        %3772 = vmatmul.bf16.gmra.mxu0 %v3747
        %v3773 = vpop.f32.mrf.mxu0
        %v3774 = vadd.f32 %v3735, %v3773
        %v3775 = vpop.f32.mrf.mxu0
        %v3776 = vadd.f32 %v3735, %v3775
        %3777 = vdwg.mxu0
        %v3778 = vpack.c.bf16 %v3666, %v3666
        %v3779 = vpack.c.bf16 %v3707, %v3705
        %v3780 = vpack.c.bf16 %v3712, %v3710
        %v3781 = vpack.c.bf16 %v3717, %v3715
        %v3782 = vpack.c.bf16 %v3722, %v3720
        %v3784 = vsel %vm2280, %v3778, 0
        %v3787 = vsel %vm2280, %v3779, 0
        %v3790 = vsel %vm2280, %v3780, 0
        %v3793 = vsel %vm2280, %v3781, 0
        %v3796 = vsel %vm2280, %v3782, 0
        %3798 = vmatpush.bf16.xpose.msra.mxu0 0
        %3799 = vmatpush.bf16.xpose.msra.mxu0 0
        %3800 = vmatpush.bf16.xpose.msra.mxu0 0
        %3801 = vmatpush.bf16.xpose.msra.mxu0 0
        %3802 = vmatpush.bf16.xpose.msra.mxu0 %v3796
        %3803 = vmatpush.bf16.xpose.msra.mxu0 %v3793
        %3804 = vmatpush.bf16.xpose.msra.mxu0 %v3790
        %3805 = vmatpush.bf16.xpose.msra.mxu0 %v3787
        %3806 = vmatmul.bf16.gmra.mxu0 %v3784
        %v3807 = vpop.f32.mrf.mxu0
        %v3808 = vadd.f32 0.0, %v3807
        %v3809 = vpop.f32.mrf.mxu0
        %3810 = vdwg.mxu0
        %v3811 = vsel %vm2309, %v3808, -inf
        %3812 = vmax.xlane.f32.xlu0 %v3811
        %v3813 = vpop.xlane.xlu0 %3812
        %v3814 = vsub.f32 %v3808, %v3813
        %v3815 = vmul.f32 %v3814, 1.442695
        %v3816 = vpow.pop %v3815
        %v3817 = vsel %vm2309, %v3816, 0.0
        %3818 = vadd.xlane.f32.xlu0 %v3817
        %v3819 = vpop.xlane.xlu0 %3818
        %v3820 = vrcp.pop %v3819
        %v3821 = vmul.f32 %v3816, %v3820
        %v3822 = vpack.c.bf16 %v3821, %v3821
        %v3823 = vpack.c.bf16 %v3761, %v3759
        %v3824 = vpack.c.bf16 %v3766, %v3764
        %v3825 = vpack.c.bf16 %v3771, %v3769
        %v3826 = vpack.c.bf16 %v3776, %v3774
        %v3828 = vsel %vm727, %v3822, 0
        %3830 = vmatpush.bf16.msra.mxu0 0
        %3831 = vmatpush.bf16.msra.mxu0 0
        %3832 = vmatpush.bf16.msra.mxu0 0
        %3833 = vmatpush.bf16.msra.mxu0 0
        %3834 = vmatpush.bf16.msra.mxu0 %v3826
        %3835 = vmatpush.bf16.msra.mxu0 %v3825
        %3836 = vmatpush.bf16.msra.mxu0 %v3824
        %3837 = vmatpush.bf16.msra.mxu0 %v3823
        %3838 = vmatmul.bf16.gmra.mxu0 %v3828
        %v3839 = vpop.f32.mrf.mxu0
        %v3840 = vadd.f32 0.0, %v3839
        %v3841 = vpop.f32.mrf.mxu0
        %3842 = vdwg.mxu0
        %3844 = vrot.lane.b32.xlu0 %v3778, 120
        %v3845 = vpop.permute.xlu0 %3844
        %3850 = vrot.lane.b32.xlu0 %v3779, 120
        %v3851 = vpop.permute.xlu0 %3850
        %3852 = vrot.lane.b32.xlu0 %v3780, 120
        %v3853 = vpop.permute.xlu0 %3852
        %3854 = vrot.lane.b32.xlu0 %v3781, 120
        %v3855 = vpop.permute.xlu0 %3854
        %3856 = vrot.lane.b32.xlu0 %v3782, 120
        %v3857 = vpop.permute.xlu0 %3856
        %v3859 = vsel %vm2280, %v3845, 0
        %v3862 = vsel %vm2280, %v3851, 0
        %v3865 = vsel %vm2280, %v3853, 0
        %v3868 = vsel %vm2280, %v3855, 0
        %v3871 = vsel %vm2280, %v3857, 0
        %3873 = vmatpush.bf16.xpose.msra.mxu0 0
        %3874 = vmatpush.bf16.xpose.msra.mxu0 0
        %3875 = vmatpush.bf16.xpose.msra.mxu0 0
        %3876 = vmatpush.bf16.xpose.msra.mxu0 0
        %3877 = vmatpush.bf16.xpose.msra.mxu0 %v3871
        %3878 = vmatpush.bf16.xpose.msra.mxu0 %v3868
        %3879 = vmatpush.bf16.xpose.msra.mxu0 %v3865
        %3880 = vmatpush.bf16.xpose.msra.mxu0 %v3862
        %3881 = vmatmul.bf16.gmra.mxu0 %v3859
        %v3882 = vpop.f32.mrf.mxu0
        %v3883 = vadd.f32 0.0, %v3882
        %v3884 = vpop.f32.mrf.mxu0
        %3885 = vdwg.mxu0
        %v3886 = vsel %vm2309, %v3883, -inf
        %3887 = vmax.xlane.f32.xlu0 %v3886
        %v3888 = vpop.xlane.xlu0 %3887
        %v3889 = vsub.f32 %v3883, %v3888
        %v3890 = vmul.f32 %v3889, 1.442695
        %v3891 = vpow.pop %v3890
        %v3892 = vsel %vm2309, %v3891, 0.0
        %3893 = vadd.xlane.f32.xlu0 %v3892
        %v3894 = vpop.xlane.xlu0 %3893
        %v3895 = vrcp.pop %v3894
        %v3896 = vmul.f32 %v3891, %v3895
        %v3897 = vpack.c.bf16 %v3896, %v3896
        %3902 = vrot.lane.b32.xlu0 %v3823, 120
        %v3903 = vpop.permute.xlu0 %3902
        %3904 = vrot.lane.b32.xlu0 %v3824, 120
        %v3905 = vpop.permute.xlu0 %3904
        %3906 = vrot.lane.b32.xlu0 %v3825, 120
        %v3907 = vpop.permute.xlu0 %3906
        %3908 = vrot.lane.b32.xlu0 %v3826, 120
        %v3909 = vpop.permute.xlu0 %3908
        %v3915 = vsel %vm727, %v3897, 0
        %3917 = vmatpush.bf16.msra.mxu0 0
        %3918 = vmatpush.bf16.msra.mxu0 0
        %3919 = vmatpush.bf16.msra.mxu0 0
        %3920 = vmatpush.bf16.msra.mxu0 0
        %3921 = vmatpush.bf16.msra.mxu0 %v3909
        %3922 = vmatpush.bf16.msra.mxu0 %v3907
        %3923 = vmatpush.bf16.msra.mxu0 %v3905
        %3924 = vmatpush.bf16.msra.mxu0 %v3903
        %3925 = vmatmul.bf16.gmra.mxu0 %v3915
        %v3926 = vpop.f32.mrf.mxu0
        %v3927 = vadd.f32 0.0, %v3926
        %v3928 = vpop.f32.mrf.mxu0
        %3929 = vdwg.mxu0
        %3931 = vrot.lane.b32.xlu0 %v3927, 8
        %v3932 = vpop.permute.xlu0 %3931
        %v3934 = vsel %vm2280, %v3840, %v3932
        %v3935 = vpack.c.bf16 %v3934, %v3934
        %v3936 = vperm.slane %v3638, 0
        %v3939 = vunpack.c.l.b16 %v3636
        %v3940 = vunpack.c.l.b16 %v3637
        %v3941 = vpack.c.b16 %v3940, %v3939
        %v3944 = vsel %vm673, %v3935, 0
        %3946 = vmatpush.bf16.msra.mxu0 0
        %3947 = vmatpush.bf16.msra.mxu0 0
        %3948 = vmatpush.bf16.msra.mxu0 0
        %3949 = vmatpush.bf16.msra.mxu0 0
        %3950 = vmatpush.bf16.msra.mxu0 0
        %3951 = vmatpush.bf16.msra.mxu0 0
        %3952 = vmatpush.bf16.msra.mxu0 0
        %3953 = vmatpush.bf16.msra.mxu0 %v3941
        %3954 = vmatmul.bf16.gmra.mxu0 %v3944
        %v3955 = vpop.f32.mrf.mxu0
        %v3956 = vadd.f32 %v3936, %v3955
        %v3957 = vpop.f32.mrf.mxu0
        %3958 = vdwg.mxu0
        %v3959 = vadd.f32 %v3621, %v3956
        %v3960 = vld [vmem:[%s3 + $0x198] sm:$0x1]
        %v3961 = vld [vmem:[%s3 + $0x1a0] sm:$0x1]
        %v3962 = vsel %vm2092, %v3959, 0.0
        %3963 = vadd.xlane.f32.xlu0 %v3962
        %v3964 = vpop.xlane.xlu0 %3963
        %v3965 = vmul.f32 %v3964, %v418
        %v3966 = vsub.f32 %v3959, %v3965
        %v3967 = vmul.f32 %v3966, %v3966
        %v3968 = vsel %vm2092, %v3967, 0.0
        %3969 = vadd.xlane.f32.xlu0 %v3968
        %v3970 = vpop.xlane.xlu0 %3969
        %v3971 = vmul.f32 %v3970, %v418
        %v3972 = vadd.f32 %v3971, 1e-05
        %v3973 = vrsqrt.pop %v3972
        %v3974 = vmul.f32 %v3973, %v3972
        %v3975 = vmul.f32 %v3974, %v3973
        %v3976 = vmul.f32 0.5, %v3975
        %v3977 = vsub.f32 1.5, %v3976
        %v3978 = vmul.f32 %v3973, %v3977
        %vm3979 = vweird.f32 %v3972
        %vm3980 = vweird.f32 %v3973
        %vm3981 = vmor %vm3979, %vm3980
        %v3982 = vsel %vm3981, %v3973, %v3978
        %v3983 = vmul.f32 %v3966, %v3982
        %v3984 = vperm.slane %v3960, 0
        %v3985 = vmul.f32 %v3983, %v3984
        %v3986 = vperm.slane %v3961, 0
        %v3987 = vadd.f32 %v3985, %v3986
        %v3988 = vld [vmem:[%s2 + $0x130] sm:$0xf]
        %v3989 = vld [vmem:[%s2 + $0x134] sm:$0xf]
        %v3990 = vld [vmem:[%s2 + $0x138] sm:$0xf]
        %v3991 = vld [vmem:[%s2 + $0x13c] sm:$0xf]
        %v3992 = vpack.c.bf16 %v3987, %v3987
        %v3993 = vld [vmem:[%s3 + $0x1a8] sm:$0x1]
        %v3994 = vperm.slane %v3993, 0
        %v3999 = vunpack.c.l.b16 %v3988
        %v4000 = vunpack.c.l.b16 %v3989
        %v4001 = vunpack.c.l.b16 %v3990
        %v4002 = vunpack.c.l.b16 %v3991
        %v4003 = vpack.c.b16 %v4000, %v3999
        %v4004 = vpack.c.b16 %v4002, %v4001
        %v4008 = vsel %vm387, %v3992, 0
        %4010 = vmatpush.bf16.msra.mxu0 0
        %4011 = vmatpush.bf16.msra.mxu0 0
        %4012 = vmatpush.bf16.msra.mxu0 0
        %4013 = vmatpush.bf16.msra.mxu0 0
        %4014 = vmatpush.bf16.msra.mxu0 0
        %4015 = vmatpush.bf16.msra.mxu0 0
        %4016 = vmatpush.bf16.msra.mxu0 %v4004
        %4017 = vmatpush.bf16.msra.mxu0 %v4003
        %4018 = vmatmul.bf16.gmra.mxu0 %v4008
        %v4019 = vpop.f32.mrf.mxu0
        %v4020 = vadd.f32 %v3994, %v4019
        %v4021 = vpop.f32.mrf.mxu0
        %4022 = vdwg.mxu0
        %v4023 = vmax.f32 %v4020, 0.0
        %v4024 = vld [vmem:[%s2 + $0x140] sm:$0xf]
        %v4025 = vld [vmem:[%s2 + $0x144] sm:$0xf]
        %v4026 = vld [vmem:[%s2 + $0x148] sm:$0xf]
        %v4027 = vld [vmem:[%s2 + $0x14c] sm:$0xf]
        %v4028 = vld [vmem:[%s2 + $0x150] sm:$0xf]
        %v4029 = vld [vmem:[%s2 + $0x154] sm:$0xf]
        %v4030 = vld [vmem:[%s2 + $0x158] sm:$0xf]
        %v4031 = vld [vmem:[%s2 + $0x15c] sm:$0xf]
        %v4032 = vpack.c.bf16 %v4023, %v4023
        %v4033 = vld [vmem:[%s3 + $0x1b0] sm:$0x1]
        %v4034 = vperm.slane %v4033, 0
        %v4043 = vunpack.c.l.b16 %v4024
        %v4044 = vunpack.c.l.b16 %v4025
        %v4045 = vunpack.c.l.b16 %v4026
        %v4046 = vunpack.c.l.b16 %v4027
        %v4047 = vunpack.c.l.b16 %v4028
        %v4048 = vunpack.c.l.b16 %v4029
        %v4049 = vunpack.c.l.b16 %v4030
        %v4050 = vunpack.c.l.b16 %v4031
        %v4051 = vpack.c.b16 %v4044, %v4043
        %v4052 = vpack.c.b16 %v4046, %v4045
        %v4053 = vpack.c.b16 %v4048, %v4047
        %v4054 = vpack.c.b16 %v4050, %v4049
        %v4060 = vsel %vm727, %v4032, 0
        %4062 = vmatpush.bf16.msra.mxu0 0
        %4063 = vmatpush.bf16.msra.mxu0 0
        %4064 = vmatpush.bf16.msra.mxu0 0
        %4065 = vmatpush.bf16.msra.mxu0 0
        %4066 = vmatpush.bf16.msra.mxu0 %v4054
        %4067 = vmatpush.bf16.msra.mxu0 %v4053
        %4068 = vmatpush.bf16.msra.mxu0 %v4052
        %4069 = vmatpush.bf16.msra.mxu0 %v4051
        %4070 = vmatmul.bf16.gmra.mxu0 %v4060
        %v4071 = vpop.f32.mrf.mxu0
        %v4072 = vadd.f32 %v4034, %v4071
        %v4073 = vpop.f32.mrf.mxu0
        %4074 = vdwg.mxu0
        %v4075 = vadd.f32 %v3987, %v4072
        %v4076 = vld [vmem:[%s3 + $0x1b8] sm:$0x1]
        %v4077 = vld [vmem:[%s3 + $0x1c0] sm:$0x1]
        %v4078 = vsel %vm2092, %v4075, 0.0
        %4079 = vadd.xlane.f32.xlu0 %v4078
        %v4080 = vpop.xlane.xlu0 %4079
        %v4081 = vmul.f32 %v4080, %v418
        %v4082 = vsub.f32 %v4075, %v4081
        %v4083 = vmul.f32 %v4082, %v4082
        %v4084 = vsel %vm2092, %v4083, 0.0
        %4085 = vadd.xlane.f32.xlu0 %v4084
        %v4086 = vpop.xlane.xlu0 %4085
        %v4087 = vmul.f32 %v4086, %v418
        %v4088 = vadd.f32 %v4087, 1e-05
        %v4089 = vrsqrt.pop %v4088
        %v4090 = vmul.f32 %v4089, %v4088
        %v4091 = vmul.f32 %v4090, %v4089
        %v4092 = vmul.f32 0.5, %v4091
        %v4093 = vsub.f32 1.5, %v4092
        %v4094 = vmul.f32 %v4089, %v4093
        %vm4095 = vweird.f32 %v4088
        %vm4096 = vweird.f32 %v4089
        %vm4097 = vmor %vm4095, %vm4096
        %v4098 = vsel %vm4097, %v4089, %v4094
        %v4099 = vmul.f32 %v4082, %v4098
        %v4100 = vperm.slane %v4076, 0
        %v4101 = vmul.f32 %v4099, %v4100
        %v4102 = vperm.slane %v4077, 0
        %v4103 = vadd.f32 %v4101, %v4102
        %v4104 = vadd.f32 %v4103, %v1878
        %v4105 = vld [vmem:[%s2 + $0x160] sm:$0xf]
        %v4106 = vld [vmem:[%s2 + $0x164] sm:$0xf]
        %v4107 = vld [vmem:[%s2 + $0x168] sm:$0xf]
        %v4108 = vld [vmem:[%s2 + $0x16c] sm:$0xf]
        %v4109 = vld [vmem:[%s3 + $0x1c8] sm:$0x1]
        %v4110 = vld [vmem:[%s2 + $0x170] sm:$0xf]
        %v4111 = vld [vmem:[%s2 + $0x174] sm:$0xf]
        %v4112 = vld [vmem:[%s3 + $0x1d0] sm:$0x1]
        %v4113 = vperm.slane %v4109, 0
        %v4118 = vunpack.c.l.b16 %v4105
        %v4119 = vunpack.c.l.b16 %v4106
        %v4120 = vunpack.c.l.b16 %v4107
        %v4121 = vunpack.c.l.b16 %v4108
        %v4122 = vpack.c.b16 %v4119, %v4118
        %v4123 = vpack.c.b16 %v4121, %v4120
        %4126 = vmatpush.bf16.msra.mxu0 0
        %4127 = vmatpush.bf16.msra.mxu0 0
        %4128 = vmatpush.bf16.msra.mxu0 0
        %4129 = vmatpush.bf16.msra.mxu0 0
        %4130 = vmatpush.bf16.msra.mxu0 0
        %4131 = vmatpush.bf16.msra.mxu0 0
        %4132 = vmatpush.bf16.msra.mxu0 %v4123
        %4133 = vmatpush.bf16.msra.mxu0 %v4122
        %4134 = vmatmul.bf16.gmra.mxu0 %v3684
        %v4135 = vpop.f32.mrf.mxu0
        %v4136 = vadd.f32 %v4113, %v4135
        %v4137 = vpop.f32.mrf.mxu0
        %v4138 = vadd.f32 %v4113, %v4137
        %4139 = vmatmul.bf16.gmra.mxu0 %v3687
        %v4140 = vpop.f32.mrf.mxu0
        %v4141 = vadd.f32 %v4113, %v4140
        %v4142 = vpop.f32.mrf.mxu0
        %v4143 = vadd.f32 %v4113, %v4142
        %4144 = vmatmul.bf16.gmra.mxu0 %v3690
        %v4145 = vpop.f32.mrf.mxu0
        %v4146 = vadd.f32 %v4113, %v4145
        %v4147 = vpop.f32.mrf.mxu0
        %v4148 = vadd.f32 %v4113, %v4147
        %4149 = vmatmul.bf16.gmra.mxu0 %v3693
        %v4150 = vpop.f32.mrf.mxu0
        %v4151 = vadd.f32 %v4113, %v4150
        %v4152 = vpop.f32.mrf.mxu0
        %v4153 = vadd.f32 %v4113, %v4152
        %4154 = vdwg.mxu0
        %v4155 = vpack.c.bf16 %v4104, %v4104
        %4156 = vrot.lane.b32.xlu0 %v4122, 112
        %v4157 = vpop.permute.xlu0 %4156
        %4158 = vrot.lane.b32.xlu0 %v4123, 112
        %v4159 = vpop.permute.xlu0 %4158
        %4163 = vrot.lane.b32.xlu0 %v4113, 112
        %v4164 = vpop.permute.xlu0 %4163
        %v4167 = vsel %vm387, %v4155, 0
        %4169 = vmatpush.bf16.msra.mxu0 0
        %4170 = vmatpush.bf16.msra.mxu0 0
        %4171 = vmatpush.bf16.msra.mxu0 0
        %4172 = vmatpush.bf16.msra.mxu0 0
        %4173 = vmatpush.bf16.msra.mxu0 0
        %4174 = vmatpush.bf16.msra.mxu0 0
        %4175 = vmatpush.bf16.msra.mxu0 %v4159
        %4176 = vmatpush.bf16.msra.mxu0 %v4157
        %4177 = vmatmul.bf16.gmra.mxu0 %v4167
        %v4178 = vpop.f32.mrf.mxu0
        %v4179 = vadd.f32 %v4164, %v4178
        %v4180 = vpop.f32.mrf.mxu0
        %4181 = vdwg.mxu0
        %v4182 = vpack.c.bf16 %v4103, %v4103
        %4183 = vrot.lane.b32.xlu0 %v4122, 96
        %v4184 = vpop.permute.xlu0 %4183
        %4185 = vrot.lane.b32.xlu0 %v4123, 96
        %v4186 = vpop.permute.xlu0 %4185
        %4189 = vrot.lane.b32.xlu0 %v4113, 96
        %v4190 = vpop.permute.xlu0 %4189
        %v4193 = vsel %vm387, %v4182, 0
        %4195 = vmatpush.bf16.msra.mxu0 0
        %4196 = vmatpush.bf16.msra.mxu0 0
        %4197 = vmatpush.bf16.msra.mxu0 0
        %4198 = vmatpush.bf16.msra.mxu0 0
        %4199 = vmatpush.bf16.msra.mxu0 0
        %4200 = vmatpush.bf16.msra.mxu0 0
        %4201 = vmatpush.bf16.msra.mxu0 %v4186
        %4202 = vmatpush.bf16.msra.mxu0 %v4184
        %4203 = vmatmul.bf16.gmra.mxu0 %v4193
        %v4204 = vpop.f32.mrf.mxu0
        %v4205 = vadd.f32 %v4190, %v4204
        %v4206 = vpop.f32.mrf.mxu0
        %4207 = vdwg.mxu0
        %v4208 = vpack.c.bf16 %v4138, %v4136
        %v4209 = vpack.c.bf16 %v4143, %v4141
        %v4210 = vpack.c.bf16 %v4148, %v4146
        %v4211 = vpack.c.bf16 %v4153, %v4151
        %v4212 = vpack.c.bf16 %v4179, %v4179
        %v4214 = vsel %vm2280, %v4208, 0
        %v4217 = vsel %vm2280, %v4209, 0
        %v4220 = vsel %vm2280, %v4210, 0
        %v4223 = vsel %vm2280, %v4211, 0
        %v4226 = vsel %vm2280, %v4212, 0
        %4228 = vmatpush.bf16.xpose.msra.mxu0 0
        %4229 = vmatpush.bf16.xpose.msra.mxu0 0
        %4230 = vmatpush.bf16.xpose.msra.mxu0 0
        %4231 = vmatpush.bf16.xpose.msra.mxu0 0
        %4232 = vmatpush.bf16.xpose.msra.mxu0 0
        %4233 = vmatpush.bf16.xpose.msra.mxu0 0
        %4234 = vmatpush.bf16.xpose.msra.mxu0 0
        %4235 = vmatpush.bf16.xpose.msra.mxu0 %v4226
        %4236 = vmatmul.bf16.gmra.mxu0 %v4214
        %v4237 = vpop.f32.mrf.mxu0
        %v4238 = vadd.f32 0.0, %v4237
        %v4239 = vpop.f32.mrf.mxu0
        %v4240 = vadd.f32 0.0, %v4239
        %4241 = vmatmul.bf16.gmra.mxu0 %v4217
        %v4242 = vpop.f32.mrf.mxu0
        %v4243 = vadd.f32 0.0, %v4242
        %v4244 = vpop.f32.mrf.mxu0
        %v4245 = vadd.f32 0.0, %v4244
        %4246 = vmatmul.bf16.gmra.mxu0 %v4220
        %v4247 = vpop.f32.mrf.mxu0
        %v4248 = vadd.f32 0.0, %v4247
        %v4249 = vpop.f32.mrf.mxu0
        %v4250 = vadd.f32 0.0, %v4249
        %4251 = vmatmul.bf16.gmra.mxu0 %v4223
        %v4252 = vpop.f32.mrf.mxu0
        %v4253 = vadd.f32 0.0, %v4252
        %v4254 = vpop.f32.mrf.mxu0
        %v4255 = vadd.f32 0.0, %v4254
        %4256 = vdwg.mxu0
        %v4257 = vsel %vm1975, %v4238, -inf
        %4258 = vmax.xlane.f32.xlu0 %v4257
        %v4259 = vpop.xlane.xlu0 %4258
        %v4260 = vsel %vm1975, %v4240, -inf
        %4261 = vmax.xlane.f32.xlu0 %v4260
        %v4262 = vpop.xlane.xlu0 %4261
        %v4263 = vsel %vm1975, %v4243, -inf
        %4264 = vmax.xlane.f32.xlu0 %v4263
        %v4265 = vpop.xlane.xlu0 %4264
        %v4266 = vsel %vm1975, %v4245, -inf
        %4267 = vmax.xlane.f32.xlu0 %v4266
        %v4268 = vpop.xlane.xlu0 %4267
        %v4269 = vsel %vm1975, %v4248, -inf
        %4270 = vmax.xlane.f32.xlu0 %v4269
        %v4271 = vpop.xlane.xlu0 %4270
        %v4272 = vsel %vm1975, %v4250, -inf
        %4273 = vmax.xlane.f32.xlu0 %v4272
        %v4274 = vpop.xlane.xlu0 %4273
        %v4275 = vsel %vm1975, %v4253, -inf
        %4276 = vmax.xlane.f32.xlu0 %v4275
        %v4277 = vpop.xlane.xlu0 %4276
        %v4278 = vsel %vm1975, %v4255, -inf
        %4279 = vmax.xlane.f32.xlu0 %v4278
        %v4280 = vpop.xlane.xlu0 %4279
        %v4281 = vsub.f32 %v4238, %v4259
        %v4282 = vsub.f32 %v4240, %v4262
        %v4283 = vsub.f32 %v4243, %v4265
        %v4284 = vsub.f32 %v4245, %v4268
        %v4285 = vsub.f32 %v4248, %v4271
        %v4286 = vsub.f32 %v4250, %v4274
        %v4287 = vsub.f32 %v4253, %v4277
        %v4288 = vsub.f32 %v4255, %v4280
        %v4289 = vmul.f32 %v4281, 1.442695
        %v4290 = vpow.pop %v4289
        %v4291 = vmul.f32 %v4282, 1.442695
        %v4292 = vpow.pop %v4291
        %v4293 = vmul.f32 %v4283, 1.442695
        %v4294 = vpow.pop %v4293
        %v4295 = vmul.f32 %v4284, 1.442695
        %v4296 = vpow.pop %v4295
        %v4297 = vmul.f32 %v4285, 1.442695
        %v4298 = vpow.pop %v4297
        %v4299 = vmul.f32 %v4286, 1.442695
        %v4300 = vpow.pop %v4299
        %v4301 = vmul.f32 %v4287, 1.442695
        %v4302 = vpow.pop %v4301
        %v4303 = vmul.f32 %v4288, 1.442695
        %v4304 = vpow.pop %v4303
        %v4305 = vsel %vm1975, %v4290, 0.0
        %4306 = vadd.xlane.f32.xlu0 %v4305
        %v4307 = vpop.xlane.xlu0 %4306
        %v4308 = vsel %vm1975, %v4292, 0.0
        %4309 = vadd.xlane.f32.xlu0 %v4308
        %v4310 = vpop.xlane.xlu0 %4309
        %v4311 = vsel %vm1975, %v4294, 0.0
        %4312 = vadd.xlane.f32.xlu0 %v4311
        %v4313 = vpop.xlane.xlu0 %4312
        %v4314 = vsel %vm1975, %v4296, 0.0
        %4315 = vadd.xlane.f32.xlu0 %v4314
        %v4316 = vpop.xlane.xlu0 %4315
        %v4317 = vsel %vm1975, %v4298, 0.0
        %4318 = vadd.xlane.f32.xlu0 %v4317
        %v4319 = vpop.xlane.xlu0 %4318
        %v4320 = vsel %vm1975, %v4300, 0.0
        %4321 = vadd.xlane.f32.xlu0 %v4320
        %v4322 = vpop.xlane.xlu0 %4321
        %v4323 = vsel %vm1975, %v4302, 0.0
        %4324 = vadd.xlane.f32.xlu0 %v4323
        %v4325 = vpop.xlane.xlu0 %4324
        %v4326 = vsel %vm1975, %v4304, 0.0
        %4327 = vadd.xlane.f32.xlu0 %v4326
        %v4328 = vpop.xlane.xlu0 %4327
        %v4329 = vrcp.pop %v4307
        %v4330 = vrcp.pop %v4310
        %v4331 = vrcp.pop %v4313
        %v4332 = vrcp.pop %v4316
        %v4333 = vrcp.pop %v4319
        %v4334 = vrcp.pop %v4322
        %v4335 = vrcp.pop %v4325
        %v4336 = vrcp.pop %v4328
        %v4337 = vmul.f32 %v4290, %v4329
        %v4338 = vmul.f32 %v4292, %v4330
        %v4339 = vmul.f32 %v4294, %v4331
        %v4340 = vmul.f32 %v4296, %v4332
        %v4341 = vmul.f32 %v4298, %v4333
        %v4342 = vmul.f32 %v4300, %v4334
        %v4343 = vmul.f32 %v4302, %v4335
        %v4344 = vmul.f32 %v4304, %v4336
        %v4345 = vpack.c.bf16 %v4338, %v4337
        %v4346 = vpack.c.bf16 %v4340, %v4339
        %v4347 = vpack.c.bf16 %v4342, %v4341
        %v4348 = vpack.c.bf16 %v4344, %v4343
        %v4349 = vpack.c.bf16 %v4205, %v4205
        %v4351 = vsel %vm1975, %v4345, 0
        %v4354 = vsel %vm1975, %v4346, 0
        %v4357 = vsel %vm1975, %v4347, 0
        %v4360 = vsel %vm1975, %v4348, 0
        %v4363 = vand.u32 %v4349, %v1982
        %4365 = vmatpush.bf16.msra.mxu0 0
        %4366 = vmatpush.bf16.msra.mxu0 0
        %4367 = vmatpush.bf16.msra.mxu0 0
        %4368 = vmatpush.bf16.msra.mxu0 0
        %4369 = vmatpush.bf16.msra.mxu0 0
        %4370 = vmatpush.bf16.msra.mxu0 0
        %4371 = vmatpush.bf16.msra.mxu0 0
        %4372 = vmatpush.bf16.msra.mxu0 %v4363
        %4373 = vmatmul.bf16.gmra.mxu0 %v4351
        %v4374 = vpop.f32.mrf.mxu0
        %v4375 = vadd.f32 0.0, %v4374
        %v4376 = vpop.f32.mrf.mxu0
        %v4377 = vadd.f32 0.0, %v4376
        %4378 = vmatmul.bf16.gmra.mxu0 %v4354
        %v4379 = vpop.f32.mrf.mxu0
        %v4380 = vadd.f32 0.0, %v4379
        %v4381 = vpop.f32.mrf.mxu0
        %v4382 = vadd.f32 0.0, %v4381
        %4383 = vmatmul.bf16.gmra.mxu0 %v4357
        %v4384 = vpop.f32.mrf.mxu0
        %v4385 = vadd.f32 0.0, %v4384
        %v4386 = vpop.f32.mrf.mxu0
        %v4387 = vadd.f32 0.0, %v4386
        %4388 = vmatmul.bf16.gmra.mxu0 %v4360
        %v4389 = vpop.f32.mrf.mxu0
        %v4390 = vadd.f32 0.0, %v4389
        %v4391 = vpop.f32.mrf.mxu0
        %v4392 = vadd.f32 0.0, %v4391
        %4393 = vdwg.mxu0
        %4398 = vrot.lane.b32.xlu0 %v4208, 120
        %v4399 = vpop.permute.xlu0 %4398
        %4400 = vrot.lane.b32.xlu0 %v4209, 120
        %v4401 = vpop.permute.xlu0 %4400
        %4402 = vrot.lane.b32.xlu0 %v4210, 120
        %v4403 = vpop.permute.xlu0 %4402
        %4404 = vrot.lane.b32.xlu0 %v4211, 120
        %v4405 = vpop.permute.xlu0 %4404
        %4407 = vrot.lane.b32.xlu0 %v4212, 120
        %v4408 = vpop.permute.xlu0 %4407
        %v4410 = vsel %vm2280, %v4399, 0
        %v4413 = vsel %vm2280, %v4401, 0
        %v4416 = vsel %vm2280, %v4403, 0
        %v4419 = vsel %vm2280, %v4405, 0
        %v4422 = vsel %vm2280, %v4408, 0
        %4424 = vmatpush.bf16.xpose.msra.mxu0 0
        %4425 = vmatpush.bf16.xpose.msra.mxu0 0
        %4426 = vmatpush.bf16.xpose.msra.mxu0 0
        %4427 = vmatpush.bf16.xpose.msra.mxu0 0
        %4428 = vmatpush.bf16.xpose.msra.mxu0 0
        %4429 = vmatpush.bf16.xpose.msra.mxu0 0
        %4430 = vmatpush.bf16.xpose.msra.mxu0 0
        %4431 = vmatpush.bf16.xpose.msra.mxu0 %v4422
        %4432 = vmatmul.bf16.gmra.mxu0 %v4410
        %v4433 = vpop.f32.mrf.mxu0
        %v4434 = vadd.f32 0.0, %v4433
        %v4435 = vpop.f32.mrf.mxu0
        %v4436 = vadd.f32 0.0, %v4435
        %4437 = vmatmul.bf16.gmra.mxu0 %v4413
        %v4438 = vpop.f32.mrf.mxu0
        %v4439 = vadd.f32 0.0, %v4438
        %v4440 = vpop.f32.mrf.mxu0
        %v4441 = vadd.f32 0.0, %v4440
        %4442 = vmatmul.bf16.gmra.mxu0 %v4416
        %v4443 = vpop.f32.mrf.mxu0
        %v4444 = vadd.f32 0.0, %v4443
        %v4445 = vpop.f32.mrf.mxu0
        %v4446 = vadd.f32 0.0, %v4445
        %4447 = vmatmul.bf16.gmra.mxu0 %v4419
        %v4448 = vpop.f32.mrf.mxu0
        %v4449 = vadd.f32 0.0, %v4448
        %v4450 = vpop.f32.mrf.mxu0
        %v4451 = vadd.f32 0.0, %v4450
        %4452 = vdwg.mxu0
        %v4453 = vsel %vm1975, %v4434, -inf
        %4454 = vmax.xlane.f32.xlu0 %v4453
        %v4455 = vpop.xlane.xlu0 %4454
        %v4456 = vsel %vm1975, %v4436, -inf
        %4457 = vmax.xlane.f32.xlu0 %v4456
        %v4458 = vpop.xlane.xlu0 %4457
        %v4459 = vsel %vm1975, %v4439, -inf
        %4460 = vmax.xlane.f32.xlu0 %v4459
        %v4461 = vpop.xlane.xlu0 %4460
        %v4462 = vsel %vm1975, %v4441, -inf
        %4463 = vmax.xlane.f32.xlu0 %v4462
        %v4464 = vpop.xlane.xlu0 %4463
        %v4465 = vsel %vm1975, %v4444, -inf
        %4466 = vmax.xlane.f32.xlu0 %v4465
        %v4467 = vpop.xlane.xlu0 %4466
        %v4468 = vsel %vm1975, %v4446, -inf
        %4469 = vmax.xlane.f32.xlu0 %v4468
        %v4470 = vpop.xlane.xlu0 %4469
        %v4471 = vsel %vm1975, %v4449, -inf
        %4472 = vmax.xlane.f32.xlu0 %v4471
        %v4473 = vpop.xlane.xlu0 %4472
        %v4474 = vsel %vm1975, %v4451, -inf
        %4475 = vmax.xlane.f32.xlu0 %v4474
        %v4476 = vpop.xlane.xlu0 %4475
        %v4477 = vsub.f32 %v4434, %v4455
        %v4478 = vsub.f32 %v4436, %v4458
        %v4479 = vsub.f32 %v4439, %v4461
        %v4480 = vsub.f32 %v4441, %v4464
        %v4481 = vsub.f32 %v4444, %v4467
        %v4482 = vsub.f32 %v4446, %v4470
        %v4483 = vsub.f32 %v4449, %v4473
        %v4484 = vsub.f32 %v4451, %v4476
        %v4485 = vmul.f32 %v4477, 1.442695
        %v4486 = vpow.pop %v4485
        %v4487 = vmul.f32 %v4478, 1.442695
        %v4488 = vpow.pop %v4487
        %v4489 = vmul.f32 %v4479, 1.442695
        %v4490 = vpow.pop %v4489
        %v4491 = vmul.f32 %v4480, 1.442695
        %v4492 = vpow.pop %v4491
        %v4493 = vmul.f32 %v4481, 1.442695
        %v4494 = vpow.pop %v4493
        %v4495 = vmul.f32 %v4482, 1.442695
        %v4496 = vpow.pop %v4495
        %v4497 = vmul.f32 %v4483, 1.442695
        %v4498 = vpow.pop %v4497
        %v4499 = vmul.f32 %v4484, 1.442695
        %v4500 = vpow.pop %v4499
        %v4501 = vsel %vm1975, %v4486, 0.0
        %4502 = vadd.xlane.f32.xlu0 %v4501
        %v4503 = vpop.xlane.xlu0 %4502
        %v4504 = vsel %vm1975, %v4488, 0.0
        %4505 = vadd.xlane.f32.xlu0 %v4504
        %v4506 = vpop.xlane.xlu0 %4505
        %v4507 = vsel %vm1975, %v4490, 0.0
        %4508 = vadd.xlane.f32.xlu0 %v4507
        %v4509 = vpop.xlane.xlu0 %4508
        %v4510 = vsel %vm1975, %v4492, 0.0
        %4511 = vadd.xlane.f32.xlu0 %v4510
        %v4512 = vpop.xlane.xlu0 %4511
        %v4513 = vsel %vm1975, %v4494, 0.0
        %4514 = vadd.xlane.f32.xlu0 %v4513
        %v4515 = vpop.xlane.xlu0 %4514
        %v4516 = vsel %vm1975, %v4496, 0.0
        %4517 = vadd.xlane.f32.xlu0 %v4516
        %v4518 = vpop.xlane.xlu0 %4517
        %v4519 = vsel %vm1975, %v4498, 0.0
        %4520 = vadd.xlane.f32.xlu0 %v4519
        %v4521 = vpop.xlane.xlu0 %4520
        %v4522 = vsel %vm1975, %v4500, 0.0
        %4523 = vadd.xlane.f32.xlu0 %v4522
        %v4524 = vpop.xlane.xlu0 %4523
        %v4525 = vrcp.pop %v4503
        %v4526 = vrcp.pop %v4506
        %v4527 = vrcp.pop %v4509
        %v4528 = vrcp.pop %v4512
        %v4529 = vrcp.pop %v4515
        %v4530 = vrcp.pop %v4518
        %v4531 = vrcp.pop %v4521
        %v4532 = vrcp.pop %v4524
        %v4533 = vmul.f32 %v4486, %v4525
        %v4534 = vmul.f32 %v4488, %v4526
        %v4535 = vmul.f32 %v4490, %v4527
        %v4536 = vmul.f32 %v4492, %v4528
        %v4537 = vmul.f32 %v4494, %v4529
        %v4538 = vmul.f32 %v4496, %v4530
        %v4539 = vmul.f32 %v4498, %v4531
        %v4540 = vmul.f32 %v4500, %v4532
        %v4541 = vpack.c.bf16 %v4534, %v4533
        %v4542 = vpack.c.bf16 %v4536, %v4535
        %v4543 = vpack.c.bf16 %v4538, %v4537
        %v4544 = vpack.c.bf16 %v4540, %v4539
        %4546 = vrot.lane.b32.xlu0 %v4349, 120
        %v4547 = vpop.permute.xlu0 %4546
        %v4549 = vsel %vm1975, %v4541, 0
        %v4552 = vsel %vm1975, %v4542, 0
        %v4555 = vsel %vm1975, %v4543, 0
        %v4558 = vsel %vm1975, %v4544, 0
        %v4561 = vand.u32 %v4547, %v1982
        %4563 = vmatpush.bf16.msra.mxu0 0
        %4564 = vmatpush.bf16.msra.mxu0 0
        %4565 = vmatpush.bf16.msra.mxu0 0
        %4566 = vmatpush.bf16.msra.mxu0 0
        %4567 = vmatpush.bf16.msra.mxu0 0
        %4568 = vmatpush.bf16.msra.mxu0 0
        %4569 = vmatpush.bf16.msra.mxu0 0
        %4570 = vmatpush.bf16.msra.mxu0 %v4561
        %4571 = vmatmul.bf16.gmra.mxu0 %v4549
        %v4572 = vpop.f32.mrf.mxu0
        %v4573 = vadd.f32 0.0, %v4572
        %v4574 = vpop.f32.mrf.mxu0
        %v4575 = vadd.f32 0.0, %v4574
        %4576 = vmatmul.bf16.gmra.mxu0 %v4552
        %v4577 = vpop.f32.mrf.mxu0
        %v4578 = vadd.f32 0.0, %v4577
        %v4579 = vpop.f32.mrf.mxu0
        %v4580 = vadd.f32 0.0, %v4579
        %4581 = vmatmul.bf16.gmra.mxu0 %v4555
        %v4582 = vpop.f32.mrf.mxu0
        %v4583 = vadd.f32 0.0, %v4582
        %v4584 = vpop.f32.mrf.mxu0
        %v4585 = vadd.f32 0.0, %v4584
        %4586 = vmatmul.bf16.gmra.mxu0 %v4558
        %v4587 = vpop.f32.mrf.mxu0
        %v4588 = vadd.f32 0.0, %v4587
        %v4589 = vpop.f32.mrf.mxu0
        %v4590 = vadd.f32 0.0, %v4589
        %4591 = vdwg.mxu0
        %4600 = vrot.lane.b32.xlu0 %v4573, 8
        %v4601 = vpop.permute.xlu0 %4600
        %4602 = vrot.lane.b32.xlu0 %v4575, 8
        %v4603 = vpop.permute.xlu0 %4602
        %4604 = vrot.lane.b32.xlu0 %v4578, 8
        %v4605 = vpop.permute.xlu0 %4604
        %4606 = vrot.lane.b32.xlu0 %v4580, 8
        %v4607 = vpop.permute.xlu0 %4606
        %4608 = vrot.lane.b32.xlu0 %v4583, 8
        %v4609 = vpop.permute.xlu0 %4608
        %4610 = vrot.lane.b32.xlu0 %v4585, 8
        %v4611 = vpop.permute.xlu0 %4610
        %4612 = vrot.lane.b32.xlu0 %v4588, 8
        %v4613 = vpop.permute.xlu0 %4612
        %4614 = vrot.lane.b32.xlu0 %v4590, 8
        %v4615 = vpop.permute.xlu0 %4614
        %v4624 = vsel %vm2280, %v4375, %v4601
        %v4625 = vsel %vm2280, %v4377, %v4603
        %v4626 = vsel %vm2280, %v4380, %v4605
        %v4627 = vsel %vm2280, %v4382, %v4607
        %v4628 = vsel %vm2280, %v4385, %v4609
        %v4629 = vsel %vm2280, %v4387, %v4611
        %v4630 = vsel %vm2280, %v4390, %v4613
        %v4631 = vsel %vm2280, %v4392, %v4615
        %v4632 = vpack.c.bf16 %v4625, %v4624
        %v4633 = vpack.c.bf16 %v4627, %v4626
        %v4634 = vpack.c.bf16 %v4629, %v4628
        %v4635 = vpack.c.bf16 %v4631, %v4630
        %v4636 = vperm.slane %v4112, 0
        %v4639 = vunpack.c.l.b16 %v4110
        %v4640 = vunpack.c.l.b16 %v4111
        %v4641 = vpack.c.b16 %v4640, %v4639
        %v4644 = vsel %vm673, %v4632, 0
        %v4647 = vsel %vm673, %v4633, 0
        %v4650 = vsel %vm673, %v4634, 0
        %v4653 = vsel %vm673, %v4635, 0
        %4655 = vmatpush.bf16.msra.mxu0 0
        %4656 = vmatpush.bf16.msra.mxu0 0
        %4657 = vmatpush.bf16.msra.mxu0 0
        %4658 = vmatpush.bf16.msra.mxu0 0
        %4659 = vmatpush.bf16.msra.mxu0 0
        %4660 = vmatpush.bf16.msra.mxu0 0
        %4661 = vmatpush.bf16.msra.mxu0 0
        %4662 = vmatpush.bf16.msra.mxu0 %v4641
        %4663 = vmatmul.bf16.gmra.mxu0 %v4644
        %v4664 = vpop.f32.mrf.mxu0
        %v4665 = vadd.f32 %v4636, %v4664
        %v4666 = vpop.f32.mrf.mxu0
        %v4667 = vadd.f32 %v4636, %v4666
        %4668 = vmatmul.bf16.gmra.mxu0 %v4647
        %v4669 = vpop.f32.mrf.mxu0
        %v4670 = vadd.f32 %v4636, %v4669
        %v4671 = vpop.f32.mrf.mxu0
        %v4672 = vadd.f32 %v4636, %v4671
        %4673 = vmatmul.bf16.gmra.mxu0 %v4650
        %v4674 = vpop.f32.mrf.mxu0
        %v4675 = vadd.f32 %v4636, %v4674
        %v4676 = vpop.f32.mrf.mxu0
        %v4677 = vadd.f32 %v4636, %v4676
        %4678 = vmatmul.bf16.gmra.mxu0 %v4653
        %v4679 = vpop.f32.mrf.mxu0
        %v4680 = vadd.f32 %v4636, %v4679
        %v4681 = vpop.f32.mrf.mxu0
        %v4682 = vadd.f32 %v4636, %v4681
        %4683 = vdwg.mxu0
        %v4684 = vadd.f32 %v3379, %v4665
        %v4685 = vadd.f32 %v3380, %v4667
        %v4686 = vadd.f32 %v3381, %v4670
        %v4687 = vadd.f32 %v3382, %v4672
        %v4688 = vadd.f32 %v3383, %v4675
        %v4689 = vadd.f32 %v3384, %v4677
        %v4690 = vadd.f32 %v3385, %v4680
        %v4691 = vadd.f32 %v3386, %v4682
        %v4692 = vld [vmem:[%s3 + $0x1d8] sm:$0x1]
        %v4693 = vld [vmem:[%s3 + $0x1e0] sm:$0x1]
        %v4694 = vsel %vm387, %v4684, 0.0
        %4695 = vadd.xlane.f32.xlu0 %v4694
        %v4696 = vpop.xlane.xlu0 %4695
        %v4697 = vsel %vm387, %v4685, 0.0
        %4698 = vadd.xlane.f32.xlu0 %v4697
        %v4699 = vpop.xlane.xlu0 %4698
        %v4700 = vsel %vm387, %v4686, 0.0
        %4701 = vadd.xlane.f32.xlu0 %v4700
        %v4702 = vpop.xlane.xlu0 %4701
        %v4703 = vsel %vm387, %v4687, 0.0
        %4704 = vadd.xlane.f32.xlu0 %v4703
        %v4705 = vpop.xlane.xlu0 %4704
        %v4706 = vsel %vm387, %v4688, 0.0
        %4707 = vadd.xlane.f32.xlu0 %v4706
        %v4708 = vpop.xlane.xlu0 %4707
        %v4709 = vsel %vm387, %v4689, 0.0
        %4710 = vadd.xlane.f32.xlu0 %v4709
        %v4711 = vpop.xlane.xlu0 %4710
        %v4712 = vsel %vm387, %v4690, 0.0
        %4713 = vadd.xlane.f32.xlu0 %v4712
        %v4714 = vpop.xlane.xlu0 %4713
        %v4715 = vsel %vm387, %v4691, 0.0
        %4716 = vadd.xlane.f32.xlu0 %v4715
        %v4717 = vpop.xlane.xlu0 %4716
        %v4718 = vmul.f32 %v4696, %v418
        %v4719 = vmul.f32 %v4699, %v418
        %v4720 = vmul.f32 %v4702, %v418
        %v4721 = vmul.f32 %v4705, %v418
        %v4722 = vmul.f32 %v4708, %v418
        %v4723 = vmul.f32 %v4711, %v418
        %v4724 = vmul.f32 %v4714, %v418
        %v4725 = vmul.f32 %v4717, %v418
        %v4726 = vsub.f32 %v4684, %v4718
        %v4727 = vsub.f32 %v4685, %v4719
        %v4728 = vsub.f32 %v4686, %v4720
        %v4729 = vsub.f32 %v4687, %v4721
        %v4730 = vsub.f32 %v4688, %v4722
        %v4731 = vsub.f32 %v4689, %v4723
        %v4732 = vsub.f32 %v4690, %v4724
        %v4733 = vsub.f32 %v4691, %v4725
        %v4734 = vmul.f32 %v4726, %v4726
        %v4735 = vmul.f32 %v4727, %v4727
        %v4736 = vmul.f32 %v4728, %v4728
        %v4737 = vmul.f32 %v4729, %v4729
        %v4738 = vmul.f32 %v4730, %v4730
        %v4739 = vmul.f32 %v4731, %v4731
        %v4740 = vmul.f32 %v4732, %v4732
        %v4741 = vmul.f32 %v4733, %v4733
        %v4742 = vsel %vm387, %v4734, 0.0
        %4743 = vadd.xlane.f32.xlu0 %v4742
        %v4744 = vpop.xlane.xlu0 %4743
        %v4745 = vsel %vm387, %v4735, 0.0
        %4746 = vadd.xlane.f32.xlu0 %v4745
        %v4747 = vpop.xlane.xlu0 %4746
        %v4748 = vsel %vm387, %v4736, 0.0
        %4749 = vadd.xlane.f32.xlu0 %v4748
        %v4750 = vpop.xlane.xlu0 %4749
        %v4751 = vsel %vm387, %v4737, 0.0
        %4752 = vadd.xlane.f32.xlu0 %v4751
        %v4753 = vpop.xlane.xlu0 %4752
        %v4754 = vsel %vm387, %v4738, 0.0
        %4755 = vadd.xlane.f32.xlu0 %v4754
        %v4756 = vpop.xlane.xlu0 %4755
        %v4757 = vsel %vm387, %v4739, 0.0
        %4758 = vadd.xlane.f32.xlu0 %v4757
        %v4759 = vpop.xlane.xlu0 %4758
        %v4760 = vsel %vm387, %v4740, 0.0
        %4761 = vadd.xlane.f32.xlu0 %v4760
        %v4762 = vpop.xlane.xlu0 %4761
        %v4763 = vsel %vm387, %v4741, 0.0
        %4764 = vadd.xlane.f32.xlu0 %v4763
        %v4765 = vpop.xlane.xlu0 %4764
        %v4766 = vmul.f32 %v4744, %v418
        %v4767 = vmul.f32 %v4747, %v418
        %v4768 = vmul.f32 %v4750, %v418
        %v4769 = vmul.f32 %v4753, %v418
        %v4770 = vmul.f32 %v4756, %v418
        %v4771 = vmul.f32 %v4759, %v418
        %v4772 = vmul.f32 %v4762, %v418
        %v4773 = vmul.f32 %v4765, %v418
        %v4774 = vadd.f32 %v4766, 1e-05
        %v4775 = vadd.f32 %v4767, 1e-05
        %v4776 = vadd.f32 %v4768, 1e-05
        %v4777 = vadd.f32 %v4769, 1e-05
        %v4778 = vadd.f32 %v4770, 1e-05
        %v4779 = vadd.f32 %v4771, 1e-05
        %v4780 = vadd.f32 %v4772, 1e-05
        %v4781 = vadd.f32 %v4773, 1e-05
        %v4782 = vrsqrt.pop %v4774
        %v4783 = vmul.f32 %v4782, %v4774
        %v4784 = vmul.f32 %v4783, %v4782
        %v4785 = vmul.f32 0.5, %v4784
        %v4786 = vsub.f32 1.5, %v4785
        %v4787 = vmul.f32 %v4782, %v4786
        %vm4788 = vweird.f32 %v4774
        %vm4789 = vweird.f32 %v4782
        %vm4790 = vmor %vm4788, %vm4789
        %v4791 = vsel %vm4790, %v4782, %v4787
        %v4792 = vrsqrt.pop %v4775
        %v4793 = vmul.f32 %v4792, %v4775
        %v4794 = vmul.f32 %v4793, %v4792
        %v4795 = vmul.f32 0.5, %v4794
        %v4796 = vsub.f32 1.5, %v4795
        %v4797 = vmul.f32 %v4792, %v4796
        %vm4798 = vweird.f32 %v4775
        %vm4799 = vweird.f32 %v4792
        %vm4800 = vmor %vm4798, %vm4799
        %v4801 = vsel %vm4800, %v4792, %v4797
        %v4802 = vrsqrt.pop %v4776
        %v4803 = vmul.f32 %v4802, %v4776
        %v4804 = vmul.f32 %v4803, %v4802
        %v4805 = vmul.f32 0.5, %v4804
        %v4806 = vsub.f32 1.5, %v4805
        %v4807 = vmul.f32 %v4802, %v4806
        %vm4808 = vweird.f32 %v4776
        %vm4809 = vweird.f32 %v4802
        %vm4810 = vmor %vm4808, %vm4809
        %v4811 = vsel %vm4810, %v4802, %v4807
        %v4812 = vrsqrt.pop %v4777
        %v4813 = vmul.f32 %v4812, %v4777
        %v4814 = vmul.f32 %v4813, %v4812
        %v4815 = vmul.f32 0.5, %v4814
        %v4816 = vsub.f32 1.5, %v4815
        %v4817 = vmul.f32 %v4812, %v4816
        %vm4818 = vweird.f32 %v4777
        %vm4819 = vweird.f32 %v4812
        %vm4820 = vmor %vm4818, %vm4819
        %v4821 = vsel %vm4820, %v4812, %v4817
        %v4822 = vrsqrt.pop %v4778
        %v4823 = vmul.f32 %v4822, %v4778
        %v4824 = vmul.f32 %v4823, %v4822
        %v4825 = vmul.f32 0.5, %v4824
        %v4826 = vsub.f32 1.5, %v4825
        %v4827 = vmul.f32 %v4822, %v4826
        %vm4828 = vweird.f32 %v4778
        %vm4829 = vweird.f32 %v4822
        %vm4830 = vmor %vm4828, %vm4829
        %v4831 = vsel %vm4830, %v4822, %v4827
        %v4832 = vrsqrt.pop %v4779
        %v4833 = vmul.f32 %v4832, %v4779
        %v4834 = vmul.f32 %v4833, %v4832
        %v4835 = vmul.f32 0.5, %v4834
        %v4836 = vsub.f32 1.5, %v4835
        %v4837 = vmul.f32 %v4832, %v4836
        %vm4838 = vweird.f32 %v4779
        %vm4839 = vweird.f32 %v4832
        %vm4840 = vmor %vm4838, %vm4839
        %v4841 = vsel %vm4840, %v4832, %v4837
        %v4842 = vrsqrt.pop %v4780
        %v4843 = vmul.f32 %v4842, %v4780
        %v4844 = vmul.f32 %v4843, %v4842
        %v4845 = vmul.f32 0.5, %v4844
        %v4846 = vsub.f32 1.5, %v4845
        %v4847 = vmul.f32 %v4842, %v4846
        %vm4848 = vweird.f32 %v4780
        %vm4849 = vweird.f32 %v4842
        %vm4850 = vmor %vm4848, %vm4849
        %v4851 = vsel %vm4850, %v4842, %v4847
        %v4852 = vrsqrt.pop %v4781
        %v4853 = vmul.f32 %v4852, %v4781
        %v4854 = vmul.f32 %v4853, %v4852
        %v4855 = vmul.f32 0.5, %v4854
        %v4856 = vsub.f32 1.5, %v4855
        %v4857 = vmul.f32 %v4852, %v4856
        %vm4858 = vweird.f32 %v4781
        %vm4859 = vweird.f32 %v4852
        %vm4860 = vmor %vm4858, %vm4859
        %v4861 = vsel %vm4860, %v4852, %v4857
        %v4862 = vmul.f32 %v4726, %v4791
        %v4863 = vmul.f32 %v4727, %v4801
        %v4864 = vmul.f32 %v4728, %v4811
        %v4865 = vmul.f32 %v4729, %v4821
        %v4866 = vmul.f32 %v4730, %v4831
        %v4867 = vmul.f32 %v4731, %v4841
        %v4868 = vmul.f32 %v4732, %v4851
        %v4869 = vmul.f32 %v4733, %v4861
        %v4870 = vperm.slane %v4692, 0
        %v4871 = vmul.f32 %v4862, %v4870
        %v4872 = vmul.f32 %v4863, %v4870
        %v4873 = vmul.f32 %v4864, %v4870
        %v4874 = vmul.f32 %v4865, %v4870
        %v4875 = vmul.f32 %v4866, %v4870
        %v4876 = vmul.f32 %v4867, %v4870
        %v4877 = vmul.f32 %v4868, %v4870
        %v4878 = vmul.f32 %v4869, %v4870
        %v4879 = vperm.slane %v4693, 0
        %v4880 = vadd.f32 %v4871, %v4879
        %v4881 = vadd.f32 %v4872, %v4879
        %v4882 = vadd.f32 %v4873, %v4879
        %v4883 = vadd.f32 %v4874, %v4879
        %v4884 = vadd.f32 %v4875, %v4879
        %v4885 = vadd.f32 %v4876, %v4879
        %v4886 = vadd.f32 %v4877, %v4879
        %v4887 = vadd.f32 %v4878, %v4879
        %v4888 = vadd.f32 %v4880, %v1889
        %v4889 = vadd.f32 %v4881, %v1890
        %v4890 = vadd.f32 %v4882, %v1891
        %v4891 = vadd.f32 %v4883, %v1892
        %v4892 = vadd.f32 %v4884, %v1893
        %v4893 = vadd.f32 %v4885, %v1894
        %v4894 = vadd.f32 %v4886, %v1895
        %v4895 = vadd.f32 %v4887, %v1896
        %v4896 = vld [vmem:[%s2 + $0x178] sm:$0xf]
        %v4897 = vld [vmem:[%s2 + $0x17c] sm:$0xf]
        %v4898 = vld [vmem:[%s2 + $0x180] sm:$0xf]
        %v4899 = vld [vmem:[%s2 + $0x184] sm:$0xf]
        %v4900 = vld [vmem:[%s3 + $0x1e8] sm:$0x1]
        %v4901 = vld [vmem:[%s2 + $0x188] sm:$0xf]
        %v4902 = vld [vmem:[%s2 + $0x18c] sm:$0xf]
        %v4903 = vld [vmem:[%s3 + $0x1f0] sm:$0x1]
        %v4904 = vperm.slane %v4900, 0
        %v4909 = vunpack.c.l.b16 %v4896
        %v4910 = vunpack.c.l.b16 %v4897
        %v4911 = vunpack.c.l.b16 %v4898
        %v4912 = vunpack.c.l.b16 %v4899
        %v4913 = vpack.c.b16 %v4910, %v4909
        %v4914 = vpack.c.b16 %v4912, %v4911
        %4917 = vmatpush.bf16.msra.mxu0 0
        %4918 = vmatpush.bf16.msra.mxu0 0
        %4919 = vmatpush.bf16.msra.mxu0 0
        %4920 = vmatpush.bf16.msra.mxu0 0
        %4921 = vmatpush.bf16.msra.mxu0 0
        %4922 = vmatpush.bf16.msra.mxu0 0
        %4923 = vmatpush.bf16.msra.mxu0 %v4914
        %4924 = vmatpush.bf16.msra.mxu0 %v4913
        %4925 = vmatmul.bf16.gmra.mxu0 %v4167
        %v4926 = vpop.f32.mrf.mxu0
        %v4927 = vadd.f32 %v4904, %v4926
        %v4928 = vpop.f32.mrf.mxu0
        %4929 = vdwg.mxu0
        %v4930 = vpack.c.bf16 %v4889, %v4888
        %v4931 = vpack.c.bf16 %v4891, %v4890
        %v4932 = vpack.c.bf16 %v4893, %v4892
        %v4933 = vpack.c.bf16 %v4895, %v4894
        %4934 = vrot.lane.b32.xlu0 %v4913, 112
        %v4935 = vpop.permute.xlu0 %4934
        %4936 = vrot.lane.b32.xlu0 %v4914, 112
        %v4937 = vpop.permute.xlu0 %4936
        %4941 = vrot.lane.b32.xlu0 %v4904, 112
        %v4942 = vpop.permute.xlu0 %4941
        %v4945 = vsel %vm387, %v4930, 0
        %v4948 = vsel %vm387, %v4931, 0
        %v4951 = vsel %vm387, %v4932, 0
        %v4954 = vsel %vm387, %v4933, 0
        %4956 = vmatpush.bf16.msra.mxu0 0
        %4957 = vmatpush.bf16.msra.mxu0 0
        %4958 = vmatpush.bf16.msra.mxu0 0
        %4959 = vmatpush.bf16.msra.mxu0 0
        %4960 = vmatpush.bf16.msra.mxu0 0
        %4961 = vmatpush.bf16.msra.mxu0 0
        %4962 = vmatpush.bf16.msra.mxu0 %v4937
        %4963 = vmatpush.bf16.msra.mxu0 %v4935
        %4964 = vmatmul.bf16.gmra.mxu0 %v4945
        %v4965 = vpop.f32.mrf.mxu0
        %v4966 = vadd.f32 %v4942, %v4965
        %v4967 = vpop.f32.mrf.mxu0
        %v4968 = vadd.f32 %v4942, %v4967
        %4969 = vmatmul.bf16.gmra.mxu0 %v4948
        %v4970 = vpop.f32.mrf.mxu0
        %v4971 = vadd.f32 %v4942, %v4970
        %v4972 = vpop.f32.mrf.mxu0
        %v4973 = vadd.f32 %v4942, %v4972
        %4974 = vmatmul.bf16.gmra.mxu0 %v4951
        %v4975 = vpop.f32.mrf.mxu0
        %v4976 = vadd.f32 %v4942, %v4975
        %v4977 = vpop.f32.mrf.mxu0
        %v4978 = vadd.f32 %v4942, %v4977
        %4979 = vmatmul.bf16.gmra.mxu0 %v4954
        %v4980 = vpop.f32.mrf.mxu0
        %v4981 = vadd.f32 %v4942, %v4980
        %v4982 = vpop.f32.mrf.mxu0
        %v4983 = vadd.f32 %v4942, %v4982
        %4984 = vdwg.mxu0
        %v4985 = vpack.c.bf16 %v4881, %v4880
        %v4986 = vpack.c.bf16 %v4883, %v4882
        %v4987 = vpack.c.bf16 %v4885, %v4884
        %v4988 = vpack.c.bf16 %v4887, %v4886
        %4989 = vrot.lane.b32.xlu0 %v4913, 96
        %v4990 = vpop.permute.xlu0 %4989
        %4991 = vrot.lane.b32.xlu0 %v4914, 96
        %v4992 = vpop.permute.xlu0 %4991
        %4995 = vrot.lane.b32.xlu0 %v4904, 96
        %v4996 = vpop.permute.xlu0 %4995
        %v4999 = vsel %vm387, %v4985, 0
        %v5002 = vsel %vm387, %v4986, 0
        %v5005 = vsel %vm387, %v4987, 0
        %v5008 = vsel %vm387, %v4988, 0
        %5010 = vmatpush.bf16.msra.mxu0 0
        %5011 = vmatpush.bf16.msra.mxu0 0
        %5012 = vmatpush.bf16.msra.mxu0 0
        %5013 = vmatpush.bf16.msra.mxu0 0
        %5014 = vmatpush.bf16.msra.mxu0 0
        %5015 = vmatpush.bf16.msra.mxu0 0
        %5016 = vmatpush.bf16.msra.mxu0 %v4992
        %5017 = vmatpush.bf16.msra.mxu0 %v4990
        %5018 = vmatmul.bf16.gmra.mxu0 %v4999
        %v5019 = vpop.f32.mrf.mxu0
        %v5020 = vadd.f32 %v4996, %v5019
        %v5021 = vpop.f32.mrf.mxu0
        %v5022 = vadd.f32 %v4996, %v5021
        %5023 = vmatmul.bf16.gmra.mxu0 %v5002
        %v5024 = vpop.f32.mrf.mxu0
        %v5025 = vadd.f32 %v4996, %v5024
        %v5026 = vpop.f32.mrf.mxu0
        %v5027 = vadd.f32 %v4996, %v5026
        %5028 = vmatmul.bf16.gmra.mxu0 %v5005
        %v5029 = vpop.f32.mrf.mxu0
        %v5030 = vadd.f32 %v4996, %v5029
        %v5031 = vpop.f32.mrf.mxu0
        %v5032 = vadd.f32 %v4996, %v5031
        %5033 = vmatmul.bf16.gmra.mxu0 %v5008
        %v5034 = vpop.f32.mrf.mxu0
        %v5035 = vadd.f32 %v4996, %v5034
        %v5036 = vpop.f32.mrf.mxu0
        %v5037 = vadd.f32 %v4996, %v5036
        %5038 = vdwg.mxu0
        %v5039 = vpack.c.bf16 %v4927, %v4927
        %v5040 = vpack.c.bf16 %v4968, %v4966
        %v5041 = vpack.c.bf16 %v4973, %v4971
        %v5042 = vpack.c.bf16 %v4978, %v4976
        %v5043 = vpack.c.bf16 %v4983, %v4981
        %v5045 = vsel %vm2280, %v5039, 0
        %v5048 = vsel %vm2280, %v5040, 0
        %v5051 = vsel %vm2280, %v5041, 0
        %v5054 = vsel %vm2280, %v5042, 0
        %v5057 = vsel %vm2280, %v5043, 0
        %5059 = vmatpush.bf16.xpose.msra.mxu0 0
        %5060 = vmatpush.bf16.xpose.msra.mxu0 0
        %5061 = vmatpush.bf16.xpose.msra.mxu0 0
        %5062 = vmatpush.bf16.xpose.msra.mxu0 0
        %5063 = vmatpush.bf16.xpose.msra.mxu0 %v5057
        %5064 = vmatpush.bf16.xpose.msra.mxu0 %v5054
        %5065 = vmatpush.bf16.xpose.msra.mxu0 %v5051
        %5066 = vmatpush.bf16.xpose.msra.mxu0 %v5048
        %5067 = vmatmul.bf16.gmra.mxu0 %v5045
        %v5068 = vpop.f32.mrf.mxu0
        %v5069 = vadd.f32 0.0, %v5068
        %v5070 = vpop.f32.mrf.mxu0
        %5071 = vdwg.mxu0
        %v5072 = vsel %vm2309, %v5069, -inf
        %5073 = vmax.xlane.f32.xlu0 %v5072
        %v5074 = vpop.xlane.xlu0 %5073
        %v5075 = vsub.f32 %v5069, %v5074
        %v5076 = vmul.f32 %v5075, 1.442695
        %v5077 = vpow.pop %v5076
        %v5078 = vsel %vm2309, %v5077, 0.0
        %5079 = vadd.xlane.f32.xlu0 %v5078
        %v5080 = vpop.xlane.xlu0 %5079
        %v5081 = vrcp.pop %v5080
        %v5082 = vmul.f32 %v5077, %v5081
        %v5083 = vpack.c.bf16 %v5082, %v5082
        %v5084 = vpack.c.bf16 %v5022, %v5020
        %v5085 = vpack.c.bf16 %v5027, %v5025
        %v5086 = vpack.c.bf16 %v5032, %v5030
        %v5087 = vpack.c.bf16 %v5037, %v5035
        %v5089 = vsel %vm727, %v5083, 0
        %5091 = vmatpush.bf16.msra.mxu0 0
        %5092 = vmatpush.bf16.msra.mxu0 0
        %5093 = vmatpush.bf16.msra.mxu0 0
        %5094 = vmatpush.bf16.msra.mxu0 0
        %5095 = vmatpush.bf16.msra.mxu0 %v5087
        %5096 = vmatpush.bf16.msra.mxu0 %v5086
        %5097 = vmatpush.bf16.msra.mxu0 %v5085
        %5098 = vmatpush.bf16.msra.mxu0 %v5084
        %5099 = vmatmul.bf16.gmra.mxu0 %v5089
        %v5100 = vpop.f32.mrf.mxu0
        %v5101 = vadd.f32 0.0, %v5100
        %v5102 = vpop.f32.mrf.mxu0
        %5103 = vdwg.mxu0
        %5105 = vrot.lane.b32.xlu0 %v5039, 120
        %v5106 = vpop.permute.xlu0 %5105
        %5111 = vrot.lane.b32.xlu0 %v5040, 120
        %v5112 = vpop.permute.xlu0 %5111
        %5113 = vrot.lane.b32.xlu0 %v5041, 120
        %v5114 = vpop.permute.xlu0 %5113
        %5115 = vrot.lane.b32.xlu0 %v5042, 120
        %v5116 = vpop.permute.xlu0 %5115
        %5117 = vrot.lane.b32.xlu0 %v5043, 120
        %v5118 = vpop.permute.xlu0 %5117
        %v5120 = vsel %vm2280, %v5106, 0
        %v5123 = vsel %vm2280, %v5112, 0
        %v5126 = vsel %vm2280, %v5114, 0
        %v5129 = vsel %vm2280, %v5116, 0
        %v5132 = vsel %vm2280, %v5118, 0
        %5134 = vmatpush.bf16.xpose.msra.mxu0 0
        %5135 = vmatpush.bf16.xpose.msra.mxu0 0
        %5136 = vmatpush.bf16.xpose.msra.mxu0 0
        %5137 = vmatpush.bf16.xpose.msra.mxu0 0
        %5138 = vmatpush.bf16.xpose.msra.mxu0 %v5132
        %5139 = vmatpush.bf16.xpose.msra.mxu0 %v5129
        %5140 = vmatpush.bf16.xpose.msra.mxu0 %v5126
        %5141 = vmatpush.bf16.xpose.msra.mxu0 %v5123
        %5142 = vmatmul.bf16.gmra.mxu0 %v5120
        %v5143 = vpop.f32.mrf.mxu0
        %v5144 = vadd.f32 0.0, %v5143
        %v5145 = vpop.f32.mrf.mxu0
        %5146 = vdwg.mxu0
        %v5147 = vsel %vm2309, %v5144, -inf
        %5148 = vmax.xlane.f32.xlu0 %v5147
        %v5149 = vpop.xlane.xlu0 %5148
        %v5150 = vsub.f32 %v5144, %v5149
        %v5151 = vmul.f32 %v5150, 1.442695
        %v5152 = vpow.pop %v5151
        %v5153 = vsel %vm2309, %v5152, 0.0
        %5154 = vadd.xlane.f32.xlu0 %v5153
        %v5155 = vpop.xlane.xlu0 %5154
        %v5156 = vrcp.pop %v5155
        %v5157 = vmul.f32 %v5152, %v5156
        %v5158 = vpack.c.bf16 %v5157, %v5157
        %5163 = vrot.lane.b32.xlu0 %v5084, 120
        %v5164 = vpop.permute.xlu0 %5163
        %5165 = vrot.lane.b32.xlu0 %v5085, 120
        %v5166 = vpop.permute.xlu0 %5165
        %5167 = vrot.lane.b32.xlu0 %v5086, 120
        %v5168 = vpop.permute.xlu0 %5167
        %5169 = vrot.lane.b32.xlu0 %v5087, 120
        %v5170 = vpop.permute.xlu0 %5169
        %v5176 = vsel %vm727, %v5158, 0
        %5178 = vmatpush.bf16.msra.mxu0 0
        %5179 = vmatpush.bf16.msra.mxu0 0
        %5180 = vmatpush.bf16.msra.mxu0 0
        %5181 = vmatpush.bf16.msra.mxu0 0
        %5182 = vmatpush.bf16.msra.mxu0 %v5170
        %5183 = vmatpush.bf16.msra.mxu0 %v5168
        %5184 = vmatpush.bf16.msra.mxu0 %v5166
        %5185 = vmatpush.bf16.msra.mxu0 %v5164
        %5186 = vmatmul.bf16.gmra.mxu0 %v5176
        %v5187 = vpop.f32.mrf.mxu0
        %v5188 = vadd.f32 0.0, %v5187
        %v5189 = vpop.f32.mrf.mxu0
        %5190 = vdwg.mxu0
        %5192 = vrot.lane.b32.xlu0 %v5188, 8
        %v5193 = vpop.permute.xlu0 %5192
        %v5195 = vsel %vm2280, %v5101, %v5193
        %v5196 = vpack.c.bf16 %v5195, %v5195
        %v5197 = vperm.slane %v4903, 0
        %v5200 = vunpack.c.l.b16 %v4901
        %v5201 = vunpack.c.l.b16 %v4902
        %v5202 = vpack.c.b16 %v5201, %v5200
        %v5205 = vsel %vm673, %v5196, 0
        %5207 = vmatpush.bf16.msra.mxu0 0
        %5208 = vmatpush.bf16.msra.mxu0 0
        %5209 = vmatpush.bf16.msra.mxu0 0
        %5210 = vmatpush.bf16.msra.mxu0 0
        %5211 = vmatpush.bf16.msra.mxu0 0
        %5212 = vmatpush.bf16.msra.mxu0 0
        %5213 = vmatpush.bf16.msra.mxu0 0
        %5214 = vmatpush.bf16.msra.mxu0 %v5202
        %5215 = vmatmul.bf16.gmra.mxu0 %v5205
        %v5216 = vpop.f32.mrf.mxu0
        %v5217 = vadd.f32 %v5197, %v5216
        %v5218 = vpop.f32.mrf.mxu0
        %5219 = vdwg.mxu0
        %v5220 = vadd.f32 %v4103, %v5217
        %v5221 = vld [vmem:[%s3 + $0x1f8] sm:$0x1]
        %v5222 = vld [vmem:[%s3 + $0x200] sm:$0x1]
        %v5223 = vsel %vm2092, %v5220, 0.0
        %5224 = vadd.xlane.f32.xlu0 %v5223
        %v5225 = vpop.xlane.xlu0 %5224
        %v5226 = vmul.f32 %v5225, %v418
        %v5227 = vsub.f32 %v5220, %v5226
        %v5228 = vmul.f32 %v5227, %v5227
        %v5229 = vsel %vm2092, %v5228, 0.0
        %5230 = vadd.xlane.f32.xlu0 %v5229
        %v5231 = vpop.xlane.xlu0 %5230
        %v5232 = vmul.f32 %v5231, %v418
        %v5233 = vadd.f32 %v5232, 1e-05
        %v5234 = vrsqrt.pop %v5233
        %v5235 = vmul.f32 %v5234, %v5233
        %v5236 = vmul.f32 %v5235, %v5234
        %v5237 = vmul.f32 0.5, %v5236
        %v5238 = vsub.f32 1.5, %v5237
        %v5239 = vmul.f32 %v5234, %v5238
        %vm5240 = vweird.f32 %v5233
        %vm5241 = vweird.f32 %v5234
        %vm5242 = vmor %vm5240, %vm5241
        %v5243 = vsel %vm5242, %v5234, %v5239
        %v5244 = vmul.f32 %v5227, %v5243
        %v5245 = vperm.slane %v5221, 0
        %v5246 = vmul.f32 %v5244, %v5245
        %v5247 = vperm.slane %v5222, 0
        %v5248 = vadd.f32 %v5246, %v5247
        %v5249 = vld [vmem:[%s2 + $0x1b0] sm:$0xf]
        %v5250 = vld [vmem:[%s2 + $0x1b4] sm:$0xf]
        %v5251 = vld [vmem:[%s2 + $0x1b8] sm:$0xf]
        %v5252 = vld [vmem:[%s2 + $0x1bc] sm:$0xf]
        %v5253 = vpack.c.bf16 %v5248, %v5248
        %v5254 = vld [vmem:[%s3 + $0x248] sm:$0x1]
        %v5255 = vperm.slane %v5254, 0
        %v5257 = vshrl.u32 %v5253, 16
        %v5259 = vshll.u32 %v5253, 16
        %v5261 = vrot.slane %v5259, 1
        %v5262 = vor.u32 %v5257, %v5261
        %v5267 = vunpack.c.l.b16 %v5249
        %v5268 = vunpack.c.l.b16 %v5250
        %v5269 = vunpack.c.l.b16 %v5251
        %v5270 = vunpack.c.l.b16 %v5252
        %v5271 = vpack.c.b16 %v5268, %v5267
        %v5272 = vpack.c.b16 %v5270, %v5269
        %v5276 = vsel %vm387, %v5262, 0
        %5278 = vmatpush.bf16.msra.mxu0 0
        %5279 = vmatpush.bf16.msra.mxu0 0
        %5280 = vmatpush.bf16.msra.mxu0 0
        %5281 = vmatpush.bf16.msra.mxu0 0
        %5282 = vmatpush.bf16.msra.mxu0 0
        %5283 = vmatpush.bf16.msra.mxu0 0
        %5284 = vmatpush.bf16.msra.mxu0 %v5272
        %5285 = vmatpush.bf16.msra.mxu0 %v5271
        %5286 = vmatmul.bf16.gmra.mxu0 %v5276
        %v5287 = vpop.f32.mrf.mxu0
        %v5288 = vadd.f32 %v5255, %v5287
        %v5289 = vpop.f32.mrf.mxu0
        %5290 = vdwg.mxu0
        %v5291 = vmax.f32 %v5288, 0.0
        %v5292 = vld [vmem:[%s2 + $0x1c0] sm:$0xf]
        %v5293 = vld [vmem:[%s2 + $0x1c4] sm:$0xf]
        %v5294 = vld [vmem:[%s2 + $0x1c8] sm:$0xf]
        %v5295 = vld [vmem:[%s2 + $0x1cc] sm:$0xf]
        %v5296 = vld [vmem:[%s2 + $0x1d0] sm:$0xf]
        %v5297 = vld [vmem:[%s2 + $0x1d4] sm:$0xf]
        %v5298 = vld [vmem:[%s2 + $0x1d8] sm:$0xf]
        %v5299 = vld [vmem:[%s2 + $0x1dc] sm:$0xf]
        %v5300 = vld [vmem:[%s2 + $0x1e0] sm:$0xf]
        %v5301 = vld [vmem:[%s2 + $0x1e4] sm:$0xf]
        %v5302 = vld [vmem:[%s2 + $0x1e8] sm:$0xf]
        %v5303 = vld [vmem:[%s2 + $0x1ec] sm:$0xf]
        %v5304 = vld [vmem:[%s2 + $0x1f0] sm:$0xf]
        %v5305 = vld [vmem:[%s2 + $0x1f4] sm:$0xf]
        %v5306 = vld [vmem:[%s2 + $0x1f8] sm:$0xf]
        %v5307 = vld [vmem:[%s2 + $0x1fc] sm:$0xf]
        %v5308 = vpack.c.bf16 %v5291, %v5291
        %v5309 = vld [vmem:[%s3 + $0x250] sm:$0x1]
        %v5310 = vperm.slane %v5309, 0
        %v5327 = vunpack.c.l.b16 %v5292
        %v5328 = vunpack.c.l.b16 %v5293
        %v5329 = vunpack.c.l.b16 %v5294
        %v5330 = vunpack.c.l.b16 %v5295
        %v5331 = vunpack.c.l.b16 %v5296
        %v5332 = vunpack.c.l.b16 %v5297
        %v5333 = vunpack.c.l.b16 %v5298
        %v5334 = vunpack.c.l.b16 %v5299
        %v5335 = vunpack.c.l.b16 %v5300
        %v5336 = vunpack.c.l.b16 %v5301
        %v5337 = vunpack.c.l.b16 %v5302
        %v5338 = vunpack.c.l.b16 %v5303
        %v5339 = vunpack.c.l.b16 %v5304
        %v5340 = vunpack.c.l.b16 %v5305
        %v5341 = vunpack.c.l.b16 %v5306
        %v5342 = vunpack.c.l.b16 %v5307
        %v5343 = vpack.c.b16 %v5328, %v5327
        %v5344 = vpack.c.b16 %v5330, %v5329
        %v5345 = vpack.c.b16 %v5332, %v5331
        %v5346 = vpack.c.b16 %v5334, %v5333
        %v5347 = vpack.c.b16 %v5336, %v5335
        %v5348 = vpack.c.b16 %v5338, %v5337
        %v5349 = vpack.c.b16 %v5340, %v5339
        %v5350 = vpack.c.b16 %v5342, %v5341
        %5359 = vmatpush.bf16.msra.mxu0 %v5350
        %5360 = vmatpush.bf16.msra.mxu0 %v5349
        %5361 = vmatpush.bf16.msra.mxu0 %v5348
        %5362 = vmatpush.bf16.msra.mxu0 %v5347
        %5363 = vmatpush.bf16.msra.mxu0 %v5346
        %5364 = vmatpush.bf16.msra.mxu0 %v5345
        %5365 = vmatpush.bf16.msra.mxu0 %v5344
        %5366 = vmatpush.bf16.msra.mxu0 %v5343
        %5367 = vmatmul.bf16.gmra.mxu0 %v5308
        %v5368 = vpop.f32.mrf.mxu0
        %v5369 = vadd.f32 %v5310, %v5368
        %v5370 = vpop.f32.mrf.mxu0
        %5371 = vdwg.mxu0
        %v5372 = vmax.f32 %v5369, 0.0
        %v5373 = vld [vmem:[%s3 + $0x260] sm:$0xf]
        %v5374 = vmul.f32 %v5372, %v5373
        %v5375 = vld [vmem:[%s2 + $0x200] sm:$0xf]
        %v5376 = vld [vmem:[%s2 + $0x204] sm:$0xf]
        %v5377 = vld [vmem:[%s2 + $0x208] sm:$0xf]
        %v5378 = vld [vmem:[%s2 + $0x20c] sm:$0xf]
        %v5379 = vld [vmem:[%s2 + $0x210] sm:$0xf]
        %v5380 = vld [vmem:[%s2 + $0x214] sm:$0xf]
        %v5381 = vld [vmem:[%s2 + $0x218] sm:$0xf]
        %v5382 = vld [vmem:[%s2 + $0x21c] sm:$0xf]
        %v5383 = vld [vmem:[%s2 + $0x220] sm:$0xf]
        %v5384 = vld [vmem:[%s2 + $0x224] sm:$0xf]
        %v5385 = vld [vmem:[%s2 + $0x228] sm:$0xf]
        %v5386 = vld [vmem:[%s2 + $0x22c] sm:$0xf]
        %v5387 = vld [vmem:[%s2 + $0x230] sm:$0xf]
        %v5388 = vld [vmem:[%s2 + $0x234] sm:$0xf]
        %v5389 = vld [vmem:[%s2 + $0x238] sm:$0xf]
        %v5390 = vld [vmem:[%s2 + $0x23c] sm:$0xf]
        %v5391 = vpack.c.bf16 %v5374, %v5374
        %v5392 = vld [vmem:[%s3 + $0x258] sm:$0xf]
        %v5409 = vunpack.c.l.b16 %v5375
        %v5410 = vunpack.c.l.b16 %v5376
        %v5411 = vunpack.c.l.b16 %v5377
        %v5412 = vunpack.c.l.b16 %v5378
        %v5413 = vunpack.c.l.b16 %v5379
        %v5414 = vunpack.c.l.b16 %v5380
        %v5415 = vunpack.c.l.b16 %v5381
        %v5416 = vunpack.c.l.b16 %v5382
        %v5417 = vunpack.c.l.b16 %v5383
        %v5418 = vunpack.c.l.b16 %v5384
        %v5419 = vunpack.c.l.b16 %v5385
        %v5420 = vunpack.c.l.b16 %v5386
        %v5421 = vunpack.c.l.b16 %v5387
        %v5422 = vunpack.c.l.b16 %v5388
        %v5423 = vunpack.c.l.b16 %v5389
        %v5424 = vunpack.c.l.b16 %v5390
        %v5425 = vpack.c.b16 %v5410, %v5409
        %v5426 = vpack.c.b16 %v5412, %v5411
        %v5427 = vpack.c.b16 %v5414, %v5413
        %v5428 = vpack.c.b16 %v5416, %v5415
        %v5429 = vpack.c.b16 %v5418, %v5417
        %v5430 = vpack.c.b16 %v5420, %v5419
        %v5431 = vpack.c.b16 %v5422, %v5421
        %v5432 = vpack.c.b16 %v5424, %v5423
        %5441 = vmatpush.bf16.msra.mxu0 %v5432
        %5442 = vmatpush.bf16.msra.mxu0 %v5431
        %5443 = vmatpush.bf16.msra.mxu0 %v5430
        %5444 = vmatpush.bf16.msra.mxu0 %v5429
        %5445 = vmatpush.bf16.msra.mxu0 %v5428
        %5446 = vmatpush.bf16.msra.mxu0 %v5427
        %5447 = vmatpush.bf16.msra.mxu0 %v5426
        %5448 = vmatpush.bf16.msra.mxu0 %v5425
        %5449 = vmatmul.bf16.gmra.mxu0 %v5391
        %v5450 = vpop.f32.mrf.mxu0
        %v5451 = vadd.f32 %v5392, %v5450
        %v5452 = vpop.f32.mrf.mxu0
        %5453 = vdwg.mxu0
        %v5454 = vld [vmem:[%s2 + $0x264] sm:$0xf]
        %v5455 = vld [vmem:[%s2 + $0x268] sm:$0xf]
        %v5456 = vld [vmem:[%s2 + $0x26c] sm:$0xf]
        %v5457 = vld [vmem:[%s2 + $0x270] sm:$0xf]
        %v5458 = vld [vmem:[%s3 + $0x2a8] sm:$0x1]
        %v5463 = vunpack.c.l.b16 %v5454
        %v5464 = vunpack.c.l.b16 %v5455
        %v5465 = vunpack.c.l.b16 %v5456
        %v5466 = vunpack.c.l.b16 %v5457
        %v5467 = vpack.c.b16 %v5464, %v5463
        %v5468 = vpack.c.b16 %v5466, %v5465
        %v5471 = vsel %vm387, %v5253, 0
        %5473 = vmatpush.bf16.msra.mxu0 0
        %5474 = vmatpush.bf16.msra.mxu0 0
        %5475 = vmatpush.bf16.msra.mxu0 0
        %5476 = vmatpush.bf16.msra.mxu0 0
        %5477 = vmatpush.bf16.msra.mxu0 0
        %5478 = vmatpush.bf16.msra.mxu0 0
        %5479 = vmatpush.bf16.msra.mxu0 %v5468
        %5480 = vmatpush.bf16.msra.mxu0 %v5467
        %5481 = vmatmul.bf16.gmra.mxu0 %v5471
        %v5482 = vpop.f32.mrf.mxu0
        %v5483 = vadd.f32 %v5458, %v5482
        %v5484 = vpop.f32.mrf.mxu0
        %5485 = vdwg.mxu0
        %v5486 = vmax.f32 %v5483, 0.0
        %v5487 = vld [vmem:[%s2 + $0x274] sm:$0xf]
        %v5488 = vld [vmem:[%s2 + $0x278] sm:$0xf]
        %v5489 = vld [vmem:[%s2 + $0x27c] sm:$0xf]
        %v5490 = vld [vmem:[%s2 + $0x280] sm:$0xf]
        %v5491 = vpack.c.bf16 %v5486, %v5486
        %v5492 = vld [vmem:[%s3 + $0x2b0] sm:$0x1]
        %v5497 = vunpack.c.l.b16 %v5487
        %v5498 = vunpack.c.l.b16 %v5488
        %v5499 = vunpack.c.l.b16 %v5489
        %v5500 = vunpack.c.l.b16 %v5490
        %v5501 = vpack.c.b16 %v5498, %v5497
        %v5502 = vpack.c.b16 %v5500, %v5499
        %v5506 = vsel %vm387, %v5491, 0
        %5508 = vmatpush.bf16.msra.mxu0 0
        %5509 = vmatpush.bf16.msra.mxu0 0
        %5510 = vmatpush.bf16.msra.mxu0 0
        %5511 = vmatpush.bf16.msra.mxu0 0
        %5512 = vmatpush.bf16.msra.mxu0 0
        %5513 = vmatpush.bf16.msra.mxu0 0
        %5514 = vmatpush.bf16.msra.mxu0 %v5502
        %5515 = vmatpush.bf16.msra.mxu0 %v5501
        %5516 = vmatmul.bf16.gmra.mxu0 %v5506
        %v5517 = vpop.f32.mrf.mxu0
        %v5518 = vadd.f32 %v5492, %v5517
        %v5519 = vpop.f32.mrf.mxu0
        %5520 = vdwg.mxu0
        %v5521 = vmax.f32 %v5518, 0.0
        %v5522 = vld [vmem:[%s2 + $0x284] sm:$0xf]
        %v5523 = vld [vmem:[%s2 + $0x288] sm:$0xf]
        %v5524 = vld [vmem:[%s2 + $0x28c] sm:$0xf]
        %v5525 = vld [vmem:[%s2 + $0x290] sm:$0xf]
        %v5526 = vpack.c.bf16 %v5521, %v5521
        %v5527 = vld [vmem:[%s3 + $0x2b8] sm:$0x1]
        %v5532 = vunpack.c.l.b16 %v5522
        %v5533 = vunpack.c.l.b16 %v5523
        %v5534 = vunpack.c.l.b16 %v5524
        %v5535 = vunpack.c.l.b16 %v5525
        %v5536 = vpack.c.b16 %v5533, %v5532
        %v5537 = vpack.c.b16 %v5535, %v5534
        %v5541 = vsel %vm387, %v5526, 0
        %5543 = vmatpush.bf16.msra.mxu0 0
        %5544 = vmatpush.bf16.msra.mxu0 0
        %5545 = vmatpush.bf16.msra.mxu0 0
        %5546 = vmatpush.bf16.msra.mxu0 0
        %5547 = vmatpush.bf16.msra.mxu0 0
        %5548 = vmatpush.bf16.msra.mxu0 0
        %5549 = vmatpush.bf16.msra.mxu0 %v5537
        %5550 = vmatpush.bf16.msra.mxu0 %v5536
        %5551 = vmatmul.bf16.gmra.mxu0 %v5541
        %v5552 = vpop.f32.mrf.mxu0
        %v5553 = vadd.f32 %v5527, %v5552
        %v5554 = vpop.f32.mrf.mxu0
        %5555 = vdwg.mxu0
        %v5556 = vld [vmem:[%s2 + $0x190] sm:$0xf]
        %v5557 = vld [vmem:[%s2 + $0x194] sm:$0xf]
        %v5558 = vld [vmem:[%s2 + $0x198] sm:$0xf]
        %v5559 = vld [vmem:[%s2 + $0x19c] sm:$0xf]
        %v5560 = vld [vmem:[%s3 + $0x208] sm:$0x1]
        %v5561 = vperm.slane %v5560, 0
        %v5566 = vunpack.c.l.b16 %v5556
        %v5567 = vunpack.c.l.b16 %v5557
        %v5568 = vunpack.c.l.b16 %v5558
        %v5569 = vunpack.c.l.b16 %v5559
        %v5570 = vpack.c.b16 %v5567, %v5566
        %v5571 = vpack.c.b16 %v5569, %v5568
        %5574 = vmatpush.bf16.msra.mxu0 0
        %5575 = vmatpush.bf16.msra.mxu0 0
        %5576 = vmatpush.bf16.msra.mxu0 0
        %5577 = vmatpush.bf16.msra.mxu0 0
        %5578 = vmatpush.bf16.msra.mxu0 0
        %5579 = vmatpush.bf16.msra.mxu0 0
        %5580 = vmatpush.bf16.msra.mxu0 %v5571
        %5581 = vmatpush.bf16.msra.mxu0 %v5570
        %5582 = vmatmul.bf16.gmra.mxu0 %v4999
        %v5583 = vpop.f32.mrf.mxu0
        %v5584 = vadd.f32 %v5561, %v5583
        %v5585 = vpop.f32.mrf.mxu0
        %v5586 = vadd.f32 %v5561, %v5585
        %5587 = vmatmul.bf16.gmra.mxu0 %v5002
        %v5588 = vpop.f32.mrf.mxu0
        %v5589 = vadd.f32 %v5561, %v5588
        %v5590 = vpop.f32.mrf.mxu0
        %v5591 = vadd.f32 %v5561, %v5590
        %5592 = vmatmul.bf16.gmra.mxu0 %v5005
        %v5593 = vpop.f32.mrf.mxu0
        %v5594 = vadd.f32 %v5561, %v5593
        %v5595 = vpop.f32.mrf.mxu0
        %v5596 = vadd.f32 %v5561, %v5595
        %5597 = vmatmul.bf16.gmra.mxu0 %v5008
        %v5598 = vpop.f32.mrf.mxu0
        %v5599 = vadd.f32 %v5561, %v5598
        %v5600 = vpop.f32.mrf.mxu0
        %v5601 = vadd.f32 %v5561, %v5600
        %5602 = vdwg.mxu0
        %v5603 = vld [vmem:[%s3 + $0x220] sm:$0xff]
        %v5604 = vld [vmem:[%s3 + $0x228] sm:$0xff]
        %v5605 = vld [vmem:[%s3 + $0x230] sm:$0xff]
        %v5606 = vld [vmem:[%s3 + $0x238] sm:$0xff]
        %v5608 = vsel %vm387, %v5584, 0
        %v5611 = vsel %vm387, %v5586, 0
        %v5614 = vsel %vm387, %v5589, 0
        %v5617 = vsel %vm387, %v5591, 0
        %v5620 = vsel %vm387, %v5594, 0
        %v5623 = vsel %vm387, %v5596, 0
        %v5626 = vsel %vm387, %v5599, 0
        %v5629 = vsel %vm387, %v5601, 0
        %5631 = vmatpush.msra.mxu0 0.0
        %5632 = vmatpush.msra.mxu0 0.0
        %5633 = vmatpush.msra.mxu0 0.0
        %5634 = vmatpush.msra.mxu0 0.0
        %5635 = vmatpush.msra.mxu0 0.0
        %5636 = vmatpush.msra.mxu0 0.0
        %5637 = vmatpush.msra.mxu0 0.0
        %5638 = vmatpush.msra.mxu0 0.0
        %5639 = vmatpush.msra.mxu0 0.0
        %5640 = vmatpush.msra.mxu0 0.0
        %5641 = vmatpush.msra.mxu0 0.0
        %5642 = vmatpush.msra.mxu0 0.0
        %5643 = vmatpush.msra.mxu0 %v5606
        %5644 = vmatpush.msra.mxu0 %v5605
        %5645 = vmatpush.msra.mxu0 %v5604
        %5646 = vmatpush.msra.mxu0 %v5603
        %5647 = vmatmul.f32.gmra.mxu0 %v5608
        %v5648 = vpop.f32.mrf.mxu0
        %v5649 = vadd.f32 0.0, %v5648
        %5650 = vmatmul.f32.gmra.mxu0 %v5611
        %v5651 = vpop.f32.mrf.mxu0
        %v5652 = vadd.f32 0.0, %v5651
        %5653 = vmatmul.f32.gmra.mxu0 %v5614
        %v5654 = vpop.f32.mrf.mxu0
        %v5655 = vadd.f32 0.0, %v5654
        %5656 = vmatmul.f32.gmra.mxu0 %v5617
        %v5657 = vpop.f32.mrf.mxu0
        %v5658 = vadd.f32 0.0, %v5657
        %5659 = vmatmul.f32.gmra.mxu0 %v5620
        %v5660 = vpop.f32.mrf.mxu0
        %v5661 = vadd.f32 0.0, %v5660
        %5662 = vmatmul.f32.gmra.mxu0 %v5623
        %v5663 = vpop.f32.mrf.mxu0
        %v5664 = vadd.f32 0.0, %v5663
        %5665 = vmatmul.f32.gmra.mxu0 %v5626
        %v5666 = vpop.f32.mrf.mxu0
        %v5667 = vadd.f32 0.0, %v5666
        %5668 = vmatmul.f32.gmra.mxu0 %v5629
        %v5669 = vpop.f32.mrf.mxu0
        %v5670 = vadd.f32 0.0, %v5669
        %5671 = vdwg.mxu0
        %v5672 = vmul.f32 %v5584, %v5584
        %v5673 = vmul.f32 %v5586, %v5586
        %v5674 = vmul.f32 %v5589, %v5589
        %v5675 = vmul.f32 %v5591, %v5591
        %v5676 = vmul.f32 %v5594, %v5594
        %v5677 = vmul.f32 %v5596, %v5596
        %v5678 = vmul.f32 %v5599, %v5599
        %v5679 = vmul.f32 %v5601, %v5601
        %v5681 = vsel %vm387, %v5672, 0
        %v5684 = vsel %vm387, %v5673, 0
        %v5687 = vsel %vm387, %v5674, 0
        %v5690 = vsel %vm387, %v5675, 0
        %v5693 = vsel %vm387, %v5676, 0
        %v5696 = vsel %vm387, %v5677, 0
        %v5699 = vsel %vm387, %v5678, 0
        %v5702 = vsel %vm387, %v5679, 0
        %5704 = vmatpush.msra.mxu0 0.0
        %5705 = vmatpush.msra.mxu0 0.0
        %5706 = vmatpush.msra.mxu0 0.0
        %5707 = vmatpush.msra.mxu0 0.0
        %5708 = vmatpush.msra.mxu0 0.0
        %5709 = vmatpush.msra.mxu0 0.0
        %5710 = vmatpush.msra.mxu0 0.0
        %5711 = vmatpush.msra.mxu0 0.0
        %5712 = vmatpush.msra.mxu0 0.0
        %5713 = vmatpush.msra.mxu0 0.0
        %5714 = vmatpush.msra.mxu0 0.0
        %5715 = vmatpush.msra.mxu0 0.0
        %5716 = vmatpush.msra.mxu0 %v5606
        %5717 = vmatpush.msra.mxu0 %v5605
        %5718 = vmatpush.msra.mxu0 %v5604
        %5719 = vmatpush.msra.mxu0 %v5603
        %5720 = vmatmul.f32.gmra.mxu0 %v5681
        %v5721 = vpop.f32.mrf.mxu0
        %v5722 = vadd.f32 0.0, %v5721
        %5723 = vmatmul.f32.gmra.mxu0 %v5684
        %v5724 = vpop.f32.mrf.mxu0
        %v5725 = vadd.f32 0.0, %v5724
        %5726 = vmatmul.f32.gmra.mxu0 %v5687
        %v5727 = vpop.f32.mrf.mxu0
        %v5728 = vadd.f32 0.0, %v5727
        %5729 = vmatmul.f32.gmra.mxu0 %v5690
        %v5730 = vpop.f32.mrf.mxu0
        %v5731 = vadd.f32 0.0, %v5730
        %5732 = vmatmul.f32.gmra.mxu0 %v5693
        %v5733 = vpop.f32.mrf.mxu0
        %v5734 = vadd.f32 0.0, %v5733
        %5735 = vmatmul.f32.gmra.mxu0 %v5696
        %v5736 = vpop.f32.mrf.mxu0
        %v5737 = vadd.f32 0.0, %v5736
        %5738 = vmatmul.f32.gmra.mxu0 %v5699
        %v5739 = vpop.f32.mrf.mxu0
        %v5740 = vadd.f32 0.0, %v5739
        %5741 = vmatmul.f32.gmra.mxu0 %v5702
        %v5742 = vpop.f32.mrf.mxu0
        %v5743 = vadd.f32 0.0, %v5742
        %5744 = vdwg.mxu0
        %v5745 = vmul.f32 %v5649, %v5649
        %v5746 = vmul.f32 %v5652, %v5652
        %v5747 = vmul.f32 %v5655, %v5655
        %v5748 = vmul.f32 %v5658, %v5658
        %v5749 = vmul.f32 %v5661, %v5661
        %v5750 = vmul.f32 %v5664, %v5664
        %v5751 = vmul.f32 %v5667, %v5667
        %v5752 = vmul.f32 %v5670, %v5670
        %v5753 = vsub.f32 %v5722, %v5745
        %v5754 = vsub.f32 %v5725, %v5746
        %v5755 = vsub.f32 %v5728, %v5747
        %v5756 = vsub.f32 %v5731, %v5748
        %v5757 = vsub.f32 %v5734, %v5749
        %v5758 = vsub.f32 %v5737, %v5750
        %v5759 = vsub.f32 %v5740, %v5751
        %v5760 = vsub.f32 %v5743, %v5752
        %v5761 = vsub.f32 %v5584, %v5649
        %v5762 = vsub.f32 %v5586, %v5652
        %v5763 = vsub.f32 %v5589, %v5655
        %v5764 = vsub.f32 %v5591, %v5658
        %v5765 = vsub.f32 %v5594, %v5661
        %v5766 = vsub.f32 %v5596, %v5664
        %v5767 = vsub.f32 %v5599, %v5667
        %v5768 = vsub.f32 %v5601, %v5670
        %v5769 = vadd.f32 %v5753, 1e-06
        %v5770 = vadd.f32 %v5754, 1e-06
        %v5771 = vadd.f32 %v5755, 1e-06
        %v5772 = vadd.f32 %v5756, 1e-06
        %v5773 = vadd.f32 %v5757, 1e-06
        %v5774 = vadd.f32 %v5758, 1e-06
        %v5775 = vadd.f32 %v5759, 1e-06
        %v5776 = vadd.f32 %v5760, 1e-06
        %v5777 = vrsqrt.pop %v5769
        %v5778 = vmul.f32 %v5777, %v5769
        %v5779 = vmul.f32 %v5778, %v5777
        %v5780 = vmul.f32 0.5, %v5779
        %v5781 = vsub.f32 1.5, %v5780
        %v5782 = vmul.f32 %v5777, %v5781
        %vm5783 = vweird.f32 %v5769
        %vm5784 = vweird.f32 %v5777
        %vm5785 = vmor %vm5783, %vm5784
        %v5786 = vsel %vm5785, %v5777, %v5782
        %v5787 = vrsqrt.pop %v5770
        %v5788 = vmul.f32 %v5787, %v5770
        %v5789 = vmul.f32 %v5788, %v5787
        %v5790 = vmul.f32 0.5, %v5789
        %v5791 = vsub.f32 1.5, %v5790
        %v5792 = vmul.f32 %v5787, %v5791
        %vm5793 = vweird.f32 %v5770
        %vm5794 = vweird.f32 %v5787
        %vm5795 = vmor %vm5793, %vm5794
        %v5796 = vsel %vm5795, %v5787, %v5792
        %v5797 = vrsqrt.pop %v5771
        %v5798 = vmul.f32 %v5797, %v5771
        %v5799 = vmul.f32 %v5798, %v5797
        %v5800 = vmul.f32 0.5, %v5799
        %v5801 = vsub.f32 1.5, %v5800
        %v5802 = vmul.f32 %v5797, %v5801
        %vm5803 = vweird.f32 %v5771
        %vm5804 = vweird.f32 %v5797
        %vm5805 = vmor %vm5803, %vm5804
        %v5806 = vsel %vm5805, %v5797, %v5802
        %v5807 = vrsqrt.pop %v5772
        %v5808 = vmul.f32 %v5807, %v5772
        %v5809 = vmul.f32 %v5808, %v5807
        %v5810 = vmul.f32 0.5, %v5809
        %v5811 = vsub.f32 1.5, %v5810
        %v5812 = vmul.f32 %v5807, %v5811
        %vm5813 = vweird.f32 %v5772
        %vm5814 = vweird.f32 %v5807
        %vm5815 = vmor %vm5813, %vm5814
        %v5816 = vsel %vm5815, %v5807, %v5812
        %v5817 = vrsqrt.pop %v5773
        %v5818 = vmul.f32 %v5817, %v5773
        %v5819 = vmul.f32 %v5818, %v5817
        %v5820 = vmul.f32 0.5, %v5819
        %v5821 = vsub.f32 1.5, %v5820
        %v5822 = vmul.f32 %v5817, %v5821
        %vm5823 = vweird.f32 %v5773
        %vm5824 = vweird.f32 %v5817
        %vm5825 = vmor %vm5823, %vm5824
        %v5826 = vsel %vm5825, %v5817, %v5822
        %v5827 = vrsqrt.pop %v5774
        %v5828 = vmul.f32 %v5827, %v5774
        %v5829 = vmul.f32 %v5828, %v5827
        %v5830 = vmul.f32 0.5, %v5829
        %v5831 = vsub.f32 1.5, %v5830
        %v5832 = vmul.f32 %v5827, %v5831
        %vm5833 = vweird.f32 %v5774
        %vm5834 = vweird.f32 %v5827
        %vm5835 = vmor %vm5833, %vm5834
        %v5836 = vsel %vm5835, %v5827, %v5832
        %v5837 = vrsqrt.pop %v5775
        %v5838 = vmul.f32 %v5837, %v5775
        %v5839 = vmul.f32 %v5838, %v5837
        %v5840 = vmul.f32 0.5, %v5839
        %v5841 = vsub.f32 1.5, %v5840
        %v5842 = vmul.f32 %v5837, %v5841
        %vm5843 = vweird.f32 %v5775
        %vm5844 = vweird.f32 %v5837
        %vm5845 = vmor %vm5843, %vm5844
        %v5846 = vsel %vm5845, %v5837, %v5842
        %v5847 = vrsqrt.pop %v5776
        %v5848 = vmul.f32 %v5847, %v5776
        %v5849 = vmul.f32 %v5848, %v5847
        %v5850 = vmul.f32 0.5, %v5849
        %v5851 = vsub.f32 1.5, %v5850
        %v5852 = vmul.f32 %v5847, %v5851
        %vm5853 = vweird.f32 %v5776
        %vm5854 = vweird.f32 %v5847
        %vm5855 = vmor %vm5853, %vm5854
        %v5856 = vsel %vm5855, %v5847, %v5852
        %v5857 = vmul.f32 %v5761, %v5786
        %v5858 = vmul.f32 %v5762, %v5796
        %v5859 = vmul.f32 %v5763, %v5806
        %v5860 = vmul.f32 %v5764, %v5816
        %v5861 = vmul.f32 %v5765, %v5826
        %v5862 = vmul.f32 %v5766, %v5836
        %v5863 = vmul.f32 %v5767, %v5846
        %v5864 = vmul.f32 %v5768, %v5856
        %v5865 = vld [vmem:[%s3 + $0x210] sm:$0x1]
        %v5866 = vperm.slane %v5865, 0
        %v5867 = vmul.f32 %v5857, %v5866
        %v5868 = vmul.f32 %v5858, %v5866
        %v5869 = vmul.f32 %v5859, %v5866
        %v5870 = vmul.f32 %v5860, %v5866
        %v5871 = vmul.f32 %v5861, %v5866
        %v5872 = vmul.f32 %v5862, %v5866
        %v5873 = vmul.f32 %v5863, %v5866
        %v5874 = vmul.f32 %v5864, %v5866
        %v5875 = vld [vmem:[%s3 + $0x218] sm:$0x1]
        %v5876 = vperm.slane %v5875, 0
        %v5877 = vadd.f32 %v5867, %v5876
        %v5878 = vadd.f32 %v5868, %v5876
        %v5879 = vadd.f32 %v5869, %v5876
        %v5880 = vadd.f32 %v5870, %v5876
        %v5881 = vadd.f32 %v5871, %v5876
        %v5882 = vadd.f32 %v5872, %v5876
        %v5883 = vadd.f32 %v5873, %v5876
        %v5884 = vadd.f32 %v5874, %v5876
        %v5885 = vmul.f32 %v5877, 0.5
        %v5886 = vmul.f32 %v5878, 0.5
        %v5887 = vmul.f32 %v5879, 0.5
        %v5888 = vmul.f32 %v5880, 0.5
        %v5889 = vmul.f32 %v5881, 0.5
        %v5890 = vmul.f32 %v5882, 0.5
        %v5891 = vmul.f32 %v5883, 0.5
        %v5892 = vmul.f32 %v5884, 0.5
        %v5893 = vmul.f32 %v5877, 0.044715
        %v5894 = vmul.f32 %v5878, 0.044715
        %v5895 = vmul.f32 %v5879, 0.044715
        %v5896 = vmul.f32 %v5880, 0.044715
        %v5897 = vmul.f32 %v5881, 0.044715
        %v5898 = vmul.f32 %v5882, 0.044715
        %v5899 = vmul.f32 %v5883, 0.044715
        %v5900 = vmul.f32 %v5884, 0.044715
        %v5901 = vmul.f32 %v5893, %v5877
        %v5902 = vmul.f32 %v5894, %v5878
        %v5903 = vmul.f32 %v5895, %v5879
        %v5904 = vmul.f32 %v5896, %v5880
        %v5905 = vmul.f32 %v5897, %v5881
        %v5906 = vmul.f32 %v5898, %v5882
        %v5907 = vmul.f32 %v5899, %v5883
        %v5908 = vmul.f32 %v5900, %v5884
        %v5909 = vmul.f32 %v5901, %v5877
        %v5910 = vmul.f32 %v5902, %v5878
        %v5911 = vmul.f32 %v5903, %v5879
        %v5912 = vmul.f32 %v5904, %v5880
        %v5913 = vmul.f32 %v5905, %v5881
        %v5914 = vmul.f32 %v5906, %v5882
        %v5915 = vmul.f32 %v5907, %v5883
        %v5916 = vmul.f32 %v5908, %v5884
        %v5917 = vadd.f32 %v5877, %v5909
        %v5918 = vadd.f32 %v5878, %v5910
        %v5919 = vadd.f32 %v5879, %v5911
        %v5920 = vadd.f32 %v5880, %v5912
        %v5921 = vadd.f32 %v5881, %v5913
        %v5922 = vadd.f32 %v5882, %v5914
        %v5923 = vadd.f32 %v5883, %v5915
        %v5924 = vadd.f32 %v5884, %v5916
        %v5925 = vmul.f32 %v5917, 0.7978846
        %v5926 = vmul.f32 %v5918, 0.7978846
        %v5927 = vmul.f32 %v5919, 0.7978846
        %v5928 = vmul.f32 %v5920, 0.7978846
        %v5929 = vmul.f32 %v5921, 0.7978846
        %v5930 = vmul.f32 %v5922, 0.7978846
        %v5931 = vmul.f32 %v5923, 0.7978846
        %v5932 = vmul.f32 %v5924, 0.7978846
        %v5933 = vtanh.pop %v5925
        %v5934 = vtanh.pop %v5926
        %v5935 = vtanh.pop %v5927
        %v5936 = vtanh.pop %v5928
        %v5937 = vtanh.pop %v5929
        %v5938 = vtanh.pop %v5930
        %v5939 = vtanh.pop %v5931
        %v5940 = vtanh.pop %v5932
        %v5941 = vadd.f32 %v5933, 1.0
        %v5942 = vadd.f32 %v5934, 1.0
        %v5943 = vadd.f32 %v5935, 1.0
        %v5944 = vadd.f32 %v5936, 1.0
        %v5945 = vadd.f32 %v5937, 1.0
        %v5946 = vadd.f32 %v5938, 1.0
        %v5947 = vadd.f32 %v5939, 1.0
        %v5948 = vadd.f32 %v5940, 1.0
        %v5949 = vmul.f32 %v5885, %v5941
        %v5950 = vmul.f32 %v5886, %v5942
        %v5951 = vmul.f32 %v5887, %v5943
        %v5952 = vmul.f32 %v5888, %v5944
        %v5953 = vmul.f32 %v5889, %v5945
        %v5954 = vmul.f32 %v5890, %v5946
        %v5955 = vmul.f32 %v5891, %v5947
        %v5956 = vmul.f32 %v5892, %v5948
        %v5957 = vld [vmem:[%s2 + $0x1a0] sm:$0xf]
        %v5958 = vld [vmem:[%s2 + $0x1a4] sm:$0xf]
        %v5959 = vld [vmem:[%s2 + $0x1a8] sm:$0xf]
        %v5960 = vld [vmem:[%s2 + $0x1ac] sm:$0xf]
        %v5961 = vpack.c.bf16 %v5950, %v5949
        %v5962 = vpack.c.bf16 %v5952, %v5951
        %v5963 = vpack.c.bf16 %v5954, %v5953
        %v5964 = vpack.c.bf16 %v5956, %v5955
        %v5965 = vld [vmem:[%s3 + $0x240] sm:$0x1]
        %v5966 = vperm.slane %v5965, 0
        %v5971 = vunpack.c.l.b16 %v5957
        %v5972 = vunpack.c.l.b16 %v5958
        %v5973 = vunpack.c.l.b16 %v5959
        %v5974 = vunpack.c.l.b16 %v5960
        %v5975 = vpack.c.b16 %v5972, %v5971
        %v5976 = vpack.c.b16 %v5974, %v5973
        %v5980 = vsel %vm387, %v5961, 0
        %v5983 = vsel %vm387, %v5962, 0
        %v5986 = vsel %vm387, %v5963, 0
        %v5989 = vsel %vm387, %v5964, 0
        %5991 = vmatpush.bf16.msra.mxu0 0
        %5992 = vmatpush.bf16.msra.mxu0 0
        %5993 = vmatpush.bf16.msra.mxu0 0
        %5994 = vmatpush.bf16.msra.mxu0 0
        %5995 = vmatpush.bf16.msra.mxu0 0
        %5996 = vmatpush.bf16.msra.mxu0 0
        %5997 = vmatpush.bf16.msra.mxu0 %v5976
        %5998 = vmatpush.bf16.msra.mxu0 %v5975
        %5999 = vmatmul.bf16.gmra.mxu0 %v5980
        %v6000 = vpop.f32.mrf.mxu0
        %v6001 = vadd.f32 %v5966, %v6000
        %v6002 = vpop.f32.mrf.mxu0
        %v6003 = vadd.f32 %v5966, %v6002
        %6004 = vmatmul.bf16.gmra.mxu0 %v5983
        %v6005 = vpop.f32.mrf.mxu0
        %v6006 = vadd.f32 %v5966, %v6005
        %v6007 = vpop.f32.mrf.mxu0
        %v6008 = vadd.f32 %v5966, %v6007
        %6009 = vmatmul.bf16.gmra.mxu0 %v5986
        %v6010 = vpop.f32.mrf.mxu0
        %v6011 = vadd.f32 %v5966, %v6010
        %v6012 = vpop.f32.mrf.mxu0
        %v6013 = vadd.f32 %v5966, %v6012
        %6014 = vmatmul.bf16.gmra.mxu0 %v5989
        %v6015 = vpop.f32.mrf.mxu0
        %v6016 = vadd.f32 %v5966, %v6015
        %v6017 = vpop.f32.mrf.mxu0
        %v6018 = vadd.f32 %v5966, %v6017
        %6019 = vdwg.mxu0
        %v6020 = vmul.f32 %v6001, 0.5
        %v6021 = vmul.f32 %v6003, 0.5
        %v6022 = vmul.f32 %v6006, 0.5
        %v6023 = vmul.f32 %v6008, 0.5
        %v6024 = vmul.f32 %v6011, 0.5
        %v6025 = vmul.f32 %v6013, 0.5
        %v6026 = vmul.f32 %v6016, 0.5
        %v6027 = vmul.f32 %v6018, 0.5
        %v6028 = vmul.f32 %v6001, 0.044715
        %v6029 = vmul.f32 %v6003, 0.044715
        %v6030 = vmul.f32 %v6006, 0.044715
        %v6031 = vmul.f32 %v6008, 0.044715
        %v6032 = vmul.f32 %v6011, 0.044715
        %v6033 = vmul.f32 %v6013, 0.044715
        %v6034 = vmul.f32 %v6016, 0.044715
        %v6035 = vmul.f32 %v6018, 0.044715
        %v6036 = vmul.f32 %v6028, %v6001
        %v6037 = vmul.f32 %v6029, %v6003
        %v6038 = vmul.f32 %v6030, %v6006
        %v6039 = vmul.f32 %v6031, %v6008
        %v6040 = vmul.f32 %v6032, %v6011
        %v6041 = vmul.f32 %v6033, %v6013
        %v6042 = vmul.f32 %v6034, %v6016
        %v6043 = vmul.f32 %v6035, %v6018
        %v6044 = vmul.f32 %v6036, %v6001
        %v6045 = vmul.f32 %v6037, %v6003
        %v6046 = vmul.f32 %v6038, %v6006
        %v6047 = vmul.f32 %v6039, %v6008
        %v6048 = vmul.f32 %v6040, %v6011
        %v6049 = vmul.f32 %v6041, %v6013
        %v6050 = vmul.f32 %v6042, %v6016
        %v6051 = vmul.f32 %v6043, %v6018
        %v6052 = vadd.f32 %v6001, %v6044
        %v6053 = vadd.f32 %v6003, %v6045
        %v6054 = vadd.f32 %v6006, %v6046
        %v6055 = vadd.f32 %v6008, %v6047
        %v6056 = vadd.f32 %v6011, %v6048
        %v6057 = vadd.f32 %v6013, %v6049
        %v6058 = vadd.f32 %v6016, %v6050
        %v6059 = vadd.f32 %v6018, %v6051
        %v6060 = vmul.f32 %v6052, 0.7978846
        %v6061 = vmul.f32 %v6053, 0.7978846
        %v6062 = vmul.f32 %v6054, 0.7978846
        %v6063 = vmul.f32 %v6055, 0.7978846
        %v6064 = vmul.f32 %v6056, 0.7978846
        %v6065 = vmul.f32 %v6057, 0.7978846
        %v6066 = vmul.f32 %v6058, 0.7978846
        %v6067 = vmul.f32 %v6059, 0.7978846
        %v6068 = vtanh.pop %v6060
        %v6069 = vtanh.pop %v6061
        %v6070 = vtanh.pop %v6062
        %v6071 = vtanh.pop %v6063
        %v6072 = vtanh.pop %v6064
        %v6073 = vtanh.pop %v6065
        %v6074 = vtanh.pop %v6066
        %v6075 = vtanh.pop %v6067
        %v6076 = vadd.f32 %v6068, 1.0
        %v6077 = vadd.f32 %v6069, 1.0
        %v6078 = vadd.f32 %v6070, 1.0
        %v6079 = vadd.f32 %v6071, 1.0
        %v6080 = vadd.f32 %v6072, 1.0
        %v6081 = vadd.f32 %v6073, 1.0
        %v6082 = vadd.f32 %v6074, 1.0
        %v6083 = vadd.f32 %v6075, 1.0
        %v6084 = vmul.f32 %v6020, %v6076
        %v6085 = vmul.f32 %v6021, %v6077
        %v6086 = vmul.f32 %v6022, %v6078
        %v6087 = vmul.f32 %v6023, %v6079
        %v6088 = vmul.f32 %v6024, %v6080
        %v6089 = vmul.f32 %v6025, %v6081
        %v6090 = vmul.f32 %v6026, %v6082
        %v6091 = vmul.f32 %v6027, %v6083
        %v6092 = vld [vmem:[%s2 + $0x240] sm:$0xf]
        %v6093 = vld [vmem:[%s2 + $0x244] sm:$0xf]
        %v6094 = vld [vmem:[%s2 + $0x248] sm:$0xf]
        %v6095 = vld [vmem:[%s2 + $0x24c] sm:$0xf]
        %v6096 = vld [vmem:[%s2 + $0x250] sm:$0xf]
        %v6097 = vld [vmem:[%s2 + $0x254] sm:$0xf]
        %v6098 = vld [vmem:[%s2 + $0x258] sm:$0xf]
        %v6099 = vld [vmem:[%s2 + $0x25c] sm:$0xf]
        %v6100 = vpack.c.bf16 %v5451, %v5451
        %v6109 = vunpack.c.l.b16 %v6092
        %v6110 = vunpack.c.l.b16 %v6093
        %v6111 = vunpack.c.l.b16 %v6094
        %v6112 = vunpack.c.l.b16 %v6095
        %v6113 = vunpack.c.l.b16 %v6096
        %v6114 = vunpack.c.l.b16 %v6097
        %v6115 = vunpack.c.l.b16 %v6098
        %v6116 = vunpack.c.l.b16 %v6099
        %v6117 = vpack.c.b16 %v6110, %v6109
        %v6118 = vpack.c.b16 %v6112, %v6111
        %v6119 = vpack.c.b16 %v6114, %v6113
        %v6120 = vpack.c.b16 %v6116, %v6115
        %vm6121 = vcmask 31744
        %v6123 = vsel %vm6121, %v6117, 0
        %v6126 = vsel %vm6121, %v6118, 0
        %v6129 = vsel %vm6121, %v6119, 0
        %v6132 = vsel %vm6121, %v6120, 0
        %v6135 = vsel %vm6121, %v6100, 0
        %6137 = vmatpush.bf16.xpose.msra.mxu0 0
        %6138 = vmatpush.bf16.xpose.msra.mxu0 0
        %6139 = vmatpush.bf16.xpose.msra.mxu0 0
        %6140 = vmatpush.bf16.xpose.msra.mxu0 0
        %6141 = vmatpush.bf16.xpose.msra.mxu0 0
        %6142 = vmatpush.bf16.xpose.msra.mxu0 0
        %6143 = vmatpush.bf16.xpose.msra.mxu0 0
        %6144 = vmatpush.bf16.xpose.msra.mxu0 %v6135
        %6145 = vmatmul.bf16.gmra.mxu0 %v6123
        %v6146 = vpop.f32.mrf.mxu0
        %v6147 = vadd.f32 0.0, %v6146
        %v6148 = vpop.f32.mrf.mxu0
        %v6149 = vadd.f32 0.0, %v6148
        %6150 = vmatmul.bf16.gmra.mxu0 %v6126
        %v6151 = vpop.f32.mrf.mxu0
        %v6152 = vadd.f32 0.0, %v6151
        %v6153 = vpop.f32.mrf.mxu0
        %v6154 = vadd.f32 0.0, %v6153
        %6155 = vmatmul.bf16.gmra.mxu0 %v6129
        %v6156 = vpop.f32.mrf.mxu0
        %v6157 = vadd.f32 0.0, %v6156
        %v6158 = vpop.f32.mrf.mxu0
        %v6159 = vadd.f32 0.0, %v6158
        %6160 = vmatmul.bf16.gmra.mxu0 %v6132
        %v6161 = vpop.f32.mrf.mxu0
        %v6162 = vadd.f32 0.0, %v6161
        %v6163 = vpop.f32.mrf.mxu0
        %v6164 = vadd.f32 0.0, %v6163
        %6165 = vdwg.mxu0
        %v6166 = vld [vmem:[%s2 + $0x260] sm:$0x3]
        %v6167 = vpack.c.bf16 %v6149, %v6147
        %v6168 = vpack.c.bf16 %v6154, %v6152
        %v6169 = vpack.c.bf16 %v6159, %v6157
        %v6170 = vpack.c.bf16 %v6164, %v6162
        %v6172 = vsel %vm6121, %v6167, 0
        %v6175 = vsel %vm6121, %v6168, 0
        %v6178 = vsel %vm6121, %v6169, 0
        %v6181 = vsel %vm6121, %v6170, 0
        %vm6183 = vcmask 1041408
        %v6185 = vsel %vm6183, %v6166, 0
        %6187 = vmatpush.bf16.msra.mxu0 0
        %6188 = vmatpush.bf16.msra.mxu0 0
        %6189 = vmatpush.bf16.msra.mxu0 0
        %6190 = vmatpush.bf16.msra.mxu0 0
        %6191 = vmatpush.bf16.msra.mxu0 0
        %6192 = vmatpush.bf16.msra.mxu0 0
        %6193 = vmatpush.bf16.msra.mxu0 0
        %6194 = vmatpush.bf16.msra.mxu0 %v6185
        %6195 = vmatmul.bf16.gmra.mxu0 %v6172
        %v6196 = vpop.f32.mrf.mxu0
        %v6197 = vadd.f32 0.0, %v6196
        %v6198 = vpop.f32.mrf.mxu0
        %v6199 = vadd.f32 0.0, %v6198
        %6200 = vmatmul.bf16.gmra.mxu0 %v6175
        %v6201 = vpop.f32.mrf.mxu0
        %v6202 = vadd.f32 0.0, %v6201
        %v6203 = vpop.f32.mrf.mxu0
        %v6204 = vadd.f32 0.0, %v6203
        %6205 = vmatmul.bf16.gmra.mxu0 %v6178
        %v6206 = vpop.f32.mrf.mxu0
        %v6207 = vadd.f32 0.0, %v6206
        %v6208 = vpop.f32.mrf.mxu0
        %v6209 = vadd.f32 0.0, %v6208
        %6210 = vmatmul.bf16.gmra.mxu0 %v6181
        %v6211 = vpop.f32.mrf.mxu0
        %v6212 = vadd.f32 0.0, %v6211
        %v6213 = vpop.f32.mrf.mxu0
        %v6214 = vadd.f32 0.0, %v6213
        %6215 = vdwg.mxu0
        %v6216 = vld [vmem:[%s3 + $0x268] sm:$0xff]
        %v6217 = vld [vmem:[%s3 + $0x270] sm:$0xff]
        %v6218 = vld [vmem:[%s3 + $0x278] sm:$0xff]
        %v6219 = vld [vmem:[%s3 + $0x280] sm:$0xff]
        %v6220 = vld [vmem:[%s3 + $0x288] sm:$0xff]
        %v6221 = vld [vmem:[%s3 + $0x290] sm:$0xff]
        %v6222 = vld [vmem:[%s3 + $0x298] sm:$0xff]
        %v6223 = vld [vmem:[%s3 + $0x2a0] sm:$0xff]
        %v6224 = vmul.f32 %v6197, %v6216
        %v6225 = vmul.f32 %v6199, %v6217
        %v6226 = vmul.f32 %v6202, %v6218
        %v6227 = vmul.f32 %v6204, %v6219
        %v6228 = vmul.f32 %v6207, %v6220
        %v6229 = vmul.f32 %v6209, %v6221
        %v6230 = vmul.f32 %v6212, %v6222
        %v6231 = vmul.f32 %v6214, %v6223
        %v6232 = vpack.c.bf16 %v6085, %v6084
        %v6233 = vpack.c.bf16 %v6087, %v6086
        %v6234 = vpack.c.bf16 %v6089, %v6088
        %v6235 = vpack.c.bf16 %v6091, %v6090
        %v6236 = vpack.c.bf16 %v6225, %v6224
        %v6237 = vpack.c.bf16 %v6227, %v6226
        %v6238 = vpack.c.bf16 %v6229, %v6228
        %v6239 = vpack.c.bf16 %v6231, %v6230
        %v6241 = vsel %vm727, %v6232, 0
        %v6244 = vsel %vm727, %v6233, 0
        %v6247 = vsel %vm727, %v6234, 0
        %v6250 = vsel %vm727, %v6235, 0
        %6252 = vmatpush.bf16.msra.mxu0 0
        %6253 = vmatpush.bf16.msra.mxu0 0
        %6254 = vmatpush.bf16.msra.mxu0 0
        %6255 = vmatpush.bf16.msra.mxu0 0
        %6256 = vmatpush.bf16.msra.mxu0 %v6239
        %6257 = vmatpush.bf16.msra.mxu0 %v6238
        %6258 = vmatpush.bf16.msra.mxu0 %v6237
        %6259 = vmatpush.bf16.msra.mxu0 %v6236
        %6260 = vmatmul.bf16.gmra.mxu0 %v6241
        %v6261 = vpop.f32.mrf.mxu0
        %v6262 = vadd.f32 0.0, %v6261
        %v6263 = vpop.f32.mrf.mxu0
        %v6264 = vadd.f32 0.0, %v6263
        %6265 = vmatmul.bf16.gmra.mxu0 %v6244
        %v6266 = vpop.f32.mrf.mxu0
        %v6267 = vadd.f32 0.0, %v6266
        %v6268 = vpop.f32.mrf.mxu0
        %v6269 = vadd.f32 0.0, %v6268
        %6270 = vmatmul.bf16.gmra.mxu0 %v6247
        %v6271 = vpop.f32.mrf.mxu0
        %v6272 = vadd.f32 0.0, %v6271
        %v6273 = vpop.f32.mrf.mxu0
        %v6274 = vadd.f32 0.0, %v6273
        %6275 = vmatmul.bf16.gmra.mxu0 %v6250
        %v6276 = vpop.f32.mrf.mxu0
        %v6277 = vadd.f32 0.0, %v6276
        %v6278 = vpop.f32.mrf.mxu0
        %v6279 = vadd.f32 0.0, %v6278
        %6280 = vdwg.mxu0
        %6281 = vst.msk [vmem:[%s284] sm:$0xff] %vm727, %v6262
        %6282 = vst.msk [vmem:[%s284 + $0x8] sm:$0xff] %vm727, %v6264
        %6283 = vst.msk [vmem:[%s284 + $0x10] sm:$0xff] %vm727, %v6267
        %6284 = vst.msk [vmem:[%s284 + $0x18] sm:$0xff] %vm727, %v6269
        %6285 = vst.msk [vmem:[%s284 + $0x20] sm:$0xff] %vm727, %v6272
        %6286 = vst.msk [vmem:[%s284 + $0x28] sm:$0xff] %vm727, %v6274
        %6287 = vst.msk [vmem:[%s284 + $0x30] sm:$0xff] %vm727, %v6277
        %6288 = vst.msk [vmem:[%s284 + $0x38] sm:$0xff] %vm727, %v6279
        %vm6289 = vcmask 24576
        %6290 = vst.msk [vmem:[%s287] sm:$0x1] %vm6289, %v5553
        %s6291 = sand.u32 %s123, 1
        %s6292 = scalar_lea.sflag [#allocation3], %s6291
        %s6293 = sand.u32 %s123, 1
        %s6294 = smul.addr %s6293, 64
        %s6295 = scalar_lea.vmem [#allocation2], %s6294
        %p6296 = scmp.lt.s32.totalorder %s21, 1
        %s6297 = scalar_select %p6296, %s21, 1
        %s6298 = smul.addr %s6297, 8
        %s6299 = smul.addr %s6298, 8
        %s6300 = scalar_lea.vmem %s5, %s6299
        %p6301 = scmp.lt.s32.totalorder %s21, 1
        %s6302 = scalar_select %p6301, %s21, 1
        %s6303 = scalar_lea.vmem %s6, %s6302
        // Predicated region
        $region37: #{_lambda_.1} parent=35 // pred_check
          %p6304 = pneg %p133
        $region38: #{_lambda_.1} parent=35 // pred_check_branch
          %6306 = sbr.rel (%p6304) target = $region40
        $region39: #{_lambda_.1} parent=35 // pred_region
          %6308 = vsyncadd %s6292, 0
          %s6309 = smul.addr %s21, 8
          %s6310 = smul.addr %s6309, 8
          %s6311 = scalar_lea.hbm %s4, %s6310
          %s6312 = sshll.u32 %s6295, 4
          %s6313 = int_to_ptr.vmem [resolvable:$true] %s6312
          %s6314 = sshll.u32 %s6311, 4
          %s6315 = int_to_ptr.hbm [resolvable:$true] %s6314
          %6320 = dma.vmem_to_hbm [thread:$0]  %s6313, 1024, %s6315, %s6292, 128, 128, 8
        $region40: #{_lambda_.1} parent=35 // pred_fallthru
          _
        // Predicated region
        $region41: #{_lambda_.1} parent=35 // pred_check
          %p6321 = pneg %p159
        $region42: #{_lambda_.1} parent=35 // pred_check_branch
          %6323 = sbr.rel (%p6321) target = $region44
        $region43: #{_lambda_.1} parent=35 // pred_region
          _
        $region44: #{_lambda_.1} parent=35 // pred_fallthru
          _
        // Predicated region
        $region45: #{_lambda_.1} parent=35 // pred_check
          %p6324 = pneg %p185
        $region46: #{_lambda_.1} parent=35 // pred_check_branch
          %6326 = sbr.rel (%p6324) target = $region48
        $region47: #{_lambda_.1} parent=35 // pred_region
          _
        $region48: #{_lambda_.1} parent=35 // pred_fallthru
          _
      $region36: #{_lambda_.1} parent=5 // pred_fallthru
        _
      %p6327 = scmp.le.s32.totalorder 2, %s16
      // Predicated region
      $region49: #{_lambda_.1} parent=5 // pred_check
        %p6328 = pneg %p6327
      $region50: #{_lambda_.1} parent=5 // pred_check_branch
        %6330 = sbr.rel (%p6328) target = $region52
      $region51: #{_lambda_.1} parent=5 // pred_region
        %s6331 = ssub.s32 %s16, 2
        // Predicated region
        $region53: #{_lambda_.1} parent=51 // pred_check
          %p6332 = pneg %p139
        $region54: #{_lambda_.1} parent=51 // pred_check_branch
          %6334 = sbr.rel (%p6332) target = $region56
        $region55: #{_lambda_.1} parent=51 // pred_region
          %s6335 = sand.u32 %s124, 1
          %s6336 = scalar_lea.sflag [#allocation3], %s6335
          %s6337 = sand.u32 %s124, 1
          %s6338 = smul.addr %s6337, 64
          %s6339 = scalar_lea.vmem [#allocation2], %s6338
          %6341 = dma.done %s6336, 1024
        $region56: #{_lambda_.1} parent=51 // pred_fallthru
          _
        // Predicated region
        $region57: #{_lambda_.1} parent=51 // pred_check
          %p6342 = pneg %p165
        $region58: #{_lambda_.1} parent=51 // pred_check_branch
          %6344 = sbr.rel (%p6342) target = $region60
        $region59: #{_lambda_.1} parent=51 // pred_region
          %p6345 = scmp.lt.s32.totalorder %s22, 1
          %s6346 = scalar_select %p6345, %s22, 1
          %s6347 = smul.addr %s6346, 8
          %s6348 = smul.addr %s6347, 8
          %s6349 = scalar_lea.vmem %s5, %s6348
        $region60: #{_lambda_.1} parent=51 // pred_fallthru
          _
        // Predicated region
        $region61: #{_lambda_.1} parent=51 // pred_check
          %p6350 = pneg %p191
        $region62: #{_lambda_.1} parent=51 // pred_check_branch
          %6352 = sbr.rel (%p6350) target = $region64
        $region63: #{_lambda_.1} parent=51 // pred_region
          %p6353 = scmp.lt.s32.totalorder %s22, 1
          %s6354 = scalar_select %p6353, %s22, 1
          %s6355 = scalar_lea.vmem %s6, %s6354
        $region64: #{_lambda_.1} parent=51 // pred_fallthru
          _
      $region52: #{_lambda_.1} parent=5 // pred_fallthru
        _
    $region6: #{_lambda_.1} parent=1 // loop_footer
      %s20 = sadd.s32 1, %s16
    $region7: #{_lambda_.1} parent=1 // loop_footer_branch
      %15 = sbr.rel target = $region3
    $region8: #{_lambda_.1} parent=1 // loop_exit
      _
    %6356 = vsyncpa [#allocation3], 1
    %s6357 = scalar_lea.sflag [#allocation3], 1
    %6358 = vsyncpa %s6357, 1

</llo_original>
